<compile_context>
chip_gen: v7x
topology: tpu7x:2x2x1
jax: 0.10.0
libtpu: 0.0.40
codegen_flags: <defaults>
</compile_context>

<pallas_src>
import functools

import numpy as np
import jax
import jax.numpy as jnp
from jax.experimental import pallas as pl
from jax.experimental.pallas import tpu as pltpu


# ----------------------------------------------------------------------------
# In-kernel helpers (operate on flat (C, H*W) activations, pixels on lanes)
# ----------------------------------------------------------------------------
def _shifted_taps_conv(x, w_ref, b_ref, w_row, mask_first, mask_last, relu):
    """3x3 circular conv on a flat (Cin, H*W) activation.

    w_ref: (9, Cout, Cin) VMEM (tap order ky,kx), b_ref: (Cout, 1).
    Row shifts are exact flat rolls by +-W; column shifts are flat rolls with a
    wrap-column fix-up select.  Per-tap matmul accumulation keeps everything
    lane-dense and relayout-free.
    """
    acc = None
    t = 0
    for dy in (-1, 0, 1):
        xr = x if dy == 0 else jnp.roll(x, -dy * w_row, axis=1)
        for dx in (-1, 0, 1):
            if dx == 0:
                tap = xr
            elif dx == 1:
                tap = jnp.where(mask_last,
                                jnp.roll(xr, w_row - 1, axis=1),
                                jnp.roll(xr, -1, axis=1))
            else:  # dx == -1
                tap = jnp.where(mask_first,
                                jnp.roll(xr, 1 - w_row, axis=1),
                                jnp.roll(xr, 1, axis=1))
            y = jnp.dot(w_ref[t], tap, preferred_element_type=jnp.float32)
            acc = y if acc is None else acc + y
            t += 1
    acc = acc + b_ref[...]
    if relu:
        acc = jnp.maximum(acc, 0.0)
    return acc


def _maxpool2x2(x, w_row, sel_ref):
    """2x2 stride-2 max pool on flat (C, H*W): two pairwise maxes via lane
    rolls, then a (H*W, H*W/4) 0/1 selection matmul for the downsample."""
    m = jnp.maximum(x, jnp.roll(x, -1, axis=1))
    m = jnp.maximum(m, jnp.roll(m, -w_row, axis=1))
    return jnp.dot(m, sel_ref[...], preferred_element_type=jnp.float32)


def _upconv2x2(x, w_ref, b_ref, usel_ref):
    """ConvTranspose2d(kernel=2, stride=2) on flat layout: 4 per-tap matmuls,
    each scattered to the upsampled grid by a 0/1 selection matmul
    (depth-to-space done in-kernel)."""
    out = None
    for k in range(4):
        t = jnp.dot(w_ref[k], x, preferred_element_type=jnp.float32)
        y = jnp.dot(t, usel_ref[k], preferred_element_type=jnp.float32)
        out = y if out is None else out + y
    return out + b_ref[...]


def _make_fused_kernel(depth, w_rows):
    """Builds the fully fused OpCorrection forward kernel (one batch element
    per grid step).  `w_rows[d]` is the image width at resolution level d."""

    def kernel(*refs):
        o_ref = refs[-1]
        it = iter(refs[:-1])
        x_ref, opA_ref = next(it), next(it)

        # TODO(synk): OperatorModule wraps an external ODL operator (no Pallas
        # equivalent); modeled here as a fixed per-pixel linear channel map.
        x = x_ref[0]                                           # (C_dom, HW0)
        op_x = jnp.dot(opA_ref[...], x, preferred_element_type=jnp.float32)

        level_masks = []
        feats = []
        cur = op_x
        # Contraction
        for d in range(depth):
            m = next(it)[...]
            masks = (m[0:1, :] > 0.5, m[1:2, :] > 0.5)  # col==0, col==W-1
            level_masks.append(masks)
            if d > 0:
                sel_ref = next(it)
                cur = _maxpool2x2(cur, w_rows[d - 1], sel_ref)
            w1, b1, w2, b2 = next(it), next(it), next(it), next(it)
            cur = _shifted_taps_conv(cur, w1, b1, w_rows[d], *masks, relu=True)
            cur = _shifted_taps_conv(cur, w2, b2, w_rows[d], *masks, relu=True)
            feats.append(cur)

        # Expansion
        out = feats[-1]
        for d in reversed(range(depth - 1)):
            upw, upb, usel = next(it), next(it), next(it)
            up = _upconv2x2(out, upw, upb, usel)
            cat = jnp.concatenate([feats[d], up], axis=0)      # skip concat
            w1, b1, w2, b2 = next(it), next(it), next(it), next(it)
            out = _shifted_taps_conv(cat, w1, b1, w_rows[d], *level_masks[d],
                                     relu=True)
            out = _shifted_taps_conv(out, w2, b2, w_rows[d], *level_masks[d],
                                     relu=True)

        # Segmentation 1x1 conv fused with the `+ op_x` residual add.
        segw, segb = next(it), next(it)
        y = jnp.dot(segw[...], out, preferred_element_type=jnp.float32)
        y = y + segb[...] + op_x
        o_ref[0] = y.astype(o_ref.dtype)

    return kernel


# ----------------------------------------------------------------------------
# Host-side (trace-time) constant builders and weight re-layout
# ----------------------------------------------------------------------------
def _pool_select(h, w):
    """(H*W, H*W/4) 0/1 matrix selecting the top-left pixel of each 2x2 cell."""
    h2, w2 = h // 2, w // 2
    s = np.zeros((h * w, h2 * w2), np.float32)
    for i in range(h2):
        for j in range(w2):
            s[(2 * i) * w + 2 * j, i * w2 + j] = 1.0
    return jnp.asarray(s)


def _upsample_select(h2, w2):
    """(4, H2*W2, 4*H2*W2) 0/1 scatter matrices for the 2x2 stride-2 up-conv."""
    w = 2 * w2
    u = np.zeros((4, h2 * w2, 4 * h2 * w2), np.float32)
    for dy in range(2):
        for dx in range(2):
            k = dy * 2 + dx
            for i in range(h2):
                for j in range(w2):
                    u[k, i * w2 + j, (2 * i + dy) * w + 2 * j + dx] = 1.0
    return jnp.asarray(u)


def _col_masks(h, w):
    """Row 0: flat positions in image column 0; row 1: in column W-1."""
    col = np.arange(h * w) % w
    m = np.zeros((2, h * w), np.float32)
    m[0, col == 0] = 1.0
    m[1, col == w - 1] = 1.0
    return jnp.asarray(m)


def _prep_w(w):
    """(kh, kw, Cin, Cout) HWIO -> (kh*kw, Cout, Cin) matmul-ready taps."""
    kh, kw, cin, cout = w.shape
    return jnp.transpose(w.reshape(kh * kw, cin, cout), (0, 2, 1))


def _prep_b(b):
    return b.reshape(-1, 1)


# ----------------------------------------------------------------------------
# Fused forward (single pallas_call, grid over batch)
# ----------------------------------------------------------------------------
def op_correction(x_nchw, op_A, params, depth):
    N, c_dom, H, W = x_nchw.shape
    c_range = op_A.shape[-1]
    hw0 = H * W
    w_rows = [W >> d for d in range(depth)]
    h_rows = [H >> d for d in range(depth)]

    # Ordered input list (must match the kernel's unpacking order).
    inputs = [x_nchw.reshape(N, c_dom, hw0), jnp.transpose(op_A)]
    for d in range(depth):
        inputs.append(_col_masks(h_rows[d], w_rows[d]))
        if d > 0:
            inputs.append(_pool_select(h_rows[d - 1], w_rows[d - 1]))
        w1, b1, w2, b2 = params["contraction"][d]
        inputs += [_prep_w(w1), _prep_b(b1), _prep_w(w2), _prep_b(b2)]
    for d in reversed(range(depth - 1)):
        uw, ub = params["upconvs"][d]
        inputs += [_prep_w(uw), _prep_b(ub),
                   _upsample_select(h_rows[d + 1], w_rows[d + 1])]
        w1, b1, w2, b2 = params["expansion"][d]
        inputs += [_prep_w(w1), _prep_b(b1), _prep_w(w2), _prep_b(b2)]
    sw, sb = params["seg"]
    inputs += [jnp.transpose(sw), _prep_b(sb)]

    def _const_spec(arr):
        nd = arr.ndim
        return pl.BlockSpec(arr.shape, lambda n, _nd=nd: (0,) * _nd)

    in_specs = [pl.BlockSpec((1, c_dom, hw0), lambda n: (n, 0, 0))]
    in_specs += [_const_spec(a) for a in inputs[1:]]
    out_spec = pl.BlockSpec((1, c_range, hw0), lambda n: (n, 0, 0))

    y_flat = pl.pallas_call(
        _make_fused_kernel(depth, w_rows),
        out_shape=jax.ShapeDtypeStruct((N, c_range, hw0), x_nchw.dtype),
        grid=(N,),
        in_specs=in_specs,
        out_specs=out_spec,
        compiler_params=pltpu.CompilerParams(
            dimension_semantics=("parallel",)),
    )(*inputs)
    return y_flat.reshape(N, c_range, H, W)


# ----------------------------------------------------------------------------
# Pure-JAX reference (mirrors the PyTorch module) for a correctness check
# ----------------------------------------------------------------------------
def _ref_conv3x3(x, w, b):
    xp = jnp.pad(x, ((0, 0), (0, 0), (1, 1), (1, 1)), mode="wrap")
    y = jax.lax.conv_general_dilated(
        xp, w, window_strides=(1, 1), padding="VALID",
        dimension_numbers=("NCHW", "HWIO", "NCHW"))
    return jnp.maximum(y + b[None, :, None, None], 0.0)


def _ref_block(x, p):
    w1, b1, w2, b2 = p
    return _ref_conv3x3(_ref_conv3x3(x, w1, b1), w2, b2)


def _ref_pool(x):
    n, c, h, w = x.shape
    return x.reshape(n, c, h // 2, 2, w // 2, 2).max(axis=(3, 5))


def _ref_upconv(x, uw, ub):
    n, _, h, w = x.shape
    cout = uw.shape[-1]
    y = jnp.einsum("nchw,abco->nohawb", x, uw).reshape(n, cout, 2 * h, 2 * w)
    return y + ub[None, :, None, None]


def op_correction_reference(x, op_A, params, depth):
    op_x = jnp.einsum("nchw,co->nohw", x, op_A)
    feats = [_ref_block(op_x, params["contraction"][0])]
    for d in range(1, depth):
        feats.append(_ref_block(_ref_pool(feats[-1]), params["contraction"][d]))
    out = feats[-1]
    for d in reversed(range(depth - 1)):
        uw, ub = params["upconvs"][d]
        up = _ref_upconv(out, uw, ub)
        out = _ref_block(jnp.concatenate([feats[d], up], axis=1),
                         params["expansion"][d])
    sw, sb = params["seg"]
    return jnp.einsum("nchw,co->nohw", out, sw) + sb[None, :, None, None] + op_x


# ----------------------------------------------------------------------------
# Deterministic parameter init (synthetic; shapes follow the PyTorch module)
# ----------------------------------------------------------------------------
def _init_conv(key, cin, cout, k):
    kw, kb = jax.random.split(key)
    w = jax.random.normal(kw, (k, k, cin, cout), jnp.float32) / jnp.sqrt(
        float(cin * k * k))
    b = 0.01 * jax.random.normal(kb, (cout,), jnp.float32)
    return w, b


def init_unet_params(key, in_channels, min_out_channels, depth):
    keys = iter(jax.random.split(key, 8 * depth + 8))
    params = {"contraction": [], "expansion": [], "upconvs": []}
    cin, cout = in_channels, min_out_channels
    for _ in range(depth):
        w1, b1 = _init_conv(next(keys), cin, cout, 3)
        w2, b2 = _init_conv(next(keys), cout, cout, 3)
        params["contraction"].append((w1, b1, w2, b2))
        cin, cout = cout, cout * 2
    cout = min_out_channels
    for _ in range(depth - 1):
        w1, b1 = _init_conv(next(keys), 2 * cout, cout, 3)
        w2, b2 = _init_conv(next(keys), cout, cout, 3)
        params["expansion"].append((w1, b1, w2, b2))
        # TODO(synk): verify PyTorch ConvTranspose2d weight-layout transpose if
        # real checkpoints are ever loaded (synthetic HWIO init here).
        uw, ub = _init_conv(next(keys), 2 * cout, cout, 2)
        params["upconvs"].append((uw, ub))
        cout *= 2
    sw, sb = _init_conv(next(keys), min_out_channels, in_channels, 1)
    params["seg"] = (sw[0, 0], sb)  # (min_out_channels, in_channels)
    return params


# ----------------------------------------------------------------------------
if __name__ == "__main__":
    key = jax.random.PRNGKey(0)
    k_in, k_op, k_params = jax.random.split(key, 3)

    N, C_dom, H, W = 2, 3, 16, 16     # operator-domain input (NCHW)
    C_range = 4                        # operator.range.shape[0] -> unet in_channels
    min_out_channels, depth = 8, 2

    x = jax.random.normal(k_in, (N, C_dom, H, W), jnp.float32)
    op_A = 0.3 * jax.random.normal(k_op, (C_dom, C_range), jnp.float32)
    params = init_unet_params(k_params, C_range, min_out_channels, depth)

    fn = jax.jit(functools.partial(op_correction, depth=depth))
    y = fn(x, op_A, params)
    jax.block_until_ready(y)

    assert y.shape == (N, C_range, H, W), y.shape
    assert bool(jnp.all(jnp.isfinite(y)))

    y_ref = jax.jit(functools.partial(op_correction_reference, depth=depth))(
        x, op_A, params)
    err = float(jnp.max(jnp.abs(y - y_ref)))
    assert err < 5e-2, f"max abs err vs reference: {err}"
    print("KERNEL_OK")
</pallas_src>

<mosaic_0001>
module attributes {stable_mosaic.version = 11 : i64} {
  func.func @kernel(%arg0: i32, %arg1: memref<1x3x256xf32, #tpu.memory_space<vmem>>, %arg2: memref<4x3xf32, #tpu.memory_space<vmem>>, %arg3: memref<2x256xf32, #tpu.memory_space<vmem>>, %arg4: memref<9x8x4xf32, #tpu.memory_space<vmem>>, %arg5: memref<8x1xf32, #tpu.memory_space<vmem>>, %arg6: memref<9x8x8xf32, #tpu.memory_space<vmem>>, %arg7: memref<8x1xf32, #tpu.memory_space<vmem>>, %arg8: memref<2x64xf32, #tpu.memory_space<vmem>>, %arg9: memref<256x64xf32, #tpu.memory_space<vmem>>, %arg10: memref<9x16x8xf32, #tpu.memory_space<vmem>>, %arg11: memref<16x1xf32, #tpu.memory_space<vmem>>, %arg12: memref<9x16x16xf32, #tpu.memory_space<vmem>>, %arg13: memref<16x1xf32, #tpu.memory_space<vmem>>, %arg14: memref<4x8x16xf32, #tpu.memory_space<vmem>>, %arg15: memref<8x1xf32, #tpu.memory_space<vmem>>, %arg16: memref<4x64x256xf32, #tpu.memory_space<vmem>>, %arg17: memref<9x8x16xf32, #tpu.memory_space<vmem>>, %arg18: memref<8x1xf32, #tpu.memory_space<vmem>>, %arg19: memref<9x8x8xf32, #tpu.memory_space<vmem>>, %arg20: memref<8x1xf32, #tpu.memory_space<vmem>>, %arg21: memref<4x8xf32, #tpu.memory_space<vmem>>, %arg22: memref<4x1xf32, #tpu.memory_space<vmem>>, %arg23: memref<1x4x256xf32, #tpu.memory_space<vmem>>) attributes {dimension_semantics = [#tpu.dimension_semantics<parallel>], iteration_bounds = array<i64: 2>, scalar_prefetch = 0 : i64, scratch_operands = 0 : i64, tpu.core_type = #tpu.core_type<tc>, window_params = [{transform_indices = @transform_0, window_bounds = array<i64: 1, 3, 256>}, {pipeline_mode = #tpu.pipeline_mode<synchronous>, transform_indices = @transform_1, window_bounds = array<i64: 4, 3>}, {pipeline_mode = #tpu.pipeline_mode<synchronous>, transform_indices = @transform_2, window_bounds = array<i64: 2, 256>}, {pipeline_mode = #tpu.pipeline_mode<synchronous>, transform_indices = @transform_3, window_bounds = array<i64: 9, 8, 4>}, {pipeline_mode = #tpu.pipeline_mode<synchronous>, transform_indices = @transform_4, window_bounds = array<i64: 8, 1>}, {pipeline_mode = #tpu.pipeline_mode<synchronous>, transform_indices = @transform_5, window_bounds = array<i64: 9, 8, 8>}, {pipeline_mode = #tpu.pipeline_mode<synchronous>, transform_indices = @transform_6, window_bounds = array<i64: 8, 1>}, {pipeline_mode = #tpu.pipeline_mode<synchronous>, transform_indices = @transform_7, window_bounds = array<i64: 2, 64>}, {pipeline_mode = #tpu.pipeline_mode<synchronous>, transform_indices = @transform_8, window_bounds = array<i64: 256, 64>}, {pipeline_mode = #tpu.pipeline_mode<synchronous>, transform_indices = @transform_9, window_bounds = array<i64: 9, 16, 8>}, {pipeline_mode = #tpu.pipeline_mode<synchronous>, transform_indices = @transform_10, window_bounds = array<i64: 16, 1>}, {pipeline_mode = #tpu.pipeline_mode<synchronous>, transform_indices = @transform_11, window_bounds = array<i64: 9, 16, 16>}, {pipeline_mode = #tpu.pipeline_mode<synchronous>, transform_indices = @transform_12, window_bounds = array<i64: 16, 1>}, {pipeline_mode = #tpu.pipeline_mode<synchronous>, transform_indices = @transform_13, window_bounds = array<i64: 4, 8, 16>}, {pipeline_mode = #tpu.pipeline_mode<synchronous>, transform_indices = @transform_14, window_bounds = array<i64: 8, 1>}, {pipeline_mode = #tpu.pipeline_mode<synchronous>, transform_indices = @transform_15, window_bounds = array<i64: 4, 64, 256>}, {pipeline_mode = #tpu.pipeline_mode<synchronous>, transform_indices = @transform_16, window_bounds = array<i64: 9, 8, 16>}, {pipeline_mode = #tpu.pipeline_mode<synchronous>, transform_indices = @transform_17, window_bounds = array<i64: 8, 1>}, {pipeline_mode = #tpu.pipeline_mode<synchronous>, transform_indices = @transform_18, window_bounds = array<i64: 9, 8, 8>}, {pipeline_mode = #tpu.pipeline_mode<synchronous>, transform_indices = @transform_19, window_bounds = array<i64: 8, 1>}, {pipeline_mode = #tpu.pipeline_mode<synchronous>, transform_indices = @transform_20, window_bounds = array<i64: 4, 8>}, {pipeline_mode = #tpu.pipeline_mode<synchronous>, transform_indices = @transform_21, window_bounds = array<i64: 4, 1>}, {transform_indices = @transform_22, window_bounds = array<i64: 1, 4, 256>}]} {
    %c0 = arith.constant 0 : index
    %c0_0 = arith.constant 0 : index
    %c0_1 = arith.constant 0 : index
    %0 = vector.load %arg1[%c0, %c0_0, %c0_1] : memref<1x3x256xf32, #tpu.memory_space<vmem>>, vector<1x3x256xf32>
    %1 = vector.shape_cast %0 : vector<1x3x256xf32> to vector<3x256xf32>
    %c0_2 = arith.constant 0 : index
    %c0_3 = arith.constant 0 : index
    %2 = vector.load %arg2[%c0_2, %c0_3] : memref<4x3xf32, #tpu.memory_space<vmem>>, vector<4x3xf32>
    %cst = arith.constant dense<0.000000e+00> : vector<4x256xf32>
    %3 = tpu.matmul %2, %1, %cst {dimension_numbers = #tpu.dot_dimension_numbers<[1], [0], [0], [1], [0, 0, 1, 1], [], []>} : vector<4x3xf32>, vector<3x256xf32>, vector<4x256xf32> -> vector<4x256xf32>
    %c0_4 = arith.constant 0 : index
    %c0_5 = arith.constant 0 : index
    %4 = vector.load %arg3[%c0_4, %c0_5] : memref<2x256xf32, #tpu.memory_space<vmem>>, vector<2x256xf32>
    %5 = vector.extract_strided_slice %4 {offsets = [0, 0], sizes = [1, 256], strides = [1, 1]} : vector<2x256xf32> to vector<1x256xf32>
    %cst_6 = arith.constant 5.000000e-01 : f32
    %6 = vector.broadcast %cst_6 : f32 to vector<1x256xf32>
    %7 = arith.cmpf ogt, %5, %6 : vector<1x256xf32>
    %8 = vector.extract_strided_slice %4 {offsets = [1, 0], sizes = [1, 256], strides = [1, 1]} : vector<2x256xf32> to vector<1x256xf32>
    %cst_7 = arith.constant 5.000000e-01 : f32
    %9 = vector.broadcast %cst_7 : f32 to vector<1x256xf32>
    %10 = arith.cmpf ogt, %8, %9 : vector<1x256xf32>
    %11 = vector.extract_strided_slice %3 {offsets = [0, 240], sizes = [4, 16], strides = [1, 1]} : vector<4x256xf32> to vector<4x16xf32>
    %12 = vector.extract_strided_slice %3 {offsets = [0, 0], sizes = [4, 240], strides = [1, 1]} : vector<4x256xf32> to vector<4x240xf32>
    %13 = tpu.concatenate %11, %12 in 1 : vector<4x16xf32>, vector<4x240xf32> -> vector<4x256xf32>
    %14 = vector.extract_strided_slice %13 {offsets = [0, 15], sizes = [4, 241], strides = [1, 1]} : vector<4x256xf32> to vector<4x241xf32>
    %15 = vector.extract_strided_slice %13 {offsets = [0, 0], sizes = [4, 15], strides = [1, 1]} : vector<4x256xf32> to vector<4x15xf32>
    %16 = tpu.concatenate %14, %15 in 1 : vector<4x241xf32>, vector<4x15xf32> -> vector<4x256xf32>
    %17 = vector.extract_strided_slice %13 {offsets = [0, 255], sizes = [4, 1], strides = [1, 1]} : vector<4x256xf32> to vector<4x1xf32>
    %18 = vector.extract_strided_slice %13 {offsets = [0, 0], sizes = [4, 255], strides = [1, 1]} : vector<4x256xf32> to vector<4x255xf32>
    %19 = tpu.concatenate %17, %18 in 1 : vector<4x1xf32>, vector<4x255xf32> -> vector<4x256xf32>
    %20 = vector.shape_cast %7 : vector<1x256xi1> to vector<1x256xi1>
    %21 = vector.broadcast %20 : vector<1x256xi1> to vector<4x256xi1>
    %22 = arith.select %21, %16, %19 : vector<4x256xi1>, vector<4x256xf32>
    %c0_8 = arith.constant 0 : index
    %c0_9 = arith.constant 0 : index
    %c0_10 = arith.constant 0 : index
    %23 = vector.load %arg4[%c0_8, %c0_9, %c0_10] : memref<9x8x4xf32, #tpu.memory_space<vmem>>, vector<1x8x4xf32>
    %24 = vector.shape_cast %23 : vector<1x8x4xf32> to vector<8x4xf32>
    %cst_11 = arith.constant dense<0.000000e+00> : vector<8x256xf32>
    %25 = tpu.matmul %24, %22, %cst_11 {dimension_numbers = #tpu.dot_dimension_numbers<[1], [0], [0], [1], [0, 0, 1, 1], [], []>} : vector<8x4xf32>, vector<4x256xf32>, vector<8x256xf32> -> vector<8x256xf32>
    %c1 = arith.constant 1 : index
    %c0_12 = arith.constant 0 : index
    %c0_13 = arith.constant 0 : index
    %26 = vector.load %arg4[%c1, %c0_12, %c0_13] : memref<9x8x4xf32, #tpu.memory_space<vmem>>, vector<1x8x4xf32>
    %27 = vector.shape_cast %26 : vector<1x8x4xf32> to vector<8x4xf32>
    %cst_14 = arith.constant dense<0.000000e+00> : vector<8x256xf32>
    %28 = tpu.matmul %27, %13, %cst_14 {dimension_numbers = #tpu.dot_dimension_numbers<[1], [0], [0], [1], [0, 0, 1, 1], [], []>} : vector<8x4xf32>, vector<4x256xf32>, vector<8x256xf32> -> vector<8x256xf32>
    %29 = arith.addf %25, %28 : vector<8x256xf32>
    %30 = vector.extract_strided_slice %13 {offsets = [0, 241], sizes = [4, 15], strides = [1, 1]} : vector<4x256xf32> to vector<4x15xf32>
    %31 = vector.extract_strided_slice %13 {offsets = [0, 0], sizes = [4, 241], strides = [1, 1]} : vector<4x256xf32> to vector<4x241xf32>
    %32 = tpu.concatenate %30, %31 in 1 : vector<4x15xf32>, vector<4x241xf32> -> vector<4x256xf32>
    %33 = vector.extract_strided_slice %13 {offsets = [0, 1], sizes = [4, 255], strides = [1, 1]} : vector<4x256xf32> to vector<4x255xf32>
    %34 = vector.extract_strided_slice %13 {offsets = [0, 0], sizes = [4, 1], strides = [1, 1]} : vector<4x256xf32> to vector<4x1xf32>
    %35 = tpu.concatenate %33, %34 in 1 : vector<4x255xf32>, vector<4x1xf32> -> vector<4x256xf32>
    %36 = vector.shape_cast %10 : vector<1x256xi1> to vector<1x256xi1>
    %37 = vector.broadcast %36 : vector<1x256xi1> to vector<4x256xi1>
    %38 = arith.select %37, %32, %35 : vector<4x256xi1>, vector<4x256xf32>
    %c2 = arith.constant 2 : index
    %c0_15 = arith.constant 0 : index
    %c0_16 = arith.constant 0 : index
    %39 = vector.load %arg4[%c2, %c0_15, %c0_16] : memref<9x8x4xf32, #tpu.memory_space<vmem>>, vector<1x8x4xf32>
    %40 = vector.shape_cast %39 : vector<1x8x4xf32> to vector<8x4xf32>
    %cst_17 = arith.constant dense<0.000000e+00> : vector<8x256xf32>
    %41 = tpu.matmul %40, %38, %cst_17 {dimension_numbers = #tpu.dot_dimension_numbers<[1], [0], [0], [1], [0, 0, 1, 1], [], []>} : vector<8x4xf32>, vector<4x256xf32>, vector<8x256xf32> -> vector<8x256xf32>
    %42 = arith.addf %29, %41 : vector<8x256xf32>
    %43 = vector.extract_strided_slice %3 {offsets = [0, 15], sizes = [4, 241], strides = [1, 1]} : vector<4x256xf32> to vector<4x241xf32>
    %44 = vector.extract_strided_slice %3 {offsets = [0, 0], sizes = [4, 15], strides = [1, 1]} : vector<4x256xf32> to vector<4x15xf32>
    %45 = tpu.concatenate %43, %44 in 1 : vector<4x241xf32>, vector<4x15xf32> -> vector<4x256xf32>
    %46 = vector.extract_strided_slice %3 {offsets = [0, 255], sizes = [4, 1], strides = [1, 1]} : vector<4x256xf32> to vector<4x1xf32>
    %47 = vector.extract_strided_slice %3 {offsets = [0, 0], sizes = [4, 255], strides = [1, 1]} : vector<4x256xf32> to vector<4x255xf32>
    %48 = tpu.concatenate %46, %47 in 1 : vector<4x1xf32>, vector<4x255xf32> -> vector<4x256xf32>
    %49 = vector.shape_cast %7 : vector<1x256xi1> to vector<1x256xi1>
    %50 = vector.broadcast %49 : vector<1x256xi1> to vector<4x256xi1>
    %51 = arith.select %50, %45, %48 : vector<4x256xi1>, vector<4x256xf32>
    %c3 = arith.constant 3 : index
    %c0_18 = arith.constant 0 : index
    %c0_19 = arith.constant 0 : index
    %52 = vector.load %arg4[%c3, %c0_18, %c0_19] : memref<9x8x4xf32, #tpu.memory_space<vmem>>, vector<1x8x4xf32>
    %53 = vector.shape_cast %52 : vector<1x8x4xf32> to vector<8x4xf32>
    %cst_20 = arith.constant dense<0.000000e+00> : vector<8x256xf32>
    %54 = tpu.matmul %53, %51, %cst_20 {dimension_numbers = #tpu.dot_dimension_numbers<[1], [0], [0], [1], [0, 0, 1, 1], [], []>} : vector<8x4xf32>, vector<4x256xf32>, vector<8x256xf32> -> vector<8x256xf32>
    %55 = arith.addf %42, %54 : vector<8x256xf32>
    %c4 = arith.constant 4 : index
    %c0_21 = arith.constant 0 : index
    %c0_22 = arith.constant 0 : index
    %56 = vector.load %arg4[%c4, %c0_21, %c0_22] : memref<9x8x4xf32, #tpu.memory_space<vmem>>, vector<1x8x4xf32>
    %57 = vector.shape_cast %56 : vector<1x8x4xf32> to vector<8x4xf32>
    %cst_23 = arith.constant dense<0.000000e+00> : vector<8x256xf32>
    %58 = tpu.matmul %57, %3, %cst_23 {dimension_numbers = #tpu.dot_dimension_numbers<[1], [0], [0], [1], [0, 0, 1, 1], [], []>} : vector<8x4xf32>, vector<4x256xf32>, vector<8x256xf32> -> vector<8x256xf32>
    %59 = arith.addf %55, %58 : vector<8x256xf32>
    %60 = vector.extract_strided_slice %3 {offsets = [0, 241], sizes = [4, 15], strides = [1, 1]} : vector<4x256xf32> to vector<4x15xf32>
    %61 = vector.extract_strided_slice %3 {offsets = [0, 0], sizes = [4, 241], strides = [1, 1]} : vector<4x256xf32> to vector<4x241xf32>
    %62 = tpu.concatenate %60, %61 in 1 : vector<4x15xf32>, vector<4x241xf32> -> vector<4x256xf32>
    %63 = vector.extract_strided_slice %3 {offsets = [0, 1], sizes = [4, 255], strides = [1, 1]} : vector<4x256xf32> to vector<4x255xf32>
    %64 = vector.extract_strided_slice %3 {offsets = [0, 0], sizes = [4, 1], strides = [1, 1]} : vector<4x256xf32> to vector<4x1xf32>
    %65 = tpu.concatenate %63, %64 in 1 : vector<4x255xf32>, vector<4x1xf32> -> vector<4x256xf32>
    %66 = vector.shape_cast %10 : vector<1x256xi1> to vector<1x256xi1>
    %67 = vector.broadcast %66 : vector<1x256xi1> to vector<4x256xi1>
    %68 = arith.select %67, %62, %65 : vector<4x256xi1>, vector<4x256xf32>
    %c5 = arith.constant 5 : index
    %c0_24 = arith.constant 0 : index
    %c0_25 = arith.constant 0 : index
    %69 = vector.load %arg4[%c5, %c0_24, %c0_25] : memref<9x8x4xf32, #tpu.memory_space<vmem>>, vector<1x8x4xf32>
    %70 = vector.shape_cast %69 : vector<1x8x4xf32> to vector<8x4xf32>
    %cst_26 = arith.constant dense<0.000000e+00> : vector<8x256xf32>
    %71 = tpu.matmul %70, %68, %cst_26 {dimension_numbers = #tpu.dot_dimension_numbers<[1], [0], [0], [1], [0, 0, 1, 1], [], []>} : vector<8x4xf32>, vector<4x256xf32>, vector<8x256xf32> -> vector<8x256xf32>
    %72 = arith.addf %59, %71 : vector<8x256xf32>
    %73 = vector.extract_strided_slice %3 {offsets = [0, 16], sizes = [4, 240], strides = [1, 1]} : vector<4x256xf32> to vector<4x240xf32>
    %74 = vector.extract_strided_slice %3 {offsets = [0, 0], sizes = [4, 16], strides = [1, 1]} : vector<4x256xf32> to vector<4x16xf32>
    %75 = tpu.concatenate %73, %74 in 1 : vector<4x240xf32>, vector<4x16xf32> -> vector<4x256xf32>
    %76 = vector.extract_strided_slice %75 {offsets = [0, 15], sizes = [4, 241], strides = [1, 1]} : vector<4x256xf32> to vector<4x241xf32>
    %77 = vector.extract_strided_slice %75 {offsets = [0, 0], sizes = [4, 15], strides = [1, 1]} : vector<4x256xf32> to vector<4x15xf32>
    %78 = tpu.concatenate %76, %77 in 1 : vector<4x241xf32>, vector<4x15xf32> -> vector<4x256xf32>
    %79 = vector.extract_strided_slice %75 {offsets = [0, 255], sizes = [4, 1], strides = [1, 1]} : vector<4x256xf32> to vector<4x1xf32>
    %80 = vector.extract_strided_slice %75 {offsets = [0, 0], sizes = [4, 255], strides = [1, 1]} : vector<4x256xf32> to vector<4x255xf32>
    %81 = tpu.concatenate %79, %80 in 1 : vector<4x1xf32>, vector<4x255xf32> -> vector<4x256xf32>
    %82 = vector.shape_cast %7 : vector<1x256xi1> to vector<1x256xi1>
    %83 = vector.broadcast %82 : vector<1x256xi1> to vector<4x256xi1>
    %84 = arith.select %83, %78, %81 : vector<4x256xi1>, vector<4x256xf32>
    %c6 = arith.constant 6 : index
    %c0_27 = arith.constant 0 : index
    %c0_28 = arith.constant 0 : index
    %85 = vector.load %arg4[%c6, %c0_27, %c0_28] : memref<9x8x4xf32, #tpu.memory_space<vmem>>, vector<1x8x4xf32>
    %86 = vector.shape_cast %85 : vector<1x8x4xf32> to vector<8x4xf32>
    %cst_29 = arith.constant dense<0.000000e+00> : vector<8x256xf32>
    %87 = tpu.matmul %86, %84, %cst_29 {dimension_numbers = #tpu.dot_dimension_numbers<[1], [0], [0], [1], [0, 0, 1, 1], [], []>} : vector<8x4xf32>, vector<4x256xf32>, vector<8x256xf32> -> vector<8x256xf32>
    %88 = arith.addf %72, %87 : vector<8x256xf32>
    %c7 = arith.constant 7 : index
    %c0_30 = arith.constant 0 : index
    %c0_31 = arith.constant 0 : index
    %89 = vector.load %arg4[%c7, %c0_30, %c0_31] : memref<9x8x4xf32, #tpu.memory_space<vmem>>, vector<1x8x4xf32>
    %90 = vector.shape_cast %89 : vector<1x8x4xf32> to vector<8x4xf32>
    %cst_32 = arith.constant dense<0.000000e+00> : vector<8x256xf32>
    %91 = tpu.matmul %90, %75, %cst_32 {dimension_numbers = #tpu.dot_dimension_numbers<[1], [0], [0], [1], [0, 0, 1, 1], [], []>} : vector<8x4xf32>, vector<4x256xf32>, vector<8x256xf32> -> vector<8x256xf32>
    %92 = arith.addf %88, %91 : vector<8x256xf32>
    %93 = vector.extract_strided_slice %75 {offsets = [0, 241], sizes = [4, 15], strides = [1, 1]} : vector<4x256xf32> to vector<4x15xf32>
    %94 = vector.extract_strided_slice %75 {offsets = [0, 0], sizes = [4, 241], strides = [1, 1]} : vector<4x256xf32> to vector<4x241xf32>
    %95 = tpu.concatenate %93, %94 in 1 : vector<4x15xf32>, vector<4x241xf32> -> vector<4x256xf32>
    %96 = vector.extract_strided_slice %75 {offsets = [0, 1], sizes = [4, 255], strides = [1, 1]} : vector<4x256xf32> to vector<4x255xf32>
    %97 = vector.extract_strided_slice %75 {offsets = [0, 0], sizes = [4, 1], strides = [1, 1]} : vector<4x256xf32> to vector<4x1xf32>
    %98 = tpu.concatenate %96, %97 in 1 : vector<4x255xf32>, vector<4x1xf32> -> vector<4x256xf32>
    %99 = vector.shape_cast %10 : vector<1x256xi1> to vector<1x256xi1>
    %100 = vector.broadcast %99 : vector<1x256xi1> to vector<4x256xi1>
    %101 = arith.select %100, %95, %98 : vector<4x256xi1>, vector<4x256xf32>
    %c8 = arith.constant 8 : index
    %c0_33 = arith.constant 0 : index
    %c0_34 = arith.constant 0 : index
    %102 = vector.load %arg4[%c8, %c0_33, %c0_34] : memref<9x8x4xf32, #tpu.memory_space<vmem>>, vector<1x8x4xf32>
    %103 = vector.shape_cast %102 : vector<1x8x4xf32> to vector<8x4xf32>
    %cst_35 = arith.constant dense<0.000000e+00> : vector<8x256xf32>
    %104 = tpu.matmul %103, %101, %cst_35 {dimension_numbers = #tpu.dot_dimension_numbers<[1], [0], [0], [1], [0, 0, 1, 1], [], []>} : vector<8x4xf32>, vector<4x256xf32>, vector<8x256xf32> -> vector<8x256xf32>
    %105 = arith.addf %92, %104 : vector<8x256xf32>
    %c0_36 = arith.constant 0 : index
    %c0_37 = arith.constant 0 : index
    %106 = vector.load %arg5[%c0_36, %c0_37] : memref<8x1xf32, #tpu.memory_space<vmem>>, vector<8x1xf32>
    %107 = vector.broadcast %106 : vector<8x1xf32> to vector<8x256xf32>
    %108 = arith.addf %105, %107 : vector<8x256xf32>
    %cst_38 = arith.constant 0.000000e+00 : f32
    %109 = vector.broadcast %cst_38 : f32 to vector<8x256xf32>
    %110 = arith.maximumf %108, %109 : vector<8x256xf32>
    %111 = vector.extract_strided_slice %110 {offsets = [0, 240], sizes = [8, 16], strides = [1, 1]} : vector<8x256xf32> to vector<8x16xf32>
    %112 = vector.extract_strided_slice %110 {offsets = [0, 0], sizes = [8, 240], strides = [1, 1]} : vector<8x256xf32> to vector<8x240xf32>
    %113 = tpu.concatenate %111, %112 in 1 : vector<8x16xf32>, vector<8x240xf32> -> vector<8x256xf32>
    %114 = vector.extract_strided_slice %113 {offsets = [0, 15], sizes = [8, 241], strides = [1, 1]} : vector<8x256xf32> to vector<8x241xf32>
    %115 = vector.extract_strided_slice %113 {offsets = [0, 0], sizes = [8, 15], strides = [1, 1]} : vector<8x256xf32> to vector<8x15xf32>
    %116 = tpu.concatenate %114, %115 in 1 : vector<8x241xf32>, vector<8x15xf32> -> vector<8x256xf32>
    %117 = vector.extract_strided_slice %113 {offsets = [0, 255], sizes = [8, 1], strides = [1, 1]} : vector<8x256xf32> to vector<8x1xf32>
    %118 = vector.extract_strided_slice %113 {offsets = [0, 0], sizes = [8, 255], strides = [1, 1]} : vector<8x256xf32> to vector<8x255xf32>
    %119 = tpu.concatenate %117, %118 in 1 : vector<8x1xf32>, vector<8x255xf32> -> vector<8x256xf32>
    %120 = vector.shape_cast %7 : vector<1x256xi1> to vector<1x256xi1>
    %121 = vector.broadcast %120 : vector<1x256xi1> to vector<8x256xi1>
    %122 = arith.select %121, %116, %119 : vector<8x256xi1>, vector<8x256xf32>
    %c0_39 = arith.constant 0 : index
    %c0_40 = arith.constant 0 : index
    %c0_41 = arith.constant 0 : index
    %123 = vector.load %arg6[%c0_39, %c0_40, %c0_41] : memref<9x8x8xf32, #tpu.memory_space<vmem>>, vector<1x8x8xf32>
    %124 = vector.shape_cast %123 : vector<1x8x8xf32> to vector<8x8xf32>
    %cst_42 = arith.constant dense<0.000000e+00> : vector<8x256xf32>
    %125 = tpu.matmul %124, %122, %cst_42 {dimension_numbers = #tpu.dot_dimension_numbers<[1], [0], [0], [1], [0, 0, 1, 1], [], []>} : vector<8x8xf32>, vector<8x256xf32>, vector<8x256xf32> -> vector<8x256xf32>
    %c1_43 = arith.constant 1 : index
    %c0_44 = arith.constant 0 : index
    %c0_45 = arith.constant 0 : index
    %126 = vector.load %arg6[%c1_43, %c0_44, %c0_45] : memref<9x8x8xf32, #tpu.memory_space<vmem>>, vector<1x8x8xf32>
    %127 = vector.shape_cast %126 : vector<1x8x8xf32> to vector<8x8xf32>
    %cst_46 = arith.constant dense<0.000000e+00> : vector<8x256xf32>
    %128 = tpu.matmul %127, %113, %cst_46 {dimension_numbers = #tpu.dot_dimension_numbers<[1], [0], [0], [1], [0, 0, 1, 1], [], []>} : vector<8x8xf32>, vector<8x256xf32>, vector<8x256xf32> -> vector<8x256xf32>
    %129 = arith.addf %125, %128 : vector<8x256xf32>
    %130 = vector.extract_strided_slice %113 {offsets = [0, 241], sizes = [8, 15], strides = [1, 1]} : vector<8x256xf32> to vector<8x15xf32>
    %131 = vector.extract_strided_slice %113 {offsets = [0, 0], sizes = [8, 241], strides = [1, 1]} : vector<8x256xf32> to vector<8x241xf32>
    %132 = tpu.concatenate %130, %131 in 1 : vector<8x15xf32>, vector<8x241xf32> -> vector<8x256xf32>
    %133 = vector.extract_strided_slice %113 {offsets = [0, 1], sizes = [8, 255], strides = [1, 1]} : vector<8x256xf32> to vector<8x255xf32>
    %134 = vector.extract_strided_slice %113 {offsets = [0, 0], sizes = [8, 1], strides = [1, 1]} : vector<8x256xf32> to vector<8x1xf32>
    %135 = tpu.concatenate %133, %134 in 1 : vector<8x255xf32>, vector<8x1xf32> -> vector<8x256xf32>
    %136 = vector.shape_cast %10 : vector<1x256xi1> to vector<1x256xi1>
    %137 = vector.broadcast %136 : vector<1x256xi1> to vector<8x256xi1>
    %138 = arith.select %137, %132, %135 : vector<8x256xi1>, vector<8x256xf32>
    %c2_47 = arith.constant 2 : index
    %c0_48 = arith.constant 0 : index
    %c0_49 = arith.constant 0 : index
    %139 = vector.load %arg6[%c2_47, %c0_48, %c0_49] : memref<9x8x8xf32, #tpu.memory_space<vmem>>, vector<1x8x8xf32>
    %140 = vector.shape_cast %139 : vector<1x8x8xf32> to vector<8x8xf32>
    %cst_50 = arith.constant dense<0.000000e+00> : vector<8x256xf32>
    %141 = tpu.matmul %140, %138, %cst_50 {dimension_numbers = #tpu.dot_dimension_numbers<[1], [0], [0], [1], [0, 0, 1, 1], [], []>} : vector<8x8xf32>, vector<8x256xf32>, vector<8x256xf32> -> vector<8x256xf32>
    %142 = arith.addf %129, %141 : vector<8x256xf32>
    %143 = vector.extract_strided_slice %110 {offsets = [0, 15], sizes = [8, 241], strides = [1, 1]} : vector<8x256xf32> to vector<8x241xf32>
    %144 = vector.extract_strided_slice %110 {offsets = [0, 0], sizes = [8, 15], strides = [1, 1]} : vector<8x256xf32> to vector<8x15xf32>
    %145 = tpu.concatenate %143, %144 in 1 : vector<8x241xf32>, vector<8x15xf32> -> vector<8x256xf32>
    %146 = vector.extract_strided_slice %110 {offsets = [0, 255], sizes = [8, 1], strides = [1, 1]} : vector<8x256xf32> to vector<8x1xf32>
    %147 = vector.extract_strided_slice %110 {offsets = [0, 0], sizes = [8, 255], strides = [1, 1]} : vector<8x256xf32> to vector<8x255xf32>
    %148 = tpu.concatenate %146, %147 in 1 : vector<8x1xf32>, vector<8x255xf32> -> vector<8x256xf32>
    %149 = vector.shape_cast %7 : vector<1x256xi1> to vector<1x256xi1>
    %150 = vector.broadcast %149 : vector<1x256xi1> to vector<8x256xi1>
    %151 = arith.select %150, %145, %148 : vector<8x256xi1>, vector<8x256xf32>
    %c3_51 = arith.constant 3 : index
    %c0_52 = arith.constant 0 : index
    %c0_53 = arith.constant 0 : index
    %152 = vector.load %arg6[%c3_51, %c0_52, %c0_53] : memref<9x8x8xf32, #tpu.memory_space<vmem>>, vector<1x8x8xf32>
    %153 = vector.shape_cast %152 : vector<1x8x8xf32> to vector<8x8xf32>
    %cst_54 = arith.constant dense<0.000000e+00> : vector<8x256xf32>
    %154 = tpu.matmul %153, %151, %cst_54 {dimension_numbers = #tpu.dot_dimension_numbers<[1], [0], [0], [1], [0, 0, 1, 1], [], []>} : vector<8x8xf32>, vector<8x256xf32>, vector<8x256xf32> -> vector<8x256xf32>
    %155 = arith.addf %142, %154 : vector<8x256xf32>
    %c4_55 = arith.constant 4 : index
    %c0_56 = arith.constant 0 : index
    %c0_57 = arith.constant 0 : index
    %156 = vector.load %arg6[%c4_55, %c0_56, %c0_57] : memref<9x8x8xf32, #tpu.memory_space<vmem>>, vector<1x8x8xf32>
    %157 = vector.shape_cast %156 : vector<1x8x8xf32> to vector<8x8xf32>
    %cst_58 = arith.constant dense<0.000000e+00> : vector<8x256xf32>
    %158 = tpu.matmul %157, %110, %cst_58 {dimension_numbers = #tpu.dot_dimension_numbers<[1], [0], [0], [1], [0, 0, 1, 1], [], []>} : vector<8x8xf32>, vector<8x256xf32>, vector<8x256xf32> -> vector<8x256xf32>
    %159 = arith.addf %155, %158 : vector<8x256xf32>
    %160 = vector.extract_strided_slice %110 {offsets = [0, 241], sizes = [8, 15], strides = [1, 1]} : vector<8x256xf32> to vector<8x15xf32>
    %161 = vector.extract_strided_slice %110 {offsets = [0, 0], sizes = [8, 241], strides = [1, 1]} : vector<8x256xf32> to vector<8x241xf32>
    %162 = tpu.concatenate %160, %161 in 1 : vector<8x15xf32>, vector<8x241xf32> -> vector<8x256xf32>
    %163 = vector.extract_strided_slice %110 {offsets = [0, 1], sizes = [8, 255], strides = [1, 1]} : vector<8x256xf32> to vector<8x255xf32>
    %164 = vector.extract_strided_slice %110 {offsets = [0, 0], sizes = [8, 1], strides = [1, 1]} : vector<8x256xf32> to vector<8x1xf32>
    %165 = tpu.concatenate %163, %164 in 1 : vector<8x255xf32>, vector<8x1xf32> -> vector<8x256xf32>
    %166 = vector.shape_cast %10 : vector<1x256xi1> to vector<1x256xi1>
    %167 = vector.broadcast %166 : vector<1x256xi1> to vector<8x256xi1>
    %168 = arith.select %167, %162, %165 : vector<8x256xi1>, vector<8x256xf32>
    %c5_59 = arith.constant 5 : index
    %c0_60 = arith.constant 0 : index
    %c0_61 = arith.constant 0 : index
    %169 = vector.load %arg6[%c5_59, %c0_60, %c0_61] : memref<9x8x8xf32, #tpu.memory_space<vmem>>, vector<1x8x8xf32>
    %170 = vector.shape_cast %169 : vector<1x8x8xf32> to vector<8x8xf32>
    %cst_62 = arith.constant dense<0.000000e+00> : vector<8x256xf32>
    %171 = tpu.matmul %170, %168, %cst_62 {dimension_numbers = #tpu.dot_dimension_numbers<[1], [0], [0], [1], [0, 0, 1, 1], [], []>} : vector<8x8xf32>, vector<8x256xf32>, vector<8x256xf32> -> vector<8x256xf32>
    %172 = arith.addf %159, %171 : vector<8x256xf32>
    %173 = vector.extract_strided_slice %110 {offsets = [0, 16], sizes = [8, 240], strides = [1, 1]} : vector<8x256xf32> to vector<8x240xf32>
    %174 = vector.extract_strided_slice %110 {offsets = [0, 0], sizes = [8, 16], strides = [1, 1]} : vector<8x256xf32> to vector<8x16xf32>
    %175 = tpu.concatenate %173, %174 in 1 : vector<8x240xf32>, vector<8x16xf32> -> vector<8x256xf32>
    %176 = vector.extract_strided_slice %175 {offsets = [0, 15], sizes = [8, 241], strides = [1, 1]} : vector<8x256xf32> to vector<8x241xf32>
    %177 = vector.extract_strided_slice %175 {offsets = [0, 0], sizes = [8, 15], strides = [1, 1]} : vector<8x256xf32> to vector<8x15xf32>
    %178 = tpu.concatenate %176, %177 in 1 : vector<8x241xf32>, vector<8x15xf32> -> vector<8x256xf32>
    %179 = vector.extract_strided_slice %175 {offsets = [0, 255], sizes = [8, 1], strides = [1, 1]} : vector<8x256xf32> to vector<8x1xf32>
    %180 = vector.extract_strided_slice %175 {offsets = [0, 0], sizes = [8, 255], strides = [1, 1]} : vector<8x256xf32> to vector<8x255xf32>
    %181 = tpu.concatenate %179, %180 in 1 : vector<8x1xf32>, vector<8x255xf32> -> vector<8x256xf32>
    %182 = vector.shape_cast %7 : vector<1x256xi1> to vector<1x256xi1>
    %183 = vector.broadcast %182 : vector<1x256xi1> to vector<8x256xi1>
    %184 = arith.select %183, %178, %181 : vector<8x256xi1>, vector<8x256xf32>
    %c6_63 = arith.constant 6 : index
    %c0_64 = arith.constant 0 : index
    %c0_65 = arith.constant 0 : index
    %185 = vector.load %arg6[%c6_63, %c0_64, %c0_65] : memref<9x8x8xf32, #tpu.memory_space<vmem>>, vector<1x8x8xf32>
    %186 = vector.shape_cast %185 : vector<1x8x8xf32> to vector<8x8xf32>
    %cst_66 = arith.constant dense<0.000000e+00> : vector<8x256xf32>
    %187 = tpu.matmul %186, %184, %cst_66 {dimension_numbers = #tpu.dot_dimension_numbers<[1], [0], [0], [1], [0, 0, 1, 1], [], []>} : vector<8x8xf32>, vector<8x256xf32>, vector<8x256xf32> -> vector<8x256xf32>
    %188 = arith.addf %172, %187 : vector<8x256xf32>
    %c7_67 = arith.constant 7 : index
    %c0_68 = arith.constant 0 : index
    %c0_69 = arith.constant 0 : index
    %189 = vector.load %arg6[%c7_67, %c0_68, %c0_69] : memref<9x8x8xf32, #tpu.memory_space<vmem>>, vector<1x8x8xf32>
    %190 = vector.shape_cast %189 : vector<1x8x8xf32> to vector<8x8xf32>
    %cst_70 = arith.constant dense<0.000000e+00> : vector<8x256xf32>
    %191 = tpu.matmul %190, %175, %cst_70 {dimension_numbers = #tpu.dot_dimension_numbers<[1], [0], [0], [1], [0, 0, 1, 1], [], []>} : vector<8x8xf32>, vector<8x256xf32>, vector<8x256xf32> -> vector<8x256xf32>
    %192 = arith.addf %188, %191 : vector<8x256xf32>
    %193 = vector.extract_strided_slice %175 {offsets = [0, 241], sizes = [8, 15], strides = [1, 1]} : vector<8x256xf32> to vector<8x15xf32>
    %194 = vector.extract_strided_slice %175 {offsets = [0, 0], sizes = [8, 241], strides = [1, 1]} : vector<8x256xf32> to vector<8x241xf32>
    %195 = tpu.concatenate %193, %194 in 1 : vector<8x15xf32>, vector<8x241xf32> -> vector<8x256xf32>
    %196 = vector.extract_strided_slice %175 {offsets = [0, 1], sizes = [8, 255], strides = [1, 1]} : vector<8x256xf32> to vector<8x255xf32>
    %197 = vector.extract_strided_slice %175 {offsets = [0, 0], sizes = [8, 1], strides = [1, 1]} : vector<8x256xf32> to vector<8x1xf32>
    %198 = tpu.concatenate %196, %197 in 1 : vector<8x255xf32>, vector<8x1xf32> -> vector<8x256xf32>
    %199 = vector.shape_cast %10 : vector<1x256xi1> to vector<1x256xi1>
    %200 = vector.broadcast %199 : vector<1x256xi1> to vector<8x256xi1>
    %201 = arith.select %200, %195, %198 : vector<8x256xi1>, vector<8x256xf32>
    %c8_71 = arith.constant 8 : index
    %c0_72 = arith.constant 0 : index
    %c0_73 = arith.constant 0 : index
    %202 = vector.load %arg6[%c8_71, %c0_72, %c0_73] : memref<9x8x8xf32, #tpu.memory_space<vmem>>, vector<1x8x8xf32>
    %203 = vector.shape_cast %202 : vector<1x8x8xf32> to vector<8x8xf32>
    %cst_74 = arith.constant dense<0.000000e+00> : vector<8x256xf32>
    %204 = tpu.matmul %203, %201, %cst_74 {dimension_numbers = #tpu.dot_dimension_numbers<[1], [0], [0], [1], [0, 0, 1, 1], [], []>} : vector<8x8xf32>, vector<8x256xf32>, vector<8x256xf32> -> vector<8x256xf32>
    %205 = arith.addf %192, %204 : vector<8x256xf32>
    %c0_75 = arith.constant 0 : index
    %c0_76 = arith.constant 0 : index
    %206 = vector.load %arg7[%c0_75, %c0_76] : memref<8x1xf32, #tpu.memory_space<vmem>>, vector<8x1xf32>
    %207 = vector.broadcast %206 : vector<8x1xf32> to vector<8x256xf32>
    %208 = arith.addf %205, %207 : vector<8x256xf32>
    %cst_77 = arith.constant 0.000000e+00 : f32
    %209 = vector.broadcast %cst_77 : f32 to vector<8x256xf32>
    %210 = arith.maximumf %208, %209 : vector<8x256xf32>
    %c0_78 = arith.constant 0 : index
    %c0_79 = arith.constant 0 : index
    %211 = vector.load %arg8[%c0_78, %c0_79] : memref<2x64xf32, #tpu.memory_space<vmem>>, vector<2x64xf32>
    %212 = vector.extract_strided_slice %211 {offsets = [0, 0], sizes = [1, 64], strides = [1, 1]} : vector<2x64xf32> to vector<1x64xf32>
    %cst_80 = arith.constant 5.000000e-01 : f32
    %213 = vector.broadcast %cst_80 : f32 to vector<1x64xf32>
    %214 = arith.cmpf ogt, %212, %213 : vector<1x64xf32>
    %215 = vector.extract_strided_slice %211 {offsets = [1, 0], sizes = [1, 64], strides = [1, 1]} : vector<2x64xf32> to vector<1x64xf32>
    %cst_81 = arith.constant 5.000000e-01 : f32
    %216 = vector.broadcast %cst_81 : f32 to vector<1x64xf32>
    %217 = arith.cmpf ogt, %215, %216 : vector<1x64xf32>
    %218 = vector.extract_strided_slice %210 {offsets = [0, 1], sizes = [8, 255], strides = [1, 1]} : vector<8x256xf32> to vector<8x255xf32>
    %219 = vector.extract_strided_slice %210 {offsets = [0, 0], sizes = [8, 1], strides = [1, 1]} : vector<8x256xf32> to vector<8x1xf32>
    %220 = tpu.concatenate %218, %219 in 1 : vector<8x255xf32>, vector<8x1xf32> -> vector<8x256xf32>
    %221 = arith.maximumf %210, %220 : vector<8x256xf32>
    %222 = vector.extract_strided_slice %221 {offsets = [0, 16], sizes = [8, 240], strides = [1, 1]} : vector<8x256xf32> to vector<8x240xf32>
    %223 = vector.extract_strided_slice %221 {offsets = [0, 0], sizes = [8, 16], strides = [1, 1]} : vector<8x256xf32> to vector<8x16xf32>
    %224 = tpu.concatenate %222, %223 in 1 : vector<8x240xf32>, vector<8x16xf32> -> vector<8x256xf32>
    %225 = arith.maximumf %221, %224 : vector<8x256xf32>
    %c0_82 = arith.constant 0 : index
    %c0_83 = arith.constant 0 : index
    %226 = vector.load %arg9[%c0_82, %c0_83] : memref<256x64xf32, #tpu.memory_space<vmem>>, vector<256x64xf32>
    %cst_84 = arith.constant dense<0.000000e+00> : vector<8x64xf32>
    %227 = tpu.matmul %225, %226, %cst_84 {dimension_numbers = #tpu.dot_dimension_numbers<[1], [0], [0], [1], [0, 0, 1, 1], [], []>} : vector<8x256xf32>, vector<256x64xf32>, vector<8x64xf32> -> vector<8x64xf32>
    %228 = vector.extract_strided_slice %227 {offsets = [0, 56], sizes = [8, 8], strides = [1, 1]} : vector<8x64xf32> to vector<8x8xf32>
    %229 = vector.extract_strided_slice %227 {offsets = [0, 0], sizes = [8, 56], strides = [1, 1]} : vector<8x64xf32> to vector<8x56xf32>
    %230 = tpu.concatenate %228, %229 in 1 : vector<8x8xf32>, vector<8x56xf32> -> vector<8x64xf32>
    %231 = vector.extract_strided_slice %230 {offsets = [0, 7], sizes = [8, 57], strides = [1, 1]} : vector<8x64xf32> to vector<8x57xf32>
    %232 = vector.extract_strided_slice %230 {offsets = [0, 0], sizes = [8, 7], strides = [1, 1]} : vector<8x64xf32> to vector<8x7xf32>
    %233 = tpu.concatenate %231, %232 in 1 : vector<8x57xf32>, vector<8x7xf32> -> vector<8x64xf32>
    %234 = vector.extract_strided_slice %230 {offsets = [0, 63], sizes = [8, 1], strides = [1, 1]} : vector<8x64xf32> to vector<8x1xf32>
    %235 = vector.extract_strided_slice %230 {offsets = [0, 0], sizes = [8, 63], strides = [1, 1]} : vector<8x64xf32> to vector<8x63xf32>
    %236 = tpu.concatenate %234, %235 in 1 : vector<8x1xf32>, vector<8x63xf32> -> vector<8x64xf32>
    %237 = vector.shape_cast %214 : vector<1x64xi1> to vector<1x64xi1>
    %238 = vector.broadcast %237 : vector<1x64xi1> to vector<8x64xi1>
    %239 = arith.select %238, %233, %236 : vector<8x64xi1>, vector<8x64xf32>
    %c0_85 = arith.constant 0 : index
    %c0_86 = arith.constant 0 : index
    %c0_87 = arith.constant 0 : index
    %240 = vector.load %arg10[%c0_85, %c0_86, %c0_87] : memref<9x16x8xf32, #tpu.memory_space<vmem>>, vector<1x16x8xf32>
    %241 = vector.shape_cast %240 : vector<1x16x8xf32> to vector<16x8xf32>
    %cst_88 = arith.constant dense<0.000000e+00> : vector<16x64xf32>
    %242 = tpu.matmul %241, %239, %cst_88 {dimension_numbers = #tpu.dot_dimension_numbers<[1], [0], [0], [1], [0, 0, 1, 1], [], []>} : vector<16x8xf32>, vector<8x64xf32>, vector<16x64xf32> -> vector<16x64xf32>
    %c1_89 = arith.constant 1 : index
    %c0_90 = arith.constant 0 : index
    %c0_91 = arith.constant 0 : index
    %243 = vector.load %arg10[%c1_89, %c0_90, %c0_91] : memref<9x16x8xf32, #tpu.memory_space<vmem>>, vector<1x16x8xf32>
    %244 = vector.shape_cast %243 : vector<1x16x8xf32> to vector<16x8xf32>
    %cst_92 = arith.constant dense<0.000000e+00> : vector<16x64xf32>
    %245 = tpu.matmul %244, %230, %cst_92 {dimension_numbers = #tpu.dot_dimension_numbers<[1], [0], [0], [1], [0, 0, 1, 1], [], []>} : vector<16x8xf32>, vector<8x64xf32>, vector<16x64xf32> -> vector<16x64xf32>
    %246 = arith.addf %242, %245 : vector<16x64xf32>
    %247 = vector.extract_strided_slice %230 {offsets = [0, 57], sizes = [8, 7], strides = [1, 1]} : vector<8x64xf32> to vector<8x7xf32>
    %248 = vector.extract_strided_slice %230 {offsets = [0, 0], sizes = [8, 57], strides = [1, 1]} : vector<8x64xf32> to vector<8x57xf32>
    %249 = tpu.concatenate %247, %248 in 1 : vector<8x7xf32>, vector<8x57xf32> -> vector<8x64xf32>
    %250 = vector.extract_strided_slice %230 {offsets = [0, 1], sizes = [8, 63], strides = [1, 1]} : vector<8x64xf32> to vector<8x63xf32>
    %251 = vector.extract_strided_slice %230 {offsets = [0, 0], sizes = [8, 1], strides = [1, 1]} : vector<8x64xf32> to vector<8x1xf32>
    %252 = tpu.concatenate %250, %251 in 1 : vector<8x63xf32>, vector<8x1xf32> -> vector<8x64xf32>
    %253 = vector.shape_cast %217 : vector<1x64xi1> to vector<1x64xi1>
    %254 = vector.broadcast %253 : vector<1x64xi1> to vector<8x64xi1>
    %255 = arith.select %254, %249, %252 : vector<8x64xi1>, vector<8x64xf32>
    %c2_93 = arith.constant 2 : index
    %c0_94 = arith.constant 0 : index
    %c0_95 = arith.constant 0 : index
    %256 = vector.load %arg10[%c2_93, %c0_94, %c0_95] : memref<9x16x8xf32, #tpu.memory_space<vmem>>, vector<1x16x8xf32>
    %257 = vector.shape_cast %256 : vector<1x16x8xf32> to vector<16x8xf32>
    %cst_96 = arith.constant dense<0.000000e+00> : vector<16x64xf32>
    %258 = tpu.matmul %257, %255, %cst_96 {dimension_numbers = #tpu.dot_dimension_numbers<[1], [0], [0], [1], [0, 0, 1, 1], [], []>} : vector<16x8xf32>, vector<8x64xf32>, vector<16x64xf32> -> vector<16x64xf32>
    %259 = arith.addf %246, %258 : vector<16x64xf32>
    %260 = vector.extract_strided_slice %227 {offsets = [0, 7], sizes = [8, 57], strides = [1, 1]} : vector<8x64xf32> to vector<8x57xf32>
    %261 = vector.extract_strided_slice %227 {offsets = [0, 0], sizes = [8, 7], strides = [1, 1]} : vector<8x64xf32> to vector<8x7xf32>
    %262 = tpu.concatenate %260, %261 in 1 : vector<8x57xf32>, vector<8x7xf32> -> vector<8x64xf32>
    %263 = vector.extract_strided_slice %227 {offsets = [0, 63], sizes = [8, 1], strides = [1, 1]} : vector<8x64xf32> to vector<8x1xf32>
    %264 = vector.extract_strided_slice %227 {offsets = [0, 0], sizes = [8, 63], strides = [1, 1]} : vector<8x64xf32> to vector<8x63xf32>
    %265 = tpu.concatenate %263, %264 in 1 : vector<8x1xf32>, vector<8x63xf32> -> vector<8x64xf32>
    %266 = vector.shape_cast %214 : vector<1x64xi1> to vector<1x64xi1>
    %267 = vector.broadcast %266 : vector<1x64xi1> to vector<8x64xi1>
    %268 = arith.select %267, %262, %265 : vector<8x64xi1>, vector<8x64xf32>
    %c3_97 = arith.constant 3 : index
    %c0_98 = arith.constant 0 : index
    %c0_99 = arith.constant 0 : index
    %269 = vector.load %arg10[%c3_97, %c0_98, %c0_99] : memref<9x16x8xf32, #tpu.memory_space<vmem>>, vector<1x16x8xf32>
    %270 = vector.shape_cast %269 : vector<1x16x8xf32> to vector<16x8xf32>
    %cst_100 = arith.constant dense<0.000000e+00> : vector<16x64xf32>
    %271 = tpu.matmul %270, %268, %cst_100 {dimension_numbers = #tpu.dot_dimension_numbers<[1], [0], [0], [1], [0, 0, 1, 1], [], []>} : vector<16x8xf32>, vector<8x64xf32>, vector<16x64xf32> -> vector<16x64xf32>
    %272 = arith.addf %259, %271 : vector<16x64xf32>
    %c4_101 = arith.constant 4 : index
    %c0_102 = arith.constant 0 : index
    %c0_103 = arith.constant 0 : index
    %273 = vector.load %arg10[%c4_101, %c0_102, %c0_103] : memref<9x16x8xf32, #tpu.memory_space<vmem>>, vector<1x16x8xf32>
    %274 = vector.shape_cast %273 : vector<1x16x8xf32> to vector<16x8xf32>
    %cst_104 = arith.constant dense<0.000000e+00> : vector<16x64xf32>
    %275 = tpu.matmul %274, %227, %cst_104 {dimension_numbers = #tpu.dot_dimension_numbers<[1], [0], [0], [1], [0, 0, 1, 1], [], []>} : vector<16x8xf32>, vector<8x64xf32>, vector<16x64xf32> -> vector<16x64xf32>
    %276 = arith.addf %272, %275 : vector<16x64xf32>
    %277 = vector.extract_strided_slice %227 {offsets = [0, 57], sizes = [8, 7], strides = [1, 1]} : vector<8x64xf32> to vector<8x7xf32>
    %278 = vector.extract_strided_slice %227 {offsets = [0, 0], sizes = [8, 57], strides = [1, 1]} : vector<8x64xf32> to vector<8x57xf32>
    %279 = tpu.concatenate %277, %278 in 1 : vector<8x7xf32>, vector<8x57xf32> -> vector<8x64xf32>
    %280 = vector.extract_strided_slice %227 {offsets = [0, 1], sizes = [8, 63], strides = [1, 1]} : vector<8x64xf32> to vector<8x63xf32>
    %281 = vector.extract_strided_slice %227 {offsets = [0, 0], sizes = [8, 1], strides = [1, 1]} : vector<8x64xf32> to vector<8x1xf32>
    %282 = tpu.concatenate %280, %281 in 1 : vector<8x63xf32>, vector<8x1xf32> -> vector<8x64xf32>
    %283 = vector.shape_cast %217 : vector<1x64xi1> to vector<1x64xi1>
    %284 = vector.broadcast %283 : vector<1x64xi1> to vector<8x64xi1>
    %285 = arith.select %284, %279, %282 : vector<8x64xi1>, vector<8x64xf32>
    %c5_105 = arith.constant 5 : index
    %c0_106 = arith.constant 0 : index
    %c0_107 = arith.constant 0 : index
    %286 = vector.load %arg10[%c5_105, %c0_106, %c0_107] : memref<9x16x8xf32, #tpu.memory_space<vmem>>, vector<1x16x8xf32>
    %287 = vector.shape_cast %286 : vector<1x16x8xf32> to vector<16x8xf32>
    %cst_108 = arith.constant dense<0.000000e+00> : vector<16x64xf32>
    %288 = tpu.matmul %287, %285, %cst_108 {dimension_numbers = #tpu.dot_dimension_numbers<[1], [0], [0], [1], [0, 0, 1, 1], [], []>} : vector<16x8xf32>, vector<8x64xf32>, vector<16x64xf32> -> vector<16x64xf32>
    %289 = arith.addf %276, %288 : vector<16x64xf32>
    %290 = vector.extract_strided_slice %227 {offsets = [0, 8], sizes = [8, 56], strides = [1, 1]} : vector<8x64xf32> to vector<8x56xf32>
    %291 = vector.extract_strided_slice %227 {offsets = [0, 0], sizes = [8, 8], strides = [1, 1]} : vector<8x64xf32> to vector<8x8xf32>
    %292 = tpu.concatenate %290, %291 in 1 : vector<8x56xf32>, vector<8x8xf32> -> vector<8x64xf32>
    %293 = vector.extract_strided_slice %292 {offsets = [0, 7], sizes = [8, 57], strides = [1, 1]} : vector<8x64xf32> to vector<8x57xf32>
    %294 = vector.extract_strided_slice %292 {offsets = [0, 0], sizes = [8, 7], strides = [1, 1]} : vector<8x64xf32> to vector<8x7xf32>
    %295 = tpu.concatenate %293, %294 in 1 : vector<8x57xf32>, vector<8x7xf32> -> vector<8x64xf32>
    %296 = vector.extract_strided_slice %292 {offsets = [0, 63], sizes = [8, 1], strides = [1, 1]} : vector<8x64xf32> to vector<8x1xf32>
    %297 = vector.extract_strided_slice %292 {offsets = [0, 0], sizes = [8, 63], strides = [1, 1]} : vector<8x64xf32> to vector<8x63xf32>
    %298 = tpu.concatenate %296, %297 in 1 : vector<8x1xf32>, vector<8x63xf32> -> vector<8x64xf32>
    %299 = vector.shape_cast %214 : vector<1x64xi1> to vector<1x64xi1>
    %300 = vector.broadcast %299 : vector<1x64xi1> to vector<8x64xi1>
    %301 = arith.select %300, %295, %298 : vector<8x64xi1>, vector<8x64xf32>
    %c6_109 = arith.constant 6 : index
    %c0_110 = arith.constant 0 : index
    %c0_111 = arith.constant 0 : index
    %302 = vector.load %arg10[%c6_109, %c0_110, %c0_111] : memref<9x16x8xf32, #tpu.memory_space<vmem>>, vector<1x16x8xf32>
    %303 = vector.shape_cast %302 : vector<1x16x8xf32> to vector<16x8xf32>
    %cst_112 = arith.constant dense<0.000000e+00> : vector<16x64xf32>
    %304 = tpu.matmul %303, %301, %cst_112 {dimension_numbers = #tpu.dot_dimension_numbers<[1], [0], [0], [1], [0, 0, 1, 1], [], []>} : vector<16x8xf32>, vector<8x64xf32>, vector<16x64xf32> -> vector<16x64xf32>
    %305 = arith.addf %289, %304 : vector<16x64xf32>
    %c7_113 = arith.constant 7 : index
    %c0_114 = arith.constant 0 : index
    %c0_115 = arith.constant 0 : index
    %306 = vector.load %arg10[%c7_113, %c0_114, %c0_115] : memref<9x16x8xf32, #tpu.memory_space<vmem>>, vector<1x16x8xf32>
    %307 = vector.shape_cast %306 : vector<1x16x8xf32> to vector<16x8xf32>
    %cst_116 = arith.constant dense<0.000000e+00> : vector<16x64xf32>
    %308 = tpu.matmul %307, %292, %cst_116 {dimension_numbers = #tpu.dot_dimension_numbers<[1], [0], [0], [1], [0, 0, 1, 1], [], []>} : vector<16x8xf32>, vector<8x64xf32>, vector<16x64xf32> -> vector<16x64xf32>
    %309 = arith.addf %305, %308 : vector<16x64xf32>
    %310 = vector.extract_strided_slice %292 {offsets = [0, 57], sizes = [8, 7], strides = [1, 1]} : vector<8x64xf32> to vector<8x7xf32>
    %311 = vector.extract_strided_slice %292 {offsets = [0, 0], sizes = [8, 57], strides = [1, 1]} : vector<8x64xf32> to vector<8x57xf32>
    %312 = tpu.concatenate %310, %311 in 1 : vector<8x7xf32>, vector<8x57xf32> -> vector<8x64xf32>
    %313 = vector.extract_strided_slice %292 {offsets = [0, 1], sizes = [8, 63], strides = [1, 1]} : vector<8x64xf32> to vector<8x63xf32>
    %314 = vector.extract_strided_slice %292 {offsets = [0, 0], sizes = [8, 1], strides = [1, 1]} : vector<8x64xf32> to vector<8x1xf32>
    %315 = tpu.concatenate %313, %314 in 1 : vector<8x63xf32>, vector<8x1xf32> -> vector<8x64xf32>
    %316 = vector.shape_cast %217 : vector<1x64xi1> to vector<1x64xi1>
    %317 = vector.broadcast %316 : vector<1x64xi1> to vector<8x64xi1>
    %318 = arith.select %317, %312, %315 : vector<8x64xi1>, vector<8x64xf32>
    %c8_117 = arith.constant 8 : index
    %c0_118 = arith.constant 0 : index
    %c0_119 = arith.constant 0 : index
    %319 = vector.load %arg10[%c8_117, %c0_118, %c0_119] : memref<9x16x8xf32, #tpu.memory_space<vmem>>, vector<1x16x8xf32>
    %320 = vector.shape_cast %319 : vector<1x16x8xf32> to vector<16x8xf32>
    %cst_120 = arith.constant dense<0.000000e+00> : vector<16x64xf32>
    %321 = tpu.matmul %320, %318, %cst_120 {dimension_numbers = #tpu.dot_dimension_numbers<[1], [0], [0], [1], [0, 0, 1, 1], [], []>} : vector<16x8xf32>, vector<8x64xf32>, vector<16x64xf32> -> vector<16x64xf32>
    %322 = arith.addf %309, %321 : vector<16x64xf32>
    %c0_121 = arith.constant 0 : index
    %c0_122 = arith.constant 0 : index
    %323 = vector.load %arg11[%c0_121, %c0_122] : memref<16x1xf32, #tpu.memory_space<vmem>>, vector<16x1xf32>
    %324 = vector.broadcast %323 : vector<16x1xf32> to vector<16x64xf32>
    %325 = arith.addf %322, %324 : vector<16x64xf32>
    %cst_123 = arith.constant 0.000000e+00 : f32
    %326 = vector.broadcast %cst_123 : f32 to vector<16x64xf32>
    %327 = arith.maximumf %325, %326 : vector<16x64xf32>
    %328 = vector.extract_strided_slice %327 {offsets = [0, 56], sizes = [16, 8], strides = [1, 1]} : vector<16x64xf32> to vector<16x8xf32>
    %329 = vector.extract_strided_slice %327 {offsets = [0, 0], sizes = [16, 56], strides = [1, 1]} : vector<16x64xf32> to vector<16x56xf32>
    %330 = tpu.concatenate %328, %329 in 1 : vector<16x8xf32>, vector<16x56xf32> -> vector<16x64xf32>
    %331 = vector.extract_strided_slice %330 {offsets = [0, 7], sizes = [16, 57], strides = [1, 1]} : vector<16x64xf32> to vector<16x57xf32>
    %332 = vector.extract_strided_slice %330 {offsets = [0, 0], sizes = [16, 7], strides = [1, 1]} : vector<16x64xf32> to vector<16x7xf32>
    %333 = tpu.concatenate %331, %332 in 1 : vector<16x57xf32>, vector<16x7xf32> -> vector<16x64xf32>
    %334 = vector.extract_strided_slice %330 {offsets = [0, 63], sizes = [16, 1], strides = [1, 1]} : vector<16x64xf32> to vector<16x1xf32>
    %335 = vector.extract_strided_slice %330 {offsets = [0, 0], sizes = [16, 63], strides = [1, 1]} : vector<16x64xf32> to vector<16x63xf32>
    %336 = tpu.concatenate %334, %335 in 1 : vector<16x1xf32>, vector<16x63xf32> -> vector<16x64xf32>
    %337 = vector.shape_cast %214 : vector<1x64xi1> to vector<1x64xi1>
    %338 = vector.broadcast %337 : vector<1x64xi1> to vector<16x64xi1>
    %339 = arith.select %338, %333, %336 : vector<16x64xi1>, vector<16x64xf32>
    %c0_124 = arith.constant 0 : index
    %c0_125 = arith.constant 0 : index
    %c0_126 = arith.constant 0 : index
    %340 = vector.load %arg12[%c0_124, %c0_125, %c0_126] : memref<9x16x16xf32, #tpu.memory_space<vmem>>, vector<1x16x16xf32>
    %341 = vector.shape_cast %340 : vector<1x16x16xf32> to vector<16x16xf32>
    %cst_127 = arith.constant dense<0.000000e+00> : vector<16x64xf32>
    %342 = tpu.matmul %341, %339, %cst_127 {dimension_numbers = #tpu.dot_dimension_numbers<[1], [0], [0], [1], [0, 0, 1, 1], [], []>} : vector<16x16xf32>, vector<16x64xf32>, vector<16x64xf32> -> vector<16x64xf32>
    %c1_128 = arith.constant 1 : index
    %c0_129 = arith.constant 0 : index
    %c0_130 = arith.constant 0 : index
    %343 = vector.load %arg12[%c1_128, %c0_129, %c0_130] : memref<9x16x16xf32, #tpu.memory_space<vmem>>, vector<1x16x16xf32>
    %344 = vector.shape_cast %343 : vector<1x16x16xf32> to vector<16x16xf32>
    %cst_131 = arith.constant dense<0.000000e+00> : vector<16x64xf32>
    %345 = tpu.matmul %344, %330, %cst_131 {dimension_numbers = #tpu.dot_dimension_numbers<[1], [0], [0], [1], [0, 0, 1, 1], [], []>} : vector<16x16xf32>, vector<16x64xf32>, vector<16x64xf32> -> vector<16x64xf32>
    %346 = arith.addf %342, %345 : vector<16x64xf32>
    %347 = vector.extract_strided_slice %330 {offsets = [0, 57], sizes = [16, 7], strides = [1, 1]} : vector<16x64xf32> to vector<16x7xf32>
    %348 = vector.extract_strided_slice %330 {offsets = [0, 0], sizes = [16, 57], strides = [1, 1]} : vector<16x64xf32> to vector<16x57xf32>
    %349 = tpu.concatenate %347, %348 in 1 : vector<16x7xf32>, vector<16x57xf32> -> vector<16x64xf32>
    %350 = vector.extract_strided_slice %330 {offsets = [0, 1], sizes = [16, 63], strides = [1, 1]} : vector<16x64xf32> to vector<16x63xf32>
    %351 = vector.extract_strided_slice %330 {offsets = [0, 0], sizes = [16, 1], strides = [1, 1]} : vector<16x64xf32> to vector<16x1xf32>
    %352 = tpu.concatenate %350, %351 in 1 : vector<16x63xf32>, vector<16x1xf32> -> vector<16x64xf32>
    %353 = vector.shape_cast %217 : vector<1x64xi1> to vector<1x64xi1>
    %354 = vector.broadcast %353 : vector<1x64xi1> to vector<16x64xi1>
    %355 = arith.select %354, %349, %352 : vector<16x64xi1>, vector<16x64xf32>
    %c2_132 = arith.constant 2 : index
    %c0_133 = arith.constant 0 : index
    %c0_134 = arith.constant 0 : index
    %356 = vector.load %arg12[%c2_132, %c0_133, %c0_134] : memref<9x16x16xf32, #tpu.memory_space<vmem>>, vector<1x16x16xf32>
    %357 = vector.shape_cast %356 : vector<1x16x16xf32> to vector<16x16xf32>
    %cst_135 = arith.constant dense<0.000000e+00> : vector<16x64xf32>
    %358 = tpu.matmul %357, %355, %cst_135 {dimension_numbers = #tpu.dot_dimension_numbers<[1], [0], [0], [1], [0, 0, 1, 1], [], []>} : vector<16x16xf32>, vector<16x64xf32>, vector<16x64xf32> -> vector<16x64xf32>
    %359 = arith.addf %346, %358 : vector<16x64xf32>
    %360 = vector.extract_strided_slice %327 {offsets = [0, 7], sizes = [16, 57], strides = [1, 1]} : vector<16x64xf32> to vector<16x57xf32>
    %361 = vector.extract_strided_slice %327 {offsets = [0, 0], sizes = [16, 7], strides = [1, 1]} : vector<16x64xf32> to vector<16x7xf32>
    %362 = tpu.concatenate %360, %361 in 1 : vector<16x57xf32>, vector<16x7xf32> -> vector<16x64xf32>
    %363 = vector.extract_strided_slice %327 {offsets = [0, 63], sizes = [16, 1], strides = [1, 1]} : vector<16x64xf32> to vector<16x1xf32>
    %364 = vector.extract_strided_slice %327 {offsets = [0, 0], sizes = [16, 63], strides = [1, 1]} : vector<16x64xf32> to vector<16x63xf32>
    %365 = tpu.concatenate %363, %364 in 1 : vector<16x1xf32>, vector<16x63xf32> -> vector<16x64xf32>
    %366 = vector.shape_cast %214 : vector<1x64xi1> to vector<1x64xi1>
    %367 = vector.broadcast %366 : vector<1x64xi1> to vector<16x64xi1>
    %368 = arith.select %367, %362, %365 : vector<16x64xi1>, vector<16x64xf32>
    %c3_136 = arith.constant 3 : index
    %c0_137 = arith.constant 0 : index
    %c0_138 = arith.constant 0 : index
    %369 = vector.load %arg12[%c3_136, %c0_137, %c0_138] : memref<9x16x16xf32, #tpu.memory_space<vmem>>, vector<1x16x16xf32>
    %370 = vector.shape_cast %369 : vector<1x16x16xf32> to vector<16x16xf32>
    %cst_139 = arith.constant dense<0.000000e+00> : vector<16x64xf32>
    %371 = tpu.matmul %370, %368, %cst_139 {dimension_numbers = #tpu.dot_dimension_numbers<[1], [0], [0], [1], [0, 0, 1, 1], [], []>} : vector<16x16xf32>, vector<16x64xf32>, vector<16x64xf32> -> vector<16x64xf32>
    %372 = arith.addf %359, %371 : vector<16x64xf32>
    %c4_140 = arith.constant 4 : index
    %c0_141 = arith.constant 0 : index
    %c0_142 = arith.constant 0 : index
    %373 = vector.load %arg12[%c4_140, %c0_141, %c0_142] : memref<9x16x16xf32, #tpu.memory_space<vmem>>, vector<1x16x16xf32>
    %374 = vector.shape_cast %373 : vector<1x16x16xf32> to vector<16x16xf32>
    %cst_143 = arith.constant dense<0.000000e+00> : vector<16x64xf32>
    %375 = tpu.matmul %374, %327, %cst_143 {dimension_numbers = #tpu.dot_dimension_numbers<[1], [0], [0], [1], [0, 0, 1, 1], [], []>} : vector<16x16xf32>, vector<16x64xf32>, vector<16x64xf32> -> vector<16x64xf32>
    %376 = arith.addf %372, %375 : vector<16x64xf32>
    %377 = vector.extract_strided_slice %327 {offsets = [0, 57], sizes = [16, 7], strides = [1, 1]} : vector<16x64xf32> to vector<16x7xf32>
    %378 = vector.extract_strided_slice %327 {offsets = [0, 0], sizes = [16, 57], strides = [1, 1]} : vector<16x64xf32> to vector<16x57xf32>
    %379 = tpu.concatenate %377, %378 in 1 : vector<16x7xf32>, vector<16x57xf32> -> vector<16x64xf32>
    %380 = vector.extract_strided_slice %327 {offsets = [0, 1], sizes = [16, 63], strides = [1, 1]} : vector<16x64xf32> to vector<16x63xf32>
    %381 = vector.extract_strided_slice %327 {offsets = [0, 0], sizes = [16, 1], strides = [1, 1]} : vector<16x64xf32> to vector<16x1xf32>
    %382 = tpu.concatenate %380, %381 in 1 : vector<16x63xf32>, vector<16x1xf32> -> vector<16x64xf32>
    %383 = vector.shape_cast %217 : vector<1x64xi1> to vector<1x64xi1>
    %384 = vector.broadcast %383 : vector<1x64xi1> to vector<16x64xi1>
    %385 = arith.select %384, %379, %382 : vector<16x64xi1>, vector<16x64xf32>
    %c5_144 = arith.constant 5 : index
    %c0_145 = arith.constant 0 : index
    %c0_146 = arith.constant 0 : index
    %386 = vector.load %arg12[%c5_144, %c0_145, %c0_146] : memref<9x16x16xf32, #tpu.memory_space<vmem>>, vector<1x16x16xf32>
    %387 = vector.shape_cast %386 : vector<1x16x16xf32> to vector<16x16xf32>
    %cst_147 = arith.constant dense<0.000000e+00> : vector<16x64xf32>
    %388 = tpu.matmul %387, %385, %cst_147 {dimension_numbers = #tpu.dot_dimension_numbers<[1], [0], [0], [1], [0, 0, 1, 1], [], []>} : vector<16x16xf32>, vector<16x64xf32>, vector<16x64xf32> -> vector<16x64xf32>
    %389 = arith.addf %376, %388 : vector<16x64xf32>
    %390 = vector.extract_strided_slice %327 {offsets = [0, 8], sizes = [16, 56], strides = [1, 1]} : vector<16x64xf32> to vector<16x56xf32>
    %391 = vector.extract_strided_slice %327 {offsets = [0, 0], sizes = [16, 8], strides = [1, 1]} : vector<16x64xf32> to vector<16x8xf32>
    %392 = tpu.concatenate %390, %391 in 1 : vector<16x56xf32>, vector<16x8xf32> -> vector<16x64xf32>
    %393 = vector.extract_strided_slice %392 {offsets = [0, 7], sizes = [16, 57], strides = [1, 1]} : vector<16x64xf32> to vector<16x57xf32>
    %394 = vector.extract_strided_slice %392 {offsets = [0, 0], sizes = [16, 7], strides = [1, 1]} : vector<16x64xf32> to vector<16x7xf32>
    %395 = tpu.concatenate %393, %394 in 1 : vector<16x57xf32>, vector<16x7xf32> -> vector<16x64xf32>
    %396 = vector.extract_strided_slice %392 {offsets = [0, 63], sizes = [16, 1], strides = [1, 1]} : vector<16x64xf32> to vector<16x1xf32>
    %397 = vector.extract_strided_slice %392 {offsets = [0, 0], sizes = [16, 63], strides = [1, 1]} : vector<16x64xf32> to vector<16x63xf32>
    %398 = tpu.concatenate %396, %397 in 1 : vector<16x1xf32>, vector<16x63xf32> -> vector<16x64xf32>
    %399 = vector.shape_cast %214 : vector<1x64xi1> to vector<1x64xi1>
    %400 = vector.broadcast %399 : vector<1x64xi1> to vector<16x64xi1>
    %401 = arith.select %400, %395, %398 : vector<16x64xi1>, vector<16x64xf32>
    %c6_148 = arith.constant 6 : index
    %c0_149 = arith.constant 0 : index
    %c0_150 = arith.constant 0 : index
    %402 = vector.load %arg12[%c6_148, %c0_149, %c0_150] : memref<9x16x16xf32, #tpu.memory_space<vmem>>, vector<1x16x16xf32>
    %403 = vector.shape_cast %402 : vector<1x16x16xf32> to vector<16x16xf32>
    %cst_151 = arith.constant dense<0.000000e+00> : vector<16x64xf32>
    %404 = tpu.matmul %403, %401, %cst_151 {dimension_numbers = #tpu.dot_dimension_numbers<[1], [0], [0], [1], [0, 0, 1, 1], [], []>} : vector<16x16xf32>, vector<16x64xf32>, vector<16x64xf32> -> vector<16x64xf32>
    %405 = arith.addf %389, %404 : vector<16x64xf32>
    %c7_152 = arith.constant 7 : index
    %c0_153 = arith.constant 0 : index
    %c0_154 = arith.constant 0 : index
    %406 = vector.load %arg12[%c7_152, %c0_153, %c0_154] : memref<9x16x16xf32, #tpu.memory_space<vmem>>, vector<1x16x16xf32>
    %407 = vector.shape_cast %406 : vector<1x16x16xf32> to vector<16x16xf32>
    %cst_155 = arith.constant dense<0.000000e+00> : vector<16x64xf32>
    %408 = tpu.matmul %407, %392, %cst_155 {dimension_numbers = #tpu.dot_dimension_numbers<[1], [0], [0], [1], [0, 0, 1, 1], [], []>} : vector<16x16xf32>, vector<16x64xf32>, vector<16x64xf32> -> vector<16x64xf32>
    %409 = arith.addf %405, %408 : vector<16x64xf32>
    %410 = vector.extract_strided_slice %392 {offsets = [0, 57], sizes = [16, 7], strides = [1, 1]} : vector<16x64xf32> to vector<16x7xf32>
    %411 = vector.extract_strided_slice %392 {offsets = [0, 0], sizes = [16, 57], strides = [1, 1]} : vector<16x64xf32> to vector<16x57xf32>
    %412 = tpu.concatenate %410, %411 in 1 : vector<16x7xf32>, vector<16x57xf32> -> vector<16x64xf32>
    %413 = vector.extract_strided_slice %392 {offsets = [0, 1], sizes = [16, 63], strides = [1, 1]} : vector<16x64xf32> to vector<16x63xf32>
    %414 = vector.extract_strided_slice %392 {offsets = [0, 0], sizes = [16, 1], strides = [1, 1]} : vector<16x64xf32> to vector<16x1xf32>
    %415 = tpu.concatenate %413, %414 in 1 : vector<16x63xf32>, vector<16x1xf32> -> vector<16x64xf32>
    %416 = vector.shape_cast %217 : vector<1x64xi1> to vector<1x64xi1>
    %417 = vector.broadcast %416 : vector<1x64xi1> to vector<16x64xi1>
    %418 = arith.select %417, %412, %415 : vector<16x64xi1>, vector<16x64xf32>
    %c8_156 = arith.constant 8 : index
    %c0_157 = arith.constant 0 : index
    %c0_158 = arith.constant 0 : index
    %419 = vector.load %arg12[%c8_156, %c0_157, %c0_158] : memref<9x16x16xf32, #tpu.memory_space<vmem>>, vector<1x16x16xf32>
    %420 = vector.shape_cast %419 : vector<1x16x16xf32> to vector<16x16xf32>
    %cst_159 = arith.constant dense<0.000000e+00> : vector<16x64xf32>
    %421 = tpu.matmul %420, %418, %cst_159 {dimension_numbers = #tpu.dot_dimension_numbers<[1], [0], [0], [1], [0, 0, 1, 1], [], []>} : vector<16x16xf32>, vector<16x64xf32>, vector<16x64xf32> -> vector<16x64xf32>
    %422 = arith.addf %409, %421 : vector<16x64xf32>
    %c0_160 = arith.constant 0 : index
    %c0_161 = arith.constant 0 : index
    %423 = vector.load %arg13[%c0_160, %c0_161] : memref<16x1xf32, #tpu.memory_space<vmem>>, vector<16x1xf32>
    %424 = vector.broadcast %423 : vector<16x1xf32> to vector<16x64xf32>
    %425 = arith.addf %422, %424 : vector<16x64xf32>
    %cst_162 = arith.constant 0.000000e+00 : f32
    %426 = vector.broadcast %cst_162 : f32 to vector<16x64xf32>
    %427 = arith.maximumf %425, %426 : vector<16x64xf32>
    %c0_163 = arith.constant 0 : index
    %c0_164 = arith.constant 0 : index
    %c0_165 = arith.constant 0 : index
    %428 = vector.load %arg14[%c0_163, %c0_164, %c0_165] : memref<4x8x16xf32, #tpu.memory_space<vmem>>, vector<1x8x16xf32>
    %429 = vector.shape_cast %428 : vector<1x8x16xf32> to vector<8x16xf32>
    %cst_166 = arith.constant dense<0.000000e+00> : vector<8x64xf32>
    %430 = tpu.matmul %429, %427, %cst_166 {dimension_numbers = #tpu.dot_dimension_numbers<[1], [0], [0], [1], [0, 0, 1, 1], [], []>} : vector<8x16xf32>, vector<16x64xf32>, vector<8x64xf32> -> vector<8x64xf32>
    %c0_167 = arith.constant 0 : index
    %c0_168 = arith.constant 0 : index
    %c0_169 = arith.constant 0 : index
    %431 = vector.load %arg16[%c0_167, %c0_168, %c0_169] : memref<4x64x256xf32, #tpu.memory_space<vmem>>, vector<1x64x256xf32>
    %432 = vector.shape_cast %431 : vector<1x64x256xf32> to vector<64x256xf32>
    %cst_170 = arith.constant dense<0.000000e+00> : vector<8x256xf32>
    %433 = tpu.matmul %430, %432, %cst_170 {dimension_numbers = #tpu.dot_dimension_numbers<[1], [0], [0], [1], [0, 0, 1, 1], [], []>} : vector<8x64xf32>, vector<64x256xf32>, vector<8x256xf32> -> vector<8x256xf32>
    %c1_171 = arith.constant 1 : index
    %c0_172 = arith.constant 0 : index
    %c0_173 = arith.constant 0 : index
    %434 = vector.load %arg14[%c1_171, %c0_172, %c0_173] : memref<4x8x16xf32, #tpu.memory_space<vmem>>, vector<1x8x16xf32>
    %435 = vector.shape_cast %434 : vector<1x8x16xf32> to vector<8x16xf32>
    %cst_174 = arith.constant dense<0.000000e+00> : vector<8x64xf32>
    %436 = tpu.matmul %435, %427, %cst_174 {dimension_numbers = #tpu.dot_dimension_numbers<[1], [0], [0], [1], [0, 0, 1, 1], [], []>} : vector<8x16xf32>, vector<16x64xf32>, vector<8x64xf32> -> vector<8x64xf32>
    %c1_175 = arith.constant 1 : index
    %c0_176 = arith.constant 0 : index
    %c0_177 = arith.constant 0 : index
    %437 = vector.load %arg16[%c1_175, %c0_176, %c0_177] : memref<4x64x256xf32, #tpu.memory_space<vmem>>, vector<1x64x256xf32>
    %438 = vector.shape_cast %437 : vector<1x64x256xf32> to vector<64x256xf32>
    %cst_178 = arith.constant dense<0.000000e+00> : vector<8x256xf32>
    %439 = tpu.matmul %436, %438, %cst_178 {dimension_numbers = #tpu.dot_dimension_numbers<[1], [0], [0], [1], [0, 0, 1, 1], [], []>} : vector<8x64xf32>, vector<64x256xf32>, vector<8x256xf32> -> vector<8x256xf32>
    %440 = arith.addf %433, %439 : vector<8x256xf32>
    %c2_179 = arith.constant 2 : index
    %c0_180 = arith.constant 0 : index
    %c0_181 = arith.constant 0 : index
    %441 = vector.load %arg14[%c2_179, %c0_180, %c0_181] : memref<4x8x16xf32, #tpu.memory_space<vmem>>, vector<1x8x16xf32>
    %442 = vector.shape_cast %441 : vector<1x8x16xf32> to vector<8x16xf32>
    %cst_182 = arith.constant dense<0.000000e+00> : vector<8x64xf32>
    %443 = tpu.matmul %442, %427, %cst_182 {dimension_numbers = #tpu.dot_dimension_numbers<[1], [0], [0], [1], [0, 0, 1, 1], [], []>} : vector<8x16xf32>, vector<16x64xf32>, vector<8x64xf32> -> vector<8x64xf32>
    %c2_183 = arith.constant 2 : index
    %c0_184 = arith.constant 0 : index
    %c0_185 = arith.constant 0 : index
    %444 = vector.load %arg16[%c2_183, %c0_184, %c0_185] : memref<4x64x256xf32, #tpu.memory_space<vmem>>, vector<1x64x256xf32>
    %445 = vector.shape_cast %444 : vector<1x64x256xf32> to vector<64x256xf32>
    %cst_186 = arith.constant dense<0.000000e+00> : vector<8x256xf32>
    %446 = tpu.matmul %443, %445, %cst_186 {dimension_numbers = #tpu.dot_dimension_numbers<[1], [0], [0], [1], [0, 0, 1, 1], [], []>} : vector<8x64xf32>, vector<64x256xf32>, vector<8x256xf32> -> vector<8x256xf32>
    %447 = arith.addf %440, %446 : vector<8x256xf32>
    %c3_187 = arith.constant 3 : index
    %c0_188 = arith.constant 0 : index
    %c0_189 = arith.constant 0 : index
    %448 = vector.load %arg14[%c3_187, %c0_188, %c0_189] : memref<4x8x16xf32, #tpu.memory_space<vmem>>, vector<1x8x16xf32>
    %449 = vector.shape_cast %448 : vector<1x8x16xf32> to vector<8x16xf32>
    %cst_190 = arith.constant dense<0.000000e+00> : vector<8x64xf32>
    %450 = tpu.matmul %449, %427, %cst_190 {dimension_numbers = #tpu.dot_dimension_numbers<[1], [0], [0], [1], [0, 0, 1, 1], [], []>} : vector<8x16xf32>, vector<16x64xf32>, vector<8x64xf32> -> vector<8x64xf32>
    %c3_191 = arith.constant 3 : index
    %c0_192 = arith.constant 0 : index
    %c0_193 = arith.constant 0 : index
    %451 = vector.load %arg16[%c3_191, %c0_192, %c0_193] : memref<4x64x256xf32, #tpu.memory_space<vmem>>, vector<1x64x256xf32>
    %452 = vector.shape_cast %451 : vector<1x64x256xf32> to vector<64x256xf32>
    %cst_194 = arith.constant dense<0.000000e+00> : vector<8x256xf32>
    %453 = tpu.matmul %450, %452, %cst_194 {dimension_numbers = #tpu.dot_dimension_numbers<[1], [0], [0], [1], [0, 0, 1, 1], [], []>} : vector<8x64xf32>, vector<64x256xf32>, vector<8x256xf32> -> vector<8x256xf32>
    %454 = arith.addf %447, %453 : vector<8x256xf32>
    %c0_195 = arith.constant 0 : index
    %c0_196 = arith.constant 0 : index
    %455 = vector.load %arg15[%c0_195, %c0_196] : memref<8x1xf32, #tpu.memory_space<vmem>>, vector<8x1xf32>
    %456 = vector.broadcast %455 : vector<8x1xf32> to vector<8x256xf32>
    %457 = arith.addf %454, %456 : vector<8x256xf32>
    %458 = tpu.concatenate %210, %457 in 0 : vector<8x256xf32>, vector<8x256xf32> -> vector<16x256xf32>
    %459 = vector.extract_strided_slice %458 {offsets = [0, 240], sizes = [16, 16], strides = [1, 1]} : vector<16x256xf32> to vector<16x16xf32>
    %460 = vector.extract_strided_slice %458 {offsets = [0, 0], sizes = [16, 240], strides = [1, 1]} : vector<16x256xf32> to vector<16x240xf32>
    %461 = tpu.concatenate %459, %460 in 1 : vector<16x16xf32>, vector<16x240xf32> -> vector<16x256xf32>
    %462 = vector.extract_strided_slice %461 {offsets = [0, 15], sizes = [16, 241], strides = [1, 1]} : vector<16x256xf32> to vector<16x241xf32>
    %463 = vector.extract_strided_slice %461 {offsets = [0, 0], sizes = [16, 15], strides = [1, 1]} : vector<16x256xf32> to vector<16x15xf32>
    %464 = tpu.concatenate %462, %463 in 1 : vector<16x241xf32>, vector<16x15xf32> -> vector<16x256xf32>
    %465 = vector.extract_strided_slice %461 {offsets = [0, 255], sizes = [16, 1], strides = [1, 1]} : vector<16x256xf32> to vector<16x1xf32>
    %466 = vector.extract_strided_slice %461 {offsets = [0, 0], sizes = [16, 255], strides = [1, 1]} : vector<16x256xf32> to vector<16x255xf32>
    %467 = tpu.concatenate %465, %466 in 1 : vector<16x1xf32>, vector<16x255xf32> -> vector<16x256xf32>
    %468 = vector.shape_cast %7 : vector<1x256xi1> to vector<1x256xi1>
    %469 = vector.broadcast %468 : vector<1x256xi1> to vector<16x256xi1>
    %470 = arith.select %469, %464, %467 : vector<16x256xi1>, vector<16x256xf32>
    %c0_197 = arith.constant 0 : index
    %c0_198 = arith.constant 0 : index
    %c0_199 = arith.constant 0 : index
    %471 = vector.load %arg17[%c0_197, %c0_198, %c0_199] : memref<9x8x16xf32, #tpu.memory_space<vmem>>, vector<1x8x16xf32>
    %472 = vector.shape_cast %471 : vector<1x8x16xf32> to vector<8x16xf32>
    %cst_200 = arith.constant dense<0.000000e+00> : vector<8x256xf32>
    %473 = tpu.matmul %472, %470, %cst_200 {dimension_numbers = #tpu.dot_dimension_numbers<[1], [0], [0], [1], [0, 0, 1, 1], [], []>} : vector<8x16xf32>, vector<16x256xf32>, vector<8x256xf32> -> vector<8x256xf32>
    %c1_201 = arith.constant 1 : index
    %c0_202 = arith.constant 0 : index
    %c0_203 = arith.constant 0 : index
    %474 = vector.load %arg17[%c1_201, %c0_202, %c0_203] : memref<9x8x16xf32, #tpu.memory_space<vmem>>, vector<1x8x16xf32>
    %475 = vector.shape_cast %474 : vector<1x8x16xf32> to vector<8x16xf32>
    %cst_204 = arith.constant dense<0.000000e+00> : vector<8x256xf32>
    %476 = tpu.matmul %475, %461, %cst_204 {dimension_numbers = #tpu.dot_dimension_numbers<[1], [0], [0], [1], [0, 0, 1, 1], [], []>} : vector<8x16xf32>, vector<16x256xf32>, vector<8x256xf32> -> vector<8x256xf32>
    %477 = arith.addf %473, %476 : vector<8x256xf32>
    %478 = vector.extract_strided_slice %461 {offsets = [0, 241], sizes = [16, 15], strides = [1, 1]} : vector<16x256xf32> to vector<16x15xf32>
    %479 = vector.extract_strided_slice %461 {offsets = [0, 0], sizes = [16, 241], strides = [1, 1]} : vector<16x256xf32> to vector<16x241xf32>
    %480 = tpu.concatenate %478, %479 in 1 : vector<16x15xf32>, vector<16x241xf32> -> vector<16x256xf32>
    %481 = vector.extract_strided_slice %461 {offsets = [0, 1], sizes = [16, 255], strides = [1, 1]} : vector<16x256xf32> to vector<16x255xf32>
    %482 = vector.extract_strided_slice %461 {offsets = [0, 0], sizes = [16, 1], strides = [1, 1]} : vector<16x256xf32> to vector<16x1xf32>
    %483 = tpu.concatenate %481, %482 in 1 : vector<16x255xf32>, vector<16x1xf32> -> vector<16x256xf32>
    %484 = vector.shape_cast %10 : vector<1x256xi1> to vector<1x256xi1>
    %485 = vector.broadcast %484 : vector<1x256xi1> to vector<16x256xi1>
    %486 = arith.select %485, %480, %483 : vector<16x256xi1>, vector<16x256xf32>
    %c2_205 = arith.constant 2 : index
    %c0_206 = arith.constant 0 : index
    %c0_207 = arith.constant 0 : index
    %487 = vector.load %arg17[%c2_205, %c0_206, %c0_207] : memref<9x8x16xf32, #tpu.memory_space<vmem>>, vector<1x8x16xf32>
    %488 = vector.shape_cast %487 : vector<1x8x16xf32> to vector<8x16xf32>
    %cst_208 = arith.constant dense<0.000000e+00> : vector<8x256xf32>
    %489 = tpu.matmul %488, %486, %cst_208 {dimension_numbers = #tpu.dot_dimension_numbers<[1], [0], [0], [1], [0, 0, 1, 1], [], []>} : vector<8x16xf32>, vector<16x256xf32>, vector<8x256xf32> -> vector<8x256xf32>
    %490 = arith.addf %477, %489 : vector<8x256xf32>
    %491 = vector.extract_strided_slice %458 {offsets = [0, 15], sizes = [16, 241], strides = [1, 1]} : vector<16x256xf32> to vector<16x241xf32>
    %492 = vector.extract_strided_slice %458 {offsets = [0, 0], sizes = [16, 15], strides = [1, 1]} : vector<16x256xf32> to vector<16x15xf32>
    %493 = tpu.concatenate %491, %492 in 1 : vector<16x241xf32>, vector<16x15xf32> -> vector<16x256xf32>
    %494 = vector.extract_strided_slice %458 {offsets = [0, 255], sizes = [16, 1], strides = [1, 1]} : vector<16x256xf32> to vector<16x1xf32>
    %495 = vector.extract_strided_slice %458 {offsets = [0, 0], sizes = [16, 255], strides = [1, 1]} : vector<16x256xf32> to vector<16x255xf32>
    %496 = tpu.concatenate %494, %495 in 1 : vector<16x1xf32>, vector<16x255xf32> -> vector<16x256xf32>
    %497 = vector.shape_cast %7 : vector<1x256xi1> to vector<1x256xi1>
    %498 = vector.broadcast %497 : vector<1x256xi1> to vector<16x256xi1>
    %499 = arith.select %498, %493, %496 : vector<16x256xi1>, vector<16x256xf32>
    %c3_209 = arith.constant 3 : index
    %c0_210 = arith.constant 0 : index
    %c0_211 = arith.constant 0 : index
    %500 = vector.load %arg17[%c3_209, %c0_210, %c0_211] : memref<9x8x16xf32, #tpu.memory_space<vmem>>, vector<1x8x16xf32>
    %501 = vector.shape_cast %500 : vector<1x8x16xf32> to vector<8x16xf32>
    %cst_212 = arith.constant dense<0.000000e+00> : vector<8x256xf32>
    %502 = tpu.matmul %501, %499, %cst_212 {dimension_numbers = #tpu.dot_dimension_numbers<[1], [0], [0], [1], [0, 0, 1, 1], [], []>} : vector<8x16xf32>, vector<16x256xf32>, vector<8x256xf32> -> vector<8x256xf32>
    %503 = arith.addf %490, %502 : vector<8x256xf32>
    %c4_213 = arith.constant 4 : index
    %c0_214 = arith.constant 0 : index
    %c0_215 = arith.constant 0 : index
    %504 = vector.load %arg17[%c4_213, %c0_214, %c0_215] : memref<9x8x16xf32, #tpu.memory_space<vmem>>, vector<1x8x16xf32>
    %505 = vector.shape_cast %504 : vector<1x8x16xf32> to vector<8x16xf32>
    %cst_216 = arith.constant dense<0.000000e+00> : vector<8x256xf32>
    %506 = tpu.matmul %505, %458, %cst_216 {dimension_numbers = #tpu.dot_dimension_numbers<[1], [0], [0], [1], [0, 0, 1, 1], [], []>} : vector<8x16xf32>, vector<16x256xf32>, vector<8x256xf32> -> vector<8x256xf32>
    %507 = arith.addf %503, %506 : vector<8x256xf32>
    %508 = vector.extract_strided_slice %458 {offsets = [0, 241], sizes = [16, 15], strides = [1, 1]} : vector<16x256xf32> to vector<16x15xf32>
    %509 = vector.extract_strided_slice %458 {offsets = [0, 0], sizes = [16, 241], strides = [1, 1]} : vector<16x256xf32> to vector<16x241xf32>
    %510 = tpu.concatenate %508, %509 in 1 : vector<16x15xf32>, vector<16x241xf32> -> vector<16x256xf32>
    %511 = vector.extract_strided_slice %458 {offsets = [0, 1], sizes = [16, 255], strides = [1, 1]} : vector<16x256xf32> to vector<16x255xf32>
    %512 = vector.extract_strided_slice %458 {offsets = [0, 0], sizes = [16, 1], strides = [1, 1]} : vector<16x256xf32> to vector<16x1xf32>
    %513 = tpu.concatenate %511, %512 in 1 : vector<16x255xf32>, vector<16x1xf32> -> vector<16x256xf32>
    %514 = vector.shape_cast %10 : vector<1x256xi1> to vector<1x256xi1>
    %515 = vector.broadcast %514 : vector<1x256xi1> to vector<16x256xi1>
    %516 = arith.select %515, %510, %513 : vector<16x256xi1>, vector<16x256xf32>
    %c5_217 = arith.constant 5 : index
    %c0_218 = arith.constant 0 : index
    %c0_219 = arith.constant 0 : index
    %517 = vector.load %arg17[%c5_217, %c0_218, %c0_219] : memref<9x8x16xf32, #tpu.memory_space<vmem>>, vector<1x8x16xf32>
    %518 = vector.shape_cast %517 : vector<1x8x16xf32> to vector<8x16xf32>
    %cst_220 = arith.constant dense<0.000000e+00> : vector<8x256xf32>
    %519 = tpu.matmul %518, %516, %cst_220 {dimension_numbers = #tpu.dot_dimension_numbers<[1], [0], [0], [1], [0, 0, 1, 1], [], []>} : vector<8x16xf32>, vector<16x256xf32>, vector<8x256xf32> -> vector<8x256xf32>
    %520 = arith.addf %507, %519 : vector<8x256xf32>
    %521 = vector.extract_strided_slice %458 {offsets = [0, 16], sizes = [16, 240], strides = [1, 1]} : vector<16x256xf32> to vector<16x240xf32>
    %522 = vector.extract_strided_slice %458 {offsets = [0, 0], sizes = [16, 16], strides = [1, 1]} : vector<16x256xf32> to vector<16x16xf32>
    %523 = tpu.concatenate %521, %522 in 1 : vector<16x240xf32>, vector<16x16xf32> -> vector<16x256xf32>
    %524 = vector.extract_strided_slice %523 {offsets = [0, 15], sizes = [16, 241], strides = [1, 1]} : vector<16x256xf32> to vector<16x241xf32>
    %525 = vector.extract_strided_slice %523 {offsets = [0, 0], sizes = [16, 15], strides = [1, 1]} : vector<16x256xf32> to vector<16x15xf32>
    %526 = tpu.concatenate %524, %525 in 1 : vector<16x241xf32>, vector<16x15xf32> -> vector<16x256xf32>
    %527 = vector.extract_strided_slice %523 {offsets = [0, 255], sizes = [16, 1], strides = [1, 1]} : vector<16x256xf32> to vector<16x1xf32>
    %528 = vector.extract_strided_slice %523 {offsets = [0, 0], sizes = [16, 255], strides = [1, 1]} : vector<16x256xf32> to vector<16x255xf32>
    %529 = tpu.concatenate %527, %528 in 1 : vector<16x1xf32>, vector<16x255xf32> -> vector<16x256xf32>
    %530 = vector.shape_cast %7 : vector<1x256xi1> to vector<1x256xi1>
    %531 = vector.broadcast %530 : vector<1x256xi1> to vector<16x256xi1>
    %532 = arith.select %531, %526, %529 : vector<16x256xi1>, vector<16x256xf32>
    %c6_221 = arith.constant 6 : index
    %c0_222 = arith.constant 0 : index
    %c0_223 = arith.constant 0 : index
    %533 = vector.load %arg17[%c6_221, %c0_222, %c0_223] : memref<9x8x16xf32, #tpu.memory_space<vmem>>, vector<1x8x16xf32>
    %534 = vector.shape_cast %533 : vector<1x8x16xf32> to vector<8x16xf32>
    %cst_224 = arith.constant dense<0.000000e+00> : vector<8x256xf32>
    %535 = tpu.matmul %534, %532, %cst_224 {dimension_numbers = #tpu.dot_dimension_numbers<[1], [0], [0], [1], [0, 0, 1, 1], [], []>} : vector<8x16xf32>, vector<16x256xf32>, vector<8x256xf32> -> vector<8x256xf32>
    %536 = arith.addf %520, %535 : vector<8x256xf32>
    %c7_225 = arith.constant 7 : index
    %c0_226 = arith.constant 0 : index
    %c0_227 = arith.constant 0 : index
    %537 = vector.load %arg17[%c7_225, %c0_226, %c0_227] : memref<9x8x16xf32, #tpu.memory_space<vmem>>, vector<1x8x16xf32>
    %538 = vector.shape_cast %537 : vector<1x8x16xf32> to vector<8x16xf32>
    %cst_228 = arith.constant dense<0.000000e+00> : vector<8x256xf32>
    %539 = tpu.matmul %538, %523, %cst_228 {dimension_numbers = #tpu.dot_dimension_numbers<[1], [0], [0], [1], [0, 0, 1, 1], [], []>} : vector<8x16xf32>, vector<16x256xf32>, vector<8x256xf32> -> vector<8x256xf32>
    %540 = arith.addf %536, %539 : vector<8x256xf32>
    %541 = vector.extract_strided_slice %523 {offsets = [0, 241], sizes = [16, 15], strides = [1, 1]} : vector<16x256xf32> to vector<16x15xf32>
    %542 = vector.extract_strided_slice %523 {offsets = [0, 0], sizes = [16, 241], strides = [1, 1]} : vector<16x256xf32> to vector<16x241xf32>
    %543 = tpu.concatenate %541, %542 in 1 : vector<16x15xf32>, vector<16x241xf32> -> vector<16x256xf32>
    %544 = vector.extract_strided_slice %523 {offsets = [0, 1], sizes = [16, 255], strides = [1, 1]} : vector<16x256xf32> to vector<16x255xf32>
    %545 = vector.extract_strided_slice %523 {offsets = [0, 0], sizes = [16, 1], strides = [1, 1]} : vector<16x256xf32> to vector<16x1xf32>
    %546 = tpu.concatenate %544, %545 in 1 : vector<16x255xf32>, vector<16x1xf32> -> vector<16x256xf32>
    %547 = vector.shape_cast %10 : vector<1x256xi1> to vector<1x256xi1>
    %548 = vector.broadcast %547 : vector<1x256xi1> to vector<16x256xi1>
    %549 = arith.select %548, %543, %546 : vector<16x256xi1>, vector<16x256xf32>
    %c8_229 = arith.constant 8 : index
    %c0_230 = arith.constant 0 : index
    %c0_231 = arith.constant 0 : index
    %550 = vector.load %arg17[%c8_229, %c0_230, %c0_231] : memref<9x8x16xf32, #tpu.memory_space<vmem>>, vector<1x8x16xf32>
    %551 = vector.shape_cast %550 : vector<1x8x16xf32> to vector<8x16xf32>
    %cst_232 = arith.constant dense<0.000000e+00> : vector<8x256xf32>
    %552 = tpu.matmul %551, %549, %cst_232 {dimension_numbers = #tpu.dot_dimension_numbers<[1], [0], [0], [1], [0, 0, 1, 1], [], []>} : vector<8x16xf32>, vector<16x256xf32>, vector<8x256xf32> -> vector<8x256xf32>
    %553 = arith.addf %540, %552 : vector<8x256xf32>
    %c0_233 = arith.constant 0 : index
    %c0_234 = arith.constant 0 : index
    %554 = vector.load %arg18[%c0_233, %c0_234] : memref<8x1xf32, #tpu.memory_space<vmem>>, vector<8x1xf32>
    %555 = vector.broadcast %554 : vector<8x1xf32> to vector<8x256xf32>
    %556 = arith.addf %553, %555 : vector<8x256xf32>
    %cst_235 = arith.constant 0.000000e+00 : f32
    %557 = vector.broadcast %cst_235 : f32 to vector<8x256xf32>
    %558 = arith.maximumf %556, %557 : vector<8x256xf32>
    %559 = vector.extract_strided_slice %558 {offsets = [0, 240], sizes = [8, 16], strides = [1, 1]} : vector<8x256xf32> to vector<8x16xf32>
    %560 = vector.extract_strided_slice %558 {offsets = [0, 0], sizes = [8, 240], strides = [1, 1]} : vector<8x256xf32> to vector<8x240xf32>
    %561 = tpu.concatenate %559, %560 in 1 : vector<8x16xf32>, vector<8x240xf32> -> vector<8x256xf32>
    %562 = vector.extract_strided_slice %561 {offsets = [0, 15], sizes = [8, 241], strides = [1, 1]} : vector<8x256xf32> to vector<8x241xf32>
    %563 = vector.extract_strided_slice %561 {offsets = [0, 0], sizes = [8, 15], strides = [1, 1]} : vector<8x256xf32> to vector<8x15xf32>
    %564 = tpu.concatenate %562, %563 in 1 : vector<8x241xf32>, vector<8x15xf32> -> vector<8x256xf32>
    %565 = vector.extract_strided_slice %561 {offsets = [0, 255], sizes = [8, 1], strides = [1, 1]} : vector<8x256xf32> to vector<8x1xf32>
    %566 = vector.extract_strided_slice %561 {offsets = [0, 0], sizes = [8, 255], strides = [1, 1]} : vector<8x256xf32> to vector<8x255xf32>
    %567 = tpu.concatenate %565, %566 in 1 : vector<8x1xf32>, vector<8x255xf32> -> vector<8x256xf32>
    %568 = vector.shape_cast %7 : vector<1x256xi1> to vector<1x256xi1>
    %569 = vector.broadcast %568 : vector<1x256xi1> to vector<8x256xi1>
    %570 = arith.select %569, %564, %567 : vector<8x256xi1>, vector<8x256xf32>
    %c0_236 = arith.constant 0 : index
    %c0_237 = arith.constant 0 : index
    %c0_238 = arith.constant 0 : index
    %571 = vector.load %arg19[%c0_236, %c0_237, %c0_238] : memref<9x8x8xf32, #tpu.memory_space<vmem>>, vector<1x8x8xf32>
    %572 = vector.shape_cast %571 : vector<1x8x8xf32> to vector<8x8xf32>
    %cst_239 = arith.constant dense<0.000000e+00> : vector<8x256xf32>
    %573 = tpu.matmul %572, %570, %cst_239 {dimension_numbers = #tpu.dot_dimension_numbers<[1], [0], [0], [1], [0, 0, 1, 1], [], []>} : vector<8x8xf32>, vector<8x256xf32>, vector<8x256xf32> -> vector<8x256xf32>
    %c1_240 = arith.constant 1 : index
    %c0_241 = arith.constant 0 : index
    %c0_242 = arith.constant 0 : index
    %574 = vector.load %arg19[%c1_240, %c0_241, %c0_242] : memref<9x8x8xf32, #tpu.memory_space<vmem>>, vector<1x8x8xf32>
    %575 = vector.shape_cast %574 : vector<1x8x8xf32> to vector<8x8xf32>
    %cst_243 = arith.constant dense<0.000000e+00> : vector<8x256xf32>
    %576 = tpu.matmul %575, %561, %cst_243 {dimension_numbers = #tpu.dot_dimension_numbers<[1], [0], [0], [1], [0, 0, 1, 1], [], []>} : vector<8x8xf32>, vector<8x256xf32>, vector<8x256xf32> -> vector<8x256xf32>
    %577 = arith.addf %573, %576 : vector<8x256xf32>
    %578 = vector.extract_strided_slice %561 {offsets = [0, 241], sizes = [8, 15], strides = [1, 1]} : vector<8x256xf32> to vector<8x15xf32>
    %579 = vector.extract_strided_slice %561 {offsets = [0, 0], sizes = [8, 241], strides = [1, 1]} : vector<8x256xf32> to vector<8x241xf32>
    %580 = tpu.concatenate %578, %579 in 1 : vector<8x15xf32>, vector<8x241xf32> -> vector<8x256xf32>
    %581 = vector.extract_strided_slice %561 {offsets = [0, 1], sizes = [8, 255], strides = [1, 1]} : vector<8x256xf32> to vector<8x255xf32>
    %582 = vector.extract_strided_slice %561 {offsets = [0, 0], sizes = [8, 1], strides = [1, 1]} : vector<8x256xf32> to vector<8x1xf32>
    %583 = tpu.concatenate %581, %582 in 1 : vector<8x255xf32>, vector<8x1xf32> -> vector<8x256xf32>
    %584 = vector.shape_cast %10 : vector<1x256xi1> to vector<1x256xi1>
    %585 = vector.broadcast %584 : vector<1x256xi1> to vector<8x256xi1>
    %586 = arith.select %585, %580, %583 : vector<8x256xi1>, vector<8x256xf32>
    %c2_244 = arith.constant 2 : index
    %c0_245 = arith.constant 0 : index
    %c0_246 = arith.constant 0 : index
    %587 = vector.load %arg19[%c2_244, %c0_245, %c0_246] : memref<9x8x8xf32, #tpu.memory_space<vmem>>, vector<1x8x8xf32>
    %588 = vector.shape_cast %587 : vector<1x8x8xf32> to vector<8x8xf32>
    %cst_247 = arith.constant dense<0.000000e+00> : vector<8x256xf32>
    %589 = tpu.matmul %588, %586, %cst_247 {dimension_numbers = #tpu.dot_dimension_numbers<[1], [0], [0], [1], [0, 0, 1, 1], [], []>} : vector<8x8xf32>, vector<8x256xf32>, vector<8x256xf32> -> vector<8x256xf32>
    %590 = arith.addf %577, %589 : vector<8x256xf32>
    %591 = vector.extract_strided_slice %558 {offsets = [0, 15], sizes = [8, 241], strides = [1, 1]} : vector<8x256xf32> to vector<8x241xf32>
    %592 = vector.extract_strided_slice %558 {offsets = [0, 0], sizes = [8, 15], strides = [1, 1]} : vector<8x256xf32> to vector<8x15xf32>
    %593 = tpu.concatenate %591, %592 in 1 : vector<8x241xf32>, vector<8x15xf32> -> vector<8x256xf32>
    %594 = vector.extract_strided_slice %558 {offsets = [0, 255], sizes = [8, 1], strides = [1, 1]} : vector<8x256xf32> to vector<8x1xf32>
    %595 = vector.extract_strided_slice %558 {offsets = [0, 0], sizes = [8, 255], strides = [1, 1]} : vector<8x256xf32> to vector<8x255xf32>
    %596 = tpu.concatenate %594, %595 in 1 : vector<8x1xf32>, vector<8x255xf32> -> vector<8x256xf32>
    %597 = vector.shape_cast %7 : vector<1x256xi1> to vector<1x256xi1>
    %598 = vector.broadcast %597 : vector<1x256xi1> to vector<8x256xi1>
    %599 = arith.select %598, %593, %596 : vector<8x256xi1>, vector<8x256xf32>
    %c3_248 = arith.constant 3 : index
    %c0_249 = arith.constant 0 : index
    %c0_250 = arith.constant 0 : index
    %600 = vector.load %arg19[%c3_248, %c0_249, %c0_250] : memref<9x8x8xf32, #tpu.memory_space<vmem>>, vector<1x8x8xf32>
    %601 = vector.shape_cast %600 : vector<1x8x8xf32> to vector<8x8xf32>
    %cst_251 = arith.constant dense<0.000000e+00> : vector<8x256xf32>
    %602 = tpu.matmul %601, %599, %cst_251 {dimension_numbers = #tpu.dot_dimension_numbers<[1], [0], [0], [1], [0, 0, 1, 1], [], []>} : vector<8x8xf32>, vector<8x256xf32>, vector<8x256xf32> -> vector<8x256xf32>
    %603 = arith.addf %590, %602 : vector<8x256xf32>
    %c4_252 = arith.constant 4 : index
    %c0_253 = arith.constant 0 : index
    %c0_254 = arith.constant 0 : index
    %604 = vector.load %arg19[%c4_252, %c0_253, %c0_254] : memref<9x8x8xf32, #tpu.memory_space<vmem>>, vector<1x8x8xf32>
    %605 = vector.shape_cast %604 : vector<1x8x8xf32> to vector<8x8xf32>
    %cst_255 = arith.constant dense<0.000000e+00> : vector<8x256xf32>
    %606 = tpu.matmul %605, %558, %cst_255 {dimension_numbers = #tpu.dot_dimension_numbers<[1], [0], [0], [1], [0, 0, 1, 1], [], []>} : vector<8x8xf32>, vector<8x256xf32>, vector<8x256xf32> -> vector<8x256xf32>
    %607 = arith.addf %603, %606 : vector<8x256xf32>
    %608 = vector.extract_strided_slice %558 {offsets = [0, 241], sizes = [8, 15], strides = [1, 1]} : vector<8x256xf32> to vector<8x15xf32>
    %609 = vector.extract_strided_slice %558 {offsets = [0, 0], sizes = [8, 241], strides = [1, 1]} : vector<8x256xf32> to vector<8x241xf32>
    %610 = tpu.concatenate %608, %609 in 1 : vector<8x15xf32>, vector<8x241xf32> -> vector<8x256xf32>
    %611 = vector.extract_strided_slice %558 {offsets = [0, 1], sizes = [8, 255], strides = [1, 1]} : vector<8x256xf32> to vector<8x255xf32>
    %612 = vector.extract_strided_slice %558 {offsets = [0, 0], sizes = [8, 1], strides = [1, 1]} : vector<8x256xf32> to vector<8x1xf32>
    %613 = tpu.concatenate %611, %612 in 1 : vector<8x255xf32>, vector<8x1xf32> -> vector<8x256xf32>
    %614 = vector.shape_cast %10 : vector<1x256xi1> to vector<1x256xi1>
    %615 = vector.broadcast %614 : vector<1x256xi1> to vector<8x256xi1>
    %616 = arith.select %615, %610, %613 : vector<8x256xi1>, vector<8x256xf32>
    %c5_256 = arith.constant 5 : index
    %c0_257 = arith.constant 0 : index
    %c0_258 = arith.constant 0 : index
    %617 = vector.load %arg19[%c5_256, %c0_257, %c0_258] : memref<9x8x8xf32, #tpu.memory_space<vmem>>, vector<1x8x8xf32>
    %618 = vector.shape_cast %617 : vector<1x8x8xf32> to vector<8x8xf32>
    %cst_259 = arith.constant dense<0.000000e+00> : vector<8x256xf32>
    %619 = tpu.matmul %618, %616, %cst_259 {dimension_numbers = #tpu.dot_dimension_numbers<[1], [0], [0], [1], [0, 0, 1, 1], [], []>} : vector<8x8xf32>, vector<8x256xf32>, vector<8x256xf32> -> vector<8x256xf32>
    %620 = arith.addf %607, %619 : vector<8x256xf32>
    %621 = vector.extract_strided_slice %558 {offsets = [0, 16], sizes = [8, 240], strides = [1, 1]} : vector<8x256xf32> to vector<8x240xf32>
    %622 = vector.extract_strided_slice %558 {offsets = [0, 0], sizes = [8, 16], strides = [1, 1]} : vector<8x256xf32> to vector<8x16xf32>
    %623 = tpu.concatenate %621, %622 in 1 : vector<8x240xf32>, vector<8x16xf32> -> vector<8x256xf32>
    %624 = vector.extract_strided_slice %623 {offsets = [0, 15], sizes = [8, 241], strides = [1, 1]} : vector<8x256xf32> to vector<8x241xf32>
    %625 = vector.extract_strided_slice %623 {offsets = [0, 0], sizes = [8, 15], strides = [1, 1]} : vector<8x256xf32> to vector<8x15xf32>
    %626 = tpu.concatenate %624, %625 in 1 : vector<8x241xf32>, vector<8x15xf32> -> vector<8x256xf32>
    %627 = vector.extract_strided_slice %623 {offsets = [0, 255], sizes = [8, 1], strides = [1, 1]} : vector<8x256xf32> to vector<8x1xf32>
    %628 = vector.extract_strided_slice %623 {offsets = [0, 0], sizes = [8, 255], strides = [1, 1]} : vector<8x256xf32> to vector<8x255xf32>
    %629 = tpu.concatenate %627, %628 in 1 : vector<8x1xf32>, vector<8x255xf32> -> vector<8x256xf32>
    %630 = vector.shape_cast %7 : vector<1x256xi1> to vector<1x256xi1>
    %631 = vector.broadcast %630 : vector<1x256xi1> to vector<8x256xi1>
    %632 = arith.select %631, %626, %629 : vector<8x256xi1>, vector<8x256xf32>
    %c6_260 = arith.constant 6 : index
    %c0_261 = arith.constant 0 : index
    %c0_262 = arith.constant 0 : index
    %633 = vector.load %arg19[%c6_260, %c0_261, %c0_262] : memref<9x8x8xf32, #tpu.memory_space<vmem>>, vector<1x8x8xf32>
    %634 = vector.shape_cast %633 : vector<1x8x8xf32> to vector<8x8xf32>
    %cst_263 = arith.constant dense<0.000000e+00> : vector<8x256xf32>
    %635 = tpu.matmul %634, %632, %cst_263 {dimension_numbers = #tpu.dot_dimension_numbers<[1], [0], [0], [1], [0, 0, 1, 1], [], []>} : vector<8x8xf32>, vector<8x256xf32>, vector<8x256xf32> -> vector<8x256xf32>
    %636 = arith.addf %620, %635 : vector<8x256xf32>
    %c7_264 = arith.constant 7 : index
    %c0_265 = arith.constant 0 : index
    %c0_266 = arith.constant 0 : index
    %637 = vector.load %arg19[%c7_264, %c0_265, %c0_266] : memref<9x8x8xf32, #tpu.memory_space<vmem>>, vector<1x8x8xf32>
    %638 = vector.shape_cast %637 : vector<1x8x8xf32> to vector<8x8xf32>
    %cst_267 = arith.constant dense<0.000000e+00> : vector<8x256xf32>
    %639 = tpu.matmul %638, %623, %cst_267 {dimension_numbers = #tpu.dot_dimension_numbers<[1], [0], [0], [1], [0, 0, 1, 1], [], []>} : vector<8x8xf32>, vector<8x256xf32>, vector<8x256xf32> -> vector<8x256xf32>
    %640 = arith.addf %636, %639 : vector<8x256xf32>
    %641 = vector.extract_strided_slice %623 {offsets = [0, 241], sizes = [8, 15], strides = [1, 1]} : vector<8x256xf32> to vector<8x15xf32>
    %642 = vector.extract_strided_slice %623 {offsets = [0, 0], sizes = [8, 241], strides = [1, 1]} : vector<8x256xf32> to vector<8x241xf32>
    %643 = tpu.concatenate %641, %642 in 1 : vector<8x15xf32>, vector<8x241xf32> -> vector<8x256xf32>
    %644 = vector.extract_strided_slice %623 {offsets = [0, 1], sizes = [8, 255], strides = [1, 1]} : vector<8x256xf32> to vector<8x255xf32>
    %645 = vector.extract_strided_slice %623 {offsets = [0, 0], sizes = [8, 1], strides = [1, 1]} : vector<8x256xf32> to vector<8x1xf32>
    %646 = tpu.concatenate %644, %645 in 1 : vector<8x255xf32>, vector<8x1xf32> -> vector<8x256xf32>
    %647 = vector.shape_cast %10 : vector<1x256xi1> to vector<1x256xi1>
    %648 = vector.broadcast %647 : vector<1x256xi1> to vector<8x256xi1>
    %649 = arith.select %648, %643, %646 : vector<8x256xi1>, vector<8x256xf32>
    %c8_268 = arith.constant 8 : index
    %c0_269 = arith.constant 0 : index
    %c0_270 = arith.constant 0 : index
    %650 = vector.load %arg19[%c8_268, %c0_269, %c0_270] : memref<9x8x8xf32, #tpu.memory_space<vmem>>, vector<1x8x8xf32>
    %651 = vector.shape_cast %650 : vector<1x8x8xf32> to vector<8x8xf32>
    %cst_271 = arith.constant dense<0.000000e+00> : vector<8x256xf32>
    %652 = tpu.matmul %651, %649, %cst_271 {dimension_numbers = #tpu.dot_dimension_numbers<[1], [0], [0], [1], [0, 0, 1, 1], [], []>} : vector<8x8xf32>, vector<8x256xf32>, vector<8x256xf32> -> vector<8x256xf32>
    %653 = arith.addf %640, %652 : vector<8x256xf32>
    %c0_272 = arith.constant 0 : index
    %c0_273 = arith.constant 0 : index
    %654 = vector.load %arg20[%c0_272, %c0_273] : memref<8x1xf32, #tpu.memory_space<vmem>>, vector<8x1xf32>
    %655 = vector.broadcast %654 : vector<8x1xf32> to vector<8x256xf32>
    %656 = arith.addf %653, %655 : vector<8x256xf32>
    %cst_274 = arith.constant 0.000000e+00 : f32
    %657 = vector.broadcast %cst_274 : f32 to vector<8x256xf32>
    %658 = arith.maximumf %656, %657 : vector<8x256xf32>
    %c0_275 = arith.constant 0 : index
    %c0_276 = arith.constant 0 : index
    %659 = vector.load %arg21[%c0_275, %c0_276] : memref<4x8xf32, #tpu.memory_space<vmem>>, vector<4x8xf32>
    %cst_277 = arith.constant dense<0.000000e+00> : vector<4x256xf32>
    %660 = tpu.matmul %659, %658, %cst_277 {dimension_numbers = #tpu.dot_dimension_numbers<[1], [0], [0], [1], [0, 0, 1, 1], [], []>} : vector<4x8xf32>, vector<8x256xf32>, vector<4x256xf32> -> vector<4x256xf32>
    %c0_278 = arith.constant 0 : index
    %c0_279 = arith.constant 0 : index
    %661 = vector.load %arg22[%c0_278, %c0_279] : memref<4x1xf32, #tpu.memory_space<vmem>>, vector<4x1xf32>
    %662 = vector.broadcast %661 : vector<4x1xf32> to vector<4x256xf32>
    %663 = arith.addf %660, %662 : vector<4x256xf32>
    %664 = arith.addf %663, %3 : vector<4x256xf32>
    %c0_280 = arith.constant 0 : index
    %c0_281 = arith.constant 0 : index
    %c0_282 = arith.constant 0 : index
    %665 = vector.load %arg23[%c0_280, %c0_281, %c0_282] : memref<1x4x256xf32, #tpu.memory_space<vmem>>, vector<1x4x256xf32>
    %666 = vector.shape_cast %665 : vector<1x4x256xf32> to vector<4x256xf32>
    %667 = vector.shape_cast %664 : vector<4x256xf32> to vector<1x4x256xf32>
    tpu.vector_store %arg23[%c0_280, %c0_281, %c0_282], %667 {strides = array<i32>} : memref<1x4x256xf32, #tpu.memory_space<vmem>>, vector<1x4x256xf32>,
    return
  }
  func.func @transform_0(%arg0: i32) -> (i32, i32, i32) {
    %c0_i32 = arith.constant 0 : i32
    %c0_i32_0 = arith.constant 0 : i32
    %c0_i32_1 = arith.constant 0 : i32
    return %arg0, %c0_i32, %c0_i32_0 : i32, i32, i32
  }
  func.func @transform_1(%arg0: i32) -> (i32, i32) {
    %c0_i32 = arith.constant 0 : i32
    %c0_i32_0 = arith.constant 0 : i32
    %c0_i32_1 = arith.constant 0 : i32
    return %c0_i32, %c0_i32_0 : i32, i32
  }
  func.func @transform_2(%arg0: i32) -> (i32, i32) {
    %c0_i32 = arith.constant 0 : i32
    %c0_i32_0 = arith.constant 0 : i32
    %c0_i32_1 = arith.constant 0 : i32
    return %c0_i32, %c0_i32_0 : i32, i32
  }
  func.func @transform_3(%arg0: i32) -> (i32, i32, i32) {
    %c0_i32 = arith.constant 0 : i32
    %c0_i32_0 = arith.constant 0 : i32
    %c0_i32_1 = arith.constant 0 : i32
    %c0_i32_2 = arith.constant 0 : i32
    return %c0_i32, %c0_i32_0, %c0_i32_1 : i32, i32, i32
  }
  func.func @transform_4(%arg0: i32) -> (i32, i32) {
    %c0_i32 = arith.constant 0 : i32
    %c0_i32_0 = arith.constant 0 : i32
    %c0_i32_1 = arith.constant 0 : i32
    return %c0_i32, %c0_i32_0 : i32, i32
  }
  func.func @transform_5(%arg0: i32) -> (i32, i32, i32) {
    %c0_i32 = arith.constant 0 : i32
    %c0_i32_0 = arith.constant 0 : i32
    %c0_i32_1 = arith.constant 0 : i32
    %c0_i32_2 = arith.constant 0 : i32
    return %c0_i32, %c0_i32_0, %c0_i32_1 : i32, i32, i32
  }
  func.func @transform_6(%arg0: i32) -> (i32, i32) {
    %c0_i32 = arith.constant 0 : i32
    %c0_i32_0 = arith.constant 0 : i32
    %c0_i32_1 = arith.constant 0 : i32
    return %c0_i32, %c0_i32_0 : i32, i32
  }
  func.func @transform_7(%arg0: i32) -> (i32, i32) {
    %c0_i32 = arith.constant 0 : i32
    %c0_i32_0 = arith.constant 0 : i32
    %c0_i32_1 = arith.constant 0 : i32
    return %c0_i32, %c0_i32_0 : i32, i32
  }
  func.func @transform_8(%arg0: i32) -> (i32, i32) {
    %c0_i32 = arith.constant 0 : i32
    %c0_i32_0 = arith.constant 0 : i32
    %c0_i32_1 = arith.constant 0 : i32
    return %c0_i32, %c0_i32_0 : i32, i32
  }
  func.func @transform_9(%arg0: i32) -> (i32, i32, i32) {
    %c0_i32 = arith.constant 0 : i32
    %c0_i32_0 = arith.constant 0 : i32
    %c0_i32_1 = arith.constant 0 : i32
    %c0_i32_2 = arith.constant 0 : i32
    return %c0_i32, %c0_i32_0, %c0_i32_1 : i32, i32, i32
  }
  func.func @transform_10(%arg0: i32) -> (i32, i32) {
    %c0_i32 = arith.constant 0 : i32
    %c0_i32_0 = arith.constant 0 : i32
    %c0_i32_1 = arith.constant 0 : i32
    return %c0_i32, %c0_i32_0 : i32, i32
  }
  func.func @transform_11(%arg0: i32) -> (i32, i32, i32) {
    %c0_i32 = arith.constant 0 : i32
    %c0_i32_0 = arith.constant 0 : i32
    %c0_i32_1 = arith.constant 0 : i32
    %c0_i32_2 = arith.constant 0 : i32
    return %c0_i32, %c0_i32_0, %c0_i32_1 : i32, i32, i32
  }
  func.func @transform_12(%arg0: i32) -> (i32, i32) {
    %c0_i32 = arith.constant 0 : i32
    %c0_i32_0 = arith.constant 0 : i32
    %c0_i32_1 = arith.constant 0 : i32
    return %c0_i32, %c0_i32_0 : i32, i32
  }
  func.func @transform_13(%arg0: i32) -> (i32, i32, i32) {
    %c0_i32 = arith.constant 0 : i32
    %c0_i32_0 = arith.constant 0 : i32
    %c0_i32_1 = arith.constant 0 : i32
    %c0_i32_2 = arith.constant 0 : i32
    return %c0_i32, %c0_i32_0, %c0_i32_1 : i32, i32, i32
  }
  func.func @transform_14(%arg0: i32) -> (i32, i32) {
    %c0_i32 = arith.constant 0 : i32
    %c0_i32_0 = arith.constant 0 : i32
    %c0_i32_1 = arith.constant 0 : i32
    return %c0_i32, %c0_i32_0 : i32, i32
  }
  func.func @transform_15(%arg0: i32) -> (i32, i32, i32) {
    %c0_i32 = arith.constant 0 : i32
    %c0_i32_0 = arith.constant 0 : i32
    %c0_i32_1 = arith.constant 0 : i32
    %c0_i32_2 = arith.constant 0 : i32
    return %c0_i32, %c0_i32_0, %c0_i32_1 : i32, i32, i32
  }
  func.func @transform_16(%arg0: i32) -> (i32, i32, i32) {
    %c0_i32 = arith.constant 0 : i32
    %c0_i32_0 = arith.constant 0 : i32
    %c0_i32_1 = arith.constant 0 : i32
    %c0_i32_2 = arith.constant 0 : i32
    return %c0_i32, %c0_i32_0, %c0_i32_1 : i32, i32, i32
  }
  func.func @transform_17(%arg0: i32) -> (i32, i32) {
    %c0_i32 = arith.constant 0 : i32
    %c0_i32_0 = arith.constant 0 : i32
    %c0_i32_1 = arith.constant 0 : i32
    return %c0_i32, %c0_i32_0 : i32, i32
  }
  func.func @transform_18(%arg0: i32) -> (i32, i32, i32) {
    %c0_i32 = arith.constant 0 : i32
    %c0_i32_0 = arith.constant 0 : i32
    %c0_i32_1 = arith.constant 0 : i32
    %c0_i32_2 = arith.constant 0 : i32
    return %c0_i32, %c0_i32_0, %c0_i32_1 : i32, i32, i32
  }
  func.func @transform_19(%arg0: i32) -> (i32, i32) {
    %c0_i32 = arith.constant 0 : i32
    %c0_i32_0 = arith.constant 0 : i32
    %c0_i32_1 = arith.constant 0 : i32
    return %c0_i32, %c0_i32_0 : i32, i32
  }
  func.func @transform_20(%arg0: i32) -> (i32, i32) {
    %c0_i32 = arith.constant 0 : i32
    %c0_i32_0 = arith.constant 0 : i32
    %c0_i32_1 = arith.constant 0 : i32
    return %c0_i32, %c0_i32_0 : i32, i32
  }
  func.func @transform_21(%arg0: i32) -> (i32, i32) {
    %c0_i32 = arith.constant 0 : i32
    %c0_i32_0 = arith.constant 0 : i32
    %c0_i32_1 = arith.constant 0 : i32
    return %c0_i32, %c0_i32_0 : i32, i32
  }
  func.func @transform_22(%arg0: i32) -> (i32, i32, i32) {
    %c0_i32 = arith.constant 0 : i32
    %c0_i32_0 = arith.constant 0 : i32
    %c0_i32_1 = arith.constant 0 : i32
    return %arg0, %c0_i32, %c0_i32_0 : i32, i32, i32
  }
}

</mosaic_0001>

<llo_original>
// kernel: op_correction.1
$region0: #{op_correction.1}
  #allocation0 [shape = 'u32[]', space=smem, size = 0x4, offset = 0x4, fixed_abs, tag = 'smem constant byte address 0x4 - core index']
  #allocation1 [shape = 'u32[144,128]{1,0:T(1,128)}', space=vmem, size = 0x12000, scoped, tag = 'internal scratch']
  %s0 = inlined_call_operand.vmem [shape: f32[2,3,256], index: 0, kind: input, shape index: {}]
  %s1 = inlined_call_operand.vmem [shape: f32[4,3], index: 1, kind: input, shape index: {}]
  %s2 = inlined_call_operand.vmem [shape: f32[2,256], index: 2, kind: input, shape index: {}]
  %s3 = inlined_call_operand.vmem [shape: f32[9,8,4], index: 3, kind: input, shape index: {}]
  %s4 = inlined_call_operand.vmem [shape: f32[8,1], index: 4, kind: input, shape index: {}]
  %s5 = inlined_call_operand.vmem [shape: f32[9,8,8], index: 5, kind: input, shape index: {}]
  %s6 = inlined_call_operand.vmem [shape: f32[8,1], index: 6, kind: input, shape index: {}]
  %s7 = inlined_call_operand.vmem [shape: f32[2,64], index: 7, kind: input, shape index: {}]
  %s8 = inlined_call_operand.vmem [shape: f32[256,64], index: 8, kind: input, shape index: {}]
  %s9 = inlined_call_operand.vmem [shape: f32[9,16,8], index: 9, kind: input, shape index: {}]
  %s10 = inlined_call_operand.vmem [shape: f32[16,1], index: 10, kind: input, shape index: {}]
  %s11 = inlined_call_operand.vmem [shape: f32[9,16,16], index: 11, kind: input, shape index: {}]
  %s12 = inlined_call_operand.vmem [shape: f32[16,1], index: 12, kind: input, shape index: {}]
  %s13 = inlined_call_operand.vmem [shape: f32[4,8,16], index: 13, kind: input, shape index: {}]
  %s14 = inlined_call_operand.vmem [shape: f32[8,1], index: 14, kind: input, shape index: {}]
  %s15 = inlined_call_operand.vmem [shape: f32[4,64,256], index: 15, kind: input, shape index: {}]
  %s16 = inlined_call_operand.vmem [shape: f32[9,8,16], index: 16, kind: input, shape index: {}]
  %s17 = inlined_call_operand.vmem [shape: f32[8,1], index: 17, kind: input, shape index: {}]
  %s18 = inlined_call_operand.vmem [shape: f32[9,8,8], index: 18, kind: input, shape index: {}]
  %s19 = inlined_call_operand.vmem [shape: f32[8,1], index: 19, kind: input, shape index: {}]
  %s20 = inlined_call_operand.vmem [shape: f32[4,8], index: 20, kind: input, shape index: {}]
  %s21 = inlined_call_operand.vmem [shape: f32[4,1], index: 21, kind: input, shape index: {}]
  %s22 = inlined_call_operand.vmem [shape: f32[2,4,256], index: 22, kind: output, shape index: {}]
  %s23 = sld [smem:[#allocation0]]
  $region121: #{op_correction.1} parent=0
    _
  %s25 = ssub.s32 1, %s23
  %s26 = scalar_select 0, %s25, %s23
  loop: start=0, step=1, limit=4
  $region2: #{op_correction.1} parent=0 // loop_pre_header
    _
  $region3: #{op_correction.1} parent=0 // loop_header
    %s28 = sphi 0, %s32
    %p29 = scmp.ge.s32.totalorder %s28, 4
    %s38 = sphi 0, %s40
    %s41 = sphi 0, %s38
    %s42 = sphi 0, %s41
    %s58 = sphi 0, %s42
    %s62 = sphi 0, %s62
    %s64 = sphi 0, %s62
    %s65 = sphi 0, %s64
    %s79 = sphi 0, %s65
    %s83 = sphi 0, %s83
    %s85 = sphi 0, %s83
    %s86 = sphi 0, %s85
    %s100 = sphi 0, %s86
    %s104 = sphi 0, %s104
    %s106 = sphi 0, %s104
    %s107 = sphi 0, %s106
    %s121 = sphi 0, %s107
    %s125 = sphi 0, %s125
    %s127 = sphi 0, %s125
    %s128 = sphi 0, %s127
    %s142 = sphi 0, %s128
    %s146 = sphi 0, %s146
    %s148 = sphi 0, %s146
    %s149 = sphi 0, %s148
    %s163 = sphi 0, %s149
    %s167 = sphi 0, %s167
    %s169 = sphi 0, %s167
    %s170 = sphi 0, %s169
    %s184 = sphi 0, %s170
    %s188 = sphi 0, %s188
    %s190 = sphi 0, %s188
    %s191 = sphi 0, %s190
    %s205 = sphi 0, %s191
    %s209 = sphi 0, %s209
    %s211 = sphi 0, %s209
    %s212 = sphi 0, %s211
    %s226 = sphi 0, %s212
    %s230 = sphi 0, %s230
    %s232 = sphi 0, %s230
    %s233 = sphi 0, %s232
    %s247 = sphi 0, %s233
    %s251 = sphi 0, %s251
    %s253 = sphi 0, %s251
    %s254 = sphi 0, %s253
    %s268 = sphi 0, %s254
    %s272 = sphi 0, %s272
    %s274 = sphi 0, %s272
    %s275 = sphi 0, %s274
    %s289 = sphi 0, %s275
    %s293 = sphi 0, %s293
    %s295 = sphi 0, %s293
    %s296 = sphi 0, %s295
    %s310 = sphi 0, %s296
    %s314 = sphi 0, %s314
    %s316 = sphi 0, %s314
    %s317 = sphi 0, %s316
    %s331 = sphi 0, %s317
    %s335 = sphi 0, %s335
    %s337 = sphi 0, %s335
    %s338 = sphi 0, %s337
    %s352 = sphi 0, %s338
    %s356 = sphi 0, %s356
    %s358 = sphi 0, %s356
    %s359 = sphi 0, %s358
    %s373 = sphi 0, %s359
    %s377 = sphi 0, %s377
    %s379 = sphi 0, %s377
    %s380 = sphi 0, %s379
    %s394 = sphi 0, %s380
    %s398 = sphi 0, %s398
    %s400 = sphi 0, %s398
    %s401 = sphi 0, %s400
    %s415 = sphi 0, %s401
    %s419 = sphi 0, %s419
    %s421 = sphi 0, %s419
    %s422 = sphi 0, %s421
    %s436 = sphi 0, %s422
    %s440 = sphi 0, %s440
    %s442 = sphi 0, %s440
    %s443 = sphi 0, %s442
    %s457 = sphi 0, %s443
    %s461 = sphi 0, %s461
    %s463 = sphi 0, %s461
    %s464 = sphi 0, %s463
    %s478 = sphi 0, %s464
    %s482 = sphi 0, %s482
    %s484 = sphi 0, %s482
    %s485 = sphi 0, %s484
    %s499 = sphi 0, %s485
    %s505 = sphi 0, %s507
    %s508 = sphi 0, %s505
    %s509 = sphi 0, %s508
    %s525 = sphi 0, %s509
  $region4: #{op_correction.1} parent=0 // loop_header_branch
    %31 = sbr.rel (%p29) target = $region8
  $region5: #{op_correction.1} parent=0 // loop_body
    %s33 = ssub.s32 %s28, 1
    %s34 = ssub.s32 %s28, 2
    %s35 = sadd.s32 %s28, 1
    %s36 = ssub.s32 %s28, %s35
    %p37 = scmp.eq.s32.totalorder %s36, 0
    %s39 = sadd.s32 %s38, 1
    %s40 = scalar_select %p37, %s38, %s39
    %p43 = pneg %p37
    %p44 = scmp.eq.s32.totalorder %s28, 1
    %p45 = por %p43, %p44
    %p46 = scmp.ne.s32.totalorder %s38, %s41
    %p47 = scmp.eq.s32.totalorder %s28, 0
    %p48 = por %p46, %p47
    %p49 = scmp.ne.s32.totalorder %s38, %s41
    %p50 = scmp.eq.s32.totalorder %s33, 1
    %p51 = por %p49, %p50
    %p52 = scmp.ne.s32.totalorder %s41, %s42
    %p53 = scmp.eq.s32.totalorder %s33, 0
    %p54 = por %p52, %p53
    %p55 = scmp.ne.s32.totalorder %s41, %s42
    %p56 = scmp.eq.s32.totalorder %s34, 1
    %p57 = por %p55, %p56
    %p59 = scmp.ne.s32.totalorder %s42, %s58
    %p60 = scmp.eq.s32.totalorder %s34, 0
    %p61 = por %p59, %p60
    %s63 = sadd.s32 %s62, 1
    %p66 = scmp.eq.s32.totalorder %s28, 1
    %p67 = scmp.ne.s32.totalorder %s62, %s64
    %p68 = scmp.eq.s32.totalorder %s28, 0
    %p69 = por %p67, %p68
    %p70 = scmp.ne.s32.totalorder %s62, %s64
    %p71 = scmp.eq.s32.totalorder %s33, 1
    %p72 = por %p70, %p71
    %p73 = scmp.ne.s32.totalorder %s64, %s65
    %p74 = scmp.eq.s32.totalorder %s33, 0
    %p75 = por %p73, %p74
    %p76 = scmp.ne.s32.totalorder %s64, %s65
    %p77 = scmp.eq.s32.totalorder %s34, 1
    %p78 = por %p76, %p77
    %p80 = scmp.ne.s32.totalorder %s65, %s79
    %p81 = scmp.eq.s32.totalorder %s34, 0
    %p82 = por %p80, %p81
    %s84 = sadd.s32 %s83, 1
    %p87 = scmp.eq.s32.totalorder %s28, 1
    %p88 = scmp.ne.s32.totalorder %s83, %s85
    %p89 = scmp.eq.s32.totalorder %s28, 0
    %p90 = por %p88, %p89
    %p91 = scmp.ne.s32.totalorder %s83, %s85
    %p92 = scmp.eq.s32.totalorder %s33, 1
    %p93 = por %p91, %p92
    %p94 = scmp.ne.s32.totalorder %s85, %s86
    %p95 = scmp.eq.s32.totalorder %s33, 0
    %p96 = por %p94, %p95
    %p97 = scmp.ne.s32.totalorder %s85, %s86
    %p98 = scmp.eq.s32.totalorder %s34, 1
    %p99 = por %p97, %p98
    %p101 = scmp.ne.s32.totalorder %s86, %s100
    %p102 = scmp.eq.s32.totalorder %s34, 0
    %p103 = por %p101, %p102
    %s105 = sadd.s32 %s104, 1
    %p108 = scmp.eq.s32.totalorder %s28, 1
    %p109 = scmp.ne.s32.totalorder %s104, %s106
    %p110 = scmp.eq.s32.totalorder %s28, 0
    %p111 = por %p109, %p110
    %p112 = scmp.ne.s32.totalorder %s104, %s106
    %p113 = scmp.eq.s32.totalorder %s33, 1
    %p114 = por %p112, %p113
    %p115 = scmp.ne.s32.totalorder %s106, %s107
    %p116 = scmp.eq.s32.totalorder %s33, 0
    %p117 = por %p115, %p116
    %p118 = scmp.ne.s32.totalorder %s106, %s107
    %p119 = scmp.eq.s32.totalorder %s34, 1
    %p120 = por %p118, %p119
    %p122 = scmp.ne.s32.totalorder %s107, %s121
    %p123 = scmp.eq.s32.totalorder %s34, 0
    %p124 = por %p122, %p123
    %s126 = sadd.s32 %s125, 1
    %p129 = scmp.eq.s32.totalorder %s28, 1
    %p130 = scmp.ne.s32.totalorder %s125, %s127
    %p131 = scmp.eq.s32.totalorder %s28, 0
    %p132 = por %p130, %p131
    %p133 = scmp.ne.s32.totalorder %s125, %s127
    %p134 = scmp.eq.s32.totalorder %s33, 1
    %p135 = por %p133, %p134
    %p136 = scmp.ne.s32.totalorder %s127, %s128
    %p137 = scmp.eq.s32.totalorder %s33, 0
    %p138 = por %p136, %p137
    %p139 = scmp.ne.s32.totalorder %s127, %s128
    %p140 = scmp.eq.s32.totalorder %s34, 1
    %p141 = por %p139, %p140
    %p143 = scmp.ne.s32.totalorder %s128, %s142
    %p144 = scmp.eq.s32.totalorder %s34, 0
    %p145 = por %p143, %p144
    %s147 = sadd.s32 %s146, 1
    %p150 = scmp.eq.s32.totalorder %s28, 1
    %p151 = scmp.ne.s32.totalorder %s146, %s148
    %p152 = scmp.eq.s32.totalorder %s28, 0
    %p153 = por %p151, %p152
    %p154 = scmp.ne.s32.totalorder %s146, %s148
    %p155 = scmp.eq.s32.totalorder %s33, 1
    %p156 = por %p154, %p155
    %p157 = scmp.ne.s32.totalorder %s148, %s149
    %p158 = scmp.eq.s32.totalorder %s33, 0
    %p159 = por %p157, %p158
    %p160 = scmp.ne.s32.totalorder %s148, %s149
    %p161 = scmp.eq.s32.totalorder %s34, 1
    %p162 = por %p160, %p161
    %p164 = scmp.ne.s32.totalorder %s149, %s163
    %p165 = scmp.eq.s32.totalorder %s34, 0
    %p166 = por %p164, %p165
    %s168 = sadd.s32 %s167, 1
    %p171 = scmp.eq.s32.totalorder %s28, 1
    %p172 = scmp.ne.s32.totalorder %s167, %s169
    %p173 = scmp.eq.s32.totalorder %s28, 0
    %p174 = por %p172, %p173
    %p175 = scmp.ne.s32.totalorder %s167, %s169
    %p176 = scmp.eq.s32.totalorder %s33, 1
    %p177 = por %p175, %p176
    %p178 = scmp.ne.s32.totalorder %s169, %s170
    %p179 = scmp.eq.s32.totalorder %s33, 0
    %p180 = por %p178, %p179
    %p181 = scmp.ne.s32.totalorder %s169, %s170
    %p182 = scmp.eq.s32.totalorder %s34, 1
    %p183 = por %p181, %p182
    %p185 = scmp.ne.s32.totalorder %s170, %s184
    %p186 = scmp.eq.s32.totalorder %s34, 0
    %p187 = por %p185, %p186
    %s189 = sadd.s32 %s188, 1
    %p192 = scmp.eq.s32.totalorder %s28, 1
    %p193 = scmp.ne.s32.totalorder %s188, %s190
    %p194 = scmp.eq.s32.totalorder %s28, 0
    %p195 = por %p193, %p194
    %p196 = scmp.ne.s32.totalorder %s188, %s190
    %p197 = scmp.eq.s32.totalorder %s33, 1
    %p198 = por %p196, %p197
    %p199 = scmp.ne.s32.totalorder %s190, %s191
    %p200 = scmp.eq.s32.totalorder %s33, 0
    %p201 = por %p199, %p200
    %p202 = scmp.ne.s32.totalorder %s190, %s191
    %p203 = scmp.eq.s32.totalorder %s34, 1
    %p204 = por %p202, %p203
    %p206 = scmp.ne.s32.totalorder %s191, %s205
    %p207 = scmp.eq.s32.totalorder %s34, 0
    %p208 = por %p206, %p207
    %s210 = sadd.s32 %s209, 1
    %p213 = scmp.eq.s32.totalorder %s28, 1
    %p214 = scmp.ne.s32.totalorder %s209, %s211
    %p215 = scmp.eq.s32.totalorder %s28, 0
    %p216 = por %p214, %p215
    %p217 = scmp.ne.s32.totalorder %s209, %s211
    %p218 = scmp.eq.s32.totalorder %s33, 1
    %p219 = por %p217, %p218
    %p220 = scmp.ne.s32.totalorder %s211, %s212
    %p221 = scmp.eq.s32.totalorder %s33, 0
    %p222 = por %p220, %p221
    %p223 = scmp.ne.s32.totalorder %s211, %s212
    %p224 = scmp.eq.s32.totalorder %s34, 1
    %p225 = por %p223, %p224
    %p227 = scmp.ne.s32.totalorder %s212, %s226
    %p228 = scmp.eq.s32.totalorder %s34, 0
    %p229 = por %p227, %p228
    %s231 = sadd.s32 %s230, 1
    %p234 = scmp.eq.s32.totalorder %s28, 1
    %p235 = scmp.ne.s32.totalorder %s230, %s232
    %p236 = scmp.eq.s32.totalorder %s28, 0
    %p237 = por %p235, %p236
    %p238 = scmp.ne.s32.totalorder %s230, %s232
    %p239 = scmp.eq.s32.totalorder %s33, 1
    %p240 = por %p238, %p239
    %p241 = scmp.ne.s32.totalorder %s232, %s233
    %p242 = scmp.eq.s32.totalorder %s33, 0
    %p243 = por %p241, %p242
    %p244 = scmp.ne.s32.totalorder %s232, %s233
    %p245 = scmp.eq.s32.totalorder %s34, 1
    %p246 = por %p244, %p245
    %p248 = scmp.ne.s32.totalorder %s233, %s247
    %p249 = scmp.eq.s32.totalorder %s34, 0
    %p250 = por %p248, %p249
    %s252 = sadd.s32 %s251, 1
    %p255 = scmp.eq.s32.totalorder %s28, 1
    %p256 = scmp.ne.s32.totalorder %s251, %s253
    %p257 = scmp.eq.s32.totalorder %s28, 0
    %p258 = por %p256, %p257
    %p259 = scmp.ne.s32.totalorder %s251, %s253
    %p260 = scmp.eq.s32.totalorder %s33, 1
    %p261 = por %p259, %p260
    %p262 = scmp.ne.s32.totalorder %s253, %s254
    %p263 = scmp.eq.s32.totalorder %s33, 0
    %p264 = por %p262, %p263
    %p265 = scmp.ne.s32.totalorder %s253, %s254
    %p266 = scmp.eq.s32.totalorder %s34, 1
    %p267 = por %p265, %p266
    %p269 = scmp.ne.s32.totalorder %s254, %s268
    %p270 = scmp.eq.s32.totalorder %s34, 0
    %p271 = por %p269, %p270
    %s273 = sadd.s32 %s272, 1
    %p276 = scmp.eq.s32.totalorder %s28, 1
    %p277 = scmp.ne.s32.totalorder %s272, %s274
    %p278 = scmp.eq.s32.totalorder %s28, 0
    %p279 = por %p277, %p278
    %p280 = scmp.ne.s32.totalorder %s272, %s274
    %p281 = scmp.eq.s32.totalorder %s33, 1
    %p282 = por %p280, %p281
    %p283 = scmp.ne.s32.totalorder %s274, %s275
    %p284 = scmp.eq.s32.totalorder %s33, 0
    %p285 = por %p283, %p284
    %p286 = scmp.ne.s32.totalorder %s274, %s275
    %p287 = scmp.eq.s32.totalorder %s34, 1
    %p288 = por %p286, %p287
    %p290 = scmp.ne.s32.totalorder %s275, %s289
    %p291 = scmp.eq.s32.totalorder %s34, 0
    %p292 = por %p290, %p291
    %s294 = sadd.s32 %s293, 1
    %p297 = scmp.eq.s32.totalorder %s28, 1
    %p298 = scmp.ne.s32.totalorder %s293, %s295
    %p299 = scmp.eq.s32.totalorder %s28, 0
    %p300 = por %p298, %p299
    %p301 = scmp.ne.s32.totalorder %s293, %s295
    %p302 = scmp.eq.s32.totalorder %s33, 1
    %p303 = por %p301, %p302
    %p304 = scmp.ne.s32.totalorder %s295, %s296
    %p305 = scmp.eq.s32.totalorder %s33, 0
    %p306 = por %p304, %p305
    %p307 = scmp.ne.s32.totalorder %s295, %s296
    %p308 = scmp.eq.s32.totalorder %s34, 1
    %p309 = por %p307, %p308
    %p311 = scmp.ne.s32.totalorder %s296, %s310
    %p312 = scmp.eq.s32.totalorder %s34, 0
    %p313 = por %p311, %p312
    %s315 = sadd.s32 %s314, 1
    %p318 = scmp.eq.s32.totalorder %s28, 1
    %p319 = scmp.ne.s32.totalorder %s314, %s316
    %p320 = scmp.eq.s32.totalorder %s28, 0
    %p321 = por %p319, %p320
    %p322 = scmp.ne.s32.totalorder %s314, %s316
    %p323 = scmp.eq.s32.totalorder %s33, 1
    %p324 = por %p322, %p323
    %p325 = scmp.ne.s32.totalorder %s316, %s317
    %p326 = scmp.eq.s32.totalorder %s33, 0
    %p327 = por %p325, %p326
    %p328 = scmp.ne.s32.totalorder %s316, %s317
    %p329 = scmp.eq.s32.totalorder %s34, 1
    %p330 = por %p328, %p329
    %p332 = scmp.ne.s32.totalorder %s317, %s331
    %p333 = scmp.eq.s32.totalorder %s34, 0
    %p334 = por %p332, %p333
    %s336 = sadd.s32 %s335, 1
    %p339 = scmp.eq.s32.totalorder %s28, 1
    %p340 = scmp.ne.s32.totalorder %s335, %s337
    %p341 = scmp.eq.s32.totalorder %s28, 0
    %p342 = por %p340, %p341
    %p343 = scmp.ne.s32.totalorder %s335, %s337
    %p344 = scmp.eq.s32.totalorder %s33, 1
    %p345 = por %p343, %p344
    %p346 = scmp.ne.s32.totalorder %s337, %s338
    %p347 = scmp.eq.s32.totalorder %s33, 0
    %p348 = por %p346, %p347
    %p349 = scmp.ne.s32.totalorder %s337, %s338
    %p350 = scmp.eq.s32.totalorder %s34, 1
    %p351 = por %p349, %p350
    %p353 = scmp.ne.s32.totalorder %s338, %s352
    %p354 = scmp.eq.s32.totalorder %s34, 0
    %p355 = por %p353, %p354
    %s357 = sadd.s32 %s356, 1
    %p360 = scmp.eq.s32.totalorder %s28, 1
    %p361 = scmp.ne.s32.totalorder %s356, %s358
    %p362 = scmp.eq.s32.totalorder %s28, 0
    %p363 = por %p361, %p362
    %p364 = scmp.ne.s32.totalorder %s356, %s358
    %p365 = scmp.eq.s32.totalorder %s33, 1
    %p366 = por %p364, %p365
    %p367 = scmp.ne.s32.totalorder %s358, %s359
    %p368 = scmp.eq.s32.totalorder %s33, 0
    %p369 = por %p367, %p368
    %p370 = scmp.ne.s32.totalorder %s358, %s359
    %p371 = scmp.eq.s32.totalorder %s34, 1
    %p372 = por %p370, %p371
    %p374 = scmp.ne.s32.totalorder %s359, %s373
    %p375 = scmp.eq.s32.totalorder %s34, 0
    %p376 = por %p374, %p375
    %s378 = sadd.s32 %s377, 1
    %p381 = scmp.eq.s32.totalorder %s28, 1
    %p382 = scmp.ne.s32.totalorder %s377, %s379
    %p383 = scmp.eq.s32.totalorder %s28, 0
    %p384 = por %p382, %p383
    %p385 = scmp.ne.s32.totalorder %s377, %s379
    %p386 = scmp.eq.s32.totalorder %s33, 1
    %p387 = por %p385, %p386
    %p388 = scmp.ne.s32.totalorder %s379, %s380
    %p389 = scmp.eq.s32.totalorder %s33, 0
    %p390 = por %p388, %p389
    %p391 = scmp.ne.s32.totalorder %s379, %s380
    %p392 = scmp.eq.s32.totalorder %s34, 1
    %p393 = por %p391, %p392
    %p395 = scmp.ne.s32.totalorder %s380, %s394
    %p396 = scmp.eq.s32.totalorder %s34, 0
    %p397 = por %p395, %p396
    %s399 = sadd.s32 %s398, 1
    %p402 = scmp.eq.s32.totalorder %s28, 1
    %p403 = scmp.ne.s32.totalorder %s398, %s400
    %p404 = scmp.eq.s32.totalorder %s28, 0
    %p405 = por %p403, %p404
    %p406 = scmp.ne.s32.totalorder %s398, %s400
    %p407 = scmp.eq.s32.totalorder %s33, 1
    %p408 = por %p406, %p407
    %p409 = scmp.ne.s32.totalorder %s400, %s401
    %p410 = scmp.eq.s32.totalorder %s33, 0
    %p411 = por %p409, %p410
    %p412 = scmp.ne.s32.totalorder %s400, %s401
    %p413 = scmp.eq.s32.totalorder %s34, 1
    %p414 = por %p412, %p413
    %p416 = scmp.ne.s32.totalorder %s401, %s415
    %p417 = scmp.eq.s32.totalorder %s34, 0
    %p418 = por %p416, %p417
    %s420 = sadd.s32 %s419, 1
    %p423 = scmp.eq.s32.totalorder %s28, 1
    %p424 = scmp.ne.s32.totalorder %s419, %s421
    %p425 = scmp.eq.s32.totalorder %s28, 0
    %p426 = por %p424, %p425
    %p427 = scmp.ne.s32.totalorder %s419, %s421
    %p428 = scmp.eq.s32.totalorder %s33, 1
    %p429 = por %p427, %p428
    %p430 = scmp.ne.s32.totalorder %s421, %s422
    %p431 = scmp.eq.s32.totalorder %s33, 0
    %p432 = por %p430, %p431
    %p433 = scmp.ne.s32.totalorder %s421, %s422
    %p434 = scmp.eq.s32.totalorder %s34, 1
    %p435 = por %p433, %p434
    %p437 = scmp.ne.s32.totalorder %s422, %s436
    %p438 = scmp.eq.s32.totalorder %s34, 0
    %p439 = por %p437, %p438
    %s441 = sadd.s32 %s440, 1
    %p444 = scmp.eq.s32.totalorder %s28, 1
    %p445 = scmp.ne.s32.totalorder %s440, %s442
    %p446 = scmp.eq.s32.totalorder %s28, 0
    %p447 = por %p445, %p446
    %p448 = scmp.ne.s32.totalorder %s440, %s442
    %p449 = scmp.eq.s32.totalorder %s33, 1
    %p450 = por %p448, %p449
    %p451 = scmp.ne.s32.totalorder %s442, %s443
    %p452 = scmp.eq.s32.totalorder %s33, 0
    %p453 = por %p451, %p452
    %p454 = scmp.ne.s32.totalorder %s442, %s443
    %p455 = scmp.eq.s32.totalorder %s34, 1
    %p456 = por %p454, %p455
    %p458 = scmp.ne.s32.totalorder %s443, %s457
    %p459 = scmp.eq.s32.totalorder %s34, 0
    %p460 = por %p458, %p459
    %s462 = sadd.s32 %s461, 1
    %p465 = scmp.eq.s32.totalorder %s28, 1
    %p466 = scmp.ne.s32.totalorder %s461, %s463
    %p467 = scmp.eq.s32.totalorder %s28, 0
    %p468 = por %p466, %p467
    %p469 = scmp.ne.s32.totalorder %s461, %s463
    %p470 = scmp.eq.s32.totalorder %s33, 1
    %p471 = por %p469, %p470
    %p472 = scmp.ne.s32.totalorder %s463, %s464
    %p473 = scmp.eq.s32.totalorder %s33, 0
    %p474 = por %p472, %p473
    %p475 = scmp.ne.s32.totalorder %s463, %s464
    %p476 = scmp.eq.s32.totalorder %s34, 1
    %p477 = por %p475, %p476
    %p479 = scmp.ne.s32.totalorder %s464, %s478
    %p480 = scmp.eq.s32.totalorder %s34, 0
    %p481 = por %p479, %p480
    %s483 = sadd.s32 %s482, 1
    %p486 = scmp.eq.s32.totalorder %s28, 1
    %p487 = scmp.ne.s32.totalorder %s482, %s484
    %p488 = scmp.eq.s32.totalorder %s28, 0
    %p489 = por %p487, %p488
    %p490 = scmp.ne.s32.totalorder %s482, %s484
    %p491 = scmp.eq.s32.totalorder %s33, 1
    %p492 = por %p490, %p491
    %p493 = scmp.ne.s32.totalorder %s484, %s485
    %p494 = scmp.eq.s32.totalorder %s33, 0
    %p495 = por %p493, %p494
    %p496 = scmp.ne.s32.totalorder %s484, %s485
    %p497 = scmp.eq.s32.totalorder %s34, 1
    %p498 = por %p496, %p497
    %p500 = scmp.ne.s32.totalorder %s485, %s499
    %p501 = scmp.eq.s32.totalorder %s34, 0
    %p502 = por %p500, %p501
    %s503 = ssub.s32 %s28, %s35
    %p504 = scmp.eq.s32.totalorder %s503, 0
    %s506 = sadd.s32 %s505, 1
    %s507 = scalar_select %p504, %s505, %s506
    %p510 = pneg %p504
    %p511 = scmp.eq.s32.totalorder %s28, 1
    %p512 = por %p510, %p511
    %p513 = scmp.ne.s32.totalorder %s505, %s508
    %p514 = scmp.eq.s32.totalorder %s28, 0
    %p515 = por %p513, %p514
    %p516 = scmp.ne.s32.totalorder %s505, %s508
    %p517 = scmp.eq.s32.totalorder %s33, 1
    %p518 = por %p516, %p517
    %p519 = scmp.ne.s32.totalorder %s508, %s509
    %p520 = scmp.eq.s32.totalorder %s33, 0
    %p521 = por %p519, %p520
    %p522 = scmp.ne.s32.totalorder %s508, %s509
    %p523 = scmp.eq.s32.totalorder %s34, 1
    %p524 = por %p522, %p523
    %p526 = scmp.ne.s32.totalorder %s509, %s525
    %p527 = scmp.eq.s32.totalorder %s34, 0
    %p528 = por %p526, %p527
    %p529 = scmp.le.s32.totalorder 1, %s28
    %p530 = scmp.lt.s32.totalorder %s28, 3
    %p531 = pnand %p529, %p530
    %p532 = pneg %p531
    // Predicated region
    $region9: #{op_correction.1} parent=5 // pred_check
      _
    $region10: #{op_correction.1} parent=5 // pred_check_branch
      %534 = sbr.rel (%p531) target = $region12
    $region11: #{op_correction.1} parent=5 // pred_region
      %s535 = ssub.s32 %s28, 1
      // Predicated region
      $region13: #{op_correction.1} parent=11 // pred_check
        %p536 = pneg %p75
      $region14: #{op_correction.1} parent=11 // pred_check_branch
        %538 = sbr.rel (%p536) target = $region16
      $region15: #{op_correction.1} parent=11 // pred_region
        _
      $region16: #{op_correction.1} parent=11 // pred_fallthru
        _
      // Predicated region
      $region17: #{op_correction.1} parent=11 // pred_check
        %p539 = pneg %p96
      $region18: #{op_correction.1} parent=11 // pred_check_branch
        %541 = sbr.rel (%p539) target = $region20
      $region19: #{op_correction.1} parent=11 // pred_region
        _
      $region20: #{op_correction.1} parent=11 // pred_fallthru
        _
      // Predicated region
      $region21: #{op_correction.1} parent=11 // pred_check
        %p542 = pneg %p117
      $region22: #{op_correction.1} parent=11 // pred_check_branch
        %544 = sbr.rel (%p542) target = $region24
      $region23: #{op_correction.1} parent=11 // pred_region
        _
      $region24: #{op_correction.1} parent=11 // pred_fallthru
        _
      // Predicated region
      $region25: #{op_correction.1} parent=11 // pred_check
        %p545 = pneg %p138
      $region26: #{op_correction.1} parent=11 // pred_check_branch
        %547 = sbr.rel (%p545) target = $region28
      $region27: #{op_correction.1} parent=11 // pred_region
        _
      $region28: #{op_correction.1} parent=11 // pred_fallthru
        _
      // Predicated region
      $region29: #{op_correction.1} parent=11 // pred_check
        %p548 = pneg %p159
      $region30: #{op_correction.1} parent=11 // pred_check_branch
        %550 = sbr.rel (%p548) target = $region32
      $region31: #{op_correction.1} parent=11 // pred_region
        _
      $region32: #{op_correction.1} parent=11 // pred_fallthru
        _
      // Predicated region
      $region33: #{op_correction.1} parent=11 // pred_check
        %p551 = pneg %p180
      $region34: #{op_correction.1} parent=11 // pred_check_branch
        %553 = sbr.rel (%p551) target = $region36
      $region35: #{op_correction.1} parent=11 // pred_region
        _
      $region36: #{op_correction.1} parent=11 // pred_fallthru
        _
      // Predicated region
      $region37: #{op_correction.1} parent=11 // pred_check
        %p554 = pneg %p201
      $region38: #{op_correction.1} parent=11 // pred_check_branch
        %556 = sbr.rel (%p554) target = $region40
      $region39: #{op_correction.1} parent=11 // pred_region
        _
      $region40: #{op_correction.1} parent=11 // pred_fallthru
        _
      // Predicated region
      $region41: #{op_correction.1} parent=11 // pred_check
        %p557 = pneg %p222
      $region42: #{op_correction.1} parent=11 // pred_check_branch
        %559 = sbr.rel (%p557) target = $region44
      $region43: #{op_correction.1} parent=11 // pred_region
        _
      $region44: #{op_correction.1} parent=11 // pred_fallthru
        _
      // Predicated region
      $region45: #{op_correction.1} parent=11 // pred_check
        %p560 = pneg %p243
      $region46: #{op_correction.1} parent=11 // pred_check_branch
        %562 = sbr.rel (%p560) target = $region48
      $region47: #{op_correction.1} parent=11 // pred_region
        _
      $region48: #{op_correction.1} parent=11 // pred_fallthru
        _
      // Predicated region
      $region49: #{op_correction.1} parent=11 // pred_check
        %p563 = pneg %p264
      $region50: #{op_correction.1} parent=11 // pred_check_branch
        %565 = sbr.rel (%p563) target = $region52
      $region51: #{op_correction.1} parent=11 // pred_region
        _
      $region52: #{op_correction.1} parent=11 // pred_fallthru
        _
      // Predicated region
      $region53: #{op_correction.1} parent=11 // pred_check
        %p566 = pneg %p285
      $region54: #{op_correction.1} parent=11 // pred_check_branch
        %568 = sbr.rel (%p566) target = $region56
      $region55: #{op_correction.1} parent=11 // pred_region
        _
      $region56: #{op_correction.1} parent=11 // pred_fallthru
        _
      // Predicated region
      $region57: #{op_correction.1} parent=11 // pred_check
        %p569 = pneg %p306
      $region58: #{op_correction.1} parent=11 // pred_check_branch
        %571 = sbr.rel (%p569) target = $region60
      $region59: #{op_correction.1} parent=11 // pred_region
        _
      $region60: #{op_correction.1} parent=11 // pred_fallthru
        _
      // Predicated region
      $region61: #{op_correction.1} parent=11 // pred_check
        %p572 = pneg %p327
      $region62: #{op_correction.1} parent=11 // pred_check_branch
        %574 = sbr.rel (%p572) target = $region64
      $region63: #{op_correction.1} parent=11 // pred_region
        _
      $region64: #{op_correction.1} parent=11 // pred_fallthru
        _
      // Predicated region
      $region65: #{op_correction.1} parent=11 // pred_check
        %p575 = pneg %p348
      $region66: #{op_correction.1} parent=11 // pred_check_branch
        %577 = sbr.rel (%p575) target = $region68
      $region67: #{op_correction.1} parent=11 // pred_region
        _
      $region68: #{op_correction.1} parent=11 // pred_fallthru
        _
      // Predicated region
      $region69: #{op_correction.1} parent=11 // pred_check
        %p578 = pneg %p369
      $region70: #{op_correction.1} parent=11 // pred_check_branch
        %580 = sbr.rel (%p578) target = $region72
      $region71: #{op_correction.1} parent=11 // pred_region
        _
      $region72: #{op_correction.1} parent=11 // pred_fallthru
        _
      // Predicated region
      $region73: #{op_correction.1} parent=11 // pred_check
        %p581 = pneg %p390
      $region74: #{op_correction.1} parent=11 // pred_check_branch
        %583 = sbr.rel (%p581) target = $region76
      $region75: #{op_correction.1} parent=11 // pred_region
        _
      $region76: #{op_correction.1} parent=11 // pred_fallthru
        _
      // Predicated region
      $region77: #{op_correction.1} parent=11 // pred_check
        %p584 = pneg %p411
      $region78: #{op_correction.1} parent=11 // pred_check_branch
        %586 = sbr.rel (%p584) target = $region80
      $region79: #{op_correction.1} parent=11 // pred_region
        _
      $region80: #{op_correction.1} parent=11 // pred_fallthru
        _
      // Predicated region
      $region81: #{op_correction.1} parent=11 // pred_check
        %p587 = pneg %p432
      $region82: #{op_correction.1} parent=11 // pred_check_branch
        %589 = sbr.rel (%p587) target = $region84
      $region83: #{op_correction.1} parent=11 // pred_region
        _
      $region84: #{op_correction.1} parent=11 // pred_fallthru
        _
      // Predicated region
      $region85: #{op_correction.1} parent=11 // pred_check
        %p590 = pneg %p453
      $region86: #{op_correction.1} parent=11 // pred_check_branch
        %592 = sbr.rel (%p590) target = $region88
      $region87: #{op_correction.1} parent=11 // pred_region
        _
      $region88: #{op_correction.1} parent=11 // pred_fallthru
        _
      // Predicated region
      $region89: #{op_correction.1} parent=11 // pred_check
        %p593 = pneg %p474
      $region90: #{op_correction.1} parent=11 // pred_check_branch
        %595 = sbr.rel (%p593) target = $region92
      $region91: #{op_correction.1} parent=11 // pred_region
        _
      $region92: #{op_correction.1} parent=11 // pred_fallthru
        _
      // Predicated region
      $region93: #{op_correction.1} parent=11 // pred_check
        %p596 = pneg %p495
      $region94: #{op_correction.1} parent=11 // pred_check_branch
        %598 = sbr.rel (%p596) target = $region96
      $region95: #{op_correction.1} parent=11 // pred_region
        _
      $region96: #{op_correction.1} parent=11 // pred_fallthru
        _
    $region12: #{op_correction.1} parent=5 // pred_fallthru
      _
    %p599 = scmp.lt.s32.totalorder %s28, 2
    // Predicated region
    $region97: #{op_correction.1} parent=5 // pred_check
      %p600 = pneg %p599
    $region98: #{op_correction.1} parent=5 // pred_check_branch
      %602 = sbr.rel (%p600) target = $region100
    $region99: #{op_correction.1} parent=5 // pred_region
      // Predicated region
      $region101: #{op_correction.1} parent=99 // pred_check
        %p603 = pneg %p48
      $region102: #{op_correction.1} parent=99 // pred_check_branch
        %605 = sbr.rel (%p603) target = $region104
      $region103: #{op_correction.1} parent=99 // pred_region
        %p606 = scmp.lt.s32.totalorder %s28, 1
        %s607 = scalar_select %p606, %s28, 1
        %s608 = smul.addr %s607, 2
        %s609 = smul.addr %s608, 4
        %s610 = scalar_lea.vmem %s0, %s609
      $region104: #{op_correction.1} parent=99 // pred_fallthru
        _
    $region100: #{op_correction.1} parent=5 // pred_fallthru
      _
    %p611 = scmp.le.s32.totalorder 1, %s28
    %p612 = scmp.lt.s32.totalorder %s28, 3
    %p613 = pnand %p611, %p612
    %p614 = pneg %p613
    // Predicated region
    $region105: #{op_correction.1} parent=5 // pred_check
      _
    $region106: #{op_correction.1} parent=5 // pred_check_branch
      %616 = sbr.rel (%p613) target = $region108
    $region107: #{op_correction.1} parent=5 // pred_region
      %s617 = ssub.s32 %s28, 1
      %p618 = scmp.lt.s32.totalorder %s33, 1
      %s619 = scalar_select %p618, %s33, 1
      %s620 = smul.addr %s619, 2
      %s621 = smul.addr %s620, 4
      %s622 = scalar_lea.vmem %s0, %s621
      %p623 = pneg %p54
      %p624 = pneg %p51
      %p625 = pneg %p75
      %p626 = pneg %p72
      %p627 = pneg %p96
      %p628 = pneg %p93
      %p629 = pneg %p117
      %p630 = pneg %p114
      %p631 = pneg %p138
      %p632 = pneg %p135
      %p633 = pneg %p159
      %p634 = pneg %p156
      %p635 = pneg %p180
      %p636 = pneg %p177
      %p637 = pneg %p201
      %p638 = pneg %p198
      %p639 = pneg %p222
      %p640 = pneg %p219
      %p641 = pneg %p243
      %p642 = pneg %p240
      %p643 = pneg %p264
      %p644 = pneg %p261
      %p645 = pneg %p285
      %p646 = pneg %p282
      %p647 = pneg %p306
      %p648 = pneg %p303
      %p649 = pneg %p327
      %p650 = pneg %p324
      %p651 = pneg %p348
      %p652 = pneg %p345
      %p653 = pneg %p369
      %p654 = pneg %p366
      %p655 = pneg %p390
      %p656 = pneg %p387
      %p657 = pneg %p411
      %p658 = pneg %p408
      %p659 = pneg %p432
      %p660 = pneg %p429
      %p661 = pneg %p453
      %p662 = pneg %p450
      %p663 = pneg %p474
      %p664 = pneg %p471
      %p665 = pneg %p495
      %p666 = pneg %p492
      %p667 = pneg %p521
      %p668 = pneg %p518
      %p669 = scmp.lt.s32.totalorder %s33, 1
      %s670 = scalar_select %p669, %s33, 1
      %s671 = smul.addr %s670, 2
      %s672 = smul.addr %s671, 4
      %s673 = scalar_lea.vmem %s22, %s672
      %p674 = scmp.lt.s32.totalorder %s33, 1
      %s675 = scalar_select %p674, %s33, 1
      %s676 = smul.addr %s675, 2
      %s677 = smul.addr %s676, 4
      %s678 = scalar_lea.vmem %s0, %s677
      %p679 = scmp.lt.s32.totalorder %s33, 1
      %s680 = scalar_select %p679, %s33, 1
      %s681 = smul.addr %s680, 2
      %s682 = smul.addr %s681, 4
      %s683 = scalar_lea.vmem %s22, %s682
      %v684 = vld [vmem:[%s678] sm:$0x77]
      %v685 = vld [vmem:[%s1] sm:$0xf]
      %v687 = vcombine.high %v684, %v684
      %vm688 = vcmask 23552
      %v690 = vsel %vm688, %v685, 0
      %vm692 = vcmask 1042432
      %v693 = vsel %vm692, %v684, 0
      %v695 = vsel %vm692, %v687, 0
      %697 = vmatprep.subr.mxu0 %v695
      %698 = vmatpush1.msra.mxu0 %v693
      %699 = vmatprep.subr.mxu0 0.0
      %700 = vmatpush1.msra.mxu0 0.0
      %701 = vmatprep.subr.mxu0 0.0
      %702 = vmatpush1.msra.mxu0 0.0
      %703 = vmatprep.subr.mxu0 0.0
      %704 = vmatpush1.msra.mxu0 0.0
      %705 = vmatprep.subr.mxu0 0.0
      %706 = vmatpush1.msra.mxu0 0.0
      %707 = vmatprep.subr.mxu0 0.0
      %708 = vmatpush1.msra.mxu0 0.0
      %709 = vmatprep.subr.mxu0 0.0
      %710 = vmatpush1.msra.mxu0 0.0
      %711 = vmatprep.subr.mxu0 0.0
      %712 = vmatpush1.msra.mxu0 0.0
      %713 = vmatprep.subr.mxu0 0.0
      %714 = vmatpush1.msra.mxu0 0.0
      %715 = vmatprep.subr.mxu0 0.0
      %716 = vmatpush1.msra.mxu0 0.0
      %717 = vmatprep.subr.mxu0 0.0
      %718 = vmatpush1.msra.mxu0 0.0
      %719 = vmatprep.subr.mxu0 0.0
      %720 = vmatpush1.msra.mxu0 0.0
      %721 = vmatprep.subr.mxu0 0.0
      %722 = vmatpush1.msra.mxu0 0.0
      %723 = vmatprep.subr.mxu0 0.0
      %724 = vmatpush1.msra.mxu0 0.0
      %725 = vmatprep.subr.mxu0 0.0
      %726 = vmatpush1.msra.mxu0 0.0
      %727 = vmatprep.subr.mxu0 0.0
      %728 = vmatpush1.msra.mxu0 0.0
      %729 = vmatprep.subr.mxu0 0.0
      %730 = vmatpush1.msra.mxu0 0.0
      %731 = vmatprep.subr.mxu0 0.0
      %732 = vmatpush1.msra.mxu0 0.0
      %733 = vmatprep.subr.mxu0 0.0
      %734 = vmatpush1.msra.mxu0 0.0
      %735 = vmatprep.subr.mxu0 0.0
      %736 = vmatpush1.msra.mxu0 0.0
      %737 = vmatprep.subr.mxu0 0.0
      %738 = vmatpush1.msra.mxu0 0.0
      %739 = vmatprep.subr.mxu0 0.0
      %740 = vmatpush1.msra.mxu0 0.0
      %741 = vmatprep.subr.mxu0 0.0
      %742 = vmatpush1.msra.mxu0 0.0
      %743 = vmatprep.subr.mxu0 0.0
      %744 = vmatpush1.msra.mxu0 0.0
      %745 = vmatprep.subr.mxu0 0.0
      %746 = vmatpush1.msra.mxu0 0.0
      %747 = vmatprep.subr.mxu0 0.0
      %748 = vmatpush1.msra.mxu0 0.0
      %749 = vmatprep.subr.mxu0 0.0
      %750 = vmatpush1.msra.mxu0 0.0
      %751 = vmatprep.subr.mxu0 0.0
      %752 = vmatpush1.msra.mxu0 0.0
      %753 = vmatprep.subr.mxu0 0.0
      %754 = vmatpush1.msra.mxu0 0.0
      %755 = vmatprep.subr.mxu0 0.0
      %756 = vmatpush1.msra.mxu0 0.0
      %757 = vmatprep.subr.mxu0 0.0
      %758 = vmatpush1.msra.mxu0 0.0
      %759 = vmatprep.subr.mxu0 0.0
      %760 = vmatpush1.msra.mxu0 0.0
      %761 = vmatprep.mubr.f32.mxu0 0.0
      %762 = vmatmul.mubr.f32.gmra.mrb[0].mxu0 %v690
      %v763 = vpop.f32.mrb[0].mxu0
      %v764 = vadd.f32 0.0, %v763
      %v765 = vpop.f32.mrb[0].mxu0
      %v766 = vadd.f32 0.0, %v765
      %767 = vdwg.mxu0
      %v768 = vld [vmem:[%s2] sm:$0xf]
      %vm769 = vcmp.gt.f32.partialorder %v768, 0.5
      %771 = vrot.lane.b32.xlu0 %v766, 16
      %v772 = vpop.permute.xlu0 %771
      %775 = vrot.lane.b32.xlu0 %v764, 16
      %v776 = vpop.permute.xlu0 %775
      %vm777 = vcmask 130048
      %v778 = vsel %vm777, %v776, %v772
      %v780 = vsel %vm777, %v772, %v776
      %782 = vrot.lane.b32.xlu0 %v780, 113
      %v783 = vpop.permute.xlu0 %782
      %784 = vrot.lane.b32.xlu0 %v778, 113
      %v785 = vpop.permute.xlu0 %784
      %vm786 = vcmask 924672
      %v787 = vsel %vm786, %v783, %v785
      %v791 = vsel %vm786, %v785, %v783
      %792 = vrot.lane.b32.xlu0 %v778, 1
      %v793 = vpop.permute.xlu0 %792
      %795 = vrot.lane.b32.xlu0 %v780, 1
      %v796 = vpop.permute.xlu0 %795
      %vm797 = vcmask 7168
      %v798 = vsel %vm797, %v796, %v793
      %v801 = vsel %vm797, %v793, %v796
      %v802 = vsel %vm769, 1, 0
      %v803 = vlaneseq
      %v804 = vshrl.u32 %v803, 7
      %v805 = vsub.s32 0, %v804
      %v806 = vrot.slane %v802, %v805
      %v807 = vlaneseq
      %v808 = vshrl.u32 %v807, 7
      %v809 = vsub.s32 2, %v808
      %v810 = vrot.slane %v802, %v809
      %v811 = vlaneseq
      %v812 = vshrl.u32 %v811, 7
      %v813 = vsub.s32 0, %v812
      %v814 = vrot.slane %v806, %v813
      %v815 = vlaneseq
      %v816 = vshrl.u32 %v815, 7
      %v817 = vsub.s32 0, %v816
      %v818 = vrot.slane %v810, %v817
      %vm819 = vcmp.eq.s32.totalorder %v814, 1
      %vm820 = vcmp.eq.s32.totalorder %v818, 1
      %v821 = vsel %vm819, %v787, %v801
      %v822 = vsel %vm820, %v791, %v798
      %v823 = vld [vmem:[%s3] sm:$0xff]
      %s824 = scalar_lea.vmem %s3, 8
      %v825 = vld [vmem:[%s824] sm:$0xff]
      %vm826 = vcmask 31744
      %v828 = vsel %vm826, %v825, 0
      %vm830 = vcmask 1043456
      %v831 = vsel %vm830, %v780, 0
      %v833 = vsel %vm830, %v778, 0
      %835 = vmatprep.subr.mxu0 %v833
      %836 = vmatpush1.msra.mxu0 %v831
      %837 = vmatprep.subr.mxu0 0.0
      %838 = vmatpush1.msra.mxu0 0.0
      %839 = vmatprep.subr.mxu0 0.0
      %840 = vmatpush1.msra.mxu0 0.0
      %841 = vmatprep.subr.mxu0 0.0
      %842 = vmatpush1.msra.mxu0 0.0
      %843 = vmatprep.subr.mxu0 0.0
      %844 = vmatpush1.msra.mxu0 0.0
      %845 = vmatprep.subr.mxu0 0.0
      %846 = vmatpush1.msra.mxu0 0.0
      %847 = vmatprep.subr.mxu0 0.0
      %848 = vmatpush1.msra.mxu0 0.0
      %849 = vmatprep.subr.mxu0 0.0
      %850 = vmatpush1.msra.mxu0 0.0
      %851 = vmatprep.subr.mxu0 0.0
      %852 = vmatpush1.msra.mxu0 0.0
      %853 = vmatprep.subr.mxu0 0.0
      %854 = vmatpush1.msra.mxu0 0.0
      %855 = vmatprep.subr.mxu0 0.0
      %856 = vmatpush1.msra.mxu0 0.0
      %857 = vmatprep.subr.mxu0 0.0
      %858 = vmatpush1.msra.mxu0 0.0
      %859 = vmatprep.subr.mxu0 0.0
      %860 = vmatpush1.msra.mxu0 0.0
      %861 = vmatprep.subr.mxu0 0.0
      %862 = vmatpush1.msra.mxu0 0.0
      %863 = vmatprep.subr.mxu0 0.0
      %864 = vmatpush1.msra.mxu0 0.0
      %865 = vmatprep.subr.mxu0 0.0
      %866 = vmatpush1.msra.mxu0 0.0
      %867 = vmatprep.subr.mxu0 0.0
      %868 = vmatpush1.msra.mxu0 0.0
      %869 = vmatprep.subr.mxu0 0.0
      %870 = vmatpush1.msra.mxu0 0.0
      %871 = vmatprep.subr.mxu0 0.0
      %872 = vmatpush1.msra.mxu0 0.0
      %873 = vmatprep.subr.mxu0 0.0
      %874 = vmatpush1.msra.mxu0 0.0
      %875 = vmatprep.subr.mxu0 0.0
      %876 = vmatpush1.msra.mxu0 0.0
      %877 = vmatprep.subr.mxu0 0.0
      %878 = vmatpush1.msra.mxu0 0.0
      %879 = vmatprep.subr.mxu0 0.0
      %880 = vmatpush1.msra.mxu0 0.0
      %881 = vmatprep.subr.mxu0 0.0
      %882 = vmatpush1.msra.mxu0 0.0
      %883 = vmatprep.subr.mxu0 0.0
      %884 = vmatpush1.msra.mxu0 0.0
      %885 = vmatprep.subr.mxu0 0.0
      %886 = vmatpush1.msra.mxu0 0.0
      %887 = vmatprep.subr.mxu0 0.0
      %888 = vmatpush1.msra.mxu0 0.0
      %889 = vmatprep.subr.mxu0 0.0
      %890 = vmatpush1.msra.mxu0 0.0
      %891 = vmatprep.subr.mxu0 0.0
      %892 = vmatpush1.msra.mxu0 0.0
      %893 = vmatprep.subr.mxu0 0.0
      %894 = vmatpush1.msra.mxu0 0.0
      %895 = vmatprep.subr.mxu0 0.0
      %896 = vmatpush1.msra.mxu0 0.0
      %897 = vmatprep.subr.mxu0 0.0
      %898 = vmatpush1.msra.mxu0 0.0
      %899 = vmatprep.mubr.f32.mxu0 0.0
      %900 = vmatmul.mubr.f32.gmra.mrb[0].mxu0 %v828
      %v901 = vpop.f32.mrb[0].mxu0
      %v902 = vadd.f32 0.0, %v901
      %v903 = vpop.f32.mrb[0].mxu0
      %v904 = vadd.f32 0.0, %v903
      %905 = vdwg.mxu0
      %v907 = vsel %vm826, %v823, 0
      %v910 = vsel %vm830, %v821, 0
      %v913 = vsel %vm830, %v822, 0
      %915 = vmatprep.subr.mxu0 %v913
      %916 = vmatpush1.msra.mxu0 %v910
      %917 = vmatprep.subr.mxu0 0.0
      %918 = vmatpush1.msra.mxu0 0.0
      %919 = vmatprep.subr.mxu0 0.0
      %920 = vmatpush1.msra.mxu0 0.0
      %921 = vmatprep.subr.mxu0 0.0
      %922 = vmatpush1.msra.mxu0 0.0
      %923 = vmatprep.subr.mxu0 0.0
      %924 = vmatpush1.msra.mxu0 0.0
      %925 = vmatprep.subr.mxu0 0.0
      %926 = vmatpush1.msra.mxu0 0.0
      %927 = vmatprep.subr.mxu0 0.0
      %928 = vmatpush1.msra.mxu0 0.0
      %929 = vmatprep.subr.mxu0 0.0
      %930 = vmatpush1.msra.mxu0 0.0
      %931 = vmatprep.subr.mxu0 0.0
      %932 = vmatpush1.msra.mxu0 0.0
      %933 = vmatprep.subr.mxu0 0.0
      %934 = vmatpush1.msra.mxu0 0.0
      %935 = vmatprep.subr.mxu0 0.0
      %936 = vmatpush1.msra.mxu0 0.0
      %937 = vmatprep.subr.mxu0 0.0
      %938 = vmatpush1.msra.mxu0 0.0
      %939 = vmatprep.subr.mxu0 0.0
      %940 = vmatpush1.msra.mxu0 0.0
      %941 = vmatprep.subr.mxu0 0.0
      %942 = vmatpush1.msra.mxu0 0.0
      %943 = vmatprep.subr.mxu0 0.0
      %944 = vmatpush1.msra.mxu0 0.0
      %945 = vmatprep.subr.mxu0 0.0
      %946 = vmatpush1.msra.mxu0 0.0
      %947 = vmatprep.subr.mxu0 0.0
      %948 = vmatpush1.msra.mxu0 0.0
      %949 = vmatprep.subr.mxu0 0.0
      %950 = vmatpush1.msra.mxu0 0.0
      %951 = vmatprep.subr.mxu0 0.0
      %952 = vmatpush1.msra.mxu0 0.0
      %953 = vmatprep.subr.mxu0 0.0
      %954 = vmatpush1.msra.mxu0 0.0
      %955 = vmatprep.subr.mxu0 0.0
      %956 = vmatpush1.msra.mxu0 0.0
      %957 = vmatprep.subr.mxu0 0.0
      %958 = vmatpush1.msra.mxu0 0.0
      %959 = vmatprep.subr.mxu0 0.0
      %960 = vmatpush1.msra.mxu0 0.0
      %961 = vmatprep.subr.mxu0 0.0
      %962 = vmatpush1.msra.mxu0 0.0
      %963 = vmatprep.subr.mxu0 0.0
      %964 = vmatpush1.msra.mxu0 0.0
      %965 = vmatprep.subr.mxu0 0.0
      %966 = vmatpush1.msra.mxu0 0.0
      %967 = vmatprep.subr.mxu0 0.0
      %968 = vmatpush1.msra.mxu0 0.0
      %969 = vmatprep.subr.mxu0 0.0
      %970 = vmatpush1.msra.mxu0 0.0
      %971 = vmatprep.subr.mxu0 0.0
      %972 = vmatpush1.msra.mxu0 0.0
      %973 = vmatprep.subr.mxu0 0.0
      %974 = vmatpush1.msra.mxu0 0.0
      %975 = vmatprep.subr.mxu0 0.0
      %976 = vmatpush1.msra.mxu0 0.0
      %977 = vmatprep.subr.mxu0 0.0
      %978 = vmatpush1.msra.mxu0 0.0
      %979 = vmatprep.mubr.f32.mxu0 0.0
      %980 = vmatmul.mubr.f32.gmra.mrb[0].mxu0 %v907
      %v981 = vpop.f32.mrb[0].mxu0
      %v982 = vadd.f32 %v902, %v981
      %v983 = vpop.f32.mrb[0].mxu0
      %v984 = vadd.f32 %v904, %v983
      %985 = vdwg.mxu0
      %986 = vrot.lane.b32.xlu0 %v778, 15
      %v987 = vpop.permute.xlu0 %986
      %989 = vrot.lane.b32.xlu0 %v780, 15
      %v990 = vpop.permute.xlu0 %989
      %vm991 = vcmask 121856
      %v992 = vsel %vm991, %v990, %v987
      %v995 = vsel %vm991, %v987, %v990
      %996 = vrot.lane.b32.xlu0 %v780, 127
      %v997 = vpop.permute.xlu0 %996
      %998 = vrot.lane.b32.xlu0 %v778, 127
      %v999 = vpop.permute.xlu0 %998
      %vm1000 = vcmask 1039360
      %v1001 = vsel %vm1000, %v997, %v999
      %v1005 = vsel %vm1000, %v999, %v997
      %v1006 = vlaneseq
      %v1007 = vshrl.u32 %v1006, 7
      %v1008 = vsub.s32 1, %v1007
      %v1009 = vrot.slane %v802, %v1008
      %v1010 = vlaneseq
      %v1011 = vshrl.u32 %v1010, 7
      %v1012 = vsub.s32 3, %v1011
      %v1013 = vrot.slane %v802, %v1012
      %v1014 = vlaneseq
      %v1015 = vshrl.u32 %v1014, 7
      %v1016 = vsub.s32 1, %v1015
      %v1017 = vrot.slane %v1009, %v1016
      %v1018 = vlaneseq
      %v1019 = vshrl.u32 %v1018, 7
      %v1020 = vsub.s32 1, %v1019
      %v1021 = vrot.slane %v1013, %v1020
      %vm1022 = vcmp.eq.s32.totalorder %v1017, 1
      %vm1023 = vcmp.eq.s32.totalorder %v1021, 1
      %v1024 = vsel %vm1022, %v995, %v1001
      %v1025 = vsel %vm1023, %v992, %v1005
      %s1026 = scalar_lea.vmem %s3, 16
      %v1027 = vld [vmem:[%s1026] sm:$0xff]
      %v1029 = vsel %vm826, %v1027, 0
      %v1032 = vsel %vm830, %v1024, 0
      %v1035 = vsel %vm830, %v1025, 0
      %1037 = vmatprep.subr.mxu0 %v1035
      %1038 = vmatpush1.msra.mxu0 %v1032
      %1039 = vmatprep.subr.mxu0 0.0
      %1040 = vmatpush1.msra.mxu0 0.0
      %1041 = vmatprep.subr.mxu0 0.0
      %1042 = vmatpush1.msra.mxu0 0.0
      %1043 = vmatprep.subr.mxu0 0.0
      %1044 = vmatpush1.msra.mxu0 0.0
      %1045 = vmatprep.subr.mxu0 0.0
      %1046 = vmatpush1.msra.mxu0 0.0
      %1047 = vmatprep.subr.mxu0 0.0
      %1048 = vmatpush1.msra.mxu0 0.0
      %1049 = vmatprep.subr.mxu0 0.0
      %1050 = vmatpush1.msra.mxu0 0.0
      %1051 = vmatprep.subr.mxu0 0.0
      %1052 = vmatpush1.msra.mxu0 0.0
      %1053 = vmatprep.subr.mxu0 0.0
      %1054 = vmatpush1.msra.mxu0 0.0
      %1055 = vmatprep.subr.mxu0 0.0
      %1056 = vmatpush1.msra.mxu0 0.0
      %1057 = vmatprep.subr.mxu0 0.0
      %1058 = vmatpush1.msra.mxu0 0.0
      %1059 = vmatprep.subr.mxu0 0.0
      %1060 = vmatpush1.msra.mxu0 0.0
      %1061 = vmatprep.subr.mxu0 0.0
      %1062 = vmatpush1.msra.mxu0 0.0
      %1063 = vmatprep.subr.mxu0 0.0
      %1064 = vmatpush1.msra.mxu0 0.0
      %1065 = vmatprep.subr.mxu0 0.0
      %1066 = vmatpush1.msra.mxu0 0.0
      %1067 = vmatprep.subr.mxu0 0.0
      %1068 = vmatpush1.msra.mxu0 0.0
      %1069 = vmatprep.subr.mxu0 0.0
      %1070 = vmatpush1.msra.mxu0 0.0
      %1071 = vmatprep.subr.mxu0 0.0
      %1072 = vmatpush1.msra.mxu0 0.0
      %1073 = vmatprep.subr.mxu0 0.0
      %1074 = vmatpush1.msra.mxu0 0.0
      %1075 = vmatprep.subr.mxu0 0.0
      %1076 = vmatpush1.msra.mxu0 0.0
      %1077 = vmatprep.subr.mxu0 0.0
      %1078 = vmatpush1.msra.mxu0 0.0
      %1079 = vmatprep.subr.mxu0 0.0
      %1080 = vmatpush1.msra.mxu0 0.0
      %1081 = vmatprep.subr.mxu0 0.0
      %1082 = vmatpush1.msra.mxu0 0.0
      %1083 = vmatprep.subr.mxu0 0.0
      %1084 = vmatpush1.msra.mxu0 0.0
      %1085 = vmatprep.subr.mxu0 0.0
      %1086 = vmatpush1.msra.mxu0 0.0
      %1087 = vmatprep.subr.mxu0 0.0
      %1088 = vmatpush1.msra.mxu0 0.0
      %1089 = vmatprep.subr.mxu0 0.0
      %1090 = vmatpush1.msra.mxu0 0.0
      %1091 = vmatprep.subr.mxu0 0.0
      %1092 = vmatpush1.msra.mxu0 0.0
      %1093 = vmatprep.subr.mxu0 0.0
      %1094 = vmatpush1.msra.mxu0 0.0
      %1095 = vmatprep.subr.mxu0 0.0
      %1096 = vmatpush1.msra.mxu0 0.0
      %1097 = vmatprep.subr.mxu0 0.0
      %1098 = vmatpush1.msra.mxu0 0.0
      %1099 = vmatprep.subr.mxu0 0.0
      %1100 = vmatpush1.msra.mxu0 0.0
      %1101 = vmatprep.mubr.f32.mxu0 0.0
      %1102 = vmatmul.mubr.f32.gmra.mrb[0].mxu0 %v1029
      %v1103 = vpop.f32.mrb[0].mxu0
      %v1104 = vadd.f32 0.0, %v1103
      %v1105 = vpop.f32.mrb[0].mxu0
      %v1106 = vadd.f32 0.0, %v1105
      %1107 = vdwg.mxu0
      %v1108 = vadd.f32 %v982, %v1104
      %v1109 = vadd.f32 %v984, %v1106
      %1110 = vrot.lane.b32.xlu0 %v764, 113
      %v1111 = vpop.permute.xlu0 %1110
      %1112 = vrot.lane.b32.xlu0 %v766, 113
      %v1113 = vpop.permute.xlu0 %1112
      %v1114 = vsel %vm786, %v1111, %v1113
      %v1118 = vsel %vm786, %v1113, %v1111
      %1119 = vrot.lane.b32.xlu0 %v766, 1
      %v1120 = vpop.permute.xlu0 %1119
      %1122 = vrot.lane.b32.xlu0 %v764, 1
      %v1123 = vpop.permute.xlu0 %1122
      %v1124 = vsel %vm797, %v1123, %v1120
      %v1127 = vsel %vm797, %v1120, %v1123
      %v1128 = vsel %vm819, %v1114, %v1127
      %v1129 = vsel %vm820, %v1118, %v1124
      %s1130 = scalar_lea.vmem %s3, 24
      %v1131 = vld [vmem:[%s1130] sm:$0xff]
      %v1133 = vsel %vm826, %v1131, 0
      %v1136 = vsel %vm830, %v1128, 0
      %v1139 = vsel %vm830, %v1129, 0
      %1141 = vmatprep.subr.mxu0 %v1139
      %1142 = vmatpush1.msra.mxu0 %v1136
      %1143 = vmatprep.subr.mxu0 0.0
      %1144 = vmatpush1.msra.mxu0 0.0
      %1145 = vmatprep.subr.mxu0 0.0
      %1146 = vmatpush1.msra.mxu0 0.0
      %1147 = vmatprep.subr.mxu0 0.0
      %1148 = vmatpush1.msra.mxu0 0.0
      %1149 = vmatprep.subr.mxu0 0.0
      %1150 = vmatpush1.msra.mxu0 0.0
      %1151 = vmatprep.subr.mxu0 0.0
      %1152 = vmatpush1.msra.mxu0 0.0
      %1153 = vmatprep.subr.mxu0 0.0
      %1154 = vmatpush1.msra.mxu0 0.0
      %1155 = vmatprep.subr.mxu0 0.0
      %1156 = vmatpush1.msra.mxu0 0.0
      %1157 = vmatprep.subr.mxu0 0.0
      %1158 = vmatpush1.msra.mxu0 0.0
      %1159 = vmatprep.subr.mxu0 0.0
      %1160 = vmatpush1.msra.mxu0 0.0
      %1161 = vmatprep.subr.mxu0 0.0
      %1162 = vmatpush1.msra.mxu0 0.0
      %1163 = vmatprep.subr.mxu0 0.0
      %1164 = vmatpush1.msra.mxu0 0.0
      %1165 = vmatprep.subr.mxu0 0.0
      %1166 = vmatpush1.msra.mxu0 0.0
      %1167 = vmatprep.subr.mxu0 0.0
      %1168 = vmatpush1.msra.mxu0 0.0
      %1169 = vmatprep.subr.mxu0 0.0
      %1170 = vmatpush1.msra.mxu0 0.0
      %1171 = vmatprep.subr.mxu0 0.0
      %1172 = vmatpush1.msra.mxu0 0.0
      %1173 = vmatprep.subr.mxu0 0.0
      %1174 = vmatpush1.msra.mxu0 0.0
      %1175 = vmatprep.subr.mxu0 0.0
      %1176 = vmatpush1.msra.mxu0 0.0
      %1177 = vmatprep.subr.mxu0 0.0
      %1178 = vmatpush1.msra.mxu0 0.0
      %1179 = vmatprep.subr.mxu0 0.0
      %1180 = vmatpush1.msra.mxu0 0.0
      %1181 = vmatprep.subr.mxu0 0.0
      %1182 = vmatpush1.msra.mxu0 0.0
      %1183 = vmatprep.subr.mxu0 0.0
      %1184 = vmatpush1.msra.mxu0 0.0
      %1185 = vmatprep.subr.mxu0 0.0
      %1186 = vmatpush1.msra.mxu0 0.0
      %1187 = vmatprep.subr.mxu0 0.0
      %1188 = vmatpush1.msra.mxu0 0.0
      %1189 = vmatprep.subr.mxu0 0.0
      %1190 = vmatpush1.msra.mxu0 0.0
      %1191 = vmatprep.subr.mxu0 0.0
      %1192 = vmatpush1.msra.mxu0 0.0
      %1193 = vmatprep.subr.mxu0 0.0
      %1194 = vmatpush1.msra.mxu0 0.0
      %1195 = vmatprep.subr.mxu0 0.0
      %1196 = vmatpush1.msra.mxu0 0.0
      %1197 = vmatprep.subr.mxu0 0.0
      %1198 = vmatpush1.msra.mxu0 0.0
      %1199 = vmatprep.subr.mxu0 0.0
      %1200 = vmatpush1.msra.mxu0 0.0
      %1201 = vmatprep.subr.mxu0 0.0
      %1202 = vmatpush1.msra.mxu0 0.0
      %1203 = vmatprep.subr.mxu0 0.0
      %1204 = vmatpush1.msra.mxu0 0.0
      %1205 = vmatprep.mubr.f32.mxu0 0.0
      %1206 = vmatmul.mubr.f32.gmra.mrb[0].mxu0 %v1133
      %v1207 = vpop.f32.mrb[0].mxu0
      %v1208 = vadd.f32 0.0, %v1207
      %v1209 = vpop.f32.mrb[0].mxu0
      %v1210 = vadd.f32 0.0, %v1209
      %1211 = vdwg.mxu0
      %v1212 = vadd.f32 %v1108, %v1208
      %v1213 = vadd.f32 %v1109, %v1210
      %s1214 = scalar_lea.vmem %s3, 32
      %v1215 = vld [vmem:[%s1214] sm:$0xff]
      %v1217 = vsel %vm826, %v1215, 0
      %v1219 = vsel %vm830, %v764, 0
      %v1221 = vsel %vm830, %v766, 0
      %1223 = vmatprep.subr.mxu0 %v1221
      %1224 = vmatpush1.msra.mxu0 %v1219
      %1225 = vmatprep.subr.mxu0 0.0
      %1226 = vmatpush1.msra.mxu0 0.0
      %1227 = vmatprep.subr.mxu0 0.0
      %1228 = vmatpush1.msra.mxu0 0.0
      %1229 = vmatprep.subr.mxu0 0.0
      %1230 = vmatpush1.msra.mxu0 0.0
      %1231 = vmatprep.subr.mxu0 0.0
      %1232 = vmatpush1.msra.mxu0 0.0
      %1233 = vmatprep.subr.mxu0 0.0
      %1234 = vmatpush1.msra.mxu0 0.0
      %1235 = vmatprep.subr.mxu0 0.0
      %1236 = vmatpush1.msra.mxu0 0.0
      %1237 = vmatprep.subr.mxu0 0.0
      %1238 = vmatpush1.msra.mxu0 0.0
      %1239 = vmatprep.subr.mxu0 0.0
      %1240 = vmatpush1.msra.mxu0 0.0
      %1241 = vmatprep.subr.mxu0 0.0
      %1242 = vmatpush1.msra.mxu0 0.0
      %1243 = vmatprep.subr.mxu0 0.0
      %1244 = vmatpush1.msra.mxu0 0.0
      %1245 = vmatprep.subr.mxu0 0.0
      %1246 = vmatpush1.msra.mxu0 0.0
      %1247 = vmatprep.subr.mxu0 0.0
      %1248 = vmatpush1.msra.mxu0 0.0
      %1249 = vmatprep.subr.mxu0 0.0
      %1250 = vmatpush1.msra.mxu0 0.0
      %1251 = vmatprep.subr.mxu0 0.0
      %1252 = vmatpush1.msra.mxu0 0.0
      %1253 = vmatprep.subr.mxu0 0.0
      %1254 = vmatpush1.msra.mxu0 0.0
      %1255 = vmatprep.subr.mxu0 0.0
      %1256 = vmatpush1.msra.mxu0 0.0
      %1257 = vmatprep.subr.mxu0 0.0
      %1258 = vmatpush1.msra.mxu0 0.0
      %1259 = vmatprep.subr.mxu0 0.0
      %1260 = vmatpush1.msra.mxu0 0.0
      %1261 = vmatprep.subr.mxu0 0.0
      %1262 = vmatpush1.msra.mxu0 0.0
      %1263 = vmatprep.subr.mxu0 0.0
      %1264 = vmatpush1.msra.mxu0 0.0
      %1265 = vmatprep.subr.mxu0 0.0
      %1266 = vmatpush1.msra.mxu0 0.0
      %1267 = vmatprep.subr.mxu0 0.0
      %1268 = vmatpush1.msra.mxu0 0.0
      %1269 = vmatprep.subr.mxu0 0.0
      %1270 = vmatpush1.msra.mxu0 0.0
      %1271 = vmatprep.subr.mxu0 0.0
      %1272 = vmatpush1.msra.mxu0 0.0
      %1273 = vmatprep.subr.mxu0 0.0
      %1274 = vmatpush1.msra.mxu0 0.0
      %1275 = vmatprep.subr.mxu0 0.0
      %1276 = vmatpush1.msra.mxu0 0.0
      %1277 = vmatprep.subr.mxu0 0.0
      %1278 = vmatpush1.msra.mxu0 0.0
      %1279 = vmatprep.subr.mxu0 0.0
      %1280 = vmatpush1.msra.mxu0 0.0
      %1281 = vmatprep.subr.mxu0 0.0
      %1282 = vmatpush1.msra.mxu0 0.0
      %1283 = vmatprep.subr.mxu0 0.0
      %1284 = vmatpush1.msra.mxu0 0.0
      %1285 = vmatprep.subr.mxu0 0.0
      %1286 = vmatpush1.msra.mxu0 0.0
      %1287 = vmatprep.mubr.f32.mxu0 0.0
      %1288 = vmatmul.mubr.f32.gmra.mrb[0].mxu0 %v1217
      %v1289 = vpop.f32.mrb[0].mxu0
      %v1290 = vadd.f32 0.0, %v1289
      %v1291 = vpop.f32.mrb[0].mxu0
      %v1292 = vadd.f32 0.0, %v1291
      %1293 = vdwg.mxu0
      %v1294 = vadd.f32 %v1212, %v1290
      %v1295 = vadd.f32 %v1213, %v1292
      %1296 = vrot.lane.b32.xlu0 %v766, 15
      %v1297 = vpop.permute.xlu0 %1296
      %1299 = vrot.lane.b32.xlu0 %v764, 15
      %v1300 = vpop.permute.xlu0 %1299
      %v1301 = vsel %vm991, %v1300, %v1297
      %v1304 = vsel %vm991, %v1297, %v1300
      %1305 = vrot.lane.b32.xlu0 %v764, 127
      %v1306 = vpop.permute.xlu0 %1305
      %1307 = vrot.lane.b32.xlu0 %v766, 127
      %v1308 = vpop.permute.xlu0 %1307
      %v1309 = vsel %vm1000, %v1306, %v1308
      %v1313 = vsel %vm1000, %v1308, %v1306
      %v1314 = vsel %vm1022, %v1304, %v1309
      %v1315 = vsel %vm1023, %v1301, %v1313
      %s1316 = scalar_lea.vmem %s3, 40
      %v1317 = vld [vmem:[%s1316] sm:$0xff]
      %v1319 = vsel %vm826, %v1317, 0
      %v1322 = vsel %vm830, %v1314, 0
      %v1325 = vsel %vm830, %v1315, 0
      %1327 = vmatprep.subr.mxu0 %v1325
      %1328 = vmatpush1.msra.mxu0 %v1322
      %1329 = vmatprep.subr.mxu0 0.0
      %1330 = vmatpush1.msra.mxu0 0.0
      %1331 = vmatprep.subr.mxu0 0.0
      %1332 = vmatpush1.msra.mxu0 0.0
      %1333 = vmatprep.subr.mxu0 0.0
      %1334 = vmatpush1.msra.mxu0 0.0
      %1335 = vmatprep.subr.mxu0 0.0
      %1336 = vmatpush1.msra.mxu0 0.0
      %1337 = vmatprep.subr.mxu0 0.0
      %1338 = vmatpush1.msra.mxu0 0.0
      %1339 = vmatprep.subr.mxu0 0.0
      %1340 = vmatpush1.msra.mxu0 0.0
      %1341 = vmatprep.subr.mxu0 0.0
      %1342 = vmatpush1.msra.mxu0 0.0
      %1343 = vmatprep.subr.mxu0 0.0
      %1344 = vmatpush1.msra.mxu0 0.0
      %1345 = vmatprep.subr.mxu0 0.0
      %1346 = vmatpush1.msra.mxu0 0.0
      %1347 = vmatprep.subr.mxu0 0.0
      %1348 = vmatpush1.msra.mxu0 0.0
      %1349 = vmatprep.subr.mxu0 0.0
      %1350 = vmatpush1.msra.mxu0 0.0
      %1351 = vmatprep.subr.mxu0 0.0
      %1352 = vmatpush1.msra.mxu0 0.0
      %1353 = vmatprep.subr.mxu0 0.0
      %1354 = vmatpush1.msra.mxu0 0.0
      %1355 = vmatprep.subr.mxu0 0.0
      %1356 = vmatpush1.msra.mxu0 0.0
      %1357 = vmatprep.subr.mxu0 0.0
      %1358 = vmatpush1.msra.mxu0 0.0
      %1359 = vmatprep.subr.mxu0 0.0
      %1360 = vmatpush1.msra.mxu0 0.0
      %1361 = vmatprep.subr.mxu0 0.0
      %1362 = vmatpush1.msra.mxu0 0.0
      %1363 = vmatprep.subr.mxu0 0.0
      %1364 = vmatpush1.msra.mxu0 0.0
      %1365 = vmatprep.subr.mxu0 0.0
      %1366 = vmatpush1.msra.mxu0 0.0
      %1367 = vmatprep.subr.mxu0 0.0
      %1368 = vmatpush1.msra.mxu0 0.0
      %1369 = vmatprep.subr.mxu0 0.0
      %1370 = vmatpush1.msra.mxu0 0.0
      %1371 = vmatprep.subr.mxu0 0.0
      %1372 = vmatpush1.msra.mxu0 0.0
      %1373 = vmatprep.subr.mxu0 0.0
      %1374 = vmatpush1.msra.mxu0 0.0
      %1375 = vmatprep.subr.mxu0 0.0
      %1376 = vmatpush1.msra.mxu0 0.0
      %1377 = vmatprep.subr.mxu0 0.0
      %1378 = vmatpush1.msra.mxu0 0.0
      %1379 = vmatprep.subr.mxu0 0.0
      %1380 = vmatpush1.msra.mxu0 0.0
      %1381 = vmatprep.subr.mxu0 0.0
      %1382 = vmatpush1.msra.mxu0 0.0
      %1383 = vmatprep.subr.mxu0 0.0
      %1384 = vmatpush1.msra.mxu0 0.0
      %1385 = vmatprep.subr.mxu0 0.0
      %1386 = vmatpush1.msra.mxu0 0.0
      %1387 = vmatprep.subr.mxu0 0.0
      %1388 = vmatpush1.msra.mxu0 0.0
      %1389 = vmatprep.subr.mxu0 0.0
      %1390 = vmatpush1.msra.mxu0 0.0
      %1391 = vmatprep.mubr.f32.mxu0 0.0
      %1392 = vmatmul.mubr.f32.gmra.mrb[0].mxu0 %v1319
      %v1393 = vpop.f32.mrb[0].mxu0
      %v1394 = vadd.f32 0.0, %v1393
      %v1395 = vpop.f32.mrb[0].mxu0
      %v1396 = vadd.f32 0.0, %v1395
      %1397 = vdwg.mxu0
      %v1398 = vadd.f32 %v1294, %v1394
      %v1399 = vadd.f32 %v1295, %v1396
      %1400 = vrot.lane.b32.xlu0 %v764, 112
      %v1401 = vpop.permute.xlu0 %1400
      %1402 = vrot.lane.b32.xlu0 %v766, 112
      %v1403 = vpop.permute.xlu0 %1402
      %vm1404 = vcmask 916480
      %v1405 = vsel %vm1404, %v1401, %v1403
      %v1408 = vsel %vm1404, %v1403, %v1401
      %1410 = vrot.lane.b32.xlu0 %v1405, 113
      %v1411 = vpop.permute.xlu0 %1410
      %1412 = vrot.lane.b32.xlu0 %v1408, 113
      %v1413 = vpop.permute.xlu0 %1412
      %v1414 = vsel %vm786, %v1411, %v1413
      %v1418 = vsel %vm786, %v1413, %v1411
      %1419 = vrot.lane.b32.xlu0 %v1408, 1
      %v1420 = vpop.permute.xlu0 %1419
      %1422 = vrot.lane.b32.xlu0 %v1405, 1
      %v1423 = vpop.permute.xlu0 %1422
      %v1424 = vsel %vm797, %v1423, %v1420
      %v1427 = vsel %vm797, %v1420, %v1423
      %v1428 = vsel %vm819, %v1414, %v1427
      %v1429 = vsel %vm820, %v1418, %v1424
      %s1430 = scalar_lea.vmem %s3, 48
      %v1431 = vld [vmem:[%s1430] sm:$0xff]
      %v1433 = vsel %vm826, %v1431, 0
      %v1436 = vsel %vm830, %v1428, 0
      %v1439 = vsel %vm830, %v1429, 0
      %1441 = vmatprep.subr.mxu0 %v1439
      %1442 = vmatpush1.msra.mxu0 %v1436
      %1443 = vmatprep.subr.mxu0 0.0
      %1444 = vmatpush1.msra.mxu0 0.0
      %1445 = vmatprep.subr.mxu0 0.0
      %1446 = vmatpush1.msra.mxu0 0.0
      %1447 = vmatprep.subr.mxu0 0.0
      %1448 = vmatpush1.msra.mxu0 0.0
      %1449 = vmatprep.subr.mxu0 0.0
      %1450 = vmatpush1.msra.mxu0 0.0
      %1451 = vmatprep.subr.mxu0 0.0
      %1452 = vmatpush1.msra.mxu0 0.0
      %1453 = vmatprep.subr.mxu0 0.0
      %1454 = vmatpush1.msra.mxu0 0.0
      %1455 = vmatprep.subr.mxu0 0.0
      %1456 = vmatpush1.msra.mxu0 0.0
      %1457 = vmatprep.subr.mxu0 0.0
      %1458 = vmatpush1.msra.mxu0 0.0
      %1459 = vmatprep.subr.mxu0 0.0
      %1460 = vmatpush1.msra.mxu0 0.0
      %1461 = vmatprep.subr.mxu0 0.0
      %1462 = vmatpush1.msra.mxu0 0.0
      %1463 = vmatprep.subr.mxu0 0.0
      %1464 = vmatpush1.msra.mxu0 0.0
      %1465 = vmatprep.subr.mxu0 0.0
      %1466 = vmatpush1.msra.mxu0 0.0
      %1467 = vmatprep.subr.mxu0 0.0
      %1468 = vmatpush1.msra.mxu0 0.0
      %1469 = vmatprep.subr.mxu0 0.0
      %1470 = vmatpush1.msra.mxu0 0.0
      %1471 = vmatprep.subr.mxu0 0.0
      %1472 = vmatpush1.msra.mxu0 0.0
      %1473 = vmatprep.subr.mxu0 0.0
      %1474 = vmatpush1.msra.mxu0 0.0
      %1475 = vmatprep.subr.mxu0 0.0
      %1476 = vmatpush1.msra.mxu0 0.0
      %1477 = vmatprep.subr.mxu0 0.0
      %1478 = vmatpush1.msra.mxu0 0.0
      %1479 = vmatprep.subr.mxu0 0.0
      %1480 = vmatpush1.msra.mxu0 0.0
      %1481 = vmatprep.subr.mxu0 0.0
      %1482 = vmatpush1.msra.mxu0 0.0
      %1483 = vmatprep.subr.mxu0 0.0
      %1484 = vmatpush1.msra.mxu0 0.0
      %1485 = vmatprep.subr.mxu0 0.0
      %1486 = vmatpush1.msra.mxu0 0.0
      %1487 = vmatprep.subr.mxu0 0.0
      %1488 = vmatpush1.msra.mxu0 0.0
      %1489 = vmatprep.subr.mxu0 0.0
      %1490 = vmatpush1.msra.mxu0 0.0
      %1491 = vmatprep.subr.mxu0 0.0
      %1492 = vmatpush1.msra.mxu0 0.0
      %1493 = vmatprep.subr.mxu0 0.0
      %1494 = vmatpush1.msra.mxu0 0.0
      %1495 = vmatprep.subr.mxu0 0.0
      %1496 = vmatpush1.msra.mxu0 0.0
      %1497 = vmatprep.subr.mxu0 0.0
      %1498 = vmatpush1.msra.mxu0 0.0
      %1499 = vmatprep.subr.mxu0 0.0
      %1500 = vmatpush1.msra.mxu0 0.0
      %1501 = vmatprep.subr.mxu0 0.0
      %1502 = vmatpush1.msra.mxu0 0.0
      %1503 = vmatprep.subr.mxu0 0.0
      %1504 = vmatpush1.msra.mxu0 0.0
      %1505 = vmatprep.mubr.f32.mxu0 0.0
      %1506 = vmatmul.mubr.f32.gmra.mrb[0].mxu0 %v1433
      %v1507 = vpop.f32.mrb[0].mxu0
      %v1508 = vadd.f32 0.0, %v1507
      %v1509 = vpop.f32.mrb[0].mxu0
      %v1510 = vadd.f32 0.0, %v1509
      %1511 = vdwg.mxu0
      %v1512 = vadd.f32 %v1398, %v1508
      %v1513 = vadd.f32 %v1399, %v1510
      %s1514 = scalar_lea.vmem %s3, 56
      %v1515 = vld [vmem:[%s1514] sm:$0xff]
      %v1517 = vsel %vm826, %v1515, 0
      %v1519 = vsel %vm830, %v1405, 0
      %v1521 = vsel %vm830, %v1408, 0
      %1523 = vmatprep.subr.mxu0 %v1521
      %1524 = vmatpush1.msra.mxu0 %v1519
      %1525 = vmatprep.subr.mxu0 0.0
      %1526 = vmatpush1.msra.mxu0 0.0
      %1527 = vmatprep.subr.mxu0 0.0
      %1528 = vmatpush1.msra.mxu0 0.0
      %1529 = vmatprep.subr.mxu0 0.0
      %1530 = vmatpush1.msra.mxu0 0.0
      %1531 = vmatprep.subr.mxu0 0.0
      %1532 = vmatpush1.msra.mxu0 0.0
      %1533 = vmatprep.subr.mxu0 0.0
      %1534 = vmatpush1.msra.mxu0 0.0
      %1535 = vmatprep.subr.mxu0 0.0
      %1536 = vmatpush1.msra.mxu0 0.0
      %1537 = vmatprep.subr.mxu0 0.0
      %1538 = vmatpush1.msra.mxu0 0.0
      %1539 = vmatprep.subr.mxu0 0.0
      %1540 = vmatpush1.msra.mxu0 0.0
      %1541 = vmatprep.subr.mxu0 0.0
      %1542 = vmatpush1.msra.mxu0 0.0
      %1543 = vmatprep.subr.mxu0 0.0
      %1544 = vmatpush1.msra.mxu0 0.0
      %1545 = vmatprep.subr.mxu0 0.0
      %1546 = vmatpush1.msra.mxu0 0.0
      %1547 = vmatprep.subr.mxu0 0.0
      %1548 = vmatpush1.msra.mxu0 0.0
      %1549 = vmatprep.subr.mxu0 0.0
      %1550 = vmatpush1.msra.mxu0 0.0
      %1551 = vmatprep.subr.mxu0 0.0
      %1552 = vmatpush1.msra.mxu0 0.0
      %1553 = vmatprep.subr.mxu0 0.0
      %1554 = vmatpush1.msra.mxu0 0.0
      %1555 = vmatprep.subr.mxu0 0.0
      %1556 = vmatpush1.msra.mxu0 0.0
      %1557 = vmatprep.subr.mxu0 0.0
      %1558 = vmatpush1.msra.mxu0 0.0
      %1559 = vmatprep.subr.mxu0 0.0
      %1560 = vmatpush1.msra.mxu0 0.0
      %1561 = vmatprep.subr.mxu0 0.0
      %1562 = vmatpush1.msra.mxu0 0.0
      %1563 = vmatprep.subr.mxu0 0.0
      %1564 = vmatpush1.msra.mxu0 0.0
      %1565 = vmatprep.subr.mxu0 0.0
      %1566 = vmatpush1.msra.mxu0 0.0
      %1567 = vmatprep.subr.mxu0 0.0
      %1568 = vmatpush1.msra.mxu0 0.0
      %1569 = vmatprep.subr.mxu0 0.0
      %1570 = vmatpush1.msra.mxu0 0.0
      %1571 = vmatprep.subr.mxu0 0.0
      %1572 = vmatpush1.msra.mxu0 0.0
      %1573 = vmatprep.subr.mxu0 0.0
      %1574 = vmatpush1.msra.mxu0 0.0
      %1575 = vmatprep.subr.mxu0 0.0
      %1576 = vmatpush1.msra.mxu0 0.0
      %1577 = vmatprep.subr.mxu0 0.0
      %1578 = vmatpush1.msra.mxu0 0.0
      %1579 = vmatprep.subr.mxu0 0.0
      %1580 = vmatpush1.msra.mxu0 0.0
      %1581 = vmatprep.subr.mxu0 0.0
      %1582 = vmatpush1.msra.mxu0 0.0
      %1583 = vmatprep.subr.mxu0 0.0
      %1584 = vmatpush1.msra.mxu0 0.0
      %1585 = vmatprep.subr.mxu0 0.0
      %1586 = vmatpush1.msra.mxu0 0.0
      %1587 = vmatprep.mubr.f32.mxu0 0.0
      %1588 = vmatmul.mubr.f32.gmra.mrb[0].mxu0 %v1517
      %v1589 = vpop.f32.mrb[0].mxu0
      %v1590 = vadd.f32 0.0, %v1589
      %v1591 = vpop.f32.mrb[0].mxu0
      %v1592 = vadd.f32 0.0, %v1591
      %1593 = vdwg.mxu0
      %v1594 = vadd.f32 %v1512, %v1590
      %v1595 = vadd.f32 %v1513, %v1592
      %1596 = vrot.lane.b32.xlu0 %v1408, 15
      %v1597 = vpop.permute.xlu0 %1596
      %1599 = vrot.lane.b32.xlu0 %v1405, 15
      %v1600 = vpop.permute.xlu0 %1599
      %v1601 = vsel %vm991, %v1600, %v1597
      %v1604 = vsel %vm991, %v1597, %v1600
      %1605 = vrot.lane.b32.xlu0 %v1405, 127
      %v1606 = vpop.permute.xlu0 %1605
      %1607 = vrot.lane.b32.xlu0 %v1408, 127
      %v1608 = vpop.permute.xlu0 %1607
      %v1609 = vsel %vm1000, %v1606, %v1608
      %v1613 = vsel %vm1000, %v1608, %v1606
      %v1614 = vsel %vm1022, %v1604, %v1609
      %v1615 = vsel %vm1023, %v1601, %v1613
      %s1616 = scalar_lea.vmem %s3, 64
      %v1617 = vld [vmem:[%s1616] sm:$0xff]
      %v1619 = vsel %vm826, %v1617, 0
      %v1622 = vsel %vm830, %v1614, 0
      %v1625 = vsel %vm830, %v1615, 0
      %1627 = vmatprep.subr.mxu0 %v1625
      %1628 = vmatpush1.msra.mxu0 %v1622
      %1629 = vmatprep.subr.mxu0 0.0
      %1630 = vmatpush1.msra.mxu0 0.0
      %1631 = vmatprep.subr.mxu0 0.0
      %1632 = vmatpush1.msra.mxu0 0.0
      %1633 = vmatprep.subr.mxu0 0.0
      %1634 = vmatpush1.msra.mxu0 0.0
      %1635 = vmatprep.subr.mxu0 0.0
      %1636 = vmatpush1.msra.mxu0 0.0
      %1637 = vmatprep.subr.mxu0 0.0
      %1638 = vmatpush1.msra.mxu0 0.0
      %1639 = vmatprep.subr.mxu0 0.0
      %1640 = vmatpush1.msra.mxu0 0.0
      %1641 = vmatprep.subr.mxu0 0.0
      %1642 = vmatpush1.msra.mxu0 0.0
      %1643 = vmatprep.subr.mxu0 0.0
      %1644 = vmatpush1.msra.mxu0 0.0
      %1645 = vmatprep.subr.mxu0 0.0
      %1646 = vmatpush1.msra.mxu0 0.0
      %1647 = vmatprep.subr.mxu0 0.0
      %1648 = vmatpush1.msra.mxu0 0.0
      %1649 = vmatprep.subr.mxu0 0.0
      %1650 = vmatpush1.msra.mxu0 0.0
      %1651 = vmatprep.subr.mxu0 0.0
      %1652 = vmatpush1.msra.mxu0 0.0
      %1653 = vmatprep.subr.mxu0 0.0
      %1654 = vmatpush1.msra.mxu0 0.0
      %1655 = vmatprep.subr.mxu0 0.0
      %1656 = vmatpush1.msra.mxu0 0.0
      %1657 = vmatprep.subr.mxu0 0.0
      %1658 = vmatpush1.msra.mxu0 0.0
      %1659 = vmatprep.subr.mxu0 0.0
      %1660 = vmatpush1.msra.mxu0 0.0
      %1661 = vmatprep.subr.mxu0 0.0
      %1662 = vmatpush1.msra.mxu0 0.0
      %1663 = vmatprep.subr.mxu0 0.0
      %1664 = vmatpush1.msra.mxu0 0.0
      %1665 = vmatprep.subr.mxu0 0.0
      %1666 = vmatpush1.msra.mxu0 0.0
      %1667 = vmatprep.subr.mxu0 0.0
      %1668 = vmatpush1.msra.mxu0 0.0
      %1669 = vmatprep.subr.mxu0 0.0
      %1670 = vmatpush1.msra.mxu0 0.0
      %1671 = vmatprep.subr.mxu0 0.0
      %1672 = vmatpush1.msra.mxu0 0.0
      %1673 = vmatprep.subr.mxu0 0.0
      %1674 = vmatpush1.msra.mxu0 0.0
      %1675 = vmatprep.subr.mxu0 0.0
      %1676 = vmatpush1.msra.mxu0 0.0
      %1677 = vmatprep.subr.mxu0 0.0
      %1678 = vmatpush1.msra.mxu0 0.0
      %1679 = vmatprep.subr.mxu0 0.0
      %1680 = vmatpush1.msra.mxu0 0.0
      %1681 = vmatprep.subr.mxu0 0.0
      %1682 = vmatpush1.msra.mxu0 0.0
      %1683 = vmatprep.subr.mxu0 0.0
      %1684 = vmatpush1.msra.mxu0 0.0
      %1685 = vmatprep.subr.mxu0 0.0
      %1686 = vmatpush1.msra.mxu0 0.0
      %1687 = vmatprep.subr.mxu0 0.0
      %1688 = vmatpush1.msra.mxu0 0.0
      %1689 = vmatprep.subr.mxu0 0.0
      %1690 = vmatpush1.msra.mxu0 0.0
      %1691 = vmatprep.mubr.f32.mxu0 0.0
      %1692 = vmatmul.mubr.f32.gmra.mrb[0].mxu0 %v1619
      %v1693 = vpop.f32.mrb[0].mxu0
      %v1694 = vadd.f32 0.0, %v1693
      %v1695 = vpop.f32.mrb[0].mxu0
      %v1696 = vadd.f32 0.0, %v1695
      %1697 = vdwg.mxu0
      %v1698 = vadd.f32 %v1594, %v1694
      %v1699 = vadd.f32 %v1595, %v1696
      %v1700 = vld [vmem:[%s4] sm:$0xff]
      %1702 = vset.pattern.permute.xlu0 0
      %1703 = vperm.xlu0 %1702, %v1700
      %v1704 = vpop.permute.xlu0 %1703
      %v1706 = vadd.f32 %v1698, %v1704
      %v1707 = vadd.f32 %v1699, %v1704
      %v1708 = vmax.f32 %v1706, 0.0
      %v1709 = vmax.f32 %v1707, 0.0
      %1711 = vrot.lane.b32.xlu0 %v1709, 16
      %v1712 = vpop.permute.xlu0 %1711
      %1715 = vrot.lane.b32.xlu0 %v1708, 16
      %v1716 = vpop.permute.xlu0 %1715
      %v1717 = vsel %vm777, %v1716, %v1712
      %v1720 = vsel %vm777, %v1712, %v1716
      %1722 = vrot.lane.b32.xlu0 %v1720, 113
      %v1723 = vpop.permute.xlu0 %1722
      %1724 = vrot.lane.b32.xlu0 %v1717, 113
      %v1725 = vpop.permute.xlu0 %1724
      %v1726 = vsel %vm786, %v1723, %v1725
      %v1730 = vsel %vm786, %v1725, %v1723
      %1731 = vrot.lane.b32.xlu0 %v1717, 1
      %v1732 = vpop.permute.xlu0 %1731
      %1734 = vrot.lane.b32.xlu0 %v1720, 1
      %v1735 = vpop.permute.xlu0 %1734
      %v1736 = vsel %vm797, %v1735, %v1732
      %v1739 = vsel %vm797, %v1732, %v1735
      %v1740 = vsel %vm819, %v1726, %v1739
      %v1741 = vsel %vm820, %v1730, %v1736
      %v1742 = vld [vmem:[%s5] sm:$0xff]
      %s1743 = scalar_lea.vmem %s5, 8
      %v1744 = vld [vmem:[%s1743] sm:$0xff]
      %vm1745 = vcmask 64512
      %v1747 = vsel %vm1745, %v1744, 0
      %1749 = vmatprep.subr.mxu0 %v1717
      %1750 = vmatpush1.msra.mxu0 %v1720
      %1751 = vmatprep.subr.mxu0 0.0
      %1752 = vmatpush1.msra.mxu0 0.0
      %1753 = vmatprep.subr.mxu0 0.0
      %1754 = vmatpush1.msra.mxu0 0.0
      %1755 = vmatprep.subr.mxu0 0.0
      %1756 = vmatpush1.msra.mxu0 0.0
      %1757 = vmatprep.subr.mxu0 0.0
      %1758 = vmatpush1.msra.mxu0 0.0
      %1759 = vmatprep.subr.mxu0 0.0
      %1760 = vmatpush1.msra.mxu0 0.0
      %1761 = vmatprep.subr.mxu0 0.0
      %1762 = vmatpush1.msra.mxu0 0.0
      %1763 = vmatprep.subr.mxu0 0.0
      %1764 = vmatpush1.msra.mxu0 0.0
      %1765 = vmatprep.subr.mxu0 0.0
      %1766 = vmatpush1.msra.mxu0 0.0
      %1767 = vmatprep.subr.mxu0 0.0
      %1768 = vmatpush1.msra.mxu0 0.0
      %1769 = vmatprep.subr.mxu0 0.0
      %1770 = vmatpush1.msra.mxu0 0.0
      %1771 = vmatprep.subr.mxu0 0.0
      %1772 = vmatpush1.msra.mxu0 0.0
      %1773 = vmatprep.subr.mxu0 0.0
      %1774 = vmatpush1.msra.mxu0 0.0
      %1775 = vmatprep.subr.mxu0 0.0
      %1776 = vmatpush1.msra.mxu0 0.0
      %1777 = vmatprep.subr.mxu0 0.0
      %1778 = vmatpush1.msra.mxu0 0.0
      %1779 = vmatprep.subr.mxu0 0.0
      %1780 = vmatpush1.msra.mxu0 0.0
      %1781 = vmatprep.subr.mxu0 0.0
      %1782 = vmatpush1.msra.mxu0 0.0
      %1783 = vmatprep.subr.mxu0 0.0
      %1784 = vmatpush1.msra.mxu0 0.0
      %1785 = vmatprep.subr.mxu0 0.0
      %1786 = vmatpush1.msra.mxu0 0.0
      %1787 = vmatprep.subr.mxu0 0.0
      %1788 = vmatpush1.msra.mxu0 0.0
      %1789 = vmatprep.subr.mxu0 0.0
      %1790 = vmatpush1.msra.mxu0 0.0
      %1791 = vmatprep.subr.mxu0 0.0
      %1792 = vmatpush1.msra.mxu0 0.0
      %1793 = vmatprep.subr.mxu0 0.0
      %1794 = vmatpush1.msra.mxu0 0.0
      %1795 = vmatprep.subr.mxu0 0.0
      %1796 = vmatpush1.msra.mxu0 0.0
      %1797 = vmatprep.subr.mxu0 0.0
      %1798 = vmatpush1.msra.mxu0 0.0
      %1799 = vmatprep.subr.mxu0 0.0
      %1800 = vmatpush1.msra.mxu0 0.0
      %1801 = vmatprep.subr.mxu0 0.0
      %1802 = vmatpush1.msra.mxu0 0.0
      %1803 = vmatprep.subr.mxu0 0.0
      %1804 = vmatpush1.msra.mxu0 0.0
      %1805 = vmatprep.subr.mxu0 0.0
      %1806 = vmatpush1.msra.mxu0 0.0
      %1807 = vmatprep.subr.mxu0 0.0
      %1808 = vmatpush1.msra.mxu0 0.0
      %1809 = vmatprep.subr.mxu0 0.0
      %1810 = vmatpush1.msra.mxu0 0.0
      %1811 = vmatprep.subr.mxu0 0.0
      %1812 = vmatpush1.msra.mxu0 0.0
      %1813 = vmatprep.mubr.f32.mxu0 0.0
      %1814 = vmatmul.mubr.f32.gmra.mrb[0].mxu0 %v1747
      %v1815 = vpop.f32.mrb[0].mxu0
      %v1816 = vadd.f32 0.0, %v1815
      %v1817 = vpop.f32.mrb[0].mxu0
      %v1818 = vadd.f32 0.0, %v1817
      %1819 = vdwg.mxu0
      %v1821 = vsel %vm1745, %v1742, 0
      %1823 = vmatprep.subr.mxu0 %v1741
      %1824 = vmatpush1.msra.mxu0 %v1740
      %1825 = vmatprep.subr.mxu0 0.0
      %1826 = vmatpush1.msra.mxu0 0.0
      %1827 = vmatprep.subr.mxu0 0.0
      %1828 = vmatpush1.msra.mxu0 0.0
      %1829 = vmatprep.subr.mxu0 0.0
      %1830 = vmatpush1.msra.mxu0 0.0
      %1831 = vmatprep.subr.mxu0 0.0
      %1832 = vmatpush1.msra.mxu0 0.0
      %1833 = vmatprep.subr.mxu0 0.0
      %1834 = vmatpush1.msra.mxu0 0.0
      %1835 = vmatprep.subr.mxu0 0.0
      %1836 = vmatpush1.msra.mxu0 0.0
      %1837 = vmatprep.subr.mxu0 0.0
      %1838 = vmatpush1.msra.mxu0 0.0
      %1839 = vmatprep.subr.mxu0 0.0
      %1840 = vmatpush1.msra.mxu0 0.0
      %1841 = vmatprep.subr.mxu0 0.0
      %1842 = vmatpush1.msra.mxu0 0.0
      %1843 = vmatprep.subr.mxu0 0.0
      %1844 = vmatpush1.msra.mxu0 0.0
      %1845 = vmatprep.subr.mxu0 0.0
      %1846 = vmatpush1.msra.mxu0 0.0
      %1847 = vmatprep.subr.mxu0 0.0
      %1848 = vmatpush1.msra.mxu0 0.0
      %1849 = vmatprep.subr.mxu0 0.0
      %1850 = vmatpush1.msra.mxu0 0.0
      %1851 = vmatprep.subr.mxu0 0.0
      %1852 = vmatpush1.msra.mxu0 0.0
      %1853 = vmatprep.subr.mxu0 0.0
      %1854 = vmatpush1.msra.mxu0 0.0
      %1855 = vmatprep.subr.mxu0 0.0
      %1856 = vmatpush1.msra.mxu0 0.0
      %1857 = vmatprep.subr.mxu0 0.0
      %1858 = vmatpush1.msra.mxu0 0.0
      %1859 = vmatprep.subr.mxu0 0.0
      %1860 = vmatpush1.msra.mxu0 0.0
      %1861 = vmatprep.subr.mxu0 0.0
      %1862 = vmatpush1.msra.mxu0 0.0
      %1863 = vmatprep.subr.mxu0 0.0
      %1864 = vmatpush1.msra.mxu0 0.0
      %1865 = vmatprep.subr.mxu0 0.0
      %1866 = vmatpush1.msra.mxu0 0.0
      %1867 = vmatprep.subr.mxu0 0.0
      %1868 = vmatpush1.msra.mxu0 0.0
      %1869 = vmatprep.subr.mxu0 0.0
      %1870 = vmatpush1.msra.mxu0 0.0
      %1871 = vmatprep.subr.mxu0 0.0
      %1872 = vmatpush1.msra.mxu0 0.0
      %1873 = vmatprep.subr.mxu0 0.0
      %1874 = vmatpush1.msra.mxu0 0.0
      %1875 = vmatprep.subr.mxu0 0.0
      %1876 = vmatpush1.msra.mxu0 0.0
      %1877 = vmatprep.subr.mxu0 0.0
      %1878 = vmatpush1.msra.mxu0 0.0
      %1879 = vmatprep.subr.mxu0 0.0
      %1880 = vmatpush1.msra.mxu0 0.0
      %1881 = vmatprep.subr.mxu0 0.0
      %1882 = vmatpush1.msra.mxu0 0.0
      %1883 = vmatprep.subr.mxu0 0.0
      %1884 = vmatpush1.msra.mxu0 0.0
      %1885 = vmatprep.subr.mxu0 0.0
      %1886 = vmatpush1.msra.mxu0 0.0
      %1887 = vmatprep.mubr.f32.mxu0 0.0
      %1888 = vmatmul.mubr.f32.gmra.mrb[0].mxu0 %v1821
      %v1889 = vpop.f32.mrb[0].mxu0
      %v1890 = vadd.f32 %v1816, %v1889
      %v1891 = vpop.f32.mrb[0].mxu0
      %v1892 = vadd.f32 %v1818, %v1891
      %1893 = vdwg.mxu0
      %1894 = vrot.lane.b32.xlu0 %v1717, 15
      %v1895 = vpop.permute.xlu0 %1894
      %1897 = vrot.lane.b32.xlu0 %v1720, 15
      %v1898 = vpop.permute.xlu0 %1897
      %v1899 = vsel %vm991, %v1898, %v1895
      %v1902 = vsel %vm991, %v1895, %v1898
      %1903 = vrot.lane.b32.xlu0 %v1720, 127
      %v1904 = vpop.permute.xlu0 %1903
      %1905 = vrot.lane.b32.xlu0 %v1717, 127
      %v1906 = vpop.permute.xlu0 %1905
      %v1907 = vsel %vm1000, %v1904, %v1906
      %v1911 = vsel %vm1000, %v1906, %v1904
      %v1912 = vsel %vm1022, %v1902, %v1907
      %v1913 = vsel %vm1023, %v1899, %v1911
      %s1914 = scalar_lea.vmem %s5, 16
      %v1915 = vld [vmem:[%s1914] sm:$0xff]
      %v1917 = vsel %vm1745, %v1915, 0
      %1919 = vmatprep.subr.mxu0 %v1913
      %1920 = vmatpush1.msra.mxu0 %v1912
      %1921 = vmatprep.subr.mxu0 0.0
      %1922 = vmatpush1.msra.mxu0 0.0
      %1923 = vmatprep.subr.mxu0 0.0
      %1924 = vmatpush1.msra.mxu0 0.0
      %1925 = vmatprep.subr.mxu0 0.0
      %1926 = vmatpush1.msra.mxu0 0.0
      %1927 = vmatprep.subr.mxu0 0.0
      %1928 = vmatpush1.msra.mxu0 0.0
      %1929 = vmatprep.subr.mxu0 0.0
      %1930 = vmatpush1.msra.mxu0 0.0
      %1931 = vmatprep.subr.mxu0 0.0
      %1932 = vmatpush1.msra.mxu0 0.0
      %1933 = vmatprep.subr.mxu0 0.0
      %1934 = vmatpush1.msra.mxu0 0.0
      %1935 = vmatprep.subr.mxu0 0.0
      %1936 = vmatpush1.msra.mxu0 0.0
      %1937 = vmatprep.subr.mxu0 0.0
      %1938 = vmatpush1.msra.mxu0 0.0
      %1939 = vmatprep.subr.mxu0 0.0
      %1940 = vmatpush1.msra.mxu0 0.0
      %1941 = vmatprep.subr.mxu0 0.0
      %1942 = vmatpush1.msra.mxu0 0.0
      %1943 = vmatprep.subr.mxu0 0.0
      %1944 = vmatpush1.msra.mxu0 0.0
      %1945 = vmatprep.subr.mxu0 0.0
      %1946 = vmatpush1.msra.mxu0 0.0
      %1947 = vmatprep.subr.mxu0 0.0
      %1948 = vmatpush1.msra.mxu0 0.0
      %1949 = vmatprep.subr.mxu0 0.0
      %1950 = vmatpush1.msra.mxu0 0.0
      %1951 = vmatprep.subr.mxu0 0.0
      %1952 = vmatpush1.msra.mxu0 0.0
      %1953 = vmatprep.subr.mxu0 0.0
      %1954 = vmatpush1.msra.mxu0 0.0
      %1955 = vmatprep.subr.mxu0 0.0
      %1956 = vmatpush1.msra.mxu0 0.0
      %1957 = vmatprep.subr.mxu0 0.0
      %1958 = vmatpush1.msra.mxu0 0.0
      %1959 = vmatprep.subr.mxu0 0.0
      %1960 = vmatpush1.msra.mxu0 0.0
      %1961 = vmatprep.subr.mxu0 0.0
      %1962 = vmatpush1.msra.mxu0 0.0
      %1963 = vmatprep.subr.mxu0 0.0
      %1964 = vmatpush1.msra.mxu0 0.0
      %1965 = vmatprep.subr.mxu0 0.0
      %1966 = vmatpush1.msra.mxu0 0.0
      %1967 = vmatprep.subr.mxu0 0.0
      %1968 = vmatpush1.msra.mxu0 0.0
      %1969 = vmatprep.subr.mxu0 0.0
      %1970 = vmatpush1.msra.mxu0 0.0
      %1971 = vmatprep.subr.mxu0 0.0
      %1972 = vmatpush1.msra.mxu0 0.0
      %1973 = vmatprep.subr.mxu0 0.0
      %1974 = vmatpush1.msra.mxu0 0.0
      %1975 = vmatprep.subr.mxu0 0.0
      %1976 = vmatpush1.msra.mxu0 0.0
      %1977 = vmatprep.subr.mxu0 0.0
      %1978 = vmatpush1.msra.mxu0 0.0
      %1979 = vmatprep.subr.mxu0 0.0
      %1980 = vmatpush1.msra.mxu0 0.0
      %1981 = vmatprep.subr.mxu0 0.0
      %1982 = vmatpush1.msra.mxu0 0.0
      %1983 = vmatprep.mubr.f32.mxu0 0.0
      %1984 = vmatmul.mubr.f32.gmra.mrb[0].mxu0 %v1917
      %v1985 = vpop.f32.mrb[0].mxu0
      %v1986 = vadd.f32 0.0, %v1985
      %v1987 = vpop.f32.mrb[0].mxu0
      %v1988 = vadd.f32 0.0, %v1987
      %1989 = vdwg.mxu0
      %v1990 = vadd.f32 %v1890, %v1986
      %v1991 = vadd.f32 %v1892, %v1988
      %1992 = vrot.lane.b32.xlu0 %v1708, 113
      %v1993 = vpop.permute.xlu0 %1992
      %1994 = vrot.lane.b32.xlu0 %v1709, 113
      %v1995 = vpop.permute.xlu0 %1994
      %v1996 = vsel %vm786, %v1993, %v1995
      %v2000 = vsel %vm786, %v1995, %v1993
      %2001 = vrot.lane.b32.xlu0 %v1709, 1
      %v2002 = vpop.permute.xlu0 %2001
      %2004 = vrot.lane.b32.xlu0 %v1708, 1
      %v2005 = vpop.permute.xlu0 %2004
      %v2006 = vsel %vm797, %v2005, %v2002
      %v2009 = vsel %vm797, %v2002, %v2005
      %v2010 = vsel %vm819, %v1996, %v2009
      %v2011 = vsel %vm820, %v2000, %v2006
      %s2012 = scalar_lea.vmem %s5, 24
      %v2013 = vld [vmem:[%s2012] sm:$0xff]
      %v2015 = vsel %vm1745, %v2013, 0
      %2017 = vmatprep.subr.mxu0 %v2011
      %2018 = vmatpush1.msra.mxu0 %v2010
      %2019 = vmatprep.subr.mxu0 0.0
      %2020 = vmatpush1.msra.mxu0 0.0
      %2021 = vmatprep.subr.mxu0 0.0
      %2022 = vmatpush1.msra.mxu0 0.0
      %2023 = vmatprep.subr.mxu0 0.0
      %2024 = vmatpush1.msra.mxu0 0.0
      %2025 = vmatprep.subr.mxu0 0.0
      %2026 = vmatpush1.msra.mxu0 0.0
      %2027 = vmatprep.subr.mxu0 0.0
      %2028 = vmatpush1.msra.mxu0 0.0
      %2029 = vmatprep.subr.mxu0 0.0
      %2030 = vmatpush1.msra.mxu0 0.0
      %2031 = vmatprep.subr.mxu0 0.0
      %2032 = vmatpush1.msra.mxu0 0.0
      %2033 = vmatprep.subr.mxu0 0.0
      %2034 = vmatpush1.msra.mxu0 0.0
      %2035 = vmatprep.subr.mxu0 0.0
      %2036 = vmatpush1.msra.mxu0 0.0
      %2037 = vmatprep.subr.mxu0 0.0
      %2038 = vmatpush1.msra.mxu0 0.0
      %2039 = vmatprep.subr.mxu0 0.0
      %2040 = vmatpush1.msra.mxu0 0.0
      %2041 = vmatprep.subr.mxu0 0.0
      %2042 = vmatpush1.msra.mxu0 0.0
      %2043 = vmatprep.subr.mxu0 0.0
      %2044 = vmatpush1.msra.mxu0 0.0
      %2045 = vmatprep.subr.mxu0 0.0
      %2046 = vmatpush1.msra.mxu0 0.0
      %2047 = vmatprep.subr.mxu0 0.0
      %2048 = vmatpush1.msra.mxu0 0.0
      %2049 = vmatprep.subr.mxu0 0.0
      %2050 = vmatpush1.msra.mxu0 0.0
      %2051 = vmatprep.subr.mxu0 0.0
      %2052 = vmatpush1.msra.mxu0 0.0
      %2053 = vmatprep.subr.mxu0 0.0
      %2054 = vmatpush1.msra.mxu0 0.0
      %2055 = vmatprep.subr.mxu0 0.0
      %2056 = vmatpush1.msra.mxu0 0.0
      %2057 = vmatprep.subr.mxu0 0.0
      %2058 = vmatpush1.msra.mxu0 0.0
      %2059 = vmatprep.subr.mxu0 0.0
      %2060 = vmatpush1.msra.mxu0 0.0
      %2061 = vmatprep.subr.mxu0 0.0
      %2062 = vmatpush1.msra.mxu0 0.0
      %2063 = vmatprep.subr.mxu0 0.0
      %2064 = vmatpush1.msra.mxu0 0.0
      %2065 = vmatprep.subr.mxu0 0.0
      %2066 = vmatpush1.msra.mxu0 0.0
      %2067 = vmatprep.subr.mxu0 0.0
      %2068 = vmatpush1.msra.mxu0 0.0
      %2069 = vmatprep.subr.mxu0 0.0
      %2070 = vmatpush1.msra.mxu0 0.0
      %2071 = vmatprep.subr.mxu0 0.0
      %2072 = vmatpush1.msra.mxu0 0.0
      %2073 = vmatprep.subr.mxu0 0.0
      %2074 = vmatpush1.msra.mxu0 0.0
      %2075 = vmatprep.subr.mxu0 0.0
      %2076 = vmatpush1.msra.mxu0 0.0
      %2077 = vmatprep.subr.mxu0 0.0
      %2078 = vmatpush1.msra.mxu0 0.0
      %2079 = vmatprep.subr.mxu0 0.0
      %2080 = vmatpush1.msra.mxu0 0.0
      %2081 = vmatprep.mubr.f32.mxu0 0.0
      %2082 = vmatmul.mubr.f32.gmra.mrb[0].mxu0 %v2015
      %v2083 = vpop.f32.mrb[0].mxu0
      %v2084 = vadd.f32 0.0, %v2083
      %v2085 = vpop.f32.mrb[0].mxu0
      %v2086 = vadd.f32 0.0, %v2085
      %2087 = vdwg.mxu0
      %v2088 = vadd.f32 %v1990, %v2084
      %v2089 = vadd.f32 %v1991, %v2086
      %s2090 = scalar_lea.vmem %s5, 32
      %v2091 = vld [vmem:[%s2090] sm:$0xff]
      %v2093 = vsel %vm1745, %v2091, 0
      %2095 = vmatprep.subr.mxu0 %v1709
      %2096 = vmatpush1.msra.mxu0 %v1708
      %2097 = vmatprep.subr.mxu0 0.0
      %2098 = vmatpush1.msra.mxu0 0.0
      %2099 = vmatprep.subr.mxu0 0.0
      %2100 = vmatpush1.msra.mxu0 0.0
      %2101 = vmatprep.subr.mxu0 0.0
      %2102 = vmatpush1.msra.mxu0 0.0
      %2103 = vmatprep.subr.mxu0 0.0
      %2104 = vmatpush1.msra.mxu0 0.0
      %2105 = vmatprep.subr.mxu0 0.0
      %2106 = vmatpush1.msra.mxu0 0.0
      %2107 = vmatprep.subr.mxu0 0.0
      %2108 = vmatpush1.msra.mxu0 0.0
      %2109 = vmatprep.subr.mxu0 0.0
      %2110 = vmatpush1.msra.mxu0 0.0
      %2111 = vmatprep.subr.mxu0 0.0
      %2112 = vmatpush1.msra.mxu0 0.0
      %2113 = vmatprep.subr.mxu0 0.0
      %2114 = vmatpush1.msra.mxu0 0.0
      %2115 = vmatprep.subr.mxu0 0.0
      %2116 = vmatpush1.msra.mxu0 0.0
      %2117 = vmatprep.subr.mxu0 0.0
      %2118 = vmatpush1.msra.mxu0 0.0
      %2119 = vmatprep.subr.mxu0 0.0
      %2120 = vmatpush1.msra.mxu0 0.0
      %2121 = vmatprep.subr.mxu0 0.0
      %2122 = vmatpush1.msra.mxu0 0.0
      %2123 = vmatprep.subr.mxu0 0.0
      %2124 = vmatpush1.msra.mxu0 0.0
      %2125 = vmatprep.subr.mxu0 0.0
      %2126 = vmatpush1.msra.mxu0 0.0
      %2127 = vmatprep.subr.mxu0 0.0
      %2128 = vmatpush1.msra.mxu0 0.0
      %2129 = vmatprep.subr.mxu0 0.0
      %2130 = vmatpush1.msra.mxu0 0.0
      %2131 = vmatprep.subr.mxu0 0.0
      %2132 = vmatpush1.msra.mxu0 0.0
      %2133 = vmatprep.subr.mxu0 0.0
      %2134 = vmatpush1.msra.mxu0 0.0
      %2135 = vmatprep.subr.mxu0 0.0
      %2136 = vmatpush1.msra.mxu0 0.0
      %2137 = vmatprep.subr.mxu0 0.0
      %2138 = vmatpush1.msra.mxu0 0.0
      %2139 = vmatprep.subr.mxu0 0.0
      %2140 = vmatpush1.msra.mxu0 0.0
      %2141 = vmatprep.subr.mxu0 0.0
      %2142 = vmatpush1.msra.mxu0 0.0
      %2143 = vmatprep.subr.mxu0 0.0
      %2144 = vmatpush1.msra.mxu0 0.0
      %2145 = vmatprep.subr.mxu0 0.0
      %2146 = vmatpush1.msra.mxu0 0.0
      %2147 = vmatprep.subr.mxu0 0.0
      %2148 = vmatpush1.msra.mxu0 0.0
      %2149 = vmatprep.subr.mxu0 0.0
      %2150 = vmatpush1.msra.mxu0 0.0
      %2151 = vmatprep.subr.mxu0 0.0
      %2152 = vmatpush1.msra.mxu0 0.0
      %2153 = vmatprep.subr.mxu0 0.0
      %2154 = vmatpush1.msra.mxu0 0.0
      %2155 = vmatprep.subr.mxu0 0.0
      %2156 = vmatpush1.msra.mxu0 0.0
      %2157 = vmatprep.subr.mxu0 0.0
      %2158 = vmatpush1.msra.mxu0 0.0
      %2159 = vmatprep.mubr.f32.mxu0 0.0
      %2160 = vmatmul.mubr.f32.gmra.mrb[0].mxu0 %v2093
      %v2161 = vpop.f32.mrb[0].mxu0
      %v2162 = vadd.f32 0.0, %v2161
      %v2163 = vpop.f32.mrb[0].mxu0
      %v2164 = vadd.f32 0.0, %v2163
      %2165 = vdwg.mxu0
      %v2166 = vadd.f32 %v2088, %v2162
      %v2167 = vadd.f32 %v2089, %v2164
      %2168 = vrot.lane.b32.xlu0 %v1709, 15
      %v2169 = vpop.permute.xlu0 %2168
      %2171 = vrot.lane.b32.xlu0 %v1708, 15
      %v2172 = vpop.permute.xlu0 %2171
      %v2173 = vsel %vm991, %v2172, %v2169
      %v2176 = vsel %vm991, %v2169, %v2172
      %2177 = vrot.lane.b32.xlu0 %v1708, 127
      %v2178 = vpop.permute.xlu0 %2177
      %2179 = vrot.lane.b32.xlu0 %v1709, 127
      %v2180 = vpop.permute.xlu0 %2179
      %v2181 = vsel %vm1000, %v2178, %v2180
      %v2185 = vsel %vm1000, %v2180, %v2178
      %v2186 = vsel %vm1022, %v2176, %v2181
      %v2187 = vsel %vm1023, %v2173, %v2185
      %s2188 = scalar_lea.vmem %s5, 40
      %v2189 = vld [vmem:[%s2188] sm:$0xff]
      %v2191 = vsel %vm1745, %v2189, 0
      %2193 = vmatprep.subr.mxu0 %v2187
      %2194 = vmatpush1.msra.mxu0 %v2186
      %2195 = vmatprep.subr.mxu0 0.0
      %2196 = vmatpush1.msra.mxu0 0.0
      %2197 = vmatprep.subr.mxu0 0.0
      %2198 = vmatpush1.msra.mxu0 0.0
      %2199 = vmatprep.subr.mxu0 0.0
      %2200 = vmatpush1.msra.mxu0 0.0
      %2201 = vmatprep.subr.mxu0 0.0
      %2202 = vmatpush1.msra.mxu0 0.0
      %2203 = vmatprep.subr.mxu0 0.0
      %2204 = vmatpush1.msra.mxu0 0.0
      %2205 = vmatprep.subr.mxu0 0.0
      %2206 = vmatpush1.msra.mxu0 0.0
      %2207 = vmatprep.subr.mxu0 0.0
      %2208 = vmatpush1.msra.mxu0 0.0
      %2209 = vmatprep.subr.mxu0 0.0
      %2210 = vmatpush1.msra.mxu0 0.0
      %2211 = vmatprep.subr.mxu0 0.0
      %2212 = vmatpush1.msra.mxu0 0.0
      %2213 = vmatprep.subr.mxu0 0.0
      %2214 = vmatpush1.msra.mxu0 0.0
      %2215 = vmatprep.subr.mxu0 0.0
      %2216 = vmatpush1.msra.mxu0 0.0
      %2217 = vmatprep.subr.mxu0 0.0
      %2218 = vmatpush1.msra.mxu0 0.0
      %2219 = vmatprep.subr.mxu0 0.0
      %2220 = vmatpush1.msra.mxu0 0.0
      %2221 = vmatprep.subr.mxu0 0.0
      %2222 = vmatpush1.msra.mxu0 0.0
      %2223 = vmatprep.subr.mxu0 0.0
      %2224 = vmatpush1.msra.mxu0 0.0
      %2225 = vmatprep.subr.mxu0 0.0
      %2226 = vmatpush1.msra.mxu0 0.0
      %2227 = vmatprep.subr.mxu0 0.0
      %2228 = vmatpush1.msra.mxu0 0.0
      %2229 = vmatprep.subr.mxu0 0.0
      %2230 = vmatpush1.msra.mxu0 0.0
      %2231 = vmatprep.subr.mxu0 0.0
      %2232 = vmatpush1.msra.mxu0 0.0
      %2233 = vmatprep.subr.mxu0 0.0
      %2234 = vmatpush1.msra.mxu0 0.0
      %2235 = vmatprep.subr.mxu0 0.0
      %2236 = vmatpush1.msra.mxu0 0.0
      %2237 = vmatprep.subr.mxu0 0.0
      %2238 = vmatpush1.msra.mxu0 0.0
      %2239 = vmatprep.subr.mxu0 0.0
      %2240 = vmatpush1.msra.mxu0 0.0
      %2241 = vmatprep.subr.mxu0 0.0
      %2242 = vmatpush1.msra.mxu0 0.0
      %2243 = vmatprep.subr.mxu0 0.0
      %2244 = vmatpush1.msra.mxu0 0.0
      %2245 = vmatprep.subr.mxu0 0.0
      %2246 = vmatpush1.msra.mxu0 0.0
      %2247 = vmatprep.subr.mxu0 0.0
      %2248 = vmatpush1.msra.mxu0 0.0
      %2249 = vmatprep.subr.mxu0 0.0
      %2250 = vmatpush1.msra.mxu0 0.0
      %2251 = vmatprep.subr.mxu0 0.0
      %2252 = vmatpush1.msra.mxu0 0.0
      %2253 = vmatprep.subr.mxu0 0.0
      %2254 = vmatpush1.msra.mxu0 0.0
      %2255 = vmatprep.subr.mxu0 0.0
      %2256 = vmatpush1.msra.mxu0 0.0
      %2257 = vmatprep.mubr.f32.mxu0 0.0
      %2258 = vmatmul.mubr.f32.gmra.mrb[0].mxu0 %v2191
      %v2259 = vpop.f32.mrb[0].mxu0
      %v2260 = vadd.f32 0.0, %v2259
      %v2261 = vpop.f32.mrb[0].mxu0
      %v2262 = vadd.f32 0.0, %v2261
      %2263 = vdwg.mxu0
      %v2264 = vadd.f32 %v2166, %v2260
      %v2265 = vadd.f32 %v2167, %v2262
      %2266 = vrot.lane.b32.xlu0 %v1708, 112
      %v2267 = vpop.permute.xlu0 %2266
      %2268 = vrot.lane.b32.xlu0 %v1709, 112
      %v2269 = vpop.permute.xlu0 %2268
      %v2270 = vsel %vm1404, %v2267, %v2269
      %v2274 = vsel %vm1404, %v2269, %v2267
      %2276 = vrot.lane.b32.xlu0 %v2270, 113
      %v2277 = vpop.permute.xlu0 %2276
      %2278 = vrot.lane.b32.xlu0 %v2274, 113
      %v2279 = vpop.permute.xlu0 %2278
      %v2280 = vsel %vm786, %v2277, %v2279
      %v2284 = vsel %vm786, %v2279, %v2277
      %2285 = vrot.lane.b32.xlu0 %v2274, 1
      %v2286 = vpop.permute.xlu0 %2285
      %2288 = vrot.lane.b32.xlu0 %v2270, 1
      %v2289 = vpop.permute.xlu0 %2288
      %v2290 = vsel %vm797, %v2289, %v2286
      %v2293 = vsel %vm797, %v2286, %v2289
      %v2294 = vsel %vm819, %v2280, %v2293
      %v2295 = vsel %vm820, %v2284, %v2290
      %s2296 = scalar_lea.vmem %s5, 48
      %v2297 = vld [vmem:[%s2296] sm:$0xff]
      %v2299 = vsel %vm1745, %v2297, 0
      %2301 = vmatprep.subr.mxu0 %v2295
      %2302 = vmatpush1.msra.mxu0 %v2294
      %2303 = vmatprep.subr.mxu0 0.0
      %2304 = vmatpush1.msra.mxu0 0.0
      %2305 = vmatprep.subr.mxu0 0.0
      %2306 = vmatpush1.msra.mxu0 0.0
      %2307 = vmatprep.subr.mxu0 0.0
      %2308 = vmatpush1.msra.mxu0 0.0
      %2309 = vmatprep.subr.mxu0 0.0
      %2310 = vmatpush1.msra.mxu0 0.0
      %2311 = vmatprep.subr.mxu0 0.0
      %2312 = vmatpush1.msra.mxu0 0.0
      %2313 = vmatprep.subr.mxu0 0.0
      %2314 = vmatpush1.msra.mxu0 0.0
      %2315 = vmatprep.subr.mxu0 0.0
      %2316 = vmatpush1.msra.mxu0 0.0
      %2317 = vmatprep.subr.mxu0 0.0
      %2318 = vmatpush1.msra.mxu0 0.0
      %2319 = vmatprep.subr.mxu0 0.0
      %2320 = vmatpush1.msra.mxu0 0.0
      %2321 = vmatprep.subr.mxu0 0.0
      %2322 = vmatpush1.msra.mxu0 0.0
      %2323 = vmatprep.subr.mxu0 0.0
      %2324 = vmatpush1.msra.mxu0 0.0
      %2325 = vmatprep.subr.mxu0 0.0
      %2326 = vmatpush1.msra.mxu0 0.0
      %2327 = vmatprep.subr.mxu0 0.0
      %2328 = vmatpush1.msra.mxu0 0.0
      %2329 = vmatprep.subr.mxu0 0.0
      %2330 = vmatpush1.msra.mxu0 0.0
      %2331 = vmatprep.subr.mxu0 0.0
      %2332 = vmatpush1.msra.mxu0 0.0
      %2333 = vmatprep.subr.mxu0 0.0
      %2334 = vmatpush1.msra.mxu0 0.0
      %2335 = vmatprep.subr.mxu0 0.0
      %2336 = vmatpush1.msra.mxu0 0.0
      %2337 = vmatprep.subr.mxu0 0.0
      %2338 = vmatpush1.msra.mxu0 0.0
      %2339 = vmatprep.subr.mxu0 0.0
      %2340 = vmatpush1.msra.mxu0 0.0
      %2341 = vmatprep.subr.mxu0 0.0
      %2342 = vmatpush1.msra.mxu0 0.0
      %2343 = vmatprep.subr.mxu0 0.0
      %2344 = vmatpush1.msra.mxu0 0.0
      %2345 = vmatprep.subr.mxu0 0.0
      %2346 = vmatpush1.msra.mxu0 0.0
      %2347 = vmatprep.subr.mxu0 0.0
      %2348 = vmatpush1.msra.mxu0 0.0
      %2349 = vmatprep.subr.mxu0 0.0
      %2350 = vmatpush1.msra.mxu0 0.0
      %2351 = vmatprep.subr.mxu0 0.0
      %2352 = vmatpush1.msra.mxu0 0.0
      %2353 = vmatprep.subr.mxu0 0.0
      %2354 = vmatpush1.msra.mxu0 0.0
      %2355 = vmatprep.subr.mxu0 0.0
      %2356 = vmatpush1.msra.mxu0 0.0
      %2357 = vmatprep.subr.mxu0 0.0
      %2358 = vmatpush1.msra.mxu0 0.0
      %2359 = vmatprep.subr.mxu0 0.0
      %2360 = vmatpush1.msra.mxu0 0.0
      %2361 = vmatprep.subr.mxu0 0.0
      %2362 = vmatpush1.msra.mxu0 0.0
      %2363 = vmatprep.subr.mxu0 0.0
      %2364 = vmatpush1.msra.mxu0 0.0
      %2365 = vmatprep.mubr.f32.mxu0 0.0
      %2366 = vmatmul.mubr.f32.gmra.mrb[0].mxu0 %v2299
      %v2367 = vpop.f32.mrb[0].mxu0
      %v2368 = vadd.f32 0.0, %v2367
      %v2369 = vpop.f32.mrb[0].mxu0
      %v2370 = vadd.f32 0.0, %v2369
      %2371 = vdwg.mxu0
      %v2372 = vadd.f32 %v2264, %v2368
      %v2373 = vadd.f32 %v2265, %v2370
      %s2374 = scalar_lea.vmem %s5, 56
      %v2375 = vld [vmem:[%s2374] sm:$0xff]
      %v2377 = vsel %vm1745, %v2375, 0
      %2379 = vmatprep.subr.mxu0 %v2274
      %2380 = vmatpush1.msra.mxu0 %v2270
      %2381 = vmatprep.subr.mxu0 0.0
      %2382 = vmatpush1.msra.mxu0 0.0
      %2383 = vmatprep.subr.mxu0 0.0
      %2384 = vmatpush1.msra.mxu0 0.0
      %2385 = vmatprep.subr.mxu0 0.0
      %2386 = vmatpush1.msra.mxu0 0.0
      %2387 = vmatprep.subr.mxu0 0.0
      %2388 = vmatpush1.msra.mxu0 0.0
      %2389 = vmatprep.subr.mxu0 0.0
      %2390 = vmatpush1.msra.mxu0 0.0
      %2391 = vmatprep.subr.mxu0 0.0
      %2392 = vmatpush1.msra.mxu0 0.0
      %2393 = vmatprep.subr.mxu0 0.0
      %2394 = vmatpush1.msra.mxu0 0.0
      %2395 = vmatprep.subr.mxu0 0.0
      %2396 = vmatpush1.msra.mxu0 0.0
      %2397 = vmatprep.subr.mxu0 0.0
      %2398 = vmatpush1.msra.mxu0 0.0
      %2399 = vmatprep.subr.mxu0 0.0
      %2400 = vmatpush1.msra.mxu0 0.0
      %2401 = vmatprep.subr.mxu0 0.0
      %2402 = vmatpush1.msra.mxu0 0.0
      %2403 = vmatprep.subr.mxu0 0.0
      %2404 = vmatpush1.msra.mxu0 0.0
      %2405 = vmatprep.subr.mxu0 0.0
      %2406 = vmatpush1.msra.mxu0 0.0
      %2407 = vmatprep.subr.mxu0 0.0
      %2408 = vmatpush1.msra.mxu0 0.0
      %2409 = vmatprep.subr.mxu0 0.0
      %2410 = vmatpush1.msra.mxu0 0.0
      %2411 = vmatprep.subr.mxu0 0.0
      %2412 = vmatpush1.msra.mxu0 0.0
      %2413 = vmatprep.subr.mxu0 0.0
      %2414 = vmatpush1.msra.mxu0 0.0
      %2415 = vmatprep.subr.mxu0 0.0
      %2416 = vmatpush1.msra.mxu0 0.0
      %2417 = vmatprep.subr.mxu0 0.0
      %2418 = vmatpush1.msra.mxu0 0.0
      %2419 = vmatprep.subr.mxu0 0.0
      %2420 = vmatpush1.msra.mxu0 0.0
      %2421 = vmatprep.subr.mxu0 0.0
      %2422 = vmatpush1.msra.mxu0 0.0
      %2423 = vmatprep.subr.mxu0 0.0
      %2424 = vmatpush1.msra.mxu0 0.0
      %2425 = vmatprep.subr.mxu0 0.0
      %2426 = vmatpush1.msra.mxu0 0.0
      %2427 = vmatprep.subr.mxu0 0.0
      %2428 = vmatpush1.msra.mxu0 0.0
      %2429 = vmatprep.subr.mxu0 0.0
      %2430 = vmatpush1.msra.mxu0 0.0
      %2431 = vmatprep.subr.mxu0 0.0
      %2432 = vmatpush1.msra.mxu0 0.0
      %2433 = vmatprep.subr.mxu0 0.0
      %2434 = vmatpush1.msra.mxu0 0.0
      %2435 = vmatprep.subr.mxu0 0.0
      %2436 = vmatpush1.msra.mxu0 0.0
      %2437 = vmatprep.subr.mxu0 0.0
      %2438 = vmatpush1.msra.mxu0 0.0
      %2439 = vmatprep.subr.mxu0 0.0
      %2440 = vmatpush1.msra.mxu0 0.0
      %2441 = vmatprep.subr.mxu0 0.0
      %2442 = vmatpush1.msra.mxu0 0.0
      %2443 = vmatprep.mubr.f32.mxu0 0.0
      %2444 = vmatmul.mubr.f32.gmra.mrb[0].mxu0 %v2377
      %v2445 = vpop.f32.mrb[0].mxu0
      %v2446 = vadd.f32 0.0, %v2445
      %v2447 = vpop.f32.mrb[0].mxu0
      %v2448 = vadd.f32 0.0, %v2447
      %2449 = vdwg.mxu0
      %v2450 = vadd.f32 %v2372, %v2446
      %v2451 = vadd.f32 %v2373, %v2448
      %2452 = vrot.lane.b32.xlu0 %v2274, 15
      %v2453 = vpop.permute.xlu0 %2452
      %2455 = vrot.lane.b32.xlu0 %v2270, 15
      %v2456 = vpop.permute.xlu0 %2455
      %v2457 = vsel %vm991, %v2456, %v2453
      %v2460 = vsel %vm991, %v2453, %v2456
      %2461 = vrot.lane.b32.xlu0 %v2270, 127
      %v2462 = vpop.permute.xlu0 %2461
      %2463 = vrot.lane.b32.xlu0 %v2274, 127
      %v2464 = vpop.permute.xlu0 %2463
      %v2465 = vsel %vm1000, %v2462, %v2464
      %v2469 = vsel %vm1000, %v2464, %v2462
      %v2470 = vsel %vm1022, %v2460, %v2465
      %v2471 = vsel %vm1023, %v2457, %v2469
      %s2472 = scalar_lea.vmem %s5, 64
      %v2473 = vld [vmem:[%s2472] sm:$0xff]
      %v2475 = vsel %vm1745, %v2473, 0
      %2477 = vmatprep.subr.mxu0 %v2471
      %2478 = vmatpush1.msra.mxu0 %v2470
      %2479 = vmatprep.subr.mxu0 0.0
      %2480 = vmatpush1.msra.mxu0 0.0
      %2481 = vmatprep.subr.mxu0 0.0
      %2482 = vmatpush1.msra.mxu0 0.0
      %2483 = vmatprep.subr.mxu0 0.0
      %2484 = vmatpush1.msra.mxu0 0.0
      %2485 = vmatprep.subr.mxu0 0.0
      %2486 = vmatpush1.msra.mxu0 0.0
      %2487 = vmatprep.subr.mxu0 0.0
      %2488 = vmatpush1.msra.mxu0 0.0
      %2489 = vmatprep.subr.mxu0 0.0
      %2490 = vmatpush1.msra.mxu0 0.0
      %2491 = vmatprep.subr.mxu0 0.0
      %2492 = vmatpush1.msra.mxu0 0.0
      %2493 = vmatprep.subr.mxu0 0.0
      %2494 = vmatpush1.msra.mxu0 0.0
      %2495 = vmatprep.subr.mxu0 0.0
      %2496 = vmatpush1.msra.mxu0 0.0
      %2497 = vmatprep.subr.mxu0 0.0
      %2498 = vmatpush1.msra.mxu0 0.0
      %2499 = vmatprep.subr.mxu0 0.0
      %2500 = vmatpush1.msra.mxu0 0.0
      %2501 = vmatprep.subr.mxu0 0.0
      %2502 = vmatpush1.msra.mxu0 0.0
      %2503 = vmatprep.subr.mxu0 0.0
      %2504 = vmatpush1.msra.mxu0 0.0
      %2505 = vmatprep.subr.mxu0 0.0
      %2506 = vmatpush1.msra.mxu0 0.0
      %2507 = vmatprep.subr.mxu0 0.0
      %2508 = vmatpush1.msra.mxu0 0.0
      %2509 = vmatprep.subr.mxu0 0.0
      %2510 = vmatpush1.msra.mxu0 0.0
      %2511 = vmatprep.subr.mxu0 0.0
      %2512 = vmatpush1.msra.mxu0 0.0
      %2513 = vmatprep.subr.mxu0 0.0
      %2514 = vmatpush1.msra.mxu0 0.0
      %2515 = vmatprep.subr.mxu0 0.0
      %2516 = vmatpush1.msra.mxu0 0.0
      %2517 = vmatprep.subr.mxu0 0.0
      %2518 = vmatpush1.msra.mxu0 0.0
      %2519 = vmatprep.subr.mxu0 0.0
      %2520 = vmatpush1.msra.mxu0 0.0
      %2521 = vmatprep.subr.mxu0 0.0
      %2522 = vmatpush1.msra.mxu0 0.0
      %2523 = vmatprep.subr.mxu0 0.0
      %2524 = vmatpush1.msra.mxu0 0.0
      %2525 = vmatprep.subr.mxu0 0.0
      %2526 = vmatpush1.msra.mxu0 0.0
      %2527 = vmatprep.subr.mxu0 0.0
      %2528 = vmatpush1.msra.mxu0 0.0
      %2529 = vmatprep.subr.mxu0 0.0
      %2530 = vmatpush1.msra.mxu0 0.0
      %2531 = vmatprep.subr.mxu0 0.0
      %2532 = vmatpush1.msra.mxu0 0.0
      %2533 = vmatprep.subr.mxu0 0.0
      %2534 = vmatpush1.msra.mxu0 0.0
      %2535 = vmatprep.subr.mxu0 0.0
      %2536 = vmatpush1.msra.mxu0 0.0
      %2537 = vmatprep.subr.mxu0 0.0
      %2538 = vmatpush1.msra.mxu0 0.0
      %2539 = vmatprep.subr.mxu0 0.0
      %2540 = vmatpush1.msra.mxu0 0.0
      %2541 = vmatprep.mubr.f32.mxu0 0.0
      %2542 = vmatmul.mubr.f32.gmra.mrb[0].mxu0 %v2475
      %v2543 = vpop.f32.mrb[0].mxu0
      %v2544 = vadd.f32 0.0, %v2543
      %v2545 = vpop.f32.mrb[0].mxu0
      %v2546 = vadd.f32 0.0, %v2545
      %2547 = vdwg.mxu0
      %v2548 = vadd.f32 %v2450, %v2544
      %v2549 = vadd.f32 %v2451, %v2546
      %v2550 = vld [vmem:[%s6] sm:$0xff]
      %2552 = vset.pattern.permute.xlu0 0
      %2553 = vperm.xlu0 %2552, %v2550
      %v2554 = vpop.permute.xlu0 %2553
      %v2556 = vadd.f32 %v2548, %v2554
      %v2557 = vadd.f32 %v2549, %v2554
      %v2558 = vmax.f32 %v2556, 0.0
      %v2559 = vmax.f32 %v2557, 0.0
      %v2560 = vld [vmem:[%s7] sm:$0x3]
      %vm2561 = vcmp.gt.f32.partialorder %v2560, 0.5
      %2564 = vrot.lane.b32.xlu0 %v2558, 127
      %v2565 = vpop.permute.xlu0 %2564
      %2566 = vrot.lane.b32.xlu0 %v2559, 127
      %v2567 = vpop.permute.xlu0 %2566
      %v2568 = vsel %vm1000, %v2565, %v2567
      %v2572 = vsel %vm1000, %v2567, %v2565
      %v2573 = vmax.f32 %v2558, %v2568
      %v2574 = vmax.f32 %v2559, %v2572
      %2577 = vrot.lane.b32.xlu0 %v2573, 112
      %v2578 = vpop.permute.xlu0 %2577
      %2579 = vrot.lane.b32.xlu0 %v2574, 112
      %v2580 = vpop.permute.xlu0 %2579
      %v2581 = vsel %vm1404, %v2578, %v2580
      %v2585 = vsel %vm1404, %v2580, %v2578
      %v2586 = vmax.f32 %v2573, %v2581
      %v2587 = vmax.f32 %v2574, %v2585
      %v2588 = vld [vmem:[%s8] sm:$0xff]
      %v2589 = vld [vmem:[%s8 + $0x8] sm:$0xff]
      %v2590 = vld [vmem:[%s8 + $0x10] sm:$0xff]
      %v2591 = vld [vmem:[%s8 + $0x18] sm:$0xff]
      %v2592 = vld [vmem:[%s8 + $0x20] sm:$0xff]
      %v2593 = vld [vmem:[%s8 + $0x28] sm:$0xff]
      %v2594 = vld [vmem:[%s8 + $0x30] sm:$0xff]
      %v2595 = vld [vmem:[%s8 + $0x38] sm:$0xff]
      %v2596 = vld [vmem:[%s8 + $0x40] sm:$0xff]
      %v2597 = vld [vmem:[%s8 + $0x48] sm:$0xff]
      %v2598 = vld [vmem:[%s8 + $0x50] sm:$0xff]
      %v2599 = vld [vmem:[%s8 + $0x58] sm:$0xff]
      %v2600 = vld [vmem:[%s8 + $0x60] sm:$0xff]
      %v2601 = vld [vmem:[%s8 + $0x68] sm:$0xff]
      %v2602 = vld [vmem:[%s8 + $0x70] sm:$0xff]
      %v2603 = vld [vmem:[%s8 + $0x78] sm:$0xff]
      %v2604 = vld [vmem:[%s8 + $0x80] sm:$0xff]
      %v2605 = vld [vmem:[%s8 + $0x88] sm:$0xff]
      %v2606 = vld [vmem:[%s8 + $0x90] sm:$0xff]
      %v2607 = vld [vmem:[%s8 + $0x98] sm:$0xff]
      %v2608 = vld [vmem:[%s8 + $0xa0] sm:$0xff]
      %v2609 = vld [vmem:[%s8 + $0xa8] sm:$0xff]
      %v2610 = vld [vmem:[%s8 + $0xb0] sm:$0xff]
      %v2611 = vld [vmem:[%s8 + $0xb8] sm:$0xff]
      %v2612 = vld [vmem:[%s8 + $0xc0] sm:$0xff]
      %v2613 = vld [vmem:[%s8 + $0xc8] sm:$0xff]
      %v2614 = vld [vmem:[%s8 + $0xd0] sm:$0xff]
      %v2615 = vld [vmem:[%s8 + $0xd8] sm:$0xff]
      %v2616 = vld [vmem:[%s8 + $0xe0] sm:$0xff]
      %v2617 = vld [vmem:[%s8 + $0xe8] sm:$0xff]
      %v2618 = vld [vmem:[%s8 + $0xf0] sm:$0xff]
      %v2619 = vld [vmem:[%s8 + $0xf8] sm:$0xff]
      %2620 = vmatprep.subr.mxu0 0.0
      %2621 = vmatpush1.msra.mxu0 %v2588
      %2622 = vmatprep.subr.mxu0 0.0
      %2623 = vmatpush1.msra.mxu0 %v2589
      %2624 = vmatprep.subr.mxu0 0.0
      %2625 = vmatpush1.msra.mxu0 %v2590
      %2626 = vmatprep.subr.mxu0 0.0
      %2627 = vmatpush1.msra.mxu0 %v2591
      %2628 = vmatprep.subr.mxu0 0.0
      %2629 = vmatpush1.msra.mxu0 %v2592
      %2630 = vmatprep.subr.mxu0 0.0
      %2631 = vmatpush1.msra.mxu0 %v2593
      %2632 = vmatprep.subr.mxu0 0.0
      %2633 = vmatpush1.msra.mxu0 %v2594
      %2634 = vmatprep.subr.mxu0 0.0
      %2635 = vmatpush1.msra.mxu0 %v2595
      %2636 = vmatprep.subr.mxu0 0.0
      %2637 = vmatpush1.msra.mxu0 %v2596
      %2638 = vmatprep.subr.mxu0 0.0
      %2639 = vmatpush1.msra.mxu0 %v2597
      %2640 = vmatprep.subr.mxu0 0.0
      %2641 = vmatpush1.msra.mxu0 %v2598
      %2642 = vmatprep.subr.mxu0 0.0
      %2643 = vmatpush1.msra.mxu0 %v2599
      %2644 = vmatprep.subr.mxu0 0.0
      %2645 = vmatpush1.msra.mxu0 %v2600
      %2646 = vmatprep.subr.mxu0 0.0
      %2647 = vmatpush1.msra.mxu0 %v2601
      %2648 = vmatprep.subr.mxu0 0.0
      %2649 = vmatpush1.msra.mxu0 %v2602
      %2650 = vmatprep.subr.mxu0 0.0
      %2651 = vmatpush1.msra.mxu0 %v2603
      %2652 = vmatprep.subr.mxu0 0.0
      %2653 = vmatpush1.msra.mxu0 %v2604
      %2654 = vmatprep.subr.mxu0 0.0
      %2655 = vmatpush1.msra.mxu0 %v2605
      %2656 = vmatprep.subr.mxu0 0.0
      %2657 = vmatpush1.msra.mxu0 %v2606
      %2658 = vmatprep.subr.mxu0 0.0
      %2659 = vmatpush1.msra.mxu0 %v2607
      %2660 = vmatprep.subr.mxu0 0.0
      %2661 = vmatpush1.msra.mxu0 %v2608
      %2662 = vmatprep.subr.mxu0 0.0
      %2663 = vmatpush1.msra.mxu0 %v2609
      %2664 = vmatprep.subr.mxu0 0.0
      %2665 = vmatpush1.msra.mxu0 %v2610
      %2666 = vmatprep.subr.mxu0 0.0
      %2667 = vmatpush1.msra.mxu0 %v2611
      %2668 = vmatprep.subr.mxu0 0.0
      %2669 = vmatpush1.msra.mxu0 %v2612
      %2670 = vmatprep.subr.mxu0 0.0
      %2671 = vmatpush1.msra.mxu0 %v2613
      %2672 = vmatprep.subr.mxu0 0.0
      %2673 = vmatpush1.msra.mxu0 %v2614
      %2674 = vmatprep.subr.mxu0 0.0
      %2675 = vmatpush1.msra.mxu0 %v2615
      %2676 = vmatprep.subr.mxu0 0.0
      %2677 = vmatpush1.msra.mxu0 %v2616
      %2678 = vmatprep.subr.mxu0 0.0
      %2679 = vmatpush1.msra.mxu0 %v2617
      %2680 = vmatprep.subr.mxu0 0.0
      %2681 = vmatpush1.msra.mxu0 %v2618
      %2682 = vmatprep.subr.mxu0 0.0
      %2683 = vmatpush1.msra.mxu0 %v2619
      %2684 = vmatprep.mubr.f32.mxu0 %v2587
      %2685 = vmatmul.mubr.f32.gmra.mrb[0].mxu0 %v2586
      %v2686 = vpop.f32.mrb[0].mxu0
      %v2687 = vadd.f32 0.0, %v2686
      %v2688 = vpop.f32.mrb[0].mxu0
      %2689 = vdwg.mxu0
      %2691 = vrot.lane.b32.xlu0 %v2687, 72
      %v2692 = vpop.permute.xlu0 %2691
      %2694 = vrot.lane.b32.xlu0 %v2687, 8
      %v2695 = vpop.permute.xlu0 %2694
      %v2697 = vsel %vm1745, %v2692, %v2695
      %2699 = vrot.lane.b32.xlu0 %v2697, 121
      %v2700 = vpop.permute.xlu0 %2699
      %2702 = vrot.lane.b32.xlu0 %v2697, 57
      %v2703 = vpop.permute.xlu0 %2702
      %vm2705 = vcmask 465920
      %v2706 = vsel %vm2705, %v2700, %v2703
      %2707 = vrot.lane.b32.xlu0 %v2697, 65
      %v2708 = vpop.permute.xlu0 %2707
      %2710 = vrot.lane.b32.xlu0 %v2697, 1
      %v2711 = vpop.permute.xlu0 %2710
      %v2713 = vsel %vm797, %v2708, %v2711
      %v2714 = vsel %vm2561, 1, 0
      %v2715 = vlaneseq
      %v2716 = vshrl.u32 %v2715, 7
      %v2717 = vsub.s32 0, %v2716
      %v2718 = vrot.slane %v2714, %v2717
      %vm2719 = vcmp.eq.s32.totalorder %v2718, 1
      %v2720 = vsel %vm2719, %v2706, %v2713
      %v2721 = vld [vmem:[%s9] sm:$0xff]
      %v2722 = vld [vmem:[%s9 + $0x8] sm:$0xff]
      %s2723 = scalar_lea.vmem %s9, 16
      %v2724 = vld [vmem:[%s2723] sm:$0xff]
      %v2725 = vld [vmem:[%s2723 + $0x8] sm:$0xff]
      %v2727 = vsel %vm1745, %v2724, 0
      %v2730 = vsel %vm1745, %v2725, 0
      %2732 = vmatprep.subr.mxu0 0.0
      %2733 = vmatpush1.msra.mxu0 %v2697
      %2734 = vmatprep.subr.mxu0 0.0
      %2735 = vmatpush1.msra.mxu0 0.0
      %2736 = vmatprep.subr.mxu0 0.0
      %2737 = vmatpush1.msra.mxu0 0.0
      %2738 = vmatprep.subr.mxu0 0.0
      %2739 = vmatpush1.msra.mxu0 0.0
      %2740 = vmatprep.subr.mxu0 0.0
      %2741 = vmatpush1.msra.mxu0 0.0
      %2742 = vmatprep.subr.mxu0 0.0
      %2743 = vmatpush1.msra.mxu0 0.0
      %2744 = vmatprep.subr.mxu0 0.0
      %2745 = vmatpush1.msra.mxu0 0.0
      %2746 = vmatprep.subr.mxu0 0.0
      %2747 = vmatpush1.msra.mxu0 0.0
      %2748 = vmatprep.subr.mxu0 0.0
      %2749 = vmatpush1.msra.mxu0 0.0
      %2750 = vmatprep.subr.mxu0 0.0
      %2751 = vmatpush1.msra.mxu0 0.0
      %2752 = vmatprep.subr.mxu0 0.0
      %2753 = vmatpush1.msra.mxu0 0.0
      %2754 = vmatprep.subr.mxu0 0.0
      %2755 = vmatpush1.msra.mxu0 0.0
      %2756 = vmatprep.subr.mxu0 0.0
      %2757 = vmatpush1.msra.mxu0 0.0
      %2758 = vmatprep.subr.mxu0 0.0
      %2759 = vmatpush1.msra.mxu0 0.0
      %2760 = vmatprep.subr.mxu0 0.0
      %2761 = vmatpush1.msra.mxu0 0.0
      %2762 = vmatprep.subr.mxu0 0.0
      %2763 = vmatpush1.msra.mxu0 0.0
      %2764 = vmatprep.subr.mxu0 0.0
      %2765 = vmatpush1.msra.mxu0 0.0
      %2766 = vmatprep.subr.mxu0 0.0
      %2767 = vmatpush1.msra.mxu0 0.0
      %2768 = vmatprep.subr.mxu0 0.0
      %2769 = vmatpush1.msra.mxu0 0.0
      %2770 = vmatprep.subr.mxu0 0.0
      %2771 = vmatpush1.msra.mxu0 0.0
      %2772 = vmatprep.subr.mxu0 0.0
      %2773 = vmatpush1.msra.mxu0 0.0
      %2774 = vmatprep.subr.mxu0 0.0
      %2775 = vmatpush1.msra.mxu0 0.0
      %2776 = vmatprep.subr.mxu0 0.0
      %2777 = vmatpush1.msra.mxu0 0.0
      %2778 = vmatprep.subr.mxu0 0.0
      %2779 = vmatpush1.msra.mxu0 0.0
      %2780 = vmatprep.subr.mxu0 0.0
      %2781 = vmatpush1.msra.mxu0 0.0
      %2782 = vmatprep.subr.mxu0 0.0
      %2783 = vmatpush1.msra.mxu0 0.0
      %2784 = vmatprep.subr.mxu0 0.0
      %2785 = vmatpush1.msra.mxu0 0.0
      %2786 = vmatprep.subr.mxu0 0.0
      %2787 = vmatpush1.msra.mxu0 0.0
      %2788 = vmatprep.subr.mxu0 0.0
      %2789 = vmatpush1.msra.mxu0 0.0
      %2790 = vmatprep.subr.mxu0 0.0
      %2791 = vmatpush1.msra.mxu0 0.0
      %2792 = vmatprep.subr.mxu0 0.0
      %2793 = vmatpush1.msra.mxu0 0.0
      %2794 = vmatprep.subr.mxu0 0.0
      %2795 = vmatpush1.msra.mxu0 0.0
      %2796 = vmatprep.mubr.f32.mxu0 0.0
      %2797 = vmatmul.mubr.f32.gmra.mrb[0].mxu0 %v2727
      %v2798 = vpop.f32.mrb[0].mxu0
      %v2799 = vadd.f32 0.0, %v2798
      %v2800 = vpop.f32.mrb[0].mxu0
      %2801 = vmatprep.mubr.f32.mxu0 0.0
      %2802 = vmatmul.mubr.f32.gmra.mrb[0].mxu0 %v2730
      %v2803 = vpop.f32.mrb[0].mxu0
      %v2804 = vadd.f32 0.0, %v2803
      %v2805 = vpop.f32.mrb[0].mxu0
      %2806 = vdwg.mxu0
      %v2808 = vsel %vm1745, %v2721, 0
      %v2811 = vsel %vm1745, %v2722, 0
      %2813 = vmatprep.subr.mxu0 0.0
      %2814 = vmatpush1.msra.mxu0 %v2720
      %2815 = vmatprep.subr.mxu0 0.0
      %2816 = vmatpush1.msra.mxu0 0.0
      %2817 = vmatprep.subr.mxu0 0.0
      %2818 = vmatpush1.msra.mxu0 0.0
      %2819 = vmatprep.subr.mxu0 0.0
      %2820 = vmatpush1.msra.mxu0 0.0
      %2821 = vmatprep.subr.mxu0 0.0
      %2822 = vmatpush1.msra.mxu0 0.0
      %2823 = vmatprep.subr.mxu0 0.0
      %2824 = vmatpush1.msra.mxu0 0.0
      %2825 = vmatprep.subr.mxu0 0.0
      %2826 = vmatpush1.msra.mxu0 0.0
      %2827 = vmatprep.subr.mxu0 0.0
      %2828 = vmatpush1.msra.mxu0 0.0
      %2829 = vmatprep.subr.mxu0 0.0
      %2830 = vmatpush1.msra.mxu0 0.0
      %2831 = vmatprep.subr.mxu0 0.0
      %2832 = vmatpush1.msra.mxu0 0.0
      %2833 = vmatprep.subr.mxu0 0.0
      %2834 = vmatpush1.msra.mxu0 0.0
      %2835 = vmatprep.subr.mxu0 0.0
      %2836 = vmatpush1.msra.mxu0 0.0
      %2837 = vmatprep.subr.mxu0 0.0
      %2838 = vmatpush1.msra.mxu0 0.0
      %2839 = vmatprep.subr.mxu0 0.0
      %2840 = vmatpush1.msra.mxu0 0.0
      %2841 = vmatprep.subr.mxu0 0.0
      %2842 = vmatpush1.msra.mxu0 0.0
      %2843 = vmatprep.subr.mxu0 0.0
      %2844 = vmatpush1.msra.mxu0 0.0
      %2845 = vmatprep.subr.mxu0 0.0
      %2846 = vmatpush1.msra.mxu0 0.0
      %2847 = vmatprep.subr.mxu0 0.0
      %2848 = vmatpush1.msra.mxu0 0.0
      %2849 = vmatprep.subr.mxu0 0.0
      %2850 = vmatpush1.msra.mxu0 0.0
      %2851 = vmatprep.subr.mxu0 0.0
      %2852 = vmatpush1.msra.mxu0 0.0
      %2853 = vmatprep.subr.mxu0 0.0
      %2854 = vmatpush1.msra.mxu0 0.0
      %2855 = vmatprep.subr.mxu0 0.0
      %2856 = vmatpush1.msra.mxu0 0.0
      %2857 = vmatprep.subr.mxu0 0.0
      %2858 = vmatpush1.msra.mxu0 0.0
      %2859 = vmatprep.subr.mxu0 0.0
      %2860 = vmatpush1.msra.mxu0 0.0
      %2861 = vmatprep.subr.mxu0 0.0
      %2862 = vmatpush1.msra.mxu0 0.0
      %2863 = vmatprep.subr.mxu0 0.0
      %2864 = vmatpush1.msra.mxu0 0.0
      %2865 = vmatprep.subr.mxu0 0.0
      %2866 = vmatpush1.msra.mxu0 0.0
      %2867 = vmatprep.subr.mxu0 0.0
      %2868 = vmatpush1.msra.mxu0 0.0
      %2869 = vmatprep.subr.mxu0 0.0
      %2870 = vmatpush1.msra.mxu0 0.0
      %2871 = vmatprep.subr.mxu0 0.0
      %2872 = vmatpush1.msra.mxu0 0.0
      %2873 = vmatprep.subr.mxu0 0.0
      %2874 = vmatpush1.msra.mxu0 0.0
      %2875 = vmatprep.subr.mxu0 0.0
      %2876 = vmatpush1.msra.mxu0 0.0
      %2877 = vmatprep.mubr.f32.mxu0 0.0
      %2878 = vmatmul.mubr.f32.gmra.mrb[0].mxu0 %v2808
      %v2879 = vpop.f32.mrb[0].mxu0
      %v2880 = vadd.f32 %v2799, %v2879
      %v2881 = vpop.f32.mrb[0].mxu0
      %2882 = vmatprep.mubr.f32.mxu0 0.0
      %2883 = vmatmul.mubr.f32.gmra.mrb[0].mxu0 %v2811
      %v2884 = vpop.f32.mrb[0].mxu0
      %v2885 = vadd.f32 %v2804, %v2884
      %v2886 = vpop.f32.mrb[0].mxu0
      %2887 = vdwg.mxu0
      %2888 = vrot.lane.b32.xlu0 %v2697, 71
      %v2889 = vpop.permute.xlu0 %2888
      %2891 = vrot.lane.b32.xlu0 %v2697, 7
      %v2892 = vpop.permute.xlu0 %2891
      %vm2894 = vcmask 56320
      %v2895 = vsel %vm2894, %v2889, %v2892
      %2896 = vrot.lane.b32.xlu0 %v2697, 127
      %v2897 = vpop.permute.xlu0 %2896
      %2899 = vrot.lane.b32.xlu0 %v2697, 63
      %v2900 = vpop.permute.xlu0 %2899
      %vm2902 = vcmask 515072
      %v2903 = vsel %vm2902, %v2897, %v2900
      %v2904 = vlaneseq
      %v2905 = vshrl.u32 %v2904, 7
      %v2906 = vsub.s32 1, %v2905
      %v2907 = vrot.slane %v2714, %v2906
      %vm2908 = vcmp.eq.s32.totalorder %v2907, 1
      %v2909 = vsel %vm2908, %v2895, %v2903
      %s2910 = scalar_lea.vmem %s9, 32
      %v2911 = vld [vmem:[%s2910] sm:$0xff]
      %v2912 = vld [vmem:[%s2910 + $0x8] sm:$0xff]
      %v2914 = vsel %vm1745, %v2911, 0
      %v2917 = vsel %vm1745, %v2912, 0
      %2919 = vmatprep.subr.mxu0 0.0
      %2920 = vmatpush1.msra.mxu0 %v2909
      %2921 = vmatprep.subr.mxu0 0.0
      %2922 = vmatpush1.msra.mxu0 0.0
      %2923 = vmatprep.subr.mxu0 0.0
      %2924 = vmatpush1.msra.mxu0 0.0
      %2925 = vmatprep.subr.mxu0 0.0
      %2926 = vmatpush1.msra.mxu0 0.0
      %2927 = vmatprep.subr.mxu0 0.0
      %2928 = vmatpush1.msra.mxu0 0.0
      %2929 = vmatprep.subr.mxu0 0.0
      %2930 = vmatpush1.msra.mxu0 0.0
      %2931 = vmatprep.subr.mxu0 0.0
      %2932 = vmatpush1.msra.mxu0 0.0
      %2933 = vmatprep.subr.mxu0 0.0
      %2934 = vmatpush1.msra.mxu0 0.0
      %2935 = vmatprep.subr.mxu0 0.0
      %2936 = vmatpush1.msra.mxu0 0.0
      %2937 = vmatprep.subr.mxu0 0.0
      %2938 = vmatpush1.msra.mxu0 0.0
      %2939 = vmatprep.subr.mxu0 0.0
      %2940 = vmatpush1.msra.mxu0 0.0
      %2941 = vmatprep.subr.mxu0 0.0
      %2942 = vmatpush1.msra.mxu0 0.0
      %2943 = vmatprep.subr.mxu0 0.0
      %2944 = vmatpush1.msra.mxu0 0.0
      %2945 = vmatprep.subr.mxu0 0.0
      %2946 = vmatpush1.msra.mxu0 0.0
      %2947 = vmatprep.subr.mxu0 0.0
      %2948 = vmatpush1.msra.mxu0 0.0
      %2949 = vmatprep.subr.mxu0 0.0
      %2950 = vmatpush1.msra.mxu0 0.0
      %2951 = vmatprep.subr.mxu0 0.0
      %2952 = vmatpush1.msra.mxu0 0.0
      %2953 = vmatprep.subr.mxu0 0.0
      %2954 = vmatpush1.msra.mxu0 0.0
      %2955 = vmatprep.subr.mxu0 0.0
      %2956 = vmatpush1.msra.mxu0 0.0
      %2957 = vmatprep.subr.mxu0 0.0
      %2958 = vmatpush1.msra.mxu0 0.0
      %2959 = vmatprep.subr.mxu0 0.0
      %2960 = vmatpush1.msra.mxu0 0.0
      %2961 = vmatprep.subr.mxu0 0.0
      %2962 = vmatpush1.msra.mxu0 0.0
      %2963 = vmatprep.subr.mxu0 0.0
      %2964 = vmatpush1.msra.mxu0 0.0
      %2965 = vmatprep.subr.mxu0 0.0
      %2966 = vmatpush1.msra.mxu0 0.0
      %2967 = vmatprep.subr.mxu0 0.0
      %2968 = vmatpush1.msra.mxu0 0.0
      %2969 = vmatprep.subr.mxu0 0.0
      %2970 = vmatpush1.msra.mxu0 0.0
      %2971 = vmatprep.subr.mxu0 0.0
      %2972 = vmatpush1.msra.mxu0 0.0
      %2973 = vmatprep.subr.mxu0 0.0
      %2974 = vmatpush1.msra.mxu0 0.0
      %2975 = vmatprep.subr.mxu0 0.0
      %2976 = vmatpush1.msra.mxu0 0.0
      %2977 = vmatprep.subr.mxu0 0.0
      %2978 = vmatpush1.msra.mxu0 0.0
      %2979 = vmatprep.subr.mxu0 0.0
      %2980 = vmatpush1.msra.mxu0 0.0
      %2981 = vmatprep.subr.mxu0 0.0
      %2982 = vmatpush1.msra.mxu0 0.0
      %2983 = vmatprep.mubr.f32.mxu0 0.0
      %2984 = vmatmul.mubr.f32.gmra.mrb[0].mxu0 %v2914
      %v2985 = vpop.f32.mrb[0].mxu0
      %v2986 = vadd.f32 0.0, %v2985
      %v2987 = vpop.f32.mrb[0].mxu0
      %2988 = vmatprep.mubr.f32.mxu0 0.0
      %2989 = vmatmul.mubr.f32.gmra.mrb[0].mxu0 %v2917
      %v2990 = vpop.f32.mrb[0].mxu0
      %v2991 = vadd.f32 0.0, %v2990
      %v2992 = vpop.f32.mrb[0].mxu0
      %2993 = vdwg.mxu0
      %v2994 = vadd.f32 %v2880, %v2986
      %v2995 = vadd.f32 %v2885, %v2991
      %2996 = vrot.lane.b32.xlu0 %v2687, 121
      %v2997 = vpop.permute.xlu0 %2996
      %2999 = vrot.lane.b32.xlu0 %v2687, 57
      %v3000 = vpop.permute.xlu0 %2999
      %v3002 = vsel %vm2705, %v2997, %v3000
      %3003 = vrot.lane.b32.xlu0 %v2687, 65
      %v3004 = vpop.permute.xlu0 %3003
      %3006 = vrot.lane.b32.xlu0 %v2687, 1
      %v3007 = vpop.permute.xlu0 %3006
      %v3009 = vsel %vm797, %v3004, %v3007
      %v3010 = vsel %vm2719, %v3002, %v3009
      %s3011 = scalar_lea.vmem %s9, 48
      %v3012 = vld [vmem:[%s3011] sm:$0xff]
      %v3013 = vld [vmem:[%s3011 + $0x8] sm:$0xff]
      %v3015 = vsel %vm1745, %v3012, 0
      %v3018 = vsel %vm1745, %v3013, 0
      %3020 = vmatprep.subr.mxu0 0.0
      %3021 = vmatpush1.msra.mxu0 %v3010
      %3022 = vmatprep.subr.mxu0 0.0
      %3023 = vmatpush1.msra.mxu0 0.0
      %3024 = vmatprep.subr.mxu0 0.0
      %3025 = vmatpush1.msra.mxu0 0.0
      %3026 = vmatprep.subr.mxu0 0.0
      %3027 = vmatpush1.msra.mxu0 0.0
      %3028 = vmatprep.subr.mxu0 0.0
      %3029 = vmatpush1.msra.mxu0 0.0
      %3030 = vmatprep.subr.mxu0 0.0
      %3031 = vmatpush1.msra.mxu0 0.0
      %3032 = vmatprep.subr.mxu0 0.0
      %3033 = vmatpush1.msra.mxu0 0.0
      %3034 = vmatprep.subr.mxu0 0.0
      %3035 = vmatpush1.msra.mxu0 0.0
      %3036 = vmatprep.subr.mxu0 0.0
      %3037 = vmatpush1.msra.mxu0 0.0
      %3038 = vmatprep.subr.mxu0 0.0
      %3039 = vmatpush1.msra.mxu0 0.0
      %3040 = vmatprep.subr.mxu0 0.0
      %3041 = vmatpush1.msra.mxu0 0.0
      %3042 = vmatprep.subr.mxu0 0.0
      %3043 = vmatpush1.msra.mxu0 0.0
      %3044 = vmatprep.subr.mxu0 0.0
      %3045 = vmatpush1.msra.mxu0 0.0
      %3046 = vmatprep.subr.mxu0 0.0
      %3047 = vmatpush1.msra.mxu0 0.0
      %3048 = vmatprep.subr.mxu0 0.0
      %3049 = vmatpush1.msra.mxu0 0.0
      %3050 = vmatprep.subr.mxu0 0.0
      %3051 = vmatpush1.msra.mxu0 0.0
      %3052 = vmatprep.subr.mxu0 0.0
      %3053 = vmatpush1.msra.mxu0 0.0
      %3054 = vmatprep.subr.mxu0 0.0
      %3055 = vmatpush1.msra.mxu0 0.0
      %3056 = vmatprep.subr.mxu0 0.0
      %3057 = vmatpush1.msra.mxu0 0.0
      %3058 = vmatprep.subr.mxu0 0.0
      %3059 = vmatpush1.msra.mxu0 0.0
      %3060 = vmatprep.subr.mxu0 0.0
      %3061 = vmatpush1.msra.mxu0 0.0
      %3062 = vmatprep.subr.mxu0 0.0
      %3063 = vmatpush1.msra.mxu0 0.0
      %3064 = vmatprep.subr.mxu0 0.0
      %3065 = vmatpush1.msra.mxu0 0.0
      %3066 = vmatprep.subr.mxu0 0.0
      %3067 = vmatpush1.msra.mxu0 0.0
      %3068 = vmatprep.subr.mxu0 0.0
      %3069 = vmatpush1.msra.mxu0 0.0
      %3070 = vmatprep.subr.mxu0 0.0
      %3071 = vmatpush1.msra.mxu0 0.0
      %3072 = vmatprep.subr.mxu0 0.0
      %3073 = vmatpush1.msra.mxu0 0.0
      %3074 = vmatprep.subr.mxu0 0.0
      %3075 = vmatpush1.msra.mxu0 0.0
      %3076 = vmatprep.subr.mxu0 0.0
      %3077 = vmatpush1.msra.mxu0 0.0
      %3078 = vmatprep.subr.mxu0 0.0
      %3079 = vmatpush1.msra.mxu0 0.0
      %3080 = vmatprep.subr.mxu0 0.0
      %3081 = vmatpush1.msra.mxu0 0.0
      %3082 = vmatprep.subr.mxu0 0.0
      %3083 = vmatpush1.msra.mxu0 0.0
      %3084 = vmatprep.mubr.f32.mxu0 0.0
      %3085 = vmatmul.mubr.f32.gmra.mrb[0].mxu0 %v3015
      %v3086 = vpop.f32.mrb[0].mxu0
      %v3087 = vadd.f32 0.0, %v3086
      %v3088 = vpop.f32.mrb[0].mxu0
      %3089 = vmatprep.mubr.f32.mxu0 0.0
      %3090 = vmatmul.mubr.f32.gmra.mrb[0].mxu0 %v3018
      %v3091 = vpop.f32.mrb[0].mxu0
      %v3092 = vadd.f32 0.0, %v3091
      %v3093 = vpop.f32.mrb[0].mxu0
      %3094 = vdwg.mxu0
      %v3095 = vadd.f32 %v2994, %v3087
      %v3096 = vadd.f32 %v2995, %v3092
      %s3097 = scalar_lea.vmem %s9, 64
      %v3098 = vld [vmem:[%s3097] sm:$0xff]
      %v3099 = vld [vmem:[%s3097 + $0x8] sm:$0xff]
      %v3101 = vsel %vm1745, %v3098, 0
      %v3104 = vsel %vm1745, %v3099, 0
      %3106 = vmatprep.subr.mxu0 0.0
      %3107 = vmatpush1.msra.mxu0 %v2687
      %3108 = vmatprep.subr.mxu0 0.0
      %3109 = vmatpush1.msra.mxu0 0.0
      %3110 = vmatprep.subr.mxu0 0.0
      %3111 = vmatpush1.msra.mxu0 0.0
      %3112 = vmatprep.subr.mxu0 0.0
      %3113 = vmatpush1.msra.mxu0 0.0
      %3114 = vmatprep.subr.mxu0 0.0
      %3115 = vmatpush1.msra.mxu0 0.0
      %3116 = vmatprep.subr.mxu0 0.0
      %3117 = vmatpush1.msra.mxu0 0.0
      %3118 = vmatprep.subr.mxu0 0.0
      %3119 = vmatpush1.msra.mxu0 0.0
      %3120 = vmatprep.subr.mxu0 0.0
      %3121 = vmatpush1.msra.mxu0 0.0
      %3122 = vmatprep.subr.mxu0 0.0
      %3123 = vmatpush1.msra.mxu0 0.0
      %3124 = vmatprep.subr.mxu0 0.0
      %3125 = vmatpush1.msra.mxu0 0.0
      %3126 = vmatprep.subr.mxu0 0.0
      %3127 = vmatpush1.msra.mxu0 0.0
      %3128 = vmatprep.subr.mxu0 0.0
      %3129 = vmatpush1.msra.mxu0 0.0
      %3130 = vmatprep.subr.mxu0 0.0
      %3131 = vmatpush1.msra.mxu0 0.0
      %3132 = vmatprep.subr.mxu0 0.0
      %3133 = vmatpush1.msra.mxu0 0.0
      %3134 = vmatprep.subr.mxu0 0.0
      %3135 = vmatpush1.msra.mxu0 0.0
      %3136 = vmatprep.subr.mxu0 0.0
      %3137 = vmatpush1.msra.mxu0 0.0
      %3138 = vmatprep.subr.mxu0 0.0
      %3139 = vmatpush1.msra.mxu0 0.0
      %3140 = vmatprep.subr.mxu0 0.0
      %3141 = vmatpush1.msra.mxu0 0.0
      %3142 = vmatprep.subr.mxu0 0.0
      %3143 = vmatpush1.msra.mxu0 0.0
      %3144 = vmatprep.subr.mxu0 0.0
      %3145 = vmatpush1.msra.mxu0 0.0
      %3146 = vmatprep.subr.mxu0 0.0
      %3147 = vmatpush1.msra.mxu0 0.0
      %3148 = vmatprep.subr.mxu0 0.0
      %3149 = vmatpush1.msra.mxu0 0.0
      %3150 = vmatprep.subr.mxu0 0.0
      %3151 = vmatpush1.msra.mxu0 0.0
      %3152 = vmatprep.subr.mxu0 0.0
      %3153 = vmatpush1.msra.mxu0 0.0
      %3154 = vmatprep.subr.mxu0 0.0
      %3155 = vmatpush1.msra.mxu0 0.0
      %3156 = vmatprep.subr.mxu0 0.0
      %3157 = vmatpush1.msra.mxu0 0.0
      %3158 = vmatprep.subr.mxu0 0.0
      %3159 = vmatpush1.msra.mxu0 0.0
      %3160 = vmatprep.subr.mxu0 0.0
      %3161 = vmatpush1.msra.mxu0 0.0
      %3162 = vmatprep.subr.mxu0 0.0
      %3163 = vmatpush1.msra.mxu0 0.0
      %3164 = vmatprep.subr.mxu0 0.0
      %3165 = vmatpush1.msra.mxu0 0.0
      %3166 = vmatprep.subr.mxu0 0.0
      %3167 = vmatpush1.msra.mxu0 0.0
      %3168 = vmatprep.subr.mxu0 0.0
      %3169 = vmatpush1.msra.mxu0 0.0
      %3170 = vmatprep.mubr.f32.mxu0 0.0
      %3171 = vmatmul.mubr.f32.gmra.mrb[0].mxu0 %v3101
      %v3172 = vpop.f32.mrb[0].mxu0
      %v3173 = vadd.f32 0.0, %v3172
      %v3174 = vpop.f32.mrb[0].mxu0
      %3175 = vmatprep.mubr.f32.mxu0 0.0
      %3176 = vmatmul.mubr.f32.gmra.mrb[0].mxu0 %v3104
      %v3177 = vpop.f32.mrb[0].mxu0
      %v3178 = vadd.f32 0.0, %v3177
      %v3179 = vpop.f32.mrb[0].mxu0
      %3180 = vdwg.mxu0
      %v3181 = vadd.f32 %v3095, %v3173
      %v3182 = vadd.f32 %v3096, %v3178
      %3183 = vrot.lane.b32.xlu0 %v2687, 71
      %v3184 = vpop.permute.xlu0 %3183
      %3186 = vrot.lane.b32.xlu0 %v2687, 7
      %v3187 = vpop.permute.xlu0 %3186
      %v3189 = vsel %vm2894, %v3184, %v3187
      %3190 = vrot.lane.b32.xlu0 %v2687, 127
      %v3191 = vpop.permute.xlu0 %3190
      %3193 = vrot.lane.b32.xlu0 %v2687, 63
      %v3194 = vpop.permute.xlu0 %3193
      %v3196 = vsel %vm2902, %v3191, %v3194
      %v3197 = vsel %vm2908, %v3189, %v3196
      %s3198 = scalar_lea.vmem %s9, 80
      %v3199 = vld [vmem:[%s3198] sm:$0xff]
      %v3200 = vld [vmem:[%s3198 + $0x8] sm:$0xff]
      %v3202 = vsel %vm1745, %v3199, 0
      %v3205 = vsel %vm1745, %v3200, 0
      %3207 = vmatprep.subr.mxu0 0.0
      %3208 = vmatpush1.msra.mxu0 %v3197
      %3209 = vmatprep.subr.mxu0 0.0
      %3210 = vmatpush1.msra.mxu0 0.0
      %3211 = vmatprep.subr.mxu0 0.0
      %3212 = vmatpush1.msra.mxu0 0.0
      %3213 = vmatprep.subr.mxu0 0.0
      %3214 = vmatpush1.msra.mxu0 0.0
      %3215 = vmatprep.subr.mxu0 0.0
      %3216 = vmatpush1.msra.mxu0 0.0
      %3217 = vmatprep.subr.mxu0 0.0
      %3218 = vmatpush1.msra.mxu0 0.0
      %3219 = vmatprep.subr.mxu0 0.0
      %3220 = vmatpush1.msra.mxu0 0.0
      %3221 = vmatprep.subr.mxu0 0.0
      %3222 = vmatpush1.msra.mxu0 0.0
      %3223 = vmatprep.subr.mxu0 0.0
      %3224 = vmatpush1.msra.mxu0 0.0
      %3225 = vmatprep.subr.mxu0 0.0
      %3226 = vmatpush1.msra.mxu0 0.0
      %3227 = vmatprep.subr.mxu0 0.0
      %3228 = vmatpush1.msra.mxu0 0.0
      %3229 = vmatprep.subr.mxu0 0.0
      %3230 = vmatpush1.msra.mxu0 0.0
      %3231 = vmatprep.subr.mxu0 0.0
      %3232 = vmatpush1.msra.mxu0 0.0
      %3233 = vmatprep.subr.mxu0 0.0
      %3234 = vmatpush1.msra.mxu0 0.0
      %3235 = vmatprep.subr.mxu0 0.0
      %3236 = vmatpush1.msra.mxu0 0.0
      %3237 = vmatprep.subr.mxu0 0.0
      %3238 = vmatpush1.msra.mxu0 0.0
      %3239 = vmatprep.subr.mxu0 0.0
      %3240 = vmatpush1.msra.mxu0 0.0
      %3241 = vmatprep.subr.mxu0 0.0
      %3242 = vmatpush1.msra.mxu0 0.0
      %3243 = vmatprep.subr.mxu0 0.0
      %3244 = vmatpush1.msra.mxu0 0.0
      %3245 = vmatprep.subr.mxu0 0.0
      %3246 = vmatpush1.msra.mxu0 0.0
      %3247 = vmatprep.subr.mxu0 0.0
      %3248 = vmatpush1.msra.mxu0 0.0
      %3249 = vmatprep.subr.mxu0 0.0
      %3250 = vmatpush1.msra.mxu0 0.0
      %3251 = vmatprep.subr.mxu0 0.0
      %3252 = vmatpush1.msra.mxu0 0.0
      %3253 = vmatprep.subr.mxu0 0.0
      %3254 = vmatpush1.msra.mxu0 0.0
      %3255 = vmatprep.subr.mxu0 0.0
      %3256 = vmatpush1.msra.mxu0 0.0
      %3257 = vmatprep.subr.mxu0 0.0
      %3258 = vmatpush1.msra.mxu0 0.0
      %3259 = vmatprep.subr.mxu0 0.0
      %3260 = vmatpush1.msra.mxu0 0.0
      %3261 = vmatprep.subr.mxu0 0.0
      %3262 = vmatpush1.msra.mxu0 0.0
      %3263 = vmatprep.subr.mxu0 0.0
      %3264 = vmatpush1.msra.mxu0 0.0
      %3265 = vmatprep.subr.mxu0 0.0
      %3266 = vmatpush1.msra.mxu0 0.0
      %3267 = vmatprep.subr.mxu0 0.0
      %3268 = vmatpush1.msra.mxu0 0.0
      %3269 = vmatprep.subr.mxu0 0.0
      %3270 = vmatpush1.msra.mxu0 0.0
      %3271 = vmatprep.mubr.f32.mxu0 0.0
      %3272 = vmatmul.mubr.f32.gmra.mrb[0].mxu0 %v3202
      %v3273 = vpop.f32.mrb[0].mxu0
      %v3274 = vadd.f32 0.0, %v3273
      %v3275 = vpop.f32.mrb[0].mxu0
      %3276 = vmatprep.mubr.f32.mxu0 0.0
      %3277 = vmatmul.mubr.f32.gmra.mrb[0].mxu0 %v3205
      %v3278 = vpop.f32.mrb[0].mxu0
      %v3279 = vadd.f32 0.0, %v3278
      %v3280 = vpop.f32.mrb[0].mxu0
      %3281 = vdwg.mxu0
      %v3282 = vadd.f32 %v3181, %v3274
      %v3283 = vadd.f32 %v3182, %v3279
      %3284 = vrot.lane.b32.xlu0 %v2687, 120
      %v3285 = vpop.permute.xlu0 %3284
      %3287 = vrot.lane.b32.xlu0 %v2687, 56
      %v3288 = vpop.permute.xlu0 %3287
      %vm3290 = vcmask 457728
      %v3291 = vsel %vm3290, %v3285, %v3288
      %3293 = vrot.lane.b32.xlu0 %v3291, 121
      %v3294 = vpop.permute.xlu0 %3293
      %3296 = vrot.lane.b32.xlu0 %v3291, 57
      %v3297 = vpop.permute.xlu0 %3296
      %v3299 = vsel %vm2705, %v3294, %v3297
      %3300 = vrot.lane.b32.xlu0 %v3291, 65
      %v3301 = vpop.permute.xlu0 %3300
      %3303 = vrot.lane.b32.xlu0 %v3291, 1
      %v3304 = vpop.permute.xlu0 %3303
      %v3306 = vsel %vm797, %v3301, %v3304
      %v3307 = vsel %vm2719, %v3299, %v3306
      %s3308 = scalar_lea.vmem %s9, 96
      %v3309 = vld [vmem:[%s3308] sm:$0xff]
      %v3310 = vld [vmem:[%s3308 + $0x8] sm:$0xff]
      %v3312 = vsel %vm1745, %v3309, 0
      %v3315 = vsel %vm1745, %v3310, 0
      %3317 = vmatprep.subr.mxu0 0.0
      %3318 = vmatpush1.msra.mxu0 %v3307
      %3319 = vmatprep.subr.mxu0 0.0
      %3320 = vmatpush1.msra.mxu0 0.0
      %3321 = vmatprep.subr.mxu0 0.0
      %3322 = vmatpush1.msra.mxu0 0.0
      %3323 = vmatprep.subr.mxu0 0.0
      %3324 = vmatpush1.msra.mxu0 0.0
      %3325 = vmatprep.subr.mxu0 0.0
      %3326 = vmatpush1.msra.mxu0 0.0
      %3327 = vmatprep.subr.mxu0 0.0
      %3328 = vmatpush1.msra.mxu0 0.0
      %3329 = vmatprep.subr.mxu0 0.0
      %3330 = vmatpush1.msra.mxu0 0.0
      %3331 = vmatprep.subr.mxu0 0.0
      %3332 = vmatpush1.msra.mxu0 0.0
      %3333 = vmatprep.subr.mxu0 0.0
      %3334 = vmatpush1.msra.mxu0 0.0
      %3335 = vmatprep.subr.mxu0 0.0
      %3336 = vmatpush1.msra.mxu0 0.0
      %3337 = vmatprep.subr.mxu0 0.0
      %3338 = vmatpush1.msra.mxu0 0.0
      %3339 = vmatprep.subr.mxu0 0.0
      %3340 = vmatpush1.msra.mxu0 0.0
      %3341 = vmatprep.subr.mxu0 0.0
      %3342 = vmatpush1.msra.mxu0 0.0
      %3343 = vmatprep.subr.mxu0 0.0
      %3344 = vmatpush1.msra.mxu0 0.0
      %3345 = vmatprep.subr.mxu0 0.0
      %3346 = vmatpush1.msra.mxu0 0.0
      %3347 = vmatprep.subr.mxu0 0.0
      %3348 = vmatpush1.msra.mxu0 0.0
      %3349 = vmatprep.subr.mxu0 0.0
      %3350 = vmatpush1.msra.mxu0 0.0
      %3351 = vmatprep.subr.mxu0 0.0
      %3352 = vmatpush1.msra.mxu0 0.0
      %3353 = vmatprep.subr.mxu0 0.0
      %3354 = vmatpush1.msra.mxu0 0.0
      %3355 = vmatprep.subr.mxu0 0.0
      %3356 = vmatpush1.msra.mxu0 0.0
      %3357 = vmatprep.subr.mxu0 0.0
      %3358 = vmatpush1.msra.mxu0 0.0
      %3359 = vmatprep.subr.mxu0 0.0
      %3360 = vmatpush1.msra.mxu0 0.0
      %3361 = vmatprep.subr.mxu0 0.0
      %3362 = vmatpush1.msra.mxu0 0.0
      %3363 = vmatprep.subr.mxu0 0.0
      %3364 = vmatpush1.msra.mxu0 0.0
      %3365 = vmatprep.subr.mxu0 0.0
      %3366 = vmatpush1.msra.mxu0 0.0
      %3367 = vmatprep.subr.mxu0 0.0
      %3368 = vmatpush1.msra.mxu0 0.0
      %3369 = vmatprep.subr.mxu0 0.0
      %3370 = vmatpush1.msra.mxu0 0.0
      %3371 = vmatprep.subr.mxu0 0.0
      %3372 = vmatpush1.msra.mxu0 0.0
      %3373 = vmatprep.subr.mxu0 0.0
      %3374 = vmatpush1.msra.mxu0 0.0
      %3375 = vmatprep.subr.mxu0 0.0
      %3376 = vmatpush1.msra.mxu0 0.0
      %3377 = vmatprep.subr.mxu0 0.0
      %3378 = vmatpush1.msra.mxu0 0.0
      %3379 = vmatprep.subr.mxu0 0.0
      %3380 = vmatpush1.msra.mxu0 0.0
      %3381 = vmatprep.mubr.f32.mxu0 0.0
      %3382 = vmatmul.mubr.f32.gmra.mrb[0].mxu0 %v3312
      %v3383 = vpop.f32.mrb[0].mxu0
      %v3384 = vadd.f32 0.0, %v3383
      %v3385 = vpop.f32.mrb[0].mxu0
      %3386 = vmatprep.mubr.f32.mxu0 0.0
      %3387 = vmatmul.mubr.f32.gmra.mrb[0].mxu0 %v3315
      %v3388 = vpop.f32.mrb[0].mxu0
      %v3389 = vadd.f32 0.0, %v3388
      %v3390 = vpop.f32.mrb[0].mxu0
      %3391 = vdwg.mxu0
      %v3392 = vadd.f32 %v3282, %v3384
      %v3393 = vadd.f32 %v3283, %v3389
      %s3394 = scalar_lea.vmem %s9, 112
      %v3395 = vld [vmem:[%s3394] sm:$0xff]
      %v3396 = vld [vmem:[%s3394 + $0x8] sm:$0xff]
      %v3398 = vsel %vm1745, %v3395, 0
      %v3401 = vsel %vm1745, %v3396, 0
      %3403 = vmatprep.subr.mxu0 0.0
      %3404 = vmatpush1.msra.mxu0 %v3291
      %3405 = vmatprep.subr.mxu0 0.0
      %3406 = vmatpush1.msra.mxu0 0.0
      %3407 = vmatprep.subr.mxu0 0.0
      %3408 = vmatpush1.msra.mxu0 0.0
      %3409 = vmatprep.subr.mxu0 0.0
      %3410 = vmatpush1.msra.mxu0 0.0
      %3411 = vmatprep.subr.mxu0 0.0
      %3412 = vmatpush1.msra.mxu0 0.0
      %3413 = vmatprep.subr.mxu0 0.0
      %3414 = vmatpush1.msra.mxu0 0.0
      %3415 = vmatprep.subr.mxu0 0.0
      %3416 = vmatpush1.msra.mxu0 0.0
      %3417 = vmatprep.subr.mxu0 0.0
      %3418 = vmatpush1.msra.mxu0 0.0
      %3419 = vmatprep.subr.mxu0 0.0
      %3420 = vmatpush1.msra.mxu0 0.0
      %3421 = vmatprep.subr.mxu0 0.0
      %3422 = vmatpush1.msra.mxu0 0.0
      %3423 = vmatprep.subr.mxu0 0.0
      %3424 = vmatpush1.msra.mxu0 0.0
      %3425 = vmatprep.subr.mxu0 0.0
      %3426 = vmatpush1.msra.mxu0 0.0
      %3427 = vmatprep.subr.mxu0 0.0
      %3428 = vmatpush1.msra.mxu0 0.0
      %3429 = vmatprep.subr.mxu0 0.0
      %3430 = vmatpush1.msra.mxu0 0.0
      %3431 = vmatprep.subr.mxu0 0.0
      %3432 = vmatpush1.msra.mxu0 0.0
      %3433 = vmatprep.subr.mxu0 0.0
      %3434 = vmatpush1.msra.mxu0 0.0
      %3435 = vmatprep.subr.mxu0 0.0
      %3436 = vmatpush1.msra.mxu0 0.0
      %3437 = vmatprep.subr.mxu0 0.0
      %3438 = vmatpush1.msra.mxu0 0.0
      %3439 = vmatprep.subr.mxu0 0.0
      %3440 = vmatpush1.msra.mxu0 0.0
      %3441 = vmatprep.subr.mxu0 0.0
      %3442 = vmatpush1.msra.mxu0 0.0
      %3443 = vmatprep.subr.mxu0 0.0
      %3444 = vmatpush1.msra.mxu0 0.0
      %3445 = vmatprep.subr.mxu0 0.0
      %3446 = vmatpush1.msra.mxu0 0.0
      %3447 = vmatprep.subr.mxu0 0.0
      %3448 = vmatpush1.msra.mxu0 0.0
      %3449 = vmatprep.subr.mxu0 0.0
      %3450 = vmatpush1.msra.mxu0 0.0
      %3451 = vmatprep.subr.mxu0 0.0
      %3452 = vmatpush1.msra.mxu0 0.0
      %3453 = vmatprep.subr.mxu0 0.0
      %3454 = vmatpush1.msra.mxu0 0.0
      %3455 = vmatprep.subr.mxu0 0.0
      %3456 = vmatpush1.msra.mxu0 0.0
      %3457 = vmatprep.subr.mxu0 0.0
      %3458 = vmatpush1.msra.mxu0 0.0
      %3459 = vmatprep.subr.mxu0 0.0
      %3460 = vmatpush1.msra.mxu0 0.0
      %3461 = vmatprep.subr.mxu0 0.0
      %3462 = vmatpush1.msra.mxu0 0.0
      %3463 = vmatprep.subr.mxu0 0.0
      %3464 = vmatpush1.msra.mxu0 0.0
      %3465 = vmatprep.subr.mxu0 0.0
      %3466 = vmatpush1.msra.mxu0 0.0
      %3467 = vmatprep.mubr.f32.mxu0 0.0
      %3468 = vmatmul.mubr.f32.gmra.mrb[0].mxu0 %v3398
      %v3469 = vpop.f32.mrb[0].mxu0
      %v3470 = vadd.f32 0.0, %v3469
      %v3471 = vpop.f32.mrb[0].mxu0
      %3472 = vmatprep.mubr.f32.mxu0 0.0
      %3473 = vmatmul.mubr.f32.gmra.mrb[0].mxu0 %v3401
      %v3474 = vpop.f32.mrb[0].mxu0
      %v3475 = vadd.f32 0.0, %v3474
      %v3476 = vpop.f32.mrb[0].mxu0
      %3477 = vdwg.mxu0
      %v3478 = vadd.f32 %v3392, %v3470
      %v3479 = vadd.f32 %v3393, %v3475
      %3480 = vrot.lane.b32.xlu0 %v3291, 71
      %v3481 = vpop.permute.xlu0 %3480
      %3483 = vrot.lane.b32.xlu0 %v3291, 7
      %v3484 = vpop.permute.xlu0 %3483
      %v3486 = vsel %vm2894, %v3481, %v3484
      %3487 = vrot.lane.b32.xlu0 %v3291, 127
      %v3488 = vpop.permute.xlu0 %3487
      %3490 = vrot.lane.b32.xlu0 %v3291, 63
      %v3491 = vpop.permute.xlu0 %3490
      %v3493 = vsel %vm2902, %v3488, %v3491
      %v3494 = vsel %vm2908, %v3486, %v3493
      %s3495 = scalar_lea.vmem %s9, 128
      %v3496 = vld [vmem:[%s3495] sm:$0xff]
      %v3497 = vld [vmem:[%s3495 + $0x8] sm:$0xff]
      %v3499 = vsel %vm1745, %v3496, 0
      %v3502 = vsel %vm1745, %v3497, 0
      %3504 = vmatprep.subr.mxu0 0.0
      %3505 = vmatpush1.msra.mxu0 %v3494
      %3506 = vmatprep.subr.mxu0 0.0
      %3507 = vmatpush1.msra.mxu0 0.0
      %3508 = vmatprep.subr.mxu0 0.0
      %3509 = vmatpush1.msra.mxu0 0.0
      %3510 = vmatprep.subr.mxu0 0.0
      %3511 = vmatpush1.msra.mxu0 0.0
      %3512 = vmatprep.subr.mxu0 0.0
      %3513 = vmatpush1.msra.mxu0 0.0
      %3514 = vmatprep.subr.mxu0 0.0
      %3515 = vmatpush1.msra.mxu0 0.0
      %3516 = vmatprep.subr.mxu0 0.0
      %3517 = vmatpush1.msra.mxu0 0.0
      %3518 = vmatprep.subr.mxu0 0.0
      %3519 = vmatpush1.msra.mxu0 0.0
      %3520 = vmatprep.subr.mxu0 0.0
      %3521 = vmatpush1.msra.mxu0 0.0
      %3522 = vmatprep.subr.mxu0 0.0
      %3523 = vmatpush1.msra.mxu0 0.0
      %3524 = vmatprep.subr.mxu0 0.0
      %3525 = vmatpush1.msra.mxu0 0.0
      %3526 = vmatprep.subr.mxu0 0.0
      %3527 = vmatpush1.msra.mxu0 0.0
      %3528 = vmatprep.subr.mxu0 0.0
      %3529 = vmatpush1.msra.mxu0 0.0
      %3530 = vmatprep.subr.mxu0 0.0
      %3531 = vmatpush1.msra.mxu0 0.0
      %3532 = vmatprep.subr.mxu0 0.0
      %3533 = vmatpush1.msra.mxu0 0.0
      %3534 = vmatprep.subr.mxu0 0.0
      %3535 = vmatpush1.msra.mxu0 0.0
      %3536 = vmatprep.subr.mxu0 0.0
      %3537 = vmatpush1.msra.mxu0 0.0
      %3538 = vmatprep.subr.mxu0 0.0
      %3539 = vmatpush1.msra.mxu0 0.0
      %3540 = vmatprep.subr.mxu0 0.0
      %3541 = vmatpush1.msra.mxu0 0.0
      %3542 = vmatprep.subr.mxu0 0.0
      %3543 = vmatpush1.msra.mxu0 0.0
      %3544 = vmatprep.subr.mxu0 0.0
      %3545 = vmatpush1.msra.mxu0 0.0
      %3546 = vmatprep.subr.mxu0 0.0
      %3547 = vmatpush1.msra.mxu0 0.0
      %3548 = vmatprep.subr.mxu0 0.0
      %3549 = vmatpush1.msra.mxu0 0.0
      %3550 = vmatprep.subr.mxu0 0.0
      %3551 = vmatpush1.msra.mxu0 0.0
      %3552 = vmatprep.subr.mxu0 0.0
      %3553 = vmatpush1.msra.mxu0 0.0
      %3554 = vmatprep.subr.mxu0 0.0
      %3555 = vmatpush1.msra.mxu0 0.0
      %3556 = vmatprep.subr.mxu0 0.0
      %3557 = vmatpush1.msra.mxu0 0.0
      %3558 = vmatprep.subr.mxu0 0.0
      %3559 = vmatpush1.msra.mxu0 0.0
      %3560 = vmatprep.subr.mxu0 0.0
      %3561 = vmatpush1.msra.mxu0 0.0
      %3562 = vmatprep.subr.mxu0 0.0
      %3563 = vmatpush1.msra.mxu0 0.0
      %3564 = vmatprep.subr.mxu0 0.0
      %3565 = vmatpush1.msra.mxu0 0.0
      %3566 = vmatprep.subr.mxu0 0.0
      %3567 = vmatpush1.msra.mxu0 0.0
      %3568 = vmatprep.mubr.f32.mxu0 0.0
      %3569 = vmatmul.mubr.f32.gmra.mrb[0].mxu0 %v3499
      %v3570 = vpop.f32.mrb[0].mxu0
      %v3571 = vadd.f32 0.0, %v3570
      %v3572 = vpop.f32.mrb[0].mxu0
      %3573 = vmatprep.mubr.f32.mxu0 0.0
      %3574 = vmatmul.mubr.f32.gmra.mrb[0].mxu0 %v3502
      %v3575 = vpop.f32.mrb[0].mxu0
      %v3576 = vadd.f32 0.0, %v3575
      %v3577 = vpop.f32.mrb[0].mxu0
      %3578 = vdwg.mxu0
      %v3579 = vadd.f32 %v3478, %v3571
      %v3580 = vadd.f32 %v3479, %v3576
      %v3581 = vld [vmem:[%s10] sm:$0xff]
      %v3582 = vld [vmem:[%s10 + $0x8] sm:$0xff]
      %3584 = vset.pattern.permute.xlu0 0
      %3585 = vperm.xlu0 %3584, %v3581
      %v3586 = vpop.permute.xlu0 %3585
      %3589 = vset.pattern.permute.xlu0 0
      %3590 = vperm.xlu0 %3589, %v3582
      %v3591 = vpop.permute.xlu0 %3590
      %v3593 = vadd.f32 %v3579, %v3586
      %v3594 = vadd.f32 %v3580, %v3591
      %v3595 = vmax.f32 %v3593, 0.0
      %v3596 = vmax.f32 %v3594, 0.0
      %3599 = vrot.lane.b32.xlu0 %v3595, 72
      %v3600 = vpop.permute.xlu0 %3599
      %3601 = vrot.lane.b32.xlu0 %v3596, 72
      %v3602 = vpop.permute.xlu0 %3601
      %3605 = vrot.lane.b32.xlu0 %v3595, 8
      %v3606 = vpop.permute.xlu0 %3605
      %3607 = vrot.lane.b32.xlu0 %v3596, 8
      %v3608 = vpop.permute.xlu0 %3607
      %v3611 = vsel %vm1745, %v3600, %v3606
      %v3612 = vsel %vm1745, %v3602, %v3608
      %3615 = vrot.lane.b32.xlu0 %v3611, 121
      %v3616 = vpop.permute.xlu0 %3615
      %3617 = vrot.lane.b32.xlu0 %v3612, 121
      %v3618 = vpop.permute.xlu0 %3617
      %3621 = vrot.lane.b32.xlu0 %v3611, 57
      %v3622 = vpop.permute.xlu0 %3621
      %3623 = vrot.lane.b32.xlu0 %v3612, 57
      %v3624 = vpop.permute.xlu0 %3623
      %v3627 = vsel %vm2705, %v3616, %v3622
      %v3628 = vsel %vm2705, %v3618, %v3624
      %3629 = vrot.lane.b32.xlu0 %v3611, 65
      %v3630 = vpop.permute.xlu0 %3629
      %3631 = vrot.lane.b32.xlu0 %v3612, 65
      %v3632 = vpop.permute.xlu0 %3631
      %3635 = vrot.lane.b32.xlu0 %v3611, 1
      %v3636 = vpop.permute.xlu0 %3635
      %3637 = vrot.lane.b32.xlu0 %v3612, 1
      %v3638 = vpop.permute.xlu0 %3637
      %v3641 = vsel %vm797, %v3630, %v3636
      %v3642 = vsel %vm797, %v3632, %v3638
      %v3643 = vsel %vm2719, %v3627, %v3641
      %v3644 = vsel %vm2719, %v3628, %v3642
      %v3645 = vld [vmem:[%s11] sm:$0xff]
      %v3646 = vld [vmem:[%s11 + $0x8] sm:$0xff]
      %s3647 = scalar_lea.vmem %s11, 16
      %v3648 = vld [vmem:[%s3647] sm:$0xff]
      %v3649 = vld [vmem:[%s3647 + $0x8] sm:$0xff]
      %v3651 = vsel %vm777, %v3648, 0
      %v3654 = vsel %vm777, %v3649, 0
      %3656 = vmatprep.subr.mxu0 0.0
      %3657 = vmatpush1.msra.mxu0 %v3611
      %3658 = vmatprep.subr.mxu0 0.0
      %3659 = vmatpush1.msra.mxu0 %v3612
      %3660 = vmatprep.subr.mxu0 0.0
      %3661 = vmatpush1.msra.mxu0 0.0
      %3662 = vmatprep.subr.mxu0 0.0
      %3663 = vmatpush1.msra.mxu0 0.0
      %3664 = vmatprep.subr.mxu0 0.0
      %3665 = vmatpush1.msra.mxu0 0.0
      %3666 = vmatprep.subr.mxu0 0.0
      %3667 = vmatpush1.msra.mxu0 0.0
      %3668 = vmatprep.subr.mxu0 0.0
      %3669 = vmatpush1.msra.mxu0 0.0
      %3670 = vmatprep.subr.mxu0 0.0
      %3671 = vmatpush1.msra.mxu0 0.0
      %3672 = vmatprep.subr.mxu0 0.0
      %3673 = vmatpush1.msra.mxu0 0.0
      %3674 = vmatprep.subr.mxu0 0.0
      %3675 = vmatpush1.msra.mxu0 0.0
      %3676 = vmatprep.subr.mxu0 0.0
      %3677 = vmatpush1.msra.mxu0 0.0
      %3678 = vmatprep.subr.mxu0 0.0
      %3679 = vmatpush1.msra.mxu0 0.0
      %3680 = vmatprep.subr.mxu0 0.0
      %3681 = vmatpush1.msra.mxu0 0.0
      %3682 = vmatprep.subr.mxu0 0.0
      %3683 = vmatpush1.msra.mxu0 0.0
      %3684 = vmatprep.subr.mxu0 0.0
      %3685 = vmatpush1.msra.mxu0 0.0
      %3686 = vmatprep.subr.mxu0 0.0
      %3687 = vmatpush1.msra.mxu0 0.0
      %3688 = vmatprep.subr.mxu0 0.0
      %3689 = vmatpush1.msra.mxu0 0.0
      %3690 = vmatprep.subr.mxu0 0.0
      %3691 = vmatpush1.msra.mxu0 0.0
      %3692 = vmatprep.subr.mxu0 0.0
      %3693 = vmatpush1.msra.mxu0 0.0
      %3694 = vmatprep.subr.mxu0 0.0
      %3695 = vmatpush1.msra.mxu0 0.0
      %3696 = vmatprep.subr.mxu0 0.0
      %3697 = vmatpush1.msra.mxu0 0.0
      %3698 = vmatprep.subr.mxu0 0.0
      %3699 = vmatpush1.msra.mxu0 0.0
      %3700 = vmatprep.subr.mxu0 0.0
      %3701 = vmatpush1.msra.mxu0 0.0
      %3702 = vmatprep.subr.mxu0 0.0
      %3703 = vmatpush1.msra.mxu0 0.0
      %3704 = vmatprep.subr.mxu0 0.0
      %3705 = vmatpush1.msra.mxu0 0.0
      %3706 = vmatprep.subr.mxu0 0.0
      %3707 = vmatpush1.msra.mxu0 0.0
      %3708 = vmatprep.subr.mxu0 0.0
      %3709 = vmatpush1.msra.mxu0 0.0
      %3710 = vmatprep.subr.mxu0 0.0
      %3711 = vmatpush1.msra.mxu0 0.0
      %3712 = vmatprep.subr.mxu0 0.0
      %3713 = vmatpush1.msra.mxu0 0.0
      %3714 = vmatprep.subr.mxu0 0.0
      %3715 = vmatpush1.msra.mxu0 0.0
      %3716 = vmatprep.subr.mxu0 0.0
      %3717 = vmatpush1.msra.mxu0 0.0
      %3718 = vmatprep.subr.mxu0 0.0
      %3719 = vmatpush1.msra.mxu0 0.0
      %3720 = vmatprep.mubr.f32.mxu0 0.0
      %3721 = vmatmul.mubr.f32.gmra.mrb[0].mxu0 %v3651
      %v3722 = vpop.f32.mrb[0].mxu0
      %v3723 = vadd.f32 0.0, %v3722
      %v3724 = vpop.f32.mrb[0].mxu0
      %3725 = vmatprep.mubr.f32.mxu0 0.0
      %3726 = vmatmul.mubr.f32.gmra.mrb[0].mxu0 %v3654
      %v3727 = vpop.f32.mrb[0].mxu0
      %v3728 = vadd.f32 0.0, %v3727
      %v3729 = vpop.f32.mrb[0].mxu0
      %3730 = vdwg.mxu0
      %v3732 = vsel %vm777, %v3645, 0
      %v3735 = vsel %vm777, %v3646, 0
      %3737 = vmatprep.subr.mxu0 0.0
      %3738 = vmatpush1.msra.mxu0 %v3643
      %3739 = vmatprep.subr.mxu0 0.0
      %3740 = vmatpush1.msra.mxu0 %v3644
      %3741 = vmatprep.subr.mxu0 0.0
      %3742 = vmatpush1.msra.mxu0 0.0
      %3743 = vmatprep.subr.mxu0 0.0
      %3744 = vmatpush1.msra.mxu0 0.0
      %3745 = vmatprep.subr.mxu0 0.0
      %3746 = vmatpush1.msra.mxu0 0.0
      %3747 = vmatprep.subr.mxu0 0.0
      %3748 = vmatpush1.msra.mxu0 0.0
      %3749 = vmatprep.subr.mxu0 0.0
      %3750 = vmatpush1.msra.mxu0 0.0
      %3751 = vmatprep.subr.mxu0 0.0
      %3752 = vmatpush1.msra.mxu0 0.0
      %3753 = vmatprep.subr.mxu0 0.0
      %3754 = vmatpush1.msra.mxu0 0.0
      %3755 = vmatprep.subr.mxu0 0.0
      %3756 = vmatpush1.msra.mxu0 0.0
      %3757 = vmatprep.subr.mxu0 0.0
      %3758 = vmatpush1.msra.mxu0 0.0
      %3759 = vmatprep.subr.mxu0 0.0
      %3760 = vmatpush1.msra.mxu0 0.0
      %3761 = vmatprep.subr.mxu0 0.0
      %3762 = vmatpush1.msra.mxu0 0.0
      %3763 = vmatprep.subr.mxu0 0.0
      %3764 = vmatpush1.msra.mxu0 0.0
      %3765 = vmatprep.subr.mxu0 0.0
      %3766 = vmatpush1.msra.mxu0 0.0
      %3767 = vmatprep.subr.mxu0 0.0
      %3768 = vmatpush1.msra.mxu0 0.0
      %3769 = vmatprep.subr.mxu0 0.0
      %3770 = vmatpush1.msra.mxu0 0.0
      %3771 = vmatprep.subr.mxu0 0.0
      %3772 = vmatpush1.msra.mxu0 0.0
      %3773 = vmatprep.subr.mxu0 0.0
      %3774 = vmatpush1.msra.mxu0 0.0
      %3775 = vmatprep.subr.mxu0 0.0
      %3776 = vmatpush1.msra.mxu0 0.0
      %3777 = vmatprep.subr.mxu0 0.0
      %3778 = vmatpush1.msra.mxu0 0.0
      %3779 = vmatprep.subr.mxu0 0.0
      %3780 = vmatpush1.msra.mxu0 0.0
      %3781 = vmatprep.subr.mxu0 0.0
      %3782 = vmatpush1.msra.mxu0 0.0
      %3783 = vmatprep.subr.mxu0 0.0
      %3784 = vmatpush1.msra.mxu0 0.0
      %3785 = vmatprep.subr.mxu0 0.0
      %3786 = vmatpush1.msra.mxu0 0.0
      %3787 = vmatprep.subr.mxu0 0.0
      %3788 = vmatpush1.msra.mxu0 0.0
      %3789 = vmatprep.subr.mxu0 0.0
      %3790 = vmatpush1.msra.mxu0 0.0
      %3791 = vmatprep.subr.mxu0 0.0
      %3792 = vmatpush1.msra.mxu0 0.0
      %3793 = vmatprep.subr.mxu0 0.0
      %3794 = vmatpush1.msra.mxu0 0.0
      %3795 = vmatprep.subr.mxu0 0.0
      %3796 = vmatpush1.msra.mxu0 0.0
      %3797 = vmatprep.subr.mxu0 0.0
      %3798 = vmatpush1.msra.mxu0 0.0
      %3799 = vmatprep.subr.mxu0 0.0
      %3800 = vmatpush1.msra.mxu0 0.0
      %3801 = vmatprep.mubr.f32.mxu0 0.0
      %3802 = vmatmul.mubr.f32.gmra.mrb[0].mxu0 %v3732
      %v3803 = vpop.f32.mrb[0].mxu0
      %v3804 = vadd.f32 %v3723, %v3803
      %v3805 = vpop.f32.mrb[0].mxu0
      %3806 = vmatprep.mubr.f32.mxu0 0.0
      %3807 = vmatmul.mubr.f32.gmra.mrb[0].mxu0 %v3735
      %v3808 = vpop.f32.mrb[0].mxu0
      %v3809 = vadd.f32 %v3728, %v3808
      %v3810 = vpop.f32.mrb[0].mxu0
      %3811 = vdwg.mxu0
      %3812 = vrot.lane.b32.xlu0 %v3611, 71
      %v3813 = vpop.permute.xlu0 %3812
      %3814 = vrot.lane.b32.xlu0 %v3612, 71
      %v3815 = vpop.permute.xlu0 %3814
      %3818 = vrot.lane.b32.xlu0 %v3611, 7
      %v3819 = vpop.permute.xlu0 %3818
      %3820 = vrot.lane.b32.xlu0 %v3612, 7
      %v3821 = vpop.permute.xlu0 %3820
      %v3824 = vsel %vm2894, %v3813, %v3819
      %v3825 = vsel %vm2894, %v3815, %v3821
      %3826 = vrot.lane.b32.xlu0 %v3611, 127
      %v3827 = vpop.permute.xlu0 %3826
      %3828 = vrot.lane.b32.xlu0 %v3612, 127
      %v3829 = vpop.permute.xlu0 %3828
      %3832 = vrot.lane.b32.xlu0 %v3611, 63
      %v3833 = vpop.permute.xlu0 %3832
      %3834 = vrot.lane.b32.xlu0 %v3612, 63
      %v3835 = vpop.permute.xlu0 %3834
      %v3838 = vsel %vm2902, %v3827, %v3833
      %v3839 = vsel %vm2902, %v3829, %v3835
      %v3840 = vsel %vm2908, %v3824, %v3838
      %v3841 = vsel %vm2908, %v3825, %v3839
      %s3842 = scalar_lea.vmem %s11, 32
      %v3843 = vld [vmem:[%s3842] sm:$0xff]
      %v3844 = vld [vmem:[%s3842 + $0x8] sm:$0xff]
      %v3846 = vsel %vm777, %v3843, 0
      %v3849 = vsel %vm777, %v3844, 0
      %3851 = vmatprep.subr.mxu0 0.0
      %3852 = vmatpush1.msra.mxu0 %v3840
      %3853 = vmatprep.subr.mxu0 0.0
      %3854 = vmatpush1.msra.mxu0 %v3841
      %3855 = vmatprep.subr.mxu0 0.0
      %3856 = vmatpush1.msra.mxu0 0.0
      %3857 = vmatprep.subr.mxu0 0.0
      %3858 = vmatpush1.msra.mxu0 0.0
      %3859 = vmatprep.subr.mxu0 0.0
      %3860 = vmatpush1.msra.mxu0 0.0
      %3861 = vmatprep.subr.mxu0 0.0
      %3862 = vmatpush1.msra.mxu0 0.0
      %3863 = vmatprep.subr.mxu0 0.0
      %3864 = vmatpush1.msra.mxu0 0.0
      %3865 = vmatprep.subr.mxu0 0.0
      %3866 = vmatpush1.msra.mxu0 0.0
      %3867 = vmatprep.subr.mxu0 0.0
      %3868 = vmatpush1.msra.mxu0 0.0
      %3869 = vmatprep.subr.mxu0 0.0
      %3870 = vmatpush1.msra.mxu0 0.0
      %3871 = vmatprep.subr.mxu0 0.0
      %3872 = vmatpush1.msra.mxu0 0.0
      %3873 = vmatprep.subr.mxu0 0.0
      %3874 = vmatpush1.msra.mxu0 0.0
      %3875 = vmatprep.subr.mxu0 0.0
      %3876 = vmatpush1.msra.mxu0 0.0
      %3877 = vmatprep.subr.mxu0 0.0
      %3878 = vmatpush1.msra.mxu0 0.0
      %3879 = vmatprep.subr.mxu0 0.0
      %3880 = vmatpush1.msra.mxu0 0.0
      %3881 = vmatprep.subr.mxu0 0.0
      %3882 = vmatpush1.msra.mxu0 0.0
      %3883 = vmatprep.subr.mxu0 0.0
      %3884 = vmatpush1.msra.mxu0 0.0
      %3885 = vmatprep.subr.mxu0 0.0
      %3886 = vmatpush1.msra.mxu0 0.0
      %3887 = vmatprep.subr.mxu0 0.0
      %3888 = vmatpush1.msra.mxu0 0.0
      %3889 = vmatprep.subr.mxu0 0.0
      %3890 = vmatpush1.msra.mxu0 0.0
      %3891 = vmatprep.subr.mxu0 0.0
      %3892 = vmatpush1.msra.mxu0 0.0
      %3893 = vmatprep.subr.mxu0 0.0
      %3894 = vmatpush1.msra.mxu0 0.0
      %3895 = vmatprep.subr.mxu0 0.0
      %3896 = vmatpush1.msra.mxu0 0.0
      %3897 = vmatprep.subr.mxu0 0.0
      %3898 = vmatpush1.msra.mxu0 0.0
      %3899 = vmatprep.subr.mxu0 0.0
      %3900 = vmatpush1.msra.mxu0 0.0
      %3901 = vmatprep.subr.mxu0 0.0
      %3902 = vmatpush1.msra.mxu0 0.0
      %3903 = vmatprep.subr.mxu0 0.0
      %3904 = vmatpush1.msra.mxu0 0.0
      %3905 = vmatprep.subr.mxu0 0.0
      %3906 = vmatpush1.msra.mxu0 0.0
      %3907 = vmatprep.subr.mxu0 0.0
      %3908 = vmatpush1.msra.mxu0 0.0
      %3909 = vmatprep.subr.mxu0 0.0
      %3910 = vmatpush1.msra.mxu0 0.0
      %3911 = vmatprep.subr.mxu0 0.0
      %3912 = vmatpush1.msra.mxu0 0.0
      %3913 = vmatprep.subr.mxu0 0.0
      %3914 = vmatpush1.msra.mxu0 0.0
      %3915 = vmatprep.mubr.f32.mxu0 0.0
      %3916 = vmatmul.mubr.f32.gmra.mrb[0].mxu0 %v3846
      %v3917 = vpop.f32.mrb[0].mxu0
      %v3918 = vadd.f32 0.0, %v3917
      %v3919 = vpop.f32.mrb[0].mxu0
      %3920 = vmatprep.mubr.f32.mxu0 0.0
      %3921 = vmatmul.mubr.f32.gmra.mrb[0].mxu0 %v3849
      %v3922 = vpop.f32.mrb[0].mxu0
      %v3923 = vadd.f32 0.0, %v3922
      %v3924 = vpop.f32.mrb[0].mxu0
      %3925 = vdwg.mxu0
      %v3926 = vadd.f32 %v3804, %v3918
      %v3927 = vadd.f32 %v3809, %v3923
      %3928 = vrot.lane.b32.xlu0 %v3595, 121
      %v3929 = vpop.permute.xlu0 %3928
      %3930 = vrot.lane.b32.xlu0 %v3596, 121
      %v3931 = vpop.permute.xlu0 %3930
      %3934 = vrot.lane.b32.xlu0 %v3595, 57
      %v3935 = vpop.permute.xlu0 %3934
      %3936 = vrot.lane.b32.xlu0 %v3596, 57
      %v3937 = vpop.permute.xlu0 %3936
      %v3940 = vsel %vm2705, %v3929, %v3935
      %v3941 = vsel %vm2705, %v3931, %v3937
      %3942 = vrot.lane.b32.xlu0 %v3595, 65
      %v3943 = vpop.permute.xlu0 %3942
      %3944 = vrot.lane.b32.xlu0 %v3596, 65
      %v3945 = vpop.permute.xlu0 %3944
      %3948 = vrot.lane.b32.xlu0 %v3595, 1
      %v3949 = vpop.permute.xlu0 %3948
      %3950 = vrot.lane.b32.xlu0 %v3596, 1
      %v3951 = vpop.permute.xlu0 %3950
      %v3954 = vsel %vm797, %v3943, %v3949
      %v3955 = vsel %vm797, %v3945, %v3951
      %v3956 = vsel %vm2719, %v3940, %v3954
      %v3957 = vsel %vm2719, %v3941, %v3955
      %s3958 = scalar_lea.vmem %s11, 48
      %v3959 = vld [vmem:[%s3958] sm:$0xff]
      %v3960 = vld [vmem:[%s3958 + $0x8] sm:$0xff]
      %v3962 = vsel %vm777, %v3959, 0
      %v3965 = vsel %vm777, %v3960, 0
      %3967 = vmatprep.subr.mxu0 0.0
      %3968 = vmatpush1.msra.mxu0 %v3956
      %3969 = vmatprep.subr.mxu0 0.0
      %3970 = vmatpush1.msra.mxu0 %v3957
      %3971 = vmatprep.subr.mxu0 0.0
      %3972 = vmatpush1.msra.mxu0 0.0
      %3973 = vmatprep.subr.mxu0 0.0
      %3974 = vmatpush1.msra.mxu0 0.0
      %3975 = vmatprep.subr.mxu0 0.0
      %3976 = vmatpush1.msra.mxu0 0.0
      %3977 = vmatprep.subr.mxu0 0.0
      %3978 = vmatpush1.msra.mxu0 0.0
      %3979 = vmatprep.subr.mxu0 0.0
      %3980 = vmatpush1.msra.mxu0 0.0
      %3981 = vmatprep.subr.mxu0 0.0
      %3982 = vmatpush1.msra.mxu0 0.0
      %3983 = vmatprep.subr.mxu0 0.0
      %3984 = vmatpush1.msra.mxu0 0.0
      %3985 = vmatprep.subr.mxu0 0.0
      %3986 = vmatpush1.msra.mxu0 0.0
      %3987 = vmatprep.subr.mxu0 0.0
      %3988 = vmatpush1.msra.mxu0 0.0
      %3989 = vmatprep.subr.mxu0 0.0
      %3990 = vmatpush1.msra.mxu0 0.0
      %3991 = vmatprep.subr.mxu0 0.0
      %3992 = vmatpush1.msra.mxu0 0.0
      %3993 = vmatprep.subr.mxu0 0.0
      %3994 = vmatpush1.msra.mxu0 0.0
      %3995 = vmatprep.subr.mxu0 0.0
      %3996 = vmatpush1.msra.mxu0 0.0
      %3997 = vmatprep.subr.mxu0 0.0
      %3998 = vmatpush1.msra.mxu0 0.0
      %3999 = vmatprep.subr.mxu0 0.0
      %4000 = vmatpush1.msra.mxu0 0.0
      %4001 = vmatprep.subr.mxu0 0.0
      %4002 = vmatpush1.msra.mxu0 0.0
      %4003 = vmatprep.subr.mxu0 0.0
      %4004 = vmatpush1.msra.mxu0 0.0
      %4005 = vmatprep.subr.mxu0 0.0
      %4006 = vmatpush1.msra.mxu0 0.0
      %4007 = vmatprep.subr.mxu0 0.0
      %4008 = vmatpush1.msra.mxu0 0.0
      %4009 = vmatprep.subr.mxu0 0.0
      %4010 = vmatpush1.msra.mxu0 0.0
      %4011 = vmatprep.subr.mxu0 0.0
      %4012 = vmatpush1.msra.mxu0 0.0
      %4013 = vmatprep.subr.mxu0 0.0
      %4014 = vmatpush1.msra.mxu0 0.0
      %4015 = vmatprep.subr.mxu0 0.0
      %4016 = vmatpush1.msra.mxu0 0.0
      %4017 = vmatprep.subr.mxu0 0.0
      %4018 = vmatpush1.msra.mxu0 0.0
      %4019 = vmatprep.subr.mxu0 0.0
      %4020 = vmatpush1.msra.mxu0 0.0
      %4021 = vmatprep.subr.mxu0 0.0
      %4022 = vmatpush1.msra.mxu0 0.0
      %4023 = vmatprep.subr.mxu0 0.0
      %4024 = vmatpush1.msra.mxu0 0.0
      %4025 = vmatprep.subr.mxu0 0.0
      %4026 = vmatpush1.msra.mxu0 0.0
      %4027 = vmatprep.subr.mxu0 0.0
      %4028 = vmatpush1.msra.mxu0 0.0
      %4029 = vmatprep.subr.mxu0 0.0
      %4030 = vmatpush1.msra.mxu0 0.0
      %4031 = vmatprep.mubr.f32.mxu0 0.0
      %4032 = vmatmul.mubr.f32.gmra.mrb[0].mxu0 %v3962
      %v4033 = vpop.f32.mrb[0].mxu0
      %v4034 = vadd.f32 0.0, %v4033
      %v4035 = vpop.f32.mrb[0].mxu0
      %4036 = vmatprep.mubr.f32.mxu0 0.0
      %4037 = vmatmul.mubr.f32.gmra.mrb[0].mxu0 %v3965
      %v4038 = vpop.f32.mrb[0].mxu0
      %v4039 = vadd.f32 0.0, %v4038
      %v4040 = vpop.f32.mrb[0].mxu0
      %4041 = vdwg.mxu0
      %v4042 = vadd.f32 %v3926, %v4034
      %v4043 = vadd.f32 %v3927, %v4039
      %s4044 = scalar_lea.vmem %s11, 64
      %v4045 = vld [vmem:[%s4044] sm:$0xff]
      %v4046 = vld [vmem:[%s4044 + $0x8] sm:$0xff]
      %v4048 = vsel %vm777, %v4045, 0
      %v4051 = vsel %vm777, %v4046, 0
      %4053 = vmatprep.subr.mxu0 0.0
      %4054 = vmatpush1.msra.mxu0 %v3595
      %4055 = vmatprep.subr.mxu0 0.0
      %4056 = vmatpush1.msra.mxu0 %v3596
      %4057 = vmatprep.subr.mxu0 0.0
      %4058 = vmatpush1.msra.mxu0 0.0
      %4059 = vmatprep.subr.mxu0 0.0
      %4060 = vmatpush1.msra.mxu0 0.0
      %4061 = vmatprep.subr.mxu0 0.0
      %4062 = vmatpush1.msra.mxu0 0.0
      %4063 = vmatprep.subr.mxu0 0.0
      %4064 = vmatpush1.msra.mxu0 0.0
      %4065 = vmatprep.subr.mxu0 0.0
      %4066 = vmatpush1.msra.mxu0 0.0
      %4067 = vmatprep.subr.mxu0 0.0
      %4068 = vmatpush1.msra.mxu0 0.0
      %4069 = vmatprep.subr.mxu0 0.0
      %4070 = vmatpush1.msra.mxu0 0.0
      %4071 = vmatprep.subr.mxu0 0.0
      %4072 = vmatpush1.msra.mxu0 0.0
      %4073 = vmatprep.subr.mxu0 0.0
      %4074 = vmatpush1.msra.mxu0 0.0
      %4075 = vmatprep.subr.mxu0 0.0
      %4076 = vmatpush1.msra.mxu0 0.0
      %4077 = vmatprep.subr.mxu0 0.0
      %4078 = vmatpush1.msra.mxu0 0.0
      %4079 = vmatprep.subr.mxu0 0.0
      %4080 = vmatpush1.msra.mxu0 0.0
      %4081 = vmatprep.subr.mxu0 0.0
      %4082 = vmatpush1.msra.mxu0 0.0
      %4083 = vmatprep.subr.mxu0 0.0
      %4084 = vmatpush1.msra.mxu0 0.0
      %4085 = vmatprep.subr.mxu0 0.0
      %4086 = vmatpush1.msra.mxu0 0.0
      %4087 = vmatprep.subr.mxu0 0.0
      %4088 = vmatpush1.msra.mxu0 0.0
      %4089 = vmatprep.subr.mxu0 0.0
      %4090 = vmatpush1.msra.mxu0 0.0
      %4091 = vmatprep.subr.mxu0 0.0
      %4092 = vmatpush1.msra.mxu0 0.0
      %4093 = vmatprep.subr.mxu0 0.0
      %4094 = vmatpush1.msra.mxu0 0.0
      %4095 = vmatprep.subr.mxu0 0.0
      %4096 = vmatpush1.msra.mxu0 0.0
      %4097 = vmatprep.subr.mxu0 0.0
      %4098 = vmatpush1.msra.mxu0 0.0
      %4099 = vmatprep.subr.mxu0 0.0
      %4100 = vmatpush1.msra.mxu0 0.0
      %4101 = vmatprep.subr.mxu0 0.0
      %4102 = vmatpush1.msra.mxu0 0.0
      %4103 = vmatprep.subr.mxu0 0.0
      %4104 = vmatpush1.msra.mxu0 0.0
      %4105 = vmatprep.subr.mxu0 0.0
      %4106 = vmatpush1.msra.mxu0 0.0
      %4107 = vmatprep.subr.mxu0 0.0
      %4108 = vmatpush1.msra.mxu0 0.0
      %4109 = vmatprep.subr.mxu0 0.0
      %4110 = vmatpush1.msra.mxu0 0.0
      %4111 = vmatprep.subr.mxu0 0.0
      %4112 = vmatpush1.msra.mxu0 0.0
      %4113 = vmatprep.subr.mxu0 0.0
      %4114 = vmatpush1.msra.mxu0 0.0
      %4115 = vmatprep.subr.mxu0 0.0
      %4116 = vmatpush1.msra.mxu0 0.0
      %4117 = vmatprep.mubr.f32.mxu0 0.0
      %4118 = vmatmul.mubr.f32.gmra.mrb[0].mxu0 %v4048
      %v4119 = vpop.f32.mrb[0].mxu0
      %v4120 = vadd.f32 0.0, %v4119
      %v4121 = vpop.f32.mrb[0].mxu0
      %4122 = vmatprep.mubr.f32.mxu0 0.0
      %4123 = vmatmul.mubr.f32.gmra.mrb[0].mxu0 %v4051
      %v4124 = vpop.f32.mrb[0].mxu0
      %v4125 = vadd.f32 0.0, %v4124
      %v4126 = vpop.f32.mrb[0].mxu0
      %4127 = vdwg.mxu0
      %v4128 = vadd.f32 %v4042, %v4120
      %v4129 = vadd.f32 %v4043, %v4125
      %4130 = vrot.lane.b32.xlu0 %v3595, 71
      %v4131 = vpop.permute.xlu0 %4130
      %4132 = vrot.lane.b32.xlu0 %v3596, 71
      %v4133 = vpop.permute.xlu0 %4132
      %4136 = vrot.lane.b32.xlu0 %v3595, 7
      %v4137 = vpop.permute.xlu0 %4136
      %4138 = vrot.lane.b32.xlu0 %v3596, 7
      %v4139 = vpop.permute.xlu0 %4138
      %v4142 = vsel %vm2894, %v4131, %v4137
      %v4143 = vsel %vm2894, %v4133, %v4139
      %4144 = vrot.lane.b32.xlu0 %v3595, 127
      %v4145 = vpop.permute.xlu0 %4144
      %4146 = vrot.lane.b32.xlu0 %v3596, 127
      %v4147 = vpop.permute.xlu0 %4146
      %4150 = vrot.lane.b32.xlu0 %v3595, 63
      %v4151 = vpop.permute.xlu0 %4150
      %4152 = vrot.lane.b32.xlu0 %v3596, 63
      %v4153 = vpop.permute.xlu0 %4152
      %v4156 = vsel %vm2902, %v4145, %v4151
      %v4157 = vsel %vm2902, %v4147, %v4153
      %v4158 = vsel %vm2908, %v4142, %v4156
      %v4159 = vsel %vm2908, %v4143, %v4157
      %s4160 = scalar_lea.vmem %s11, 80
      %v4161 = vld [vmem:[%s4160] sm:$0xff]
      %v4162 = vld [vmem:[%s4160 + $0x8] sm:$0xff]
      %v4164 = vsel %vm777, %v4161, 0
      %v4167 = vsel %vm777, %v4162, 0
      %4169 = vmatprep.subr.mxu0 0.0
      %4170 = vmatpush1.msra.mxu0 %v4158
      %4171 = vmatprep.subr.mxu0 0.0
      %4172 = vmatpush1.msra.mxu0 %v4159
      %4173 = vmatprep.subr.mxu0 0.0
      %4174 = vmatpush1.msra.mxu0 0.0
      %4175 = vmatprep.subr.mxu0 0.0
      %4176 = vmatpush1.msra.mxu0 0.0
      %4177 = vmatprep.subr.mxu0 0.0
      %4178 = vmatpush1.msra.mxu0 0.0
      %4179 = vmatprep.subr.mxu0 0.0
      %4180 = vmatpush1.msra.mxu0 0.0
      %4181 = vmatprep.subr.mxu0 0.0
      %4182 = vmatpush1.msra.mxu0 0.0
      %4183 = vmatprep.subr.mxu0 0.0
      %4184 = vmatpush1.msra.mxu0 0.0
      %4185 = vmatprep.subr.mxu0 0.0
      %4186 = vmatpush1.msra.mxu0 0.0
      %4187 = vmatprep.subr.mxu0 0.0
      %4188 = vmatpush1.msra.mxu0 0.0
      %4189 = vmatprep.subr.mxu0 0.0
      %4190 = vmatpush1.msra.mxu0 0.0
      %4191 = vmatprep.subr.mxu0 0.0
      %4192 = vmatpush1.msra.mxu0 0.0
      %4193 = vmatprep.subr.mxu0 0.0
      %4194 = vmatpush1.msra.mxu0 0.0
      %4195 = vmatprep.subr.mxu0 0.0
      %4196 = vmatpush1.msra.mxu0 0.0
      %4197 = vmatprep.subr.mxu0 0.0
      %4198 = vmatpush1.msra.mxu0 0.0
      %4199 = vmatprep.subr.mxu0 0.0
      %4200 = vmatpush1.msra.mxu0 0.0
      %4201 = vmatprep.subr.mxu0 0.0
      %4202 = vmatpush1.msra.mxu0 0.0
      %4203 = vmatprep.subr.mxu0 0.0
      %4204 = vmatpush1.msra.mxu0 0.0
      %4205 = vmatprep.subr.mxu0 0.0
      %4206 = vmatpush1.msra.mxu0 0.0
      %4207 = vmatprep.subr.mxu0 0.0
      %4208 = vmatpush1.msra.mxu0 0.0
      %4209 = vmatprep.subr.mxu0 0.0
      %4210 = vmatpush1.msra.mxu0 0.0
      %4211 = vmatprep.subr.mxu0 0.0
      %4212 = vmatpush1.msra.mxu0 0.0
      %4213 = vmatprep.subr.mxu0 0.0
      %4214 = vmatpush1.msra.mxu0 0.0
      %4215 = vmatprep.subr.mxu0 0.0
      %4216 = vmatpush1.msra.mxu0 0.0
      %4217 = vmatprep.subr.mxu0 0.0
      %4218 = vmatpush1.msra.mxu0 0.0
      %4219 = vmatprep.subr.mxu0 0.0
      %4220 = vmatpush1.msra.mxu0 0.0
      %4221 = vmatprep.subr.mxu0 0.0
      %4222 = vmatpush1.msra.mxu0 0.0
      %4223 = vmatprep.subr.mxu0 0.0
      %4224 = vmatpush1.msra.mxu0 0.0
      %4225 = vmatprep.subr.mxu0 0.0
      %4226 = vmatpush1.msra.mxu0 0.0
      %4227 = vmatprep.subr.mxu0 0.0
      %4228 = vmatpush1.msra.mxu0 0.0
      %4229 = vmatprep.subr.mxu0 0.0
      %4230 = vmatpush1.msra.mxu0 0.0
      %4231 = vmatprep.subr.mxu0 0.0
      %4232 = vmatpush1.msra.mxu0 0.0
      %4233 = vmatprep.mubr.f32.mxu0 0.0
      %4234 = vmatmul.mubr.f32.gmra.mrb[0].mxu0 %v4164
      %v4235 = vpop.f32.mrb[0].mxu0
      %v4236 = vadd.f32 0.0, %v4235
      %v4237 = vpop.f32.mrb[0].mxu0
      %4238 = vmatprep.mubr.f32.mxu0 0.0
      %4239 = vmatmul.mubr.f32.gmra.mrb[0].mxu0 %v4167
      %v4240 = vpop.f32.mrb[0].mxu0
      %v4241 = vadd.f32 0.0, %v4240
      %v4242 = vpop.f32.mrb[0].mxu0
      %4243 = vdwg.mxu0
      %v4244 = vadd.f32 %v4128, %v4236
      %v4245 = vadd.f32 %v4129, %v4241
      %4246 = vrot.lane.b32.xlu0 %v3595, 120
      %v4247 = vpop.permute.xlu0 %4246
      %4248 = vrot.lane.b32.xlu0 %v3596, 120
      %v4249 = vpop.permute.xlu0 %4248
      %4252 = vrot.lane.b32.xlu0 %v3595, 56
      %v4253 = vpop.permute.xlu0 %4252
      %4254 = vrot.lane.b32.xlu0 %v3596, 56
      %v4255 = vpop.permute.xlu0 %4254
      %v4258 = vsel %vm3290, %v4247, %v4253
      %v4259 = vsel %vm3290, %v4249, %v4255
      %4262 = vrot.lane.b32.xlu0 %v4258, 121
      %v4263 = vpop.permute.xlu0 %4262
      %4264 = vrot.lane.b32.xlu0 %v4259, 121
      %v4265 = vpop.permute.xlu0 %4264
      %4268 = vrot.lane.b32.xlu0 %v4258, 57
      %v4269 = vpop.permute.xlu0 %4268
      %4270 = vrot.lane.b32.xlu0 %v4259, 57
      %v4271 = vpop.permute.xlu0 %4270
      %v4274 = vsel %vm2705, %v4263, %v4269
      %v4275 = vsel %vm2705, %v4265, %v4271
      %4276 = vrot.lane.b32.xlu0 %v4258, 65
      %v4277 = vpop.permute.xlu0 %4276
      %4278 = vrot.lane.b32.xlu0 %v4259, 65
      %v4279 = vpop.permute.xlu0 %4278
      %4282 = vrot.lane.b32.xlu0 %v4258, 1
      %v4283 = vpop.permute.xlu0 %4282
      %4284 = vrot.lane.b32.xlu0 %v4259, 1
      %v4285 = vpop.permute.xlu0 %4284
      %v4288 = vsel %vm797, %v4277, %v4283
      %v4289 = vsel %vm797, %v4279, %v4285
      %v4290 = vsel %vm2719, %v4274, %v4288
      %v4291 = vsel %vm2719, %v4275, %v4289
      %s4292 = scalar_lea.vmem %s11, 96
      %v4293 = vld [vmem:[%s4292] sm:$0xff]
      %v4294 = vld [vmem:[%s4292 + $0x8] sm:$0xff]
      %v4296 = vsel %vm777, %v4293, 0
      %v4299 = vsel %vm777, %v4294, 0
      %4301 = vmatprep.subr.mxu0 0.0
      %4302 = vmatpush1.msra.mxu0 %v4290
      %4303 = vmatprep.subr.mxu0 0.0
      %4304 = vmatpush1.msra.mxu0 %v4291
      %4305 = vmatprep.subr.mxu0 0.0
      %4306 = vmatpush1.msra.mxu0 0.0
      %4307 = vmatprep.subr.mxu0 0.0
      %4308 = vmatpush1.msra.mxu0 0.0
      %4309 = vmatprep.subr.mxu0 0.0
      %4310 = vmatpush1.msra.mxu0 0.0
      %4311 = vmatprep.subr.mxu0 0.0
      %4312 = vmatpush1.msra.mxu0 0.0
      %4313 = vmatprep.subr.mxu0 0.0
      %4314 = vmatpush1.msra.mxu0 0.0
      %4315 = vmatprep.subr.mxu0 0.0
      %4316 = vmatpush1.msra.mxu0 0.0
      %4317 = vmatprep.subr.mxu0 0.0
      %4318 = vmatpush1.msra.mxu0 0.0
      %4319 = vmatprep.subr.mxu0 0.0
      %4320 = vmatpush1.msra.mxu0 0.0
      %4321 = vmatprep.subr.mxu0 0.0
      %4322 = vmatpush1.msra.mxu0 0.0
      %4323 = vmatprep.subr.mxu0 0.0
      %4324 = vmatpush1.msra.mxu0 0.0
      %4325 = vmatprep.subr.mxu0 0.0
      %4326 = vmatpush1.msra.mxu0 0.0
      %4327 = vmatprep.subr.mxu0 0.0
      %4328 = vmatpush1.msra.mxu0 0.0
      %4329 = vmatprep.subr.mxu0 0.0
      %4330 = vmatpush1.msra.mxu0 0.0
      %4331 = vmatprep.subr.mxu0 0.0
      %4332 = vmatpush1.msra.mxu0 0.0
      %4333 = vmatprep.subr.mxu0 0.0
      %4334 = vmatpush1.msra.mxu0 0.0
      %4335 = vmatprep.subr.mxu0 0.0
      %4336 = vmatpush1.msra.mxu0 0.0
      %4337 = vmatprep.subr.mxu0 0.0
      %4338 = vmatpush1.msra.mxu0 0.0
      %4339 = vmatprep.subr.mxu0 0.0
      %4340 = vmatpush1.msra.mxu0 0.0
      %4341 = vmatprep.subr.mxu0 0.0
      %4342 = vmatpush1.msra.mxu0 0.0
      %4343 = vmatprep.subr.mxu0 0.0
      %4344 = vmatpush1.msra.mxu0 0.0
      %4345 = vmatprep.subr.mxu0 0.0
      %4346 = vmatpush1.msra.mxu0 0.0
      %4347 = vmatprep.subr.mxu0 0.0
      %4348 = vmatpush1.msra.mxu0 0.0
      %4349 = vmatprep.subr.mxu0 0.0
      %4350 = vmatpush1.msra.mxu0 0.0
      %4351 = vmatprep.subr.mxu0 0.0
      %4352 = vmatpush1.msra.mxu0 0.0
      %4353 = vmatprep.subr.mxu0 0.0
      %4354 = vmatpush1.msra.mxu0 0.0
      %4355 = vmatprep.subr.mxu0 0.0
      %4356 = vmatpush1.msra.mxu0 0.0
      %4357 = vmatprep.subr.mxu0 0.0
      %4358 = vmatpush1.msra.mxu0 0.0
      %4359 = vmatprep.subr.mxu0 0.0
      %4360 = vmatpush1.msra.mxu0 0.0
      %4361 = vmatprep.subr.mxu0 0.0
      %4362 = vmatpush1.msra.mxu0 0.0
      %4363 = vmatprep.subr.mxu0 0.0
      %4364 = vmatpush1.msra.mxu0 0.0
      %4365 = vmatprep.mubr.f32.mxu0 0.0
      %4366 = vmatmul.mubr.f32.gmra.mrb[0].mxu0 %v4296
      %v4367 = vpop.f32.mrb[0].mxu0
      %v4368 = vadd.f32 0.0, %v4367
      %v4369 = vpop.f32.mrb[0].mxu0
      %4370 = vmatprep.mubr.f32.mxu0 0.0
      %4371 = vmatmul.mubr.f32.gmra.mrb[0].mxu0 %v4299
      %v4372 = vpop.f32.mrb[0].mxu0
      %v4373 = vadd.f32 0.0, %v4372
      %v4374 = vpop.f32.mrb[0].mxu0
      %4375 = vdwg.mxu0
      %v4376 = vadd.f32 %v4244, %v4368
      %v4377 = vadd.f32 %v4245, %v4373
      %s4378 = scalar_lea.vmem %s11, 112
      %v4379 = vld [vmem:[%s4378] sm:$0xff]
      %v4380 = vld [vmem:[%s4378 + $0x8] sm:$0xff]
      %v4382 = vsel %vm777, %v4379, 0
      %v4385 = vsel %vm777, %v4380, 0
      %4387 = vmatprep.subr.mxu0 0.0
      %4388 = vmatpush1.msra.mxu0 %v4258
      %4389 = vmatprep.subr.mxu0 0.0
      %4390 = vmatpush1.msra.mxu0 %v4259
      %4391 = vmatprep.subr.mxu0 0.0
      %4392 = vmatpush1.msra.mxu0 0.0
      %4393 = vmatprep.subr.mxu0 0.0
      %4394 = vmatpush1.msra.mxu0 0.0
      %4395 = vmatprep.subr.mxu0 0.0
      %4396 = vmatpush1.msra.mxu0 0.0
      %4397 = vmatprep.subr.mxu0 0.0
      %4398 = vmatpush1.msra.mxu0 0.0
      %4399 = vmatprep.subr.mxu0 0.0
      %4400 = vmatpush1.msra.mxu0 0.0
      %4401 = vmatprep.subr.mxu0 0.0
      %4402 = vmatpush1.msra.mxu0 0.0
      %4403 = vmatprep.subr.mxu0 0.0
      %4404 = vmatpush1.msra.mxu0 0.0
      %4405 = vmatprep.subr.mxu0 0.0
      %4406 = vmatpush1.msra.mxu0 0.0
      %4407 = vmatprep.subr.mxu0 0.0
      %4408 = vmatpush1.msra.mxu0 0.0
      %4409 = vmatprep.subr.mxu0 0.0
      %4410 = vmatpush1.msra.mxu0 0.0
      %4411 = vmatprep.subr.mxu0 0.0
      %4412 = vmatpush1.msra.mxu0 0.0
      %4413 = vmatprep.subr.mxu0 0.0
      %4414 = vmatpush1.msra.mxu0 0.0
      %4415 = vmatprep.subr.mxu0 0.0
      %4416 = vmatpush1.msra.mxu0 0.0
      %4417 = vmatprep.subr.mxu0 0.0
      %4418 = vmatpush1.msra.mxu0 0.0
      %4419 = vmatprep.subr.mxu0 0.0
      %4420 = vmatpush1.msra.mxu0 0.0
      %4421 = vmatprep.subr.mxu0 0.0
      %4422 = vmatpush1.msra.mxu0 0.0
      %4423 = vmatprep.subr.mxu0 0.0
      %4424 = vmatpush1.msra.mxu0 0.0
      %4425 = vmatprep.subr.mxu0 0.0
      %4426 = vmatpush1.msra.mxu0 0.0
      %4427 = vmatprep.subr.mxu0 0.0
      %4428 = vmatpush1.msra.mxu0 0.0
      %4429 = vmatprep.subr.mxu0 0.0
      %4430 = vmatpush1.msra.mxu0 0.0
      %4431 = vmatprep.subr.mxu0 0.0
      %4432 = vmatpush1.msra.mxu0 0.0
      %4433 = vmatprep.subr.mxu0 0.0
      %4434 = vmatpush1.msra.mxu0 0.0
      %4435 = vmatprep.subr.mxu0 0.0
      %4436 = vmatpush1.msra.mxu0 0.0
      %4437 = vmatprep.subr.mxu0 0.0
      %4438 = vmatpush1.msra.mxu0 0.0
      %4439 = vmatprep.subr.mxu0 0.0
      %4440 = vmatpush1.msra.mxu0 0.0
      %4441 = vmatprep.subr.mxu0 0.0
      %4442 = vmatpush1.msra.mxu0 0.0
      %4443 = vmatprep.subr.mxu0 0.0
      %4444 = vmatpush1.msra.mxu0 0.0
      %4445 = vmatprep.subr.mxu0 0.0
      %4446 = vmatpush1.msra.mxu0 0.0
      %4447 = vmatprep.subr.mxu0 0.0
      %4448 = vmatpush1.msra.mxu0 0.0
      %4449 = vmatprep.subr.mxu0 0.0
      %4450 = vmatpush1.msra.mxu0 0.0
      %4451 = vmatprep.mubr.f32.mxu0 0.0
      %4452 = vmatmul.mubr.f32.gmra.mrb[0].mxu0 %v4382
      %v4453 = vpop.f32.mrb[0].mxu0
      %v4454 = vadd.f32 0.0, %v4453
      %v4455 = vpop.f32.mrb[0].mxu0
      %4456 = vmatprep.mubr.f32.mxu0 0.0
      %4457 = vmatmul.mubr.f32.gmra.mrb[0].mxu0 %v4385
      %v4458 = vpop.f32.mrb[0].mxu0
      %v4459 = vadd.f32 0.0, %v4458
      %v4460 = vpop.f32.mrb[0].mxu0
      %4461 = vdwg.mxu0
      %v4462 = vadd.f32 %v4376, %v4454
      %v4463 = vadd.f32 %v4377, %v4459
      %4464 = vrot.lane.b32.xlu0 %v4258, 71
      %v4465 = vpop.permute.xlu0 %4464
      %4466 = vrot.lane.b32.xlu0 %v4259, 71
      %v4467 = vpop.permute.xlu0 %4466
      %4470 = vrot.lane.b32.xlu0 %v4258, 7
      %v4471 = vpop.permute.xlu0 %4470
      %4472 = vrot.lane.b32.xlu0 %v4259, 7
      %v4473 = vpop.permute.xlu0 %4472
      %v4476 = vsel %vm2894, %v4465, %v4471
      %v4477 = vsel %vm2894, %v4467, %v4473
      %4478 = vrot.lane.b32.xlu0 %v4258, 127
      %v4479 = vpop.permute.xlu0 %4478
      %4480 = vrot.lane.b32.xlu0 %v4259, 127
      %v4481 = vpop.permute.xlu0 %4480
      %4484 = vrot.lane.b32.xlu0 %v4258, 63
      %v4485 = vpop.permute.xlu0 %4484
      %4486 = vrot.lane.b32.xlu0 %v4259, 63
      %v4487 = vpop.permute.xlu0 %4486
      %v4490 = vsel %vm2902, %v4479, %v4485
      %v4491 = vsel %vm2902, %v4481, %v4487
      %v4492 = vsel %vm2908, %v4476, %v4490
      %v4493 = vsel %vm2908, %v4477, %v4491
      %s4494 = scalar_lea.vmem %s11, 128
      %v4495 = vld [vmem:[%s4494] sm:$0xff]
      %v4496 = vld [vmem:[%s4494 + $0x8] sm:$0xff]
      %v4498 = vsel %vm777, %v4495, 0
      %v4501 = vsel %vm777, %v4496, 0
      %4503 = vmatprep.subr.mxu0 0.0
      %4504 = vmatpush1.msra.mxu0 %v4492
      %4505 = vmatprep.subr.mxu0 0.0
      %4506 = vmatpush1.msra.mxu0 %v4493
      %4507 = vmatprep.subr.mxu0 0.0
      %4508 = vmatpush1.msra.mxu0 0.0
      %4509 = vmatprep.subr.mxu0 0.0
      %4510 = vmatpush1.msra.mxu0 0.0
      %4511 = vmatprep.subr.mxu0 0.0
      %4512 = vmatpush1.msra.mxu0 0.0
      %4513 = vmatprep.subr.mxu0 0.0
      %4514 = vmatpush1.msra.mxu0 0.0
      %4515 = vmatprep.subr.mxu0 0.0
      %4516 = vmatpush1.msra.mxu0 0.0
      %4517 = vmatprep.subr.mxu0 0.0
      %4518 = vmatpush1.msra.mxu0 0.0
      %4519 = vmatprep.subr.mxu0 0.0
      %4520 = vmatpush1.msra.mxu0 0.0
      %4521 = vmatprep.subr.mxu0 0.0
      %4522 = vmatpush1.msra.mxu0 0.0
      %4523 = vmatprep.subr.mxu0 0.0
      %4524 = vmatpush1.msra.mxu0 0.0
      %4525 = vmatprep.subr.mxu0 0.0
      %4526 = vmatpush1.msra.mxu0 0.0
      %4527 = vmatprep.subr.mxu0 0.0
      %4528 = vmatpush1.msra.mxu0 0.0
      %4529 = vmatprep.subr.mxu0 0.0
      %4530 = vmatpush1.msra.mxu0 0.0
      %4531 = vmatprep.subr.mxu0 0.0
      %4532 = vmatpush1.msra.mxu0 0.0
      %4533 = vmatprep.subr.mxu0 0.0
      %4534 = vmatpush1.msra.mxu0 0.0
      %4535 = vmatprep.subr.mxu0 0.0
      %4536 = vmatpush1.msra.mxu0 0.0
      %4537 = vmatprep.subr.mxu0 0.0
      %4538 = vmatpush1.msra.mxu0 0.0
      %4539 = vmatprep.subr.mxu0 0.0
      %4540 = vmatpush1.msra.mxu0 0.0
      %4541 = vmatprep.subr.mxu0 0.0
      %4542 = vmatpush1.msra.mxu0 0.0
      %4543 = vmatprep.subr.mxu0 0.0
      %4544 = vmatpush1.msra.mxu0 0.0
      %4545 = vmatprep.subr.mxu0 0.0
      %4546 = vmatpush1.msra.mxu0 0.0
      %4547 = vmatprep.subr.mxu0 0.0
      %4548 = vmatpush1.msra.mxu0 0.0
      %4549 = vmatprep.subr.mxu0 0.0
      %4550 = vmatpush1.msra.mxu0 0.0
      %4551 = vmatprep.subr.mxu0 0.0
      %4552 = vmatpush1.msra.mxu0 0.0
      %4553 = vmatprep.subr.mxu0 0.0
      %4554 = vmatpush1.msra.mxu0 0.0
      %4555 = vmatprep.subr.mxu0 0.0
      %4556 = vmatpush1.msra.mxu0 0.0
      %4557 = vmatprep.subr.mxu0 0.0
      %4558 = vmatpush1.msra.mxu0 0.0
      %4559 = vmatprep.subr.mxu0 0.0
      %4560 = vmatpush1.msra.mxu0 0.0
      %4561 = vmatprep.subr.mxu0 0.0
      %4562 = vmatpush1.msra.mxu0 0.0
      %4563 = vmatprep.subr.mxu0 0.0
      %4564 = vmatpush1.msra.mxu0 0.0
      %4565 = vmatprep.subr.mxu0 0.0
      %4566 = vmatpush1.msra.mxu0 0.0
      %4567 = vmatprep.mubr.f32.mxu0 0.0
      %4568 = vmatmul.mubr.f32.gmra.mrb[0].mxu0 %v4498
      %v4569 = vpop.f32.mrb[0].mxu0
      %v4570 = vadd.f32 0.0, %v4569
      %v4571 = vpop.f32.mrb[0].mxu0
      %4572 = vmatprep.mubr.f32.mxu0 0.0
      %4573 = vmatmul.mubr.f32.gmra.mrb[0].mxu0 %v4501
      %v4574 = vpop.f32.mrb[0].mxu0
      %v4575 = vadd.f32 0.0, %v4574
      %v4576 = vpop.f32.mrb[0].mxu0
      %4577 = vdwg.mxu0
      %v4578 = vadd.f32 %v4462, %v4570
      %v4579 = vadd.f32 %v4463, %v4575
      %v4580 = vld [vmem:[%s12] sm:$0xff]
      %v4581 = vld [vmem:[%s12 + $0x8] sm:$0xff]
      %4583 = vset.pattern.permute.xlu0 0
      %4584 = vperm.xlu0 %4583, %v4580
      %v4585 = vpop.permute.xlu0 %4584
      %4588 = vset.pattern.permute.xlu0 0
      %4589 = vperm.xlu0 %4588, %v4581
      %v4590 = vpop.permute.xlu0 %4589
      %v4592 = vadd.f32 %v4578, %v4585
      %v4593 = vadd.f32 %v4579, %v4590
      %v4594 = vmax.f32 %v4592, 0.0
      %v4595 = vmax.f32 %v4593, 0.0
      %v4596 = vld [vmem:[%s13] sm:$0xff]
      %v4598 = vsel %vm777, %v4596, 0
      %4600 = vmatprep.subr.mxu0 0.0
      %4601 = vmatpush1.msra.mxu0 %v4594
      %4602 = vmatprep.subr.mxu0 0.0
      %4603 = vmatpush1.msra.mxu0 %v4595
      %4604 = vmatprep.subr.mxu0 0.0
      %4605 = vmatpush1.msra.mxu0 0.0
      %4606 = vmatprep.subr.mxu0 0.0
      %4607 = vmatpush1.msra.mxu0 0.0
      %4608 = vmatprep.subr.mxu0 0.0
      %4609 = vmatpush1.msra.mxu0 0.0
      %4610 = vmatprep.subr.mxu0 0.0
      %4611 = vmatpush1.msra.mxu0 0.0
      %4612 = vmatprep.subr.mxu0 0.0
      %4613 = vmatpush1.msra.mxu0 0.0
      %4614 = vmatprep.subr.mxu0 0.0
      %4615 = vmatpush1.msra.mxu0 0.0
      %4616 = vmatprep.subr.mxu0 0.0
      %4617 = vmatpush1.msra.mxu0 0.0
      %4618 = vmatprep.subr.mxu0 0.0
      %4619 = vmatpush1.msra.mxu0 0.0
      %4620 = vmatprep.subr.mxu0 0.0
      %4621 = vmatpush1.msra.mxu0 0.0
      %4622 = vmatprep.subr.mxu0 0.0
      %4623 = vmatpush1.msra.mxu0 0.0
      %4624 = vmatprep.subr.mxu0 0.0
      %4625 = vmatpush1.msra.mxu0 0.0
      %4626 = vmatprep.subr.mxu0 0.0
      %4627 = vmatpush1.msra.mxu0 0.0
      %4628 = vmatprep.subr.mxu0 0.0
      %4629 = vmatpush1.msra.mxu0 0.0
      %4630 = vmatprep.subr.mxu0 0.0
      %4631 = vmatpush1.msra.mxu0 0.0
      %4632 = vmatprep.subr.mxu0 0.0
      %4633 = vmatpush1.msra.mxu0 0.0
      %4634 = vmatprep.subr.mxu0 0.0
      %4635 = vmatpush1.msra.mxu0 0.0
      %4636 = vmatprep.subr.mxu0 0.0
      %4637 = vmatpush1.msra.mxu0 0.0
      %4638 = vmatprep.subr.mxu0 0.0
      %4639 = vmatpush1.msra.mxu0 0.0
      %4640 = vmatprep.subr.mxu0 0.0
      %4641 = vmatpush1.msra.mxu0 0.0
      %4642 = vmatprep.subr.mxu0 0.0
      %4643 = vmatpush1.msra.mxu0 0.0
      %4644 = vmatprep.subr.mxu0 0.0
      %4645 = vmatpush1.msra.mxu0 0.0
      %4646 = vmatprep.subr.mxu0 0.0
      %4647 = vmatpush1.msra.mxu0 0.0
      %4648 = vmatprep.subr.mxu0 0.0
      %4649 = vmatpush1.msra.mxu0 0.0
      %4650 = vmatprep.subr.mxu0 0.0
      %4651 = vmatpush1.msra.mxu0 0.0
      %4652 = vmatprep.subr.mxu0 0.0
      %4653 = vmatpush1.msra.mxu0 0.0
      %4654 = vmatprep.subr.mxu0 0.0
      %4655 = vmatpush1.msra.mxu0 0.0
      %4656 = vmatprep.subr.mxu0 0.0
      %4657 = vmatpush1.msra.mxu0 0.0
      %4658 = vmatprep.subr.mxu0 0.0
      %4659 = vmatpush1.msra.mxu0 0.0
      %4660 = vmatprep.subr.mxu0 0.0
      %4661 = vmatpush1.msra.mxu0 0.0
      %4662 = vmatprep.subr.mxu0 0.0
      %4663 = vmatpush1.msra.mxu0 0.0
      %4664 = vmatprep.mubr.f32.mxu0 0.0
      %4665 = vmatmul.mubr.f32.gmra.mrb[0].mxu0 %v4598
      %v4666 = vpop.f32.mrb[0].mxu0
      %v4667 = vadd.f32 0.0, %v4666
      %v4668 = vpop.f32.mrb[0].mxu0
      %4669 = vdwg.mxu0
      %v4670 = vld [vmem:[%s15] sm:$0xff]
      %v4671 = vld [vmem:[%s15 + $0x8] sm:$0xff]
      %v4672 = vld [vmem:[%s15 + $0x10] sm:$0xff]
      %v4673 = vld [vmem:[%s15 + $0x18] sm:$0xff]
      %v4674 = vld [vmem:[%s15 + $0x20] sm:$0xff]
      %v4675 = vld [vmem:[%s15 + $0x28] sm:$0xff]
      %v4676 = vld [vmem:[%s15 + $0x30] sm:$0xff]
      %v4677 = vld [vmem:[%s15 + $0x38] sm:$0xff]
      %v4678 = vld [vmem:[%s15 + $0x40] sm:$0xff]
      %v4679 = vld [vmem:[%s15 + $0x48] sm:$0xff]
      %v4680 = vld [vmem:[%s15 + $0x50] sm:$0xff]
      %v4681 = vld [vmem:[%s15 + $0x58] sm:$0xff]
      %v4682 = vld [vmem:[%s15 + $0x60] sm:$0xff]
      %v4683 = vld [vmem:[%s15 + $0x68] sm:$0xff]
      %v4684 = vld [vmem:[%s15 + $0x70] sm:$0xff]
      %v4685 = vld [vmem:[%s15 + $0x78] sm:$0xff]
      %s4686 = scalar_lea.vmem %s13, 8
      %v4687 = vld [vmem:[%s4686] sm:$0xff]
      %v4689 = vsel %vm777, %v4687, 0
      %4691 = vmatprep.subr.mxu0 0.0
      %4692 = vmatpush1.msra.mxu0 %v4594
      %4693 = vmatprep.subr.mxu0 0.0
      %4694 = vmatpush1.msra.mxu0 %v4595
      %4695 = vmatprep.subr.mxu0 0.0
      %4696 = vmatpush1.msra.mxu0 0.0
      %4697 = vmatprep.subr.mxu0 0.0
      %4698 = vmatpush1.msra.mxu0 0.0
      %4699 = vmatprep.subr.mxu0 0.0
      %4700 = vmatpush1.msra.mxu0 0.0
      %4701 = vmatprep.subr.mxu0 0.0
      %4702 = vmatpush1.msra.mxu0 0.0
      %4703 = vmatprep.subr.mxu0 0.0
      %4704 = vmatpush1.msra.mxu0 0.0
      %4705 = vmatprep.subr.mxu0 0.0
      %4706 = vmatpush1.msra.mxu0 0.0
      %4707 = vmatprep.subr.mxu0 0.0
      %4708 = vmatpush1.msra.mxu0 0.0
      %4709 = vmatprep.subr.mxu0 0.0
      %4710 = vmatpush1.msra.mxu0 0.0
      %4711 = vmatprep.subr.mxu0 0.0
      %4712 = vmatpush1.msra.mxu0 0.0
      %4713 = vmatprep.subr.mxu0 0.0
      %4714 = vmatpush1.msra.mxu0 0.0
      %4715 = vmatprep.subr.mxu0 0.0
      %4716 = vmatpush1.msra.mxu0 0.0
      %4717 = vmatprep.subr.mxu0 0.0
      %4718 = vmatpush1.msra.mxu0 0.0
      %4719 = vmatprep.subr.mxu0 0.0
      %4720 = vmatpush1.msra.mxu0 0.0
      %4721 = vmatprep.subr.mxu0 0.0
      %4722 = vmatpush1.msra.mxu0 0.0
      %4723 = vmatprep.subr.mxu0 0.0
      %4724 = vmatpush1.msra.mxu0 0.0
      %4725 = vmatprep.subr.mxu0 0.0
      %4726 = vmatpush1.msra.mxu0 0.0
      %4727 = vmatprep.subr.mxu0 0.0
      %4728 = vmatpush1.msra.mxu0 0.0
      %4729 = vmatprep.subr.mxu0 0.0
      %4730 = vmatpush1.msra.mxu0 0.0
      %4731 = vmatprep.subr.mxu0 0.0
      %4732 = vmatpush1.msra.mxu0 0.0
      %4733 = vmatprep.subr.mxu0 0.0
      %4734 = vmatpush1.msra.mxu0 0.0
      %4735 = vmatprep.subr.mxu0 0.0
      %4736 = vmatpush1.msra.mxu0 0.0
      %4737 = vmatprep.subr.mxu0 0.0
      %4738 = vmatpush1.msra.mxu0 0.0
      %4739 = vmatprep.subr.mxu0 0.0
      %4740 = vmatpush1.msra.mxu0 0.0
      %4741 = vmatprep.subr.mxu0 0.0
      %4742 = vmatpush1.msra.mxu0 0.0
      %4743 = vmatprep.subr.mxu0 0.0
      %4744 = vmatpush1.msra.mxu0 0.0
      %4745 = vmatprep.subr.mxu0 0.0
      %4746 = vmatpush1.msra.mxu0 0.0
      %4747 = vmatprep.subr.mxu0 0.0
      %4748 = vmatpush1.msra.mxu0 0.0
      %4749 = vmatprep.subr.mxu0 0.0
      %4750 = vmatpush1.msra.mxu0 0.0
      %4751 = vmatprep.subr.mxu0 0.0
      %4752 = vmatpush1.msra.mxu0 0.0
      %4753 = vmatprep.subr.mxu0 0.0
      %4754 = vmatpush1.msra.mxu0 0.0
      %4755 = vmatprep.mubr.f32.mxu0 0.0
      %4756 = vmatmul.mubr.f32.gmra.mrb[0].mxu0 %v4689
      %v4757 = vpop.f32.mrb[0].mxu0
      %v4758 = vadd.f32 0.0, %v4757
      %v4759 = vpop.f32.mrb[0].mxu0
      %4760 = vdwg.mxu0
      %s4761 = scalar_lea.vmem %s15, 128
      %v4762 = vld [vmem:[%s4761] sm:$0xff]
      %v4763 = vld [vmem:[%s4761 + $0x8] sm:$0xff]
      %v4764 = vld [vmem:[%s4761 + $0x10] sm:$0xff]
      %v4765 = vld [vmem:[%s4761 + $0x18] sm:$0xff]
      %v4766 = vld [vmem:[%s4761 + $0x20] sm:$0xff]
      %v4767 = vld [vmem:[%s4761 + $0x28] sm:$0xff]
      %v4768 = vld [vmem:[%s4761 + $0x30] sm:$0xff]
      %v4769 = vld [vmem:[%s4761 + $0x38] sm:$0xff]
      %v4770 = vld [vmem:[%s4761 + $0x40] sm:$0xff]
      %v4771 = vld [vmem:[%s4761 + $0x48] sm:$0xff]
      %v4772 = vld [vmem:[%s4761 + $0x50] sm:$0xff]
      %v4773 = vld [vmem:[%s4761 + $0x58] sm:$0xff]
      %v4774 = vld [vmem:[%s4761 + $0x60] sm:$0xff]
      %v4775 = vld [vmem:[%s4761 + $0x68] sm:$0xff]
      %v4776 = vld [vmem:[%s4761 + $0x70] sm:$0xff]
      %v4777 = vld [vmem:[%s4761 + $0x78] sm:$0xff]
      %vm4778 = vcmask 523264
      %v4780 = vsel %vm4778, %v4758, 0
      %4782 = vmatprep.subr.mxu0 %v4763
      %4783 = vmatpush1.msra.mxu0 %v4762
      %4784 = vmatprep.subr.mxu0 %v4765
      %4785 = vmatpush1.msra.mxu0 %v4764
      %4786 = vmatprep.subr.mxu0 %v4767
      %4787 = vmatpush1.msra.mxu0 %v4766
      %4788 = vmatprep.subr.mxu0 %v4769
      %4789 = vmatpush1.msra.mxu0 %v4768
      %4790 = vmatprep.subr.mxu0 %v4771
      %4791 = vmatpush1.msra.mxu0 %v4770
      %4792 = vmatprep.subr.mxu0 %v4773
      %4793 = vmatpush1.msra.mxu0 %v4772
      %4794 = vmatprep.subr.mxu0 %v4775
      %4795 = vmatpush1.msra.mxu0 %v4774
      %4796 = vmatprep.subr.mxu0 %v4777
      %4797 = vmatpush1.msra.mxu0 %v4776
      %4798 = vmatprep.subr.mxu0 0.0
      %4799 = vmatpush1.msra.mxu0 0.0
      %4800 = vmatprep.subr.mxu0 0.0
      %4801 = vmatpush1.msra.mxu0 0.0
      %4802 = vmatprep.subr.mxu0 0.0
      %4803 = vmatpush1.msra.mxu0 0.0
      %4804 = vmatprep.subr.mxu0 0.0
      %4805 = vmatpush1.msra.mxu0 0.0
      %4806 = vmatprep.subr.mxu0 0.0
      %4807 = vmatpush1.msra.mxu0 0.0
      %4808 = vmatprep.subr.mxu0 0.0
      %4809 = vmatpush1.msra.mxu0 0.0
      %4810 = vmatprep.subr.mxu0 0.0
      %4811 = vmatpush1.msra.mxu0 0.0
      %4812 = vmatprep.subr.mxu0 0.0
      %4813 = vmatpush1.msra.mxu0 0.0
      %4814 = vmatprep.subr.mxu0 0.0
      %4815 = vmatpush1.msra.mxu0 0.0
      %4816 = vmatprep.subr.mxu0 0.0
      %4817 = vmatpush1.msra.mxu0 0.0
      %4818 = vmatprep.subr.mxu0 0.0
      %4819 = vmatpush1.msra.mxu0 0.0
      %4820 = vmatprep.subr.mxu0 0.0
      %4821 = vmatpush1.msra.mxu0 0.0
      %4822 = vmatprep.subr.mxu0 0.0
      %4823 = vmatpush1.msra.mxu0 0.0
      %4824 = vmatprep.subr.mxu0 0.0
      %4825 = vmatpush1.msra.mxu0 0.0
      %4826 = vmatprep.subr.mxu0 0.0
      %4827 = vmatpush1.msra.mxu0 0.0
      %4828 = vmatprep.subr.mxu0 0.0
      %4829 = vmatpush1.msra.mxu0 0.0
      %4830 = vmatprep.subr.mxu0 0.0
      %4831 = vmatpush1.msra.mxu0 0.0
      %4832 = vmatprep.subr.mxu0 0.0
      %4833 = vmatpush1.msra.mxu0 0.0
      %4834 = vmatprep.subr.mxu0 0.0
      %4835 = vmatpush1.msra.mxu0 0.0
      %4836 = vmatprep.subr.mxu0 0.0
      %4837 = vmatpush1.msra.mxu0 0.0
      %4838 = vmatprep.subr.mxu0 0.0
      %4839 = vmatpush1.msra.mxu0 0.0
      %4840 = vmatprep.subr.mxu0 0.0
      %4841 = vmatpush1.msra.mxu0 0.0
      %4842 = vmatprep.subr.mxu0 0.0
      %4843 = vmatpush1.msra.mxu0 0.0
      %4844 = vmatprep.subr.mxu0 0.0
      %4845 = vmatpush1.msra.mxu0 0.0
      %4846 = vmatprep.mubr.f32.mxu0 0.0
      %4847 = vmatmul.mubr.f32.gmra.mrb[0].mxu0 %v4780
      %v4848 = vpop.f32.mrb[0].mxu0
      %v4849 = vadd.f32 0.0, %v4848
      %v4850 = vpop.f32.mrb[0].mxu0
      %v4851 = vadd.f32 0.0, %v4850
      %4852 = vdwg.mxu0
      %v4854 = vsel %vm4778, %v4667, 0
      %4856 = vmatprep.subr.mxu0 %v4671
      %4857 = vmatpush1.msra.mxu0 %v4670
      %4858 = vmatprep.subr.mxu0 %v4673
      %4859 = vmatpush1.msra.mxu0 %v4672
      %4860 = vmatprep.subr.mxu0 %v4675
      %4861 = vmatpush1.msra.mxu0 %v4674
      %4862 = vmatprep.subr.mxu0 %v4677
      %4863 = vmatpush1.msra.mxu0 %v4676
      %4864 = vmatprep.subr.mxu0 %v4679
      %4865 = vmatpush1.msra.mxu0 %v4678
      %4866 = vmatprep.subr.mxu0 %v4681
      %4867 = vmatpush1.msra.mxu0 %v4680
      %4868 = vmatprep.subr.mxu0 %v4683
      %4869 = vmatpush1.msra.mxu0 %v4682
      %4870 = vmatprep.subr.mxu0 %v4685
      %4871 = vmatpush1.msra.mxu0 %v4684
      %4872 = vmatprep.subr.mxu0 0.0
      %4873 = vmatpush1.msra.mxu0 0.0
      %4874 = vmatprep.subr.mxu0 0.0
      %4875 = vmatpush1.msra.mxu0 0.0
      %4876 = vmatprep.subr.mxu0 0.0
      %4877 = vmatpush1.msra.mxu0 0.0
      %4878 = vmatprep.subr.mxu0 0.0
      %4879 = vmatpush1.msra.mxu0 0.0
      %4880 = vmatprep.subr.mxu0 0.0
      %4881 = vmatpush1.msra.mxu0 0.0
      %4882 = vmatprep.subr.mxu0 0.0
      %4883 = vmatpush1.msra.mxu0 0.0
      %4884 = vmatprep.subr.mxu0 0.0
      %4885 = vmatpush1.msra.mxu0 0.0
      %4886 = vmatprep.subr.mxu0 0.0
      %4887 = vmatpush1.msra.mxu0 0.0
      %4888 = vmatprep.subr.mxu0 0.0
      %4889 = vmatpush1.msra.mxu0 0.0
      %4890 = vmatprep.subr.mxu0 0.0
      %4891 = vmatpush1.msra.mxu0 0.0
      %4892 = vmatprep.subr.mxu0 0.0
      %4893 = vmatpush1.msra.mxu0 0.0
      %4894 = vmatprep.subr.mxu0 0.0
      %4895 = vmatpush1.msra.mxu0 0.0
      %4896 = vmatprep.subr.mxu0 0.0
      %4897 = vmatpush1.msra.mxu0 0.0
      %4898 = vmatprep.subr.mxu0 0.0
      %4899 = vmatpush1.msra.mxu0 0.0
      %4900 = vmatprep.subr.mxu0 0.0
      %4901 = vmatpush1.msra.mxu0 0.0
      %4902 = vmatprep.subr.mxu0 0.0
      %4903 = vmatpush1.msra.mxu0 0.0
      %4904 = vmatprep.subr.mxu0 0.0
      %4905 = vmatpush1.msra.mxu0 0.0
      %4906 = vmatprep.subr.mxu0 0.0
      %4907 = vmatpush1.msra.mxu0 0.0
      %4908 = vmatprep.subr.mxu0 0.0
      %4909 = vmatpush1.msra.mxu0 0.0
      %4910 = vmatprep.subr.mxu0 0.0
      %4911 = vmatpush1.msra.mxu0 0.0
      %4912 = vmatprep.subr.mxu0 0.0
      %4913 = vmatpush1.msra.mxu0 0.0
      %4914 = vmatprep.subr.mxu0 0.0
      %4915 = vmatpush1.msra.mxu0 0.0
      %4916 = vmatprep.subr.mxu0 0.0
      %4917 = vmatpush1.msra.mxu0 0.0
      %4918 = vmatprep.subr.mxu0 0.0
      %4919 = vmatpush1.msra.mxu0 0.0
      %4920 = vmatprep.mubr.f32.mxu0 0.0
      %4921 = vmatmul.mubr.f32.gmra.mrb[0].mxu0 %v4854
      %v4922 = vpop.f32.mrb[0].mxu0
      %v4923 = vadd.f32 %v4849, %v4922
      %v4924 = vpop.f32.mrb[0].mxu0
      %v4925 = vadd.f32 %v4851, %v4924
      %4926 = vdwg.mxu0
      %s4927 = scalar_lea.vmem %s13, 16
      %v4928 = vld [vmem:[%s4927] sm:$0xff]
      %v4930 = vsel %vm777, %v4928, 0
      %4932 = vmatprep.subr.mxu0 0.0
      %4933 = vmatpush1.msra.mxu0 %v4594
      %4934 = vmatprep.subr.mxu0 0.0
      %4935 = vmatpush1.msra.mxu0 %v4595
      %4936 = vmatprep.subr.mxu0 0.0
      %4937 = vmatpush1.msra.mxu0 0.0
      %4938 = vmatprep.subr.mxu0 0.0
      %4939 = vmatpush1.msra.mxu0 0.0
      %4940 = vmatprep.subr.mxu0 0.0
      %4941 = vmatpush1.msra.mxu0 0.0
      %4942 = vmatprep.subr.mxu0 0.0
      %4943 = vmatpush1.msra.mxu0 0.0
      %4944 = vmatprep.subr.mxu0 0.0
      %4945 = vmatpush1.msra.mxu0 0.0
      %4946 = vmatprep.subr.mxu0 0.0
      %4947 = vmatpush1.msra.mxu0 0.0
      %4948 = vmatprep.subr.mxu0 0.0
      %4949 = vmatpush1.msra.mxu0 0.0
      %4950 = vmatprep.subr.mxu0 0.0
      %4951 = vmatpush1.msra.mxu0 0.0
      %4952 = vmatprep.subr.mxu0 0.0
      %4953 = vmatpush1.msra.mxu0 0.0
      %4954 = vmatprep.subr.mxu0 0.0
      %4955 = vmatpush1.msra.mxu0 0.0
      %4956 = vmatprep.subr.mxu0 0.0
      %4957 = vmatpush1.msra.mxu0 0.0
      %4958 = vmatprep.subr.mxu0 0.0
      %4959 = vmatpush1.msra.mxu0 0.0
      %4960 = vmatprep.subr.mxu0 0.0
      %4961 = vmatpush1.msra.mxu0 0.0
      %4962 = vmatprep.subr.mxu0 0.0
      %4963 = vmatpush1.msra.mxu0 0.0
      %4964 = vmatprep.subr.mxu0 0.0
      %4965 = vmatpush1.msra.mxu0 0.0
      %4966 = vmatprep.subr.mxu0 0.0
      %4967 = vmatpush1.msra.mxu0 0.0
      %4968 = vmatprep.subr.mxu0 0.0
      %4969 = vmatpush1.msra.mxu0 0.0
      %4970 = vmatprep.subr.mxu0 0.0
      %4971 = vmatpush1.msra.mxu0 0.0
      %4972 = vmatprep.subr.mxu0 0.0
      %4973 = vmatpush1.msra.mxu0 0.0
      %4974 = vmatprep.subr.mxu0 0.0
      %4975 = vmatpush1.msra.mxu0 0.0
      %4976 = vmatprep.subr.mxu0 0.0
      %4977 = vmatpush1.msra.mxu0 0.0
      %4978 = vmatprep.subr.mxu0 0.0
      %4979 = vmatpush1.msra.mxu0 0.0
      %4980 = vmatprep.subr.mxu0 0.0
      %4981 = vmatpush1.msra.mxu0 0.0
      %4982 = vmatprep.subr.mxu0 0.0
      %4983 = vmatpush1.msra.mxu0 0.0
      %4984 = vmatprep.subr.mxu0 0.0
      %4985 = vmatpush1.msra.mxu0 0.0
      %4986 = vmatprep.subr.mxu0 0.0
      %4987 = vmatpush1.msra.mxu0 0.0
      %4988 = vmatprep.subr.mxu0 0.0
      %4989 = vmatpush1.msra.mxu0 0.0
      %4990 = vmatprep.subr.mxu0 0.0
      %4991 = vmatpush1.msra.mxu0 0.0
      %4992 = vmatprep.subr.mxu0 0.0
      %4993 = vmatpush1.msra.mxu0 0.0
      %4994 = vmatprep.subr.mxu0 0.0
      %4995 = vmatpush1.msra.mxu0 0.0
      %4996 = vmatprep.mubr.f32.mxu0 0.0
      %4997 = vmatmul.mubr.f32.gmra.mrb[0].mxu0 %v4930
      %v4998 = vpop.f32.mrb[0].mxu0
      %v4999 = vadd.f32 0.0, %v4998
      %v5000 = vpop.f32.mrb[0].mxu0
      %5001 = vdwg.mxu0
      %s5002 = scalar_lea.vmem %s15, 256
      %v5003 = vld [vmem:[%s5002] sm:$0xff]
      %v5004 = vld [vmem:[%s5002 + $0x8] sm:$0xff]
      %v5005 = vld [vmem:[%s5002 + $0x10] sm:$0xff]
      %v5006 = vld [vmem:[%s5002 + $0x18] sm:$0xff]
      %v5007 = vld [vmem:[%s5002 + $0x20] sm:$0xff]
      %v5008 = vld [vmem:[%s5002 + $0x28] sm:$0xff]
      %v5009 = vld [vmem:[%s5002 + $0x30] sm:$0xff]
      %v5010 = vld [vmem:[%s5002 + $0x38] sm:$0xff]
      %v5011 = vld [vmem:[%s5002 + $0x40] sm:$0xff]
      %v5012 = vld [vmem:[%s5002 + $0x48] sm:$0xff]
      %v5013 = vld [vmem:[%s5002 + $0x50] sm:$0xff]
      %v5014 = vld [vmem:[%s5002 + $0x58] sm:$0xff]
      %v5015 = vld [vmem:[%s5002 + $0x60] sm:$0xff]
      %v5016 = vld [vmem:[%s5002 + $0x68] sm:$0xff]
      %v5017 = vld [vmem:[%s5002 + $0x70] sm:$0xff]
      %v5018 = vld [vmem:[%s5002 + $0x78] sm:$0xff]
      %v5020 = vsel %vm4778, %v4999, 0
      %5022 = vmatprep.subr.mxu0 %v5004
      %5023 = vmatpush1.msra.mxu0 %v5003
      %5024 = vmatprep.subr.mxu0 %v5006
      %5025 = vmatpush1.msra.mxu0 %v5005
      %5026 = vmatprep.subr.mxu0 %v5008
      %5027 = vmatpush1.msra.mxu0 %v5007
      %5028 = vmatprep.subr.mxu0 %v5010
      %5029 = vmatpush1.msra.mxu0 %v5009
      %5030 = vmatprep.subr.mxu0 %v5012
      %5031 = vmatpush1.msra.mxu0 %v5011
      %5032 = vmatprep.subr.mxu0 %v5014
      %5033 = vmatpush1.msra.mxu0 %v5013
      %5034 = vmatprep.subr.mxu0 %v5016
      %5035 = vmatpush1.msra.mxu0 %v5015
      %5036 = vmatprep.subr.mxu0 %v5018
      %5037 = vmatpush1.msra.mxu0 %v5017
      %5038 = vmatprep.subr.mxu0 0.0
      %5039 = vmatpush1.msra.mxu0 0.0
      %5040 = vmatprep.subr.mxu0 0.0
      %5041 = vmatpush1.msra.mxu0 0.0
      %5042 = vmatprep.subr.mxu0 0.0
      %5043 = vmatpush1.msra.mxu0 0.0
      %5044 = vmatprep.subr.mxu0 0.0
      %5045 = vmatpush1.msra.mxu0 0.0
      %5046 = vmatprep.subr.mxu0 0.0
      %5047 = vmatpush1.msra.mxu0 0.0
      %5048 = vmatprep.subr.mxu0 0.0
      %5049 = vmatpush1.msra.mxu0 0.0
      %5050 = vmatprep.subr.mxu0 0.0
      %5051 = vmatpush1.msra.mxu0 0.0
      %5052 = vmatprep.subr.mxu0 0.0
      %5053 = vmatpush1.msra.mxu0 0.0
      %5054 = vmatprep.subr.mxu0 0.0
      %5055 = vmatpush1.msra.mxu0 0.0
      %5056 = vmatprep.subr.mxu0 0.0
      %5057 = vmatpush1.msra.mxu0 0.0
      %5058 = vmatprep.subr.mxu0 0.0
      %5059 = vmatpush1.msra.mxu0 0.0
      %5060 = vmatprep.subr.mxu0 0.0
      %5061 = vmatpush1.msra.mxu0 0.0
      %5062 = vmatprep.subr.mxu0 0.0
      %5063 = vmatpush1.msra.mxu0 0.0
      %5064 = vmatprep.subr.mxu0 0.0
      %5065 = vmatpush1.msra.mxu0 0.0
      %5066 = vmatprep.subr.mxu0 0.0
      %5067 = vmatpush1.msra.mxu0 0.0
      %5068 = vmatprep.subr.mxu0 0.0
      %5069 = vmatpush1.msra.mxu0 0.0
      %5070 = vmatprep.subr.mxu0 0.0
      %5071 = vmatpush1.msra.mxu0 0.0
      %5072 = vmatprep.subr.mxu0 0.0
      %5073 = vmatpush1.msra.mxu0 0.0
      %5074 = vmatprep.subr.mxu0 0.0
      %5075 = vmatpush1.msra.mxu0 0.0
      %5076 = vmatprep.subr.mxu0 0.0
      %5077 = vmatpush1.msra.mxu0 0.0
      %5078 = vmatprep.subr.mxu0 0.0
      %5079 = vmatpush1.msra.mxu0 0.0
      %5080 = vmatprep.subr.mxu0 0.0
      %5081 = vmatpush1.msra.mxu0 0.0
      %5082 = vmatprep.subr.mxu0 0.0
      %5083 = vmatpush1.msra.mxu0 0.0
      %5084 = vmatprep.subr.mxu0 0.0
      %5085 = vmatpush1.msra.mxu0 0.0
      %5086 = vmatprep.mubr.f32.mxu0 0.0
      %5087 = vmatmul.mubr.f32.gmra.mrb[0].mxu0 %v5020
      %v5088 = vpop.f32.mrb[0].mxu0
      %v5089 = vadd.f32 0.0, %v5088
      %v5090 = vpop.f32.mrb[0].mxu0
      %v5091 = vadd.f32 0.0, %v5090
      %5092 = vdwg.mxu0
      %v5093 = vadd.f32 %v4923, %v5089
      %v5094 = vadd.f32 %v4925, %v5091
      %s5095 = scalar_lea.vmem %s13, 24
      %v5096 = vld [vmem:[%s5095] sm:$0xff]
      %v5098 = vsel %vm777, %v5096, 0
      %5100 = vmatprep.subr.mxu0 0.0
      %5101 = vmatpush1.msra.mxu0 %v4594
      %5102 = vmatprep.subr.mxu0 0.0
      %5103 = vmatpush1.msra.mxu0 %v4595
      %5104 = vmatprep.subr.mxu0 0.0
      %5105 = vmatpush1.msra.mxu0 0.0
      %5106 = vmatprep.subr.mxu0 0.0
      %5107 = vmatpush1.msra.mxu0 0.0
      %5108 = vmatprep.subr.mxu0 0.0
      %5109 = vmatpush1.msra.mxu0 0.0
      %5110 = vmatprep.subr.mxu0 0.0
      %5111 = vmatpush1.msra.mxu0 0.0
      %5112 = vmatprep.subr.mxu0 0.0
      %5113 = vmatpush1.msra.mxu0 0.0
      %5114 = vmatprep.subr.mxu0 0.0
      %5115 = vmatpush1.msra.mxu0 0.0
      %5116 = vmatprep.subr.mxu0 0.0
      %5117 = vmatpush1.msra.mxu0 0.0
      %5118 = vmatprep.subr.mxu0 0.0
      %5119 = vmatpush1.msra.mxu0 0.0
      %5120 = vmatprep.subr.mxu0 0.0
      %5121 = vmatpush1.msra.mxu0 0.0
      %5122 = vmatprep.subr.mxu0 0.0
      %5123 = vmatpush1.msra.mxu0 0.0
      %5124 = vmatprep.subr.mxu0 0.0
      %5125 = vmatpush1.msra.mxu0 0.0
      %5126 = vmatprep.subr.mxu0 0.0
      %5127 = vmatpush1.msra.mxu0 0.0
      %5128 = vmatprep.subr.mxu0 0.0
      %5129 = vmatpush1.msra.mxu0 0.0
      %5130 = vmatprep.subr.mxu0 0.0
      %5131 = vmatpush1.msra.mxu0 0.0
      %5132 = vmatprep.subr.mxu0 0.0
      %5133 = vmatpush1.msra.mxu0 0.0
      %5134 = vmatprep.subr.mxu0 0.0
      %5135 = vmatpush1.msra.mxu0 0.0
      %5136 = vmatprep.subr.mxu0 0.0
      %5137 = vmatpush1.msra.mxu0 0.0
      %5138 = vmatprep.subr.mxu0 0.0
      %5139 = vmatpush1.msra.mxu0 0.0
      %5140 = vmatprep.subr.mxu0 0.0
      %5141 = vmatpush1.msra.mxu0 0.0
      %5142 = vmatprep.subr.mxu0 0.0
      %5143 = vmatpush1.msra.mxu0 0.0
      %5144 = vmatprep.subr.mxu0 0.0
      %5145 = vmatpush1.msra.mxu0 0.0
      %5146 = vmatprep.subr.mxu0 0.0
      %5147 = vmatpush1.msra.mxu0 0.0
      %5148 = vmatprep.subr.mxu0 0.0
      %5149 = vmatpush1.msra.mxu0 0.0
      %5150 = vmatprep.subr.mxu0 0.0
      %5151 = vmatpush1.msra.mxu0 0.0
      %5152 = vmatprep.subr.mxu0 0.0
      %5153 = vmatpush1.msra.mxu0 0.0
      %5154 = vmatprep.subr.mxu0 0.0
      %5155 = vmatpush1.msra.mxu0 0.0
      %5156 = vmatprep.subr.mxu0 0.0
      %5157 = vmatpush1.msra.mxu0 0.0
      %5158 = vmatprep.subr.mxu0 0.0
      %5159 = vmatpush1.msra.mxu0 0.0
      %5160 = vmatprep.subr.mxu0 0.0
      %5161 = vmatpush1.msra.mxu0 0.0
      %5162 = vmatprep.subr.mxu0 0.0
      %5163 = vmatpush1.msra.mxu0 0.0
      %5164 = vmatprep.mubr.f32.mxu0 0.0
      %5165 = vmatmul.mubr.f32.gmra.mrb[0].mxu0 %v5098
      %v5166 = vpop.f32.mrb[0].mxu0
      %v5167 = vadd.f32 0.0, %v5166
      %v5168 = vpop.f32.mrb[0].mxu0
      %5169 = vdwg.mxu0
      %s5170 = scalar_lea.vmem %s15, 384
      %v5171 = vld [vmem:[%s5170] sm:$0xff]
      %v5172 = vld [vmem:[%s5170 + $0x8] sm:$0xff]
      %v5173 = vld [vmem:[%s5170 + $0x10] sm:$0xff]
      %v5174 = vld [vmem:[%s5170 + $0x18] sm:$0xff]
      %v5175 = vld [vmem:[%s5170 + $0x20] sm:$0xff]
      %v5176 = vld [vmem:[%s5170 + $0x28] sm:$0xff]
      %v5177 = vld [vmem:[%s5170 + $0x30] sm:$0xff]
      %v5178 = vld [vmem:[%s5170 + $0x38] sm:$0xff]
      %v5179 = vld [vmem:[%s5170 + $0x40] sm:$0xff]
      %v5180 = vld [vmem:[%s5170 + $0x48] sm:$0xff]
      %v5181 = vld [vmem:[%s5170 + $0x50] sm:$0xff]
      %v5182 = vld [vmem:[%s5170 + $0x58] sm:$0xff]
      %v5183 = vld [vmem:[%s5170 + $0x60] sm:$0xff]
      %v5184 = vld [vmem:[%s5170 + $0x68] sm:$0xff]
      %v5185 = vld [vmem:[%s5170 + $0x70] sm:$0xff]
      %v5186 = vld [vmem:[%s5170 + $0x78] sm:$0xff]
      %v5188 = vsel %vm4778, %v5167, 0
      %5190 = vmatprep.subr.mxu0 %v5172
      %5191 = vmatpush1.msra.mxu0 %v5171
      %5192 = vmatprep.subr.mxu0 %v5174
      %5193 = vmatpush1.msra.mxu0 %v5173
      %5194 = vmatprep.subr.mxu0 %v5176
      %5195 = vmatpush1.msra.mxu0 %v5175
      %5196 = vmatprep.subr.mxu0 %v5178
      %5197 = vmatpush1.msra.mxu0 %v5177
      %5198 = vmatprep.subr.mxu0 %v5180
      %5199 = vmatpush1.msra.mxu0 %v5179
      %5200 = vmatprep.subr.mxu0 %v5182
      %5201 = vmatpush1.msra.mxu0 %v5181
      %5202 = vmatprep.subr.mxu0 %v5184
      %5203 = vmatpush1.msra.mxu0 %v5183
      %5204 = vmatprep.subr.mxu0 %v5186
      %5205 = vmatpush1.msra.mxu0 %v5185
      %5206 = vmatprep.subr.mxu0 0.0
      %5207 = vmatpush1.msra.mxu0 0.0
      %5208 = vmatprep.subr.mxu0 0.0
      %5209 = vmatpush1.msra.mxu0 0.0
      %5210 = vmatprep.subr.mxu0 0.0
      %5211 = vmatpush1.msra.mxu0 0.0
      %5212 = vmatprep.subr.mxu0 0.0
      %5213 = vmatpush1.msra.mxu0 0.0
      %5214 = vmatprep.subr.mxu0 0.0
      %5215 = vmatpush1.msra.mxu0 0.0
      %5216 = vmatprep.subr.mxu0 0.0
      %5217 = vmatpush1.msra.mxu0 0.0
      %5218 = vmatprep.subr.mxu0 0.0
      %5219 = vmatpush1.msra.mxu0 0.0
      %5220 = vmatprep.subr.mxu0 0.0
      %5221 = vmatpush1.msra.mxu0 0.0
      %5222 = vmatprep.subr.mxu0 0.0
      %5223 = vmatpush1.msra.mxu0 0.0
      %5224 = vmatprep.subr.mxu0 0.0
      %5225 = vmatpush1.msra.mxu0 0.0
      %5226 = vmatprep.subr.mxu0 0.0
      %5227 = vmatpush1.msra.mxu0 0.0
      %5228 = vmatprep.subr.mxu0 0.0
      %5229 = vmatpush1.msra.mxu0 0.0
      %5230 = vmatprep.subr.mxu0 0.0
      %5231 = vmatpush1.msra.mxu0 0.0
      %5232 = vmatprep.subr.mxu0 0.0
      %5233 = vmatpush1.msra.mxu0 0.0
      %5234 = vmatprep.subr.mxu0 0.0
      %5235 = vmatpush1.msra.mxu0 0.0
      %5236 = vmatprep.subr.mxu0 0.0
      %5237 = vmatpush1.msra.mxu0 0.0
      %5238 = vmatprep.subr.mxu0 0.0
      %5239 = vmatpush1.msra.mxu0 0.0
      %5240 = vmatprep.subr.mxu0 0.0
      %5241 = vmatpush1.msra.mxu0 0.0
      %5242 = vmatprep.subr.mxu0 0.0
      %5243 = vmatpush1.msra.mxu0 0.0
      %5244 = vmatprep.subr.mxu0 0.0
      %5245 = vmatpush1.msra.mxu0 0.0
      %5246 = vmatprep.subr.mxu0 0.0
      %5247 = vmatpush1.msra.mxu0 0.0
      %5248 = vmatprep.subr.mxu0 0.0
      %5249 = vmatpush1.msra.mxu0 0.0
      %5250 = vmatprep.subr.mxu0 0.0
      %5251 = vmatpush1.msra.mxu0 0.0
      %5252 = vmatprep.subr.mxu0 0.0
      %5253 = vmatpush1.msra.mxu0 0.0
      %5254 = vmatprep.mubr.f32.mxu0 0.0
      %5255 = vmatmul.mubr.f32.gmra.mrb[0].mxu0 %v5188
      %v5256 = vpop.f32.mrb[0].mxu0
      %v5257 = vadd.f32 0.0, %v5256
      %v5258 = vpop.f32.mrb[0].mxu0
      %v5259 = vadd.f32 0.0, %v5258
      %5260 = vdwg.mxu0
      %v5261 = vadd.f32 %v5093, %v5257
      %v5262 = vadd.f32 %v5094, %v5259
      %v5263 = vld [vmem:[%s14] sm:$0xff]
      %5265 = vset.pattern.permute.xlu0 0
      %5266 = vperm.xlu0 %5265, %v5263
      %v5267 = vpop.permute.xlu0 %5266
      %v5269 = vadd.f32 %v5261, %v5267
      %v5270 = vadd.f32 %v5262, %v5267
      %5272 = vrot.lane.b32.xlu0 %v2559, 16
      %v5273 = vpop.permute.xlu0 %5272
      %5274 = vrot.lane.b32.xlu0 %v5270, 16
      %v5275 = vpop.permute.xlu0 %5274
      %5279 = vrot.lane.b32.xlu0 %v2558, 16
      %v5280 = vpop.permute.xlu0 %5279
      %5281 = vrot.lane.b32.xlu0 %v5269, 16
      %v5282 = vpop.permute.xlu0 %5281
      %v5283 = vsel %vm777, %v5280, %v5273
      %v5284 = vsel %vm777, %v5282, %v5275
      %v5289 = vsel %vm777, %v5273, %v5280
      %v5290 = vsel %vm777, %v5275, %v5282
      %5293 = vrot.lane.b32.xlu0 %v5289, 113
      %v5294 = vpop.permute.xlu0 %5293
      %5295 = vrot.lane.b32.xlu0 %v5283, 113
      %v5296 = vpop.permute.xlu0 %5295
      %5297 = vrot.lane.b32.xlu0 %v5290, 113
      %v5298 = vpop.permute.xlu0 %5297
      %5299 = vrot.lane.b32.xlu0 %v5284, 113
      %v5300 = vpop.permute.xlu0 %5299
      %v5301 = vsel %vm786, %v5294, %v5296
      %v5302 = vsel %vm786, %v5298, %v5300
      %v5309 = vsel %vm786, %v5296, %v5294
      %v5310 = vsel %vm786, %v5300, %v5298
      %5311 = vrot.lane.b32.xlu0 %v5283, 1
      %v5312 = vpop.permute.xlu0 %5311
      %5313 = vrot.lane.b32.xlu0 %v5284, 1
      %v5314 = vpop.permute.xlu0 %5313
      %5317 = vrot.lane.b32.xlu0 %v5289, 1
      %v5318 = vpop.permute.xlu0 %5317
      %5319 = vrot.lane.b32.xlu0 %v5290, 1
      %v5320 = vpop.permute.xlu0 %5319
      %v5321 = vsel %vm797, %v5318, %v5312
      %v5322 = vsel %vm797, %v5320, %v5314
      %v5327 = vsel %vm797, %v5312, %v5318
      %v5328 = vsel %vm797, %v5314, %v5320
      %v5329 = vsel %vm819, %v5301, %v5327
      %v5330 = vsel %vm820, %v5309, %v5321
      %v5331 = vsel %vm819, %v5302, %v5328
      %v5332 = vsel %vm820, %v5310, %v5322
      %v5333 = vld [vmem:[%s16] sm:$0xff]
      %s5334 = scalar_lea.vmem %s16, 8
      %v5335 = vld [vmem:[%s5334] sm:$0xff]
      %v5337 = vsel %vm777, %v5335, 0
      %5339 = vmatprep.subr.mxu0 %v5283
      %5340 = vmatpush1.msra.mxu0 %v5289
      %5341 = vmatprep.subr.mxu0 %v5284
      %5342 = vmatpush1.msra.mxu0 %v5290
      %5343 = vmatprep.subr.mxu0 0.0
      %5344 = vmatpush1.msra.mxu0 0.0
      %5345 = vmatprep.subr.mxu0 0.0
      %5346 = vmatpush1.msra.mxu0 0.0
      %5347 = vmatprep.subr.mxu0 0.0
      %5348 = vmatpush1.msra.mxu0 0.0
      %5349 = vmatprep.subr.mxu0 0.0
      %5350 = vmatpush1.msra.mxu0 0.0
      %5351 = vmatprep.subr.mxu0 0.0
      %5352 = vmatpush1.msra.mxu0 0.0
      %5353 = vmatprep.subr.mxu0 0.0
      %5354 = vmatpush1.msra.mxu0 0.0
      %5355 = vmatprep.subr.mxu0 0.0
      %5356 = vmatpush1.msra.mxu0 0.0
      %5357 = vmatprep.subr.mxu0 0.0
      %5358 = vmatpush1.msra.mxu0 0.0
      %5359 = vmatprep.subr.mxu0 0.0
      %5360 = vmatpush1.msra.mxu0 0.0
      %5361 = vmatprep.subr.mxu0 0.0
      %5362 = vmatpush1.msra.mxu0 0.0
      %5363 = vmatprep.subr.mxu0 0.0
      %5364 = vmatpush1.msra.mxu0 0.0
      %5365 = vmatprep.subr.mxu0 0.0
      %5366 = vmatpush1.msra.mxu0 0.0
      %5367 = vmatprep.subr.mxu0 0.0
      %5368 = vmatpush1.msra.mxu0 0.0
      %5369 = vmatprep.subr.mxu0 0.0
      %5370 = vmatpush1.msra.mxu0 0.0
      %5371 = vmatprep.subr.mxu0 0.0
      %5372 = vmatpush1.msra.mxu0 0.0
      %5373 = vmatprep.subr.mxu0 0.0
      %5374 = vmatpush1.msra.mxu0 0.0
      %5375 = vmatprep.subr.mxu0 0.0
      %5376 = vmatpush1.msra.mxu0 0.0
      %5377 = vmatprep.subr.mxu0 0.0
      %5378 = vmatpush1.msra.mxu0 0.0
      %5379 = vmatprep.subr.mxu0 0.0
      %5380 = vmatpush1.msra.mxu0 0.0
      %5381 = vmatprep.subr.mxu0 0.0
      %5382 = vmatpush1.msra.mxu0 0.0
      %5383 = vmatprep.subr.mxu0 0.0
      %5384 = vmatpush1.msra.mxu0 0.0
      %5385 = vmatprep.subr.mxu0 0.0
      %5386 = vmatpush1.msra.mxu0 0.0
      %5387 = vmatprep.subr.mxu0 0.0
      %5388 = vmatpush1.msra.mxu0 0.0
      %5389 = vmatprep.subr.mxu0 0.0
      %5390 = vmatpush1.msra.mxu0 0.0
      %5391 = vmatprep.subr.mxu0 0.0
      %5392 = vmatpush1.msra.mxu0 0.0
      %5393 = vmatprep.subr.mxu0 0.0
      %5394 = vmatpush1.msra.mxu0 0.0
      %5395 = vmatprep.subr.mxu0 0.0
      %5396 = vmatpush1.msra.mxu0 0.0
      %5397 = vmatprep.subr.mxu0 0.0
      %5398 = vmatpush1.msra.mxu0 0.0
      %5399 = vmatprep.subr.mxu0 0.0
      %5400 = vmatpush1.msra.mxu0 0.0
      %5401 = vmatprep.subr.mxu0 0.0
      %5402 = vmatpush1.msra.mxu0 0.0
      %5403 = vmatprep.mubr.f32.mxu0 0.0
      %5404 = vmatmul.mubr.f32.gmra.mrb[0].mxu0 %v5337
      %v5405 = vpop.f32.mrb[0].mxu0
      %v5406 = vadd.f32 0.0, %v5405
      %v5407 = vpop.f32.mrb[0].mxu0
      %v5408 = vadd.f32 0.0, %v5407
      %5409 = vdwg.mxu0
      %v5411 = vsel %vm777, %v5333, 0
      %5413 = vmatprep.subr.mxu0 %v5330
      %5414 = vmatpush1.msra.mxu0 %v5329
      %5415 = vmatprep.subr.mxu0 %v5332
      %5416 = vmatpush1.msra.mxu0 %v5331
      %5417 = vmatprep.subr.mxu0 0.0
      %5418 = vmatpush1.msra.mxu0 0.0
      %5419 = vmatprep.subr.mxu0 0.0
      %5420 = vmatpush1.msra.mxu0 0.0
      %5421 = vmatprep.subr.mxu0 0.0
      %5422 = vmatpush1.msra.mxu0 0.0
      %5423 = vmatprep.subr.mxu0 0.0
      %5424 = vmatpush1.msra.mxu0 0.0
      %5425 = vmatprep.subr.mxu0 0.0
      %5426 = vmatpush1.msra.mxu0 0.0
      %5427 = vmatprep.subr.mxu0 0.0
      %5428 = vmatpush1.msra.mxu0 0.0
      %5429 = vmatprep.subr.mxu0 0.0
      %5430 = vmatpush1.msra.mxu0 0.0
      %5431 = vmatprep.subr.mxu0 0.0
      %5432 = vmatpush1.msra.mxu0 0.0
      %5433 = vmatprep.subr.mxu0 0.0
      %5434 = vmatpush1.msra.mxu0 0.0
      %5435 = vmatprep.subr.mxu0 0.0
      %5436 = vmatpush1.msra.mxu0 0.0
      %5437 = vmatprep.subr.mxu0 0.0
      %5438 = vmatpush1.msra.mxu0 0.0
      %5439 = vmatprep.subr.mxu0 0.0
      %5440 = vmatpush1.msra.mxu0 0.0
      %5441 = vmatprep.subr.mxu0 0.0
      %5442 = vmatpush1.msra.mxu0 0.0
      %5443 = vmatprep.subr.mxu0 0.0
      %5444 = vmatpush1.msra.mxu0 0.0
      %5445 = vmatprep.subr.mxu0 0.0
      %5446 = vmatpush1.msra.mxu0 0.0
      %5447 = vmatprep.subr.mxu0 0.0
      %5448 = vmatpush1.msra.mxu0 0.0
      %5449 = vmatprep.subr.mxu0 0.0
      %5450 = vmatpush1.msra.mxu0 0.0
      %5451 = vmatprep.subr.mxu0 0.0
      %5452 = vmatpush1.msra.mxu0 0.0
      %5453 = vmatprep.subr.mxu0 0.0
      %5454 = vmatpush1.msra.mxu0 0.0
      %5455 = vmatprep.subr.mxu0 0.0
      %5456 = vmatpush1.msra.mxu0 0.0
      %5457 = vmatprep.subr.mxu0 0.0
      %5458 = vmatpush1.msra.mxu0 0.0
      %5459 = vmatprep.subr.mxu0 0.0
      %5460 = vmatpush1.msra.mxu0 0.0
      %5461 = vmatprep.subr.mxu0 0.0
      %5462 = vmatpush1.msra.mxu0 0.0
      %5463 = vmatprep.subr.mxu0 0.0
      %5464 = vmatpush1.msra.mxu0 0.0
      %5465 = vmatprep.subr.mxu0 0.0
      %5466 = vmatpush1.msra.mxu0 0.0
      %5467 = vmatprep.subr.mxu0 0.0
      %5468 = vmatpush1.msra.mxu0 0.0
      %5469 = vmatprep.subr.mxu0 0.0
      %5470 = vmatpush1.msra.mxu0 0.0
      %5471 = vmatprep.subr.mxu0 0.0
      %5472 = vmatpush1.msra.mxu0 0.0
      %5473 = vmatprep.subr.mxu0 0.0
      %5474 = vmatpush1.msra.mxu0 0.0
      %5475 = vmatprep.subr.mxu0 0.0
      %5476 = vmatpush1.msra.mxu0 0.0
      %5477 = vmatprep.mubr.f32.mxu0 0.0
      %5478 = vmatmul.mubr.f32.gmra.mrb[0].mxu0 %v5411
      %v5479 = vpop.f32.mrb[0].mxu0
      %v5480 = vadd.f32 %v5406, %v5479
      %v5481 = vpop.f32.mrb[0].mxu0
      %v5482 = vadd.f32 %v5408, %v5481
      %5483 = vdwg.mxu0
      %5484 = vrot.lane.b32.xlu0 %v5283, 15
      %v5485 = vpop.permute.xlu0 %5484
      %5486 = vrot.lane.b32.xlu0 %v5284, 15
      %v5487 = vpop.permute.xlu0 %5486
      %5490 = vrot.lane.b32.xlu0 %v5289, 15
      %v5491 = vpop.permute.xlu0 %5490
      %5492 = vrot.lane.b32.xlu0 %v5290, 15
      %v5493 = vpop.permute.xlu0 %5492
      %v5494 = vsel %vm991, %v5491, %v5485
      %v5495 = vsel %vm991, %v5493, %v5487
      %v5500 = vsel %vm991, %v5485, %v5491
      %v5501 = vsel %vm991, %v5487, %v5493
      %5502 = vrot.lane.b32.xlu0 %v5289, 127
      %v5503 = vpop.permute.xlu0 %5502
      %5504 = vrot.lane.b32.xlu0 %v5283, 127
      %v5505 = vpop.permute.xlu0 %5504
      %5506 = vrot.lane.b32.xlu0 %v5290, 127
      %v5507 = vpop.permute.xlu0 %5506
      %5508 = vrot.lane.b32.xlu0 %v5284, 127
      %v5509 = vpop.permute.xlu0 %5508
      %v5510 = vsel %vm1000, %v5503, %v5505
      %v5511 = vsel %vm1000, %v5507, %v5509
      %v5518 = vsel %vm1000, %v5505, %v5503
      %v5519 = vsel %vm1000, %v5509, %v5507
      %v5520 = vsel %vm1022, %v5500, %v5510
      %v5521 = vsel %vm1023, %v5494, %v5518
      %v5522 = vsel %vm1022, %v5501, %v5511
      %v5523 = vsel %vm1023, %v5495, %v5519
      %s5524 = scalar_lea.vmem %s16, 16
      %v5525 = vld [vmem:[%s5524] sm:$0xff]
      %v5527 = vsel %vm777, %v5525, 0
      %5529 = vmatprep.subr.mxu0 %v5521
      %5530 = vmatpush1.msra.mxu0 %v5520
      %5531 = vmatprep.subr.mxu0 %v5523
      %5532 = vmatpush1.msra.mxu0 %v5522
      %5533 = vmatprep.subr.mxu0 0.0
      %5534 = vmatpush1.msra.mxu0 0.0
      %5535 = vmatprep.subr.mxu0 0.0
      %5536 = vmatpush1.msra.mxu0 0.0
      %5537 = vmatprep.subr.mxu0 0.0
      %5538 = vmatpush1.msra.mxu0 0.0
      %5539 = vmatprep.subr.mxu0 0.0
      %5540 = vmatpush1.msra.mxu0 0.0
      %5541 = vmatprep.subr.mxu0 0.0
      %5542 = vmatpush1.msra.mxu0 0.0
      %5543 = vmatprep.subr.mxu0 0.0
      %5544 = vmatpush1.msra.mxu0 0.0
      %5545 = vmatprep.subr.mxu0 0.0
      %5546 = vmatpush1.msra.mxu0 0.0
      %5547 = vmatprep.subr.mxu0 0.0
      %5548 = vmatpush1.msra.mxu0 0.0
      %5549 = vmatprep.subr.mxu0 0.0
      %5550 = vmatpush1.msra.mxu0 0.0
      %5551 = vmatprep.subr.mxu0 0.0
      %5552 = vmatpush1.msra.mxu0 0.0
      %5553 = vmatprep.subr.mxu0 0.0
      %5554 = vmatpush1.msra.mxu0 0.0
      %5555 = vmatprep.subr.mxu0 0.0
      %5556 = vmatpush1.msra.mxu0 0.0
      %5557 = vmatprep.subr.mxu0 0.0
      %5558 = vmatpush1.msra.mxu0 0.0
      %5559 = vmatprep.subr.mxu0 0.0
      %5560 = vmatpush1.msra.mxu0 0.0
      %5561 = vmatprep.subr.mxu0 0.0
      %5562 = vmatpush1.msra.mxu0 0.0
      %5563 = vmatprep.subr.mxu0 0.0
      %5564 = vmatpush1.msra.mxu0 0.0
      %5565 = vmatprep.subr.mxu0 0.0
      %5566 = vmatpush1.msra.mxu0 0.0
      %5567 = vmatprep.subr.mxu0 0.0
      %5568 = vmatpush1.msra.mxu0 0.0
      %5569 = vmatprep.subr.mxu0 0.0
      %5570 = vmatpush1.msra.mxu0 0.0
      %5571 = vmatprep.subr.mxu0 0.0
      %5572 = vmatpush1.msra.mxu0 0.0
      %5573 = vmatprep.subr.mxu0 0.0
      %5574 = vmatpush1.msra.mxu0 0.0
      %5575 = vmatprep.subr.mxu0 0.0
      %5576 = vmatpush1.msra.mxu0 0.0
      %5577 = vmatprep.subr.mxu0 0.0
      %5578 = vmatpush1.msra.mxu0 0.0
      %5579 = vmatprep.subr.mxu0 0.0
      %5580 = vmatpush1.msra.mxu0 0.0
      %5581 = vmatprep.subr.mxu0 0.0
      %5582 = vmatpush1.msra.mxu0 0.0
      %5583 = vmatprep.subr.mxu0 0.0
      %5584 = vmatpush1.msra.mxu0 0.0
      %5585 = vmatprep.subr.mxu0 0.0
      %5586 = vmatpush1.msra.mxu0 0.0
      %5587 = vmatprep.subr.mxu0 0.0
      %5588 = vmatpush1.msra.mxu0 0.0
      %5589 = vmatprep.subr.mxu0 0.0
      %5590 = vmatpush1.msra.mxu0 0.0
      %5591 = vmatprep.subr.mxu0 0.0
      %5592 = vmatpush1.msra.mxu0 0.0
      %5593 = vmatprep.mubr.f32.mxu0 0.0
      %5594 = vmatmul.mubr.f32.gmra.mrb[0].mxu0 %v5527
      %v5595 = vpop.f32.mrb[0].mxu0
      %v5596 = vadd.f32 0.0, %v5595
      %v5597 = vpop.f32.mrb[0].mxu0
      %v5598 = vadd.f32 0.0, %v5597
      %5599 = vdwg.mxu0
      %v5600 = vadd.f32 %v5480, %v5596
      %v5601 = vadd.f32 %v5482, %v5598
      %5602 = vrot.lane.b32.xlu0 %v2558, 113
      %v5603 = vpop.permute.xlu0 %5602
      %5604 = vrot.lane.b32.xlu0 %v2559, 113
      %v5605 = vpop.permute.xlu0 %5604
      %5606 = vrot.lane.b32.xlu0 %v5269, 113
      %v5607 = vpop.permute.xlu0 %5606
      %5608 = vrot.lane.b32.xlu0 %v5270, 113
      %v5609 = vpop.permute.xlu0 %5608
      %v5610 = vsel %vm786, %v5603, %v5605
      %v5611 = vsel %vm786, %v5607, %v5609
      %v5618 = vsel %vm786, %v5605, %v5603
      %v5619 = vsel %vm786, %v5609, %v5607
      %5620 = vrot.lane.b32.xlu0 %v2559, 1
      %v5621 = vpop.permute.xlu0 %5620
      %5622 = vrot.lane.b32.xlu0 %v5270, 1
      %v5623 = vpop.permute.xlu0 %5622
      %5626 = vrot.lane.b32.xlu0 %v2558, 1
      %v5627 = vpop.permute.xlu0 %5626
      %5628 = vrot.lane.b32.xlu0 %v5269, 1
      %v5629 = vpop.permute.xlu0 %5628
      %v5630 = vsel %vm797, %v5627, %v5621
      %v5631 = vsel %vm797, %v5629, %v5623
      %v5636 = vsel %vm797, %v5621, %v5627
      %v5637 = vsel %vm797, %v5623, %v5629
      %v5638 = vsel %vm819, %v5610, %v5636
      %v5639 = vsel %vm820, %v5618, %v5630
      %v5640 = vsel %vm819, %v5611, %v5637
      %v5641 = vsel %vm820, %v5619, %v5631
      %s5642 = scalar_lea.vmem %s16, 24
      %v5643 = vld [vmem:[%s5642] sm:$0xff]
      %v5645 = vsel %vm777, %v5643, 0
      %5647 = vmatprep.subr.mxu0 %v5639
      %5648 = vmatpush1.msra.mxu0 %v5638
      %5649 = vmatprep.subr.mxu0 %v5641
      %5650 = vmatpush1.msra.mxu0 %v5640
      %5651 = vmatprep.subr.mxu0 0.0
      %5652 = vmatpush1.msra.mxu0 0.0
      %5653 = vmatprep.subr.mxu0 0.0
      %5654 = vmatpush1.msra.mxu0 0.0
      %5655 = vmatprep.subr.mxu0 0.0
      %5656 = vmatpush1.msra.mxu0 0.0
      %5657 = vmatprep.subr.mxu0 0.0
      %5658 = vmatpush1.msra.mxu0 0.0
      %5659 = vmatprep.subr.mxu0 0.0
      %5660 = vmatpush1.msra.mxu0 0.0
      %5661 = vmatprep.subr.mxu0 0.0
      %5662 = vmatpush1.msra.mxu0 0.0
      %5663 = vmatprep.subr.mxu0 0.0
      %5664 = vmatpush1.msra.mxu0 0.0
      %5665 = vmatprep.subr.mxu0 0.0
      %5666 = vmatpush1.msra.mxu0 0.0
      %5667 = vmatprep.subr.mxu0 0.0
      %5668 = vmatpush1.msra.mxu0 0.0
      %5669 = vmatprep.subr.mxu0 0.0
      %5670 = vmatpush1.msra.mxu0 0.0
      %5671 = vmatprep.subr.mxu0 0.0
      %5672 = vmatpush1.msra.mxu0 0.0
      %5673 = vmatprep.subr.mxu0 0.0
      %5674 = vmatpush1.msra.mxu0 0.0
      %5675 = vmatprep.subr.mxu0 0.0
      %5676 = vmatpush1.msra.mxu0 0.0
      %5677 = vmatprep.subr.mxu0 0.0
      %5678 = vmatpush1.msra.mxu0 0.0
      %5679 = vmatprep.subr.mxu0 0.0
      %5680 = vmatpush1.msra.mxu0 0.0
      %5681 = vmatprep.subr.mxu0 0.0
      %5682 = vmatpush1.msra.mxu0 0.0
      %5683 = vmatprep.subr.mxu0 0.0
      %5684 = vmatpush1.msra.mxu0 0.0
      %5685 = vmatprep.subr.mxu0 0.0
      %5686 = vmatpush1.msra.mxu0 0.0
      %5687 = vmatprep.subr.mxu0 0.0
      %5688 = vmatpush1.msra.mxu0 0.0
      %5689 = vmatprep.subr.mxu0 0.0
      %5690 = vmatpush1.msra.mxu0 0.0
      %5691 = vmatprep.subr.mxu0 0.0
      %5692 = vmatpush1.msra.mxu0 0.0
      %5693 = vmatprep.subr.mxu0 0.0
      %5694 = vmatpush1.msra.mxu0 0.0
      %5695 = vmatprep.subr.mxu0 0.0
      %5696 = vmatpush1.msra.mxu0 0.0
      %5697 = vmatprep.subr.mxu0 0.0
      %5698 = vmatpush1.msra.mxu0 0.0
      %5699 = vmatprep.subr.mxu0 0.0
      %5700 = vmatpush1.msra.mxu0 0.0
      %5701 = vmatprep.subr.mxu0 0.0
      %5702 = vmatpush1.msra.mxu0 0.0
      %5703 = vmatprep.subr.mxu0 0.0
      %5704 = vmatpush1.msra.mxu0 0.0
      %5705 = vmatprep.subr.mxu0 0.0
      %5706 = vmatpush1.msra.mxu0 0.0
      %5707 = vmatprep.subr.mxu0 0.0
      %5708 = vmatpush1.msra.mxu0 0.0
      %5709 = vmatprep.subr.mxu0 0.0
      %5710 = vmatpush1.msra.mxu0 0.0
      %5711 = vmatprep.mubr.f32.mxu0 0.0
      %5712 = vmatmul.mubr.f32.gmra.mrb[0].mxu0 %v5645
      %v5713 = vpop.f32.mrb[0].mxu0
      %v5714 = vadd.f32 0.0, %v5713
      %v5715 = vpop.f32.mrb[0].mxu0
      %v5716 = vadd.f32 0.0, %v5715
      %5717 = vdwg.mxu0
      %v5718 = vadd.f32 %v5600, %v5714
      %v5719 = vadd.f32 %v5601, %v5716
      %s5720 = scalar_lea.vmem %s16, 32
      %v5721 = vld [vmem:[%s5720] sm:$0xff]
      %v5723 = vsel %vm777, %v5721, 0
      %5725 = vmatprep.subr.mxu0 %v2559
      %5726 = vmatpush1.msra.mxu0 %v2558
      %5727 = vmatprep.subr.mxu0 %v5270
      %5728 = vmatpush1.msra.mxu0 %v5269
      %5729 = vmatprep.subr.mxu0 0.0
      %5730 = vmatpush1.msra.mxu0 0.0
      %5731 = vmatprep.subr.mxu0 0.0
      %5732 = vmatpush1.msra.mxu0 0.0
      %5733 = vmatprep.subr.mxu0 0.0
      %5734 = vmatpush1.msra.mxu0 0.0
      %5735 = vmatprep.subr.mxu0 0.0
      %5736 = vmatpush1.msra.mxu0 0.0
      %5737 = vmatprep.subr.mxu0 0.0
      %5738 = vmatpush1.msra.mxu0 0.0
      %5739 = vmatprep.subr.mxu0 0.0
      %5740 = vmatpush1.msra.mxu0 0.0
      %5741 = vmatprep.subr.mxu0 0.0
      %5742 = vmatpush1.msra.mxu0 0.0
      %5743 = vmatprep.subr.mxu0 0.0
      %5744 = vmatpush1.msra.mxu0 0.0
      %5745 = vmatprep.subr.mxu0 0.0
      %5746 = vmatpush1.msra.mxu0 0.0
      %5747 = vmatprep.subr.mxu0 0.0
      %5748 = vmatpush1.msra.mxu0 0.0
      %5749 = vmatprep.subr.mxu0 0.0
      %5750 = vmatpush1.msra.mxu0 0.0
      %5751 = vmatprep.subr.mxu0 0.0
      %5752 = vmatpush1.msra.mxu0 0.0
      %5753 = vmatprep.subr.mxu0 0.0
      %5754 = vmatpush1.msra.mxu0 0.0
      %5755 = vmatprep.subr.mxu0 0.0
      %5756 = vmatpush1.msra.mxu0 0.0
      %5757 = vmatprep.subr.mxu0 0.0
      %5758 = vmatpush1.msra.mxu0 0.0
      %5759 = vmatprep.subr.mxu0 0.0
      %5760 = vmatpush1.msra.mxu0 0.0
      %5761 = vmatprep.subr.mxu0 0.0
      %5762 = vmatpush1.msra.mxu0 0.0
      %5763 = vmatprep.subr.mxu0 0.0
      %5764 = vmatpush1.msra.mxu0 0.0
      %5765 = vmatprep.subr.mxu0 0.0
      %5766 = vmatpush1.msra.mxu0 0.0
      %5767 = vmatprep.subr.mxu0 0.0
      %5768 = vmatpush1.msra.mxu0 0.0
      %5769 = vmatprep.subr.mxu0 0.0
      %5770 = vmatpush1.msra.mxu0 0.0
      %5771 = vmatprep.subr.mxu0 0.0
      %5772 = vmatpush1.msra.mxu0 0.0
      %5773 = vmatprep.subr.mxu0 0.0
      %5774 = vmatpush1.msra.mxu0 0.0
      %5775 = vmatprep.subr.mxu0 0.0
      %5776 = vmatpush1.msra.mxu0 0.0
      %5777 = vmatprep.subr.mxu0 0.0
      %5778 = vmatpush1.msra.mxu0 0.0
      %5779 = vmatprep.subr.mxu0 0.0
      %5780 = vmatpush1.msra.mxu0 0.0
      %5781 = vmatprep.subr.mxu0 0.0
      %5782 = vmatpush1.msra.mxu0 0.0
      %5783 = vmatprep.subr.mxu0 0.0
      %5784 = vmatpush1.msra.mxu0 0.0
      %5785 = vmatprep.subr.mxu0 0.0
      %5786 = vmatpush1.msra.mxu0 0.0
      %5787 = vmatprep.subr.mxu0 0.0
      %5788 = vmatpush1.msra.mxu0 0.0
      %5789 = vmatprep.mubr.f32.mxu0 0.0
      %5790 = vmatmul.mubr.f32.gmra.mrb[0].mxu0 %v5723
      %v5791 = vpop.f32.mrb[0].mxu0
      %v5792 = vadd.f32 0.0, %v5791
      %v5793 = vpop.f32.mrb[0].mxu0
      %v5794 = vadd.f32 0.0, %v5793
      %5795 = vdwg.mxu0
      %v5796 = vadd.f32 %v5718, %v5792
      %v5797 = vadd.f32 %v5719, %v5794
      %5798 = vrot.lane.b32.xlu0 %v2559, 15
      %v5799 = vpop.permute.xlu0 %5798
      %5800 = vrot.lane.b32.xlu0 %v5270, 15
      %v5801 = vpop.permute.xlu0 %5800
      %5804 = vrot.lane.b32.xlu0 %v2558, 15
      %v5805 = vpop.permute.xlu0 %5804
      %5806 = vrot.lane.b32.xlu0 %v5269, 15
      %v5807 = vpop.permute.xlu0 %5806
      %v5808 = vsel %vm991, %v5805, %v5799
      %v5809 = vsel %vm991, %v5807, %v5801
      %v5814 = vsel %vm991, %v5799, %v5805
      %v5815 = vsel %vm991, %v5801, %v5807
      %5816 = vrot.lane.b32.xlu0 %v5269, 127
      %v5817 = vpop.permute.xlu0 %5816
      %5818 = vrot.lane.b32.xlu0 %v5270, 127
      %v5819 = vpop.permute.xlu0 %5818
      %v5820 = vsel %vm1000, %v5817, %v5819
      %v5824 = vsel %vm1000, %v5819, %v5817
      %v5825 = vsel %vm1022, %v5814, %v2568
      %v5826 = vsel %vm1023, %v5808, %v2572
      %v5827 = vsel %vm1022, %v5815, %v5820
      %v5828 = vsel %vm1023, %v5809, %v5824
      %s5829 = scalar_lea.vmem %s16, 40
      %v5830 = vld [vmem:[%s5829] sm:$0xff]
      %v5832 = vsel %vm777, %v5830, 0
      %5834 = vmatprep.subr.mxu0 %v5826
      %5835 = vmatpush1.msra.mxu0 %v5825
      %5836 = vmatprep.subr.mxu0 %v5828
      %5837 = vmatpush1.msra.mxu0 %v5827
      %5838 = vmatprep.subr.mxu0 0.0
      %5839 = vmatpush1.msra.mxu0 0.0
      %5840 = vmatprep.subr.mxu0 0.0
      %5841 = vmatpush1.msra.mxu0 0.0
      %5842 = vmatprep.subr.mxu0 0.0
      %5843 = vmatpush1.msra.mxu0 0.0
      %5844 = vmatprep.subr.mxu0 0.0
      %5845 = vmatpush1.msra.mxu0 0.0
      %5846 = vmatprep.subr.mxu0 0.0
      %5847 = vmatpush1.msra.mxu0 0.0
      %5848 = vmatprep.subr.mxu0 0.0
      %5849 = vmatpush1.msra.mxu0 0.0
      %5850 = vmatprep.subr.mxu0 0.0
      %5851 = vmatpush1.msra.mxu0 0.0
      %5852 = vmatprep.subr.mxu0 0.0
      %5853 = vmatpush1.msra.mxu0 0.0
      %5854 = vmatprep.subr.mxu0 0.0
      %5855 = vmatpush1.msra.mxu0 0.0
      %5856 = vmatprep.subr.mxu0 0.0
      %5857 = vmatpush1.msra.mxu0 0.0
      %5858 = vmatprep.subr.mxu0 0.0
      %5859 = vmatpush1.msra.mxu0 0.0
      %5860 = vmatprep.subr.mxu0 0.0
      %5861 = vmatpush1.msra.mxu0 0.0
      %5862 = vmatprep.subr.mxu0 0.0
      %5863 = vmatpush1.msra.mxu0 0.0
      %5864 = vmatprep.subr.mxu0 0.0
      %5865 = vmatpush1.msra.mxu0 0.0
      %5866 = vmatprep.subr.mxu0 0.0
      %5867 = vmatpush1.msra.mxu0 0.0
      %5868 = vmatprep.subr.mxu0 0.0
      %5869 = vmatpush1.msra.mxu0 0.0
      %5870 = vmatprep.subr.mxu0 0.0
      %5871 = vmatpush1.msra.mxu0 0.0
      %5872 = vmatprep.subr.mxu0 0.0
      %5873 = vmatpush1.msra.mxu0 0.0
      %5874 = vmatprep.subr.mxu0 0.0
      %5875 = vmatpush1.msra.mxu0 0.0
      %5876 = vmatprep.subr.mxu0 0.0
      %5877 = vmatpush1.msra.mxu0 0.0
      %5878 = vmatprep.subr.mxu0 0.0
      %5879 = vmatpush1.msra.mxu0 0.0
      %5880 = vmatprep.subr.mxu0 0.0
      %5881 = vmatpush1.msra.mxu0 0.0
      %5882 = vmatprep.subr.mxu0 0.0
      %5883 = vmatpush1.msra.mxu0 0.0
      %5884 = vmatprep.subr.mxu0 0.0
      %5885 = vmatpush1.msra.mxu0 0.0
      %5886 = vmatprep.subr.mxu0 0.0
      %5887 = vmatpush1.msra.mxu0 0.0
      %5888 = vmatprep.subr.mxu0 0.0
      %5889 = vmatpush1.msra.mxu0 0.0
      %5890 = vmatprep.subr.mxu0 0.0
      %5891 = vmatpush1.msra.mxu0 0.0
      %5892 = vmatprep.subr.mxu0 0.0
      %5893 = vmatpush1.msra.mxu0 0.0
      %5894 = vmatprep.subr.mxu0 0.0
      %5895 = vmatpush1.msra.mxu0 0.0
      %5896 = vmatprep.subr.mxu0 0.0
      %5897 = vmatpush1.msra.mxu0 0.0
      %5898 = vmatprep.mubr.f32.mxu0 0.0
      %5899 = vmatmul.mubr.f32.gmra.mrb[0].mxu0 %v5832
      %v5900 = vpop.f32.mrb[0].mxu0
      %v5901 = vadd.f32 0.0, %v5900
      %v5902 = vpop.f32.mrb[0].mxu0
      %v5903 = vadd.f32 0.0, %v5902
      %5904 = vdwg.mxu0
      %v5905 = vadd.f32 %v5796, %v5901
      %v5906 = vadd.f32 %v5797, %v5903
      %5907 = vrot.lane.b32.xlu0 %v2558, 112
      %v5908 = vpop.permute.xlu0 %5907
      %5909 = vrot.lane.b32.xlu0 %v2559, 112
      %v5910 = vpop.permute.xlu0 %5909
      %5911 = vrot.lane.b32.xlu0 %v5269, 112
      %v5912 = vpop.permute.xlu0 %5911
      %5913 = vrot.lane.b32.xlu0 %v5270, 112
      %v5914 = vpop.permute.xlu0 %5913
      %v5915 = vsel %vm1404, %v5908, %v5910
      %v5916 = vsel %vm1404, %v5912, %v5914
      %v5923 = vsel %vm1404, %v5910, %v5908
      %v5924 = vsel %vm1404, %v5914, %v5912
      %5927 = vrot.lane.b32.xlu0 %v5915, 113
      %v5928 = vpop.permute.xlu0 %5927
      %5929 = vrot.lane.b32.xlu0 %v5923, 113
      %v5930 = vpop.permute.xlu0 %5929
      %5931 = vrot.lane.b32.xlu0 %v5916, 113
      %v5932 = vpop.permute.xlu0 %5931
      %5933 = vrot.lane.b32.xlu0 %v5924, 113
      %v5934 = vpop.permute.xlu0 %5933
      %v5935 = vsel %vm786, %v5928, %v5930
      %v5936 = vsel %vm786, %v5932, %v5934
      %v5943 = vsel %vm786, %v5930, %v5928
      %v5944 = vsel %vm786, %v5934, %v5932
      %5945 = vrot.lane.b32.xlu0 %v5923, 1
      %v5946 = vpop.permute.xlu0 %5945
      %5947 = vrot.lane.b32.xlu0 %v5924, 1
      %v5948 = vpop.permute.xlu0 %5947
      %5951 = vrot.lane.b32.xlu0 %v5915, 1
      %v5952 = vpop.permute.xlu0 %5951
      %5953 = vrot.lane.b32.xlu0 %v5916, 1
      %v5954 = vpop.permute.xlu0 %5953
      %v5955 = vsel %vm797, %v5952, %v5946
      %v5956 = vsel %vm797, %v5954, %v5948
      %v5961 = vsel %vm797, %v5946, %v5952
      %v5962 = vsel %vm797, %v5948, %v5954
      %v5963 = vsel %vm819, %v5935, %v5961
      %v5964 = vsel %vm820, %v5943, %v5955
      %v5965 = vsel %vm819, %v5936, %v5962
      %v5966 = vsel %vm820, %v5944, %v5956
      %s5967 = scalar_lea.vmem %s16, 48
      %v5968 = vld [vmem:[%s5967] sm:$0xff]
      %v5970 = vsel %vm777, %v5968, 0
      %5972 = vmatprep.subr.mxu0 %v5964
      %5973 = vmatpush1.msra.mxu0 %v5963
      %5974 = vmatprep.subr.mxu0 %v5966
      %5975 = vmatpush1.msra.mxu0 %v5965
      %5976 = vmatprep.subr.mxu0 0.0
      %5977 = vmatpush1.msra.mxu0 0.0
      %5978 = vmatprep.subr.mxu0 0.0
      %5979 = vmatpush1.msra.mxu0 0.0
      %5980 = vmatprep.subr.mxu0 0.0
      %5981 = vmatpush1.msra.mxu0 0.0
      %5982 = vmatprep.subr.mxu0 0.0
      %5983 = vmatpush1.msra.mxu0 0.0
      %5984 = vmatprep.subr.mxu0 0.0
      %5985 = vmatpush1.msra.mxu0 0.0
      %5986 = vmatprep.subr.mxu0 0.0
      %5987 = vmatpush1.msra.mxu0 0.0
      %5988 = vmatprep.subr.mxu0 0.0
      %5989 = vmatpush1.msra.mxu0 0.0
      %5990 = vmatprep.subr.mxu0 0.0
      %5991 = vmatpush1.msra.mxu0 0.0
      %5992 = vmatprep.subr.mxu0 0.0
      %5993 = vmatpush1.msra.mxu0 0.0
      %5994 = vmatprep.subr.mxu0 0.0
      %5995 = vmatpush1.msra.mxu0 0.0
      %5996 = vmatprep.subr.mxu0 0.0
      %5997 = vmatpush1.msra.mxu0 0.0
      %5998 = vmatprep.subr.mxu0 0.0
      %5999 = vmatpush1.msra.mxu0 0.0
      %6000 = vmatprep.subr.mxu0 0.0
      %6001 = vmatpush1.msra.mxu0 0.0
      %6002 = vmatprep.subr.mxu0 0.0
      %6003 = vmatpush1.msra.mxu0 0.0
      %6004 = vmatprep.subr.mxu0 0.0
      %6005 = vmatpush1.msra.mxu0 0.0
      %6006 = vmatprep.subr.mxu0 0.0
      %6007 = vmatpush1.msra.mxu0 0.0
      %6008 = vmatprep.subr.mxu0 0.0
      %6009 = vmatpush1.msra.mxu0 0.0
      %6010 = vmatprep.subr.mxu0 0.0
      %6011 = vmatpush1.msra.mxu0 0.0
      %6012 = vmatprep.subr.mxu0 0.0
      %6013 = vmatpush1.msra.mxu0 0.0
      %6014 = vmatprep.subr.mxu0 0.0
      %6015 = vmatpush1.msra.mxu0 0.0
      %6016 = vmatprep.subr.mxu0 0.0
      %6017 = vmatpush1.msra.mxu0 0.0
      %6018 = vmatprep.subr.mxu0 0.0
      %6019 = vmatpush1.msra.mxu0 0.0
      %6020 = vmatprep.subr.mxu0 0.0
      %6021 = vmatpush1.msra.mxu0 0.0
      %6022 = vmatprep.subr.mxu0 0.0
      %6023 = vmatpush1.msra.mxu0 0.0
      %6024 = vmatprep.subr.mxu0 0.0
      %6025 = vmatpush1.msra.mxu0 0.0
      %6026 = vmatprep.subr.mxu0 0.0
      %6027 = vmatpush1.msra.mxu0 0.0
      %6028 = vmatprep.subr.mxu0 0.0
      %6029 = vmatpush1.msra.mxu0 0.0
      %6030 = vmatprep.subr.mxu0 0.0
      %6031 = vmatpush1.msra.mxu0 0.0
      %6032 = vmatprep.subr.mxu0 0.0
      %6033 = vmatpush1.msra.mxu0 0.0
      %6034 = vmatprep.subr.mxu0 0.0
      %6035 = vmatpush1.msra.mxu0 0.0
      %6036 = vmatprep.mubr.f32.mxu0 0.0
      %6037 = vmatmul.mubr.f32.gmra.mrb[0].mxu0 %v5970
      %v6038 = vpop.f32.mrb[0].mxu0
      %v6039 = vadd.f32 0.0, %v6038
      %v6040 = vpop.f32.mrb[0].mxu0
      %v6041 = vadd.f32 0.0, %v6040
      %6042 = vdwg.mxu0
      %v6043 = vadd.f32 %v5905, %v6039
      %v6044 = vadd.f32 %v5906, %v6041
      %s6045 = scalar_lea.vmem %s16, 56
      %v6046 = vld [vmem:[%s6045] sm:$0xff]
      %v6048 = vsel %vm777, %v6046, 0
      %6050 = vmatprep.subr.mxu0 %v5923
      %6051 = vmatpush1.msra.mxu0 %v5915
      %6052 = vmatprep.subr.mxu0 %v5924
      %6053 = vmatpush1.msra.mxu0 %v5916
      %6054 = vmatprep.subr.mxu0 0.0
      %6055 = vmatpush1.msra.mxu0 0.0
      %6056 = vmatprep.subr.mxu0 0.0
      %6057 = vmatpush1.msra.mxu0 0.0
      %6058 = vmatprep.subr.mxu0 0.0
      %6059 = vmatpush1.msra.mxu0 0.0
      %6060 = vmatprep.subr.mxu0 0.0
      %6061 = vmatpush1.msra.mxu0 0.0
      %6062 = vmatprep.subr.mxu0 0.0
      %6063 = vmatpush1.msra.mxu0 0.0
      %6064 = vmatprep.subr.mxu0 0.0
      %6065 = vmatpush1.msra.mxu0 0.0
      %6066 = vmatprep.subr.mxu0 0.0
      %6067 = vmatpush1.msra.mxu0 0.0
      %6068 = vmatprep.subr.mxu0 0.0
      %6069 = vmatpush1.msra.mxu0 0.0
      %6070 = vmatprep.subr.mxu0 0.0
      %6071 = vmatpush1.msra.mxu0 0.0
      %6072 = vmatprep.subr.mxu0 0.0
      %6073 = vmatpush1.msra.mxu0 0.0
      %6074 = vmatprep.subr.mxu0 0.0
      %6075 = vmatpush1.msra.mxu0 0.0
      %6076 = vmatprep.subr.mxu0 0.0
      %6077 = vmatpush1.msra.mxu0 0.0
      %6078 = vmatprep.subr.mxu0 0.0
      %6079 = vmatpush1.msra.mxu0 0.0
      %6080 = vmatprep.subr.mxu0 0.0
      %6081 = vmatpush1.msra.mxu0 0.0
      %6082 = vmatprep.subr.mxu0 0.0
      %6083 = vmatpush1.msra.mxu0 0.0
      %6084 = vmatprep.subr.mxu0 0.0
      %6085 = vmatpush1.msra.mxu0 0.0
      %6086 = vmatprep.subr.mxu0 0.0
      %6087 = vmatpush1.msra.mxu0 0.0
      %6088 = vmatprep.subr.mxu0 0.0
      %6089 = vmatpush1.msra.mxu0 0.0
      %6090 = vmatprep.subr.mxu0 0.0
      %6091 = vmatpush1.msra.mxu0 0.0
      %6092 = vmatprep.subr.mxu0 0.0
      %6093 = vmatpush1.msra.mxu0 0.0
      %6094 = vmatprep.subr.mxu0 0.0
      %6095 = vmatpush1.msra.mxu0 0.0
      %6096 = vmatprep.subr.mxu0 0.0
      %6097 = vmatpush1.msra.mxu0 0.0
      %6098 = vmatprep.subr.mxu0 0.0
      %6099 = vmatpush1.msra.mxu0 0.0
      %6100 = vmatprep.subr.mxu0 0.0
      %6101 = vmatpush1.msra.mxu0 0.0
      %6102 = vmatprep.subr.mxu0 0.0
      %6103 = vmatpush1.msra.mxu0 0.0
      %6104 = vmatprep.subr.mxu0 0.0
      %6105 = vmatpush1.msra.mxu0 0.0
      %6106 = vmatprep.subr.mxu0 0.0
      %6107 = vmatpush1.msra.mxu0 0.0
      %6108 = vmatprep.subr.mxu0 0.0
      %6109 = vmatpush1.msra.mxu0 0.0
      %6110 = vmatprep.subr.mxu0 0.0
      %6111 = vmatpush1.msra.mxu0 0.0
      %6112 = vmatprep.subr.mxu0 0.0
      %6113 = vmatpush1.msra.mxu0 0.0
      %6114 = vmatprep.mubr.f32.mxu0 0.0
      %6115 = vmatmul.mubr.f32.gmra.mrb[0].mxu0 %v6048
      %v6116 = vpop.f32.mrb[0].mxu0
      %v6117 = vadd.f32 0.0, %v6116
      %v6118 = vpop.f32.mrb[0].mxu0
      %v6119 = vadd.f32 0.0, %v6118
      %6120 = vdwg.mxu0
      %v6121 = vadd.f32 %v6043, %v6117
      %v6122 = vadd.f32 %v6044, %v6119
      %6123 = vrot.lane.b32.xlu0 %v5923, 15
      %v6124 = vpop.permute.xlu0 %6123
      %6125 = vrot.lane.b32.xlu0 %v5924, 15
      %v6126 = vpop.permute.xlu0 %6125
      %6129 = vrot.lane.b32.xlu0 %v5915, 15
      %v6130 = vpop.permute.xlu0 %6129
      %6131 = vrot.lane.b32.xlu0 %v5916, 15
      %v6132 = vpop.permute.xlu0 %6131
      %v6133 = vsel %vm991, %v6130, %v6124
      %v6134 = vsel %vm991, %v6132, %v6126
      %v6139 = vsel %vm991, %v6124, %v6130
      %v6140 = vsel %vm991, %v6126, %v6132
      %6141 = vrot.lane.b32.xlu0 %v5915, 127
      %v6142 = vpop.permute.xlu0 %6141
      %6143 = vrot.lane.b32.xlu0 %v5923, 127
      %v6144 = vpop.permute.xlu0 %6143
      %6145 = vrot.lane.b32.xlu0 %v5916, 127
      %v6146 = vpop.permute.xlu0 %6145
      %6147 = vrot.lane.b32.xlu0 %v5924, 127
      %v6148 = vpop.permute.xlu0 %6147
      %v6149 = vsel %vm1000, %v6142, %v6144
      %v6150 = vsel %vm1000, %v6146, %v6148
      %v6157 = vsel %vm1000, %v6144, %v6142
      %v6158 = vsel %vm1000, %v6148, %v6146
      %v6159 = vsel %vm1022, %v6139, %v6149
      %v6160 = vsel %vm1023, %v6133, %v6157
      %v6161 = vsel %vm1022, %v6140, %v6150
      %v6162 = vsel %vm1023, %v6134, %v6158
      %s6163 = scalar_lea.vmem %s16, 64
      %v6164 = vld [vmem:[%s6163] sm:$0xff]
      %v6166 = vsel %vm777, %v6164, 0
      %6168 = vmatprep.subr.mxu0 %v6160
      %6169 = vmatpush1.msra.mxu0 %v6159
      %6170 = vmatprep.subr.mxu0 %v6162
      %6171 = vmatpush1.msra.mxu0 %v6161
      %6172 = vmatprep.subr.mxu0 0.0
      %6173 = vmatpush1.msra.mxu0 0.0
      %6174 = vmatprep.subr.mxu0 0.0
      %6175 = vmatpush1.msra.mxu0 0.0
      %6176 = vmatprep.subr.mxu0 0.0
      %6177 = vmatpush1.msra.mxu0 0.0
      %6178 = vmatprep.subr.mxu0 0.0
      %6179 = vmatpush1.msra.mxu0 0.0
      %6180 = vmatprep.subr.mxu0 0.0
      %6181 = vmatpush1.msra.mxu0 0.0
      %6182 = vmatprep.subr.mxu0 0.0
      %6183 = vmatpush1.msra.mxu0 0.0
      %6184 = vmatprep.subr.mxu0 0.0
      %6185 = vmatpush1.msra.mxu0 0.0
      %6186 = vmatprep.subr.mxu0 0.0
      %6187 = vmatpush1.msra.mxu0 0.0
      %6188 = vmatprep.subr.mxu0 0.0
      %6189 = vmatpush1.msra.mxu0 0.0
      %6190 = vmatprep.subr.mxu0 0.0
      %6191 = vmatpush1.msra.mxu0 0.0
      %6192 = vmatprep.subr.mxu0 0.0
      %6193 = vmatpush1.msra.mxu0 0.0
      %6194 = vmatprep.subr.mxu0 0.0
      %6195 = vmatpush1.msra.mxu0 0.0
      %6196 = vmatprep.subr.mxu0 0.0
      %6197 = vmatpush1.msra.mxu0 0.0
      %6198 = vmatprep.subr.mxu0 0.0
      %6199 = vmatpush1.msra.mxu0 0.0
      %6200 = vmatprep.subr.mxu0 0.0
      %6201 = vmatpush1.msra.mxu0 0.0
      %6202 = vmatprep.subr.mxu0 0.0
      %6203 = vmatpush1.msra.mxu0 0.0
      %6204 = vmatprep.subr.mxu0 0.0
      %6205 = vmatpush1.msra.mxu0 0.0
      %6206 = vmatprep.subr.mxu0 0.0
      %6207 = vmatpush1.msra.mxu0 0.0
      %6208 = vmatprep.subr.mxu0 0.0
      %6209 = vmatpush1.msra.mxu0 0.0
      %6210 = vmatprep.subr.mxu0 0.0
      %6211 = vmatpush1.msra.mxu0 0.0
      %6212 = vmatprep.subr.mxu0 0.0
      %6213 = vmatpush1.msra.mxu0 0.0
      %6214 = vmatprep.subr.mxu0 0.0
      %6215 = vmatpush1.msra.mxu0 0.0
      %6216 = vmatprep.subr.mxu0 0.0
      %6217 = vmatpush1.msra.mxu0 0.0
      %6218 = vmatprep.subr.mxu0 0.0
      %6219 = vmatpush1.msra.mxu0 0.0
      %6220 = vmatprep.subr.mxu0 0.0
      %6221 = vmatpush1.msra.mxu0 0.0
      %6222 = vmatprep.subr.mxu0 0.0
      %6223 = vmatpush1.msra.mxu0 0.0
      %6224 = vmatprep.subr.mxu0 0.0
      %6225 = vmatpush1.msra.mxu0 0.0
      %6226 = vmatprep.subr.mxu0 0.0
      %6227 = vmatpush1.msra.mxu0 0.0
      %6228 = vmatprep.subr.mxu0 0.0
      %6229 = vmatpush1.msra.mxu0 0.0
      %6230 = vmatprep.subr.mxu0 0.0
      %6231 = vmatpush1.msra.mxu0 0.0
      %6232 = vmatprep.mubr.f32.mxu0 0.0
      %6233 = vmatmul.mubr.f32.gmra.mrb[0].mxu0 %v6166
      %v6234 = vpop.f32.mrb[0].mxu0
      %v6235 = vadd.f32 0.0, %v6234
      %v6236 = vpop.f32.mrb[0].mxu0
      %v6237 = vadd.f32 0.0, %v6236
      %6238 = vdwg.mxu0
      %v6239 = vadd.f32 %v6121, %v6235
      %v6240 = vadd.f32 %v6122, %v6237
      %v6241 = vld [vmem:[%s17] sm:$0xff]
      %6243 = vset.pattern.permute.xlu0 0
      %6244 = vperm.xlu0 %6243, %v6241
      %v6245 = vpop.permute.xlu0 %6244
      %v6247 = vadd.f32 %v6239, %v6245
      %v6248 = vadd.f32 %v6240, %v6245
      %v6249 = vmax.f32 %v6247, 0.0
      %v6250 = vmax.f32 %v6248, 0.0
      %6252 = vrot.lane.b32.xlu0 %v6250, 16
      %v6253 = vpop.permute.xlu0 %6252
      %6256 = vrot.lane.b32.xlu0 %v6249, 16
      %v6257 = vpop.permute.xlu0 %6256
      %v6258 = vsel %vm777, %v6257, %v6253
      %v6261 = vsel %vm777, %v6253, %v6257
      %6263 = vrot.lane.b32.xlu0 %v6261, 113
      %v6264 = vpop.permute.xlu0 %6263
      %6265 = vrot.lane.b32.xlu0 %v6258, 113
      %v6266 = vpop.permute.xlu0 %6265
      %v6267 = vsel %vm786, %v6264, %v6266
      %v6271 = vsel %vm786, %v6266, %v6264
      %6272 = vrot.lane.b32.xlu0 %v6258, 1
      %v6273 = vpop.permute.xlu0 %6272
      %6275 = vrot.lane.b32.xlu0 %v6261, 1
      %v6276 = vpop.permute.xlu0 %6275
      %v6277 = vsel %vm797, %v6276, %v6273
      %v6280 = vsel %vm797, %v6273, %v6276
      %v6281 = vsel %vm819, %v6267, %v6280
      %v6282 = vsel %vm820, %v6271, %v6277
      %v6283 = vld [vmem:[%s18] sm:$0xff]
      %s6284 = scalar_lea.vmem %s18, 8
      %v6285 = vld [vmem:[%s6284] sm:$0xff]
      %v6287 = vsel %vm1745, %v6285, 0
      %6289 = vmatprep.subr.mxu0 %v6258
      %6290 = vmatpush1.msra.mxu0 %v6261
      %6291 = vmatprep.subr.mxu0 0.0
      %6292 = vmatpush1.msra.mxu0 0.0
      %6293 = vmatprep.subr.mxu0 0.0
      %6294 = vmatpush1.msra.mxu0 0.0
      %6295 = vmatprep.subr.mxu0 0.0
      %6296 = vmatpush1.msra.mxu0 0.0
      %6297 = vmatprep.subr.mxu0 0.0
      %6298 = vmatpush1.msra.mxu0 0.0
      %6299 = vmatprep.subr.mxu0 0.0
      %6300 = vmatpush1.msra.mxu0 0.0
      %6301 = vmatprep.subr.mxu0 0.0
      %6302 = vmatpush1.msra.mxu0 0.0
      %6303 = vmatprep.subr.mxu0 0.0
      %6304 = vmatpush1.msra.mxu0 0.0
      %6305 = vmatprep.subr.mxu0 0.0
      %6306 = vmatpush1.msra.mxu0 0.0
      %6307 = vmatprep.subr.mxu0 0.0
      %6308 = vmatpush1.msra.mxu0 0.0
      %6309 = vmatprep.subr.mxu0 0.0
      %6310 = vmatpush1.msra.mxu0 0.0
      %6311 = vmatprep.subr.mxu0 0.0
      %6312 = vmatpush1.msra.mxu0 0.0
      %6313 = vmatprep.subr.mxu0 0.0
      %6314 = vmatpush1.msra.mxu0 0.0
      %6315 = vmatprep.subr.mxu0 0.0
      %6316 = vmatpush1.msra.mxu0 0.0
      %6317 = vmatprep.subr.mxu0 0.0
      %6318 = vmatpush1.msra.mxu0 0.0
      %6319 = vmatprep.subr.mxu0 0.0
      %6320 = vmatpush1.msra.mxu0 0.0
      %6321 = vmatprep.subr.mxu0 0.0
      %6322 = vmatpush1.msra.mxu0 0.0
      %6323 = vmatprep.subr.mxu0 0.0
      %6324 = vmatpush1.msra.mxu0 0.0
      %6325 = vmatprep.subr.mxu0 0.0
      %6326 = vmatpush1.msra.mxu0 0.0
      %6327 = vmatprep.subr.mxu0 0.0
      %6328 = vmatpush1.msra.mxu0 0.0
      %6329 = vmatprep.subr.mxu0 0.0
      %6330 = vmatpush1.msra.mxu0 0.0
      %6331 = vmatprep.subr.mxu0 0.0
      %6332 = vmatpush1.msra.mxu0 0.0
      %6333 = vmatprep.subr.mxu0 0.0
      %6334 = vmatpush1.msra.mxu0 0.0
      %6335 = vmatprep.subr.mxu0 0.0
      %6336 = vmatpush1.msra.mxu0 0.0
      %6337 = vmatprep.subr.mxu0 0.0
      %6338 = vmatpush1.msra.mxu0 0.0
      %6339 = vmatprep.subr.mxu0 0.0
      %6340 = vmatpush1.msra.mxu0 0.0
      %6341 = vmatprep.subr.mxu0 0.0
      %6342 = vmatpush1.msra.mxu0 0.0
      %6343 = vmatprep.subr.mxu0 0.0
      %6344 = vmatpush1.msra.mxu0 0.0
      %6345 = vmatprep.subr.mxu0 0.0
      %6346 = vmatpush1.msra.mxu0 0.0
      %6347 = vmatprep.subr.mxu0 0.0
      %6348 = vmatpush1.msra.mxu0 0.0
      %6349 = vmatprep.subr.mxu0 0.0
      %6350 = vmatpush1.msra.mxu0 0.0
      %6351 = vmatprep.subr.mxu0 0.0
      %6352 = vmatpush1.msra.mxu0 0.0
      %6353 = vmatprep.mubr.f32.mxu0 0.0
      %6354 = vmatmul.mubr.f32.gmra.mrb[0].mxu0 %v6287
      %v6355 = vpop.f32.mrb[0].mxu0
      %v6356 = vadd.f32 0.0, %v6355
      %v6357 = vpop.f32.mrb[0].mxu0
      %v6358 = vadd.f32 0.0, %v6357
      %6359 = vdwg.mxu0
      %v6361 = vsel %vm1745, %v6283, 0
      %6363 = vmatprep.subr.mxu0 %v6282
      %6364 = vmatpush1.msra.mxu0 %v6281
      %6365 = vmatprep.subr.mxu0 0.0
      %6366 = vmatpush1.msra.mxu0 0.0
      %6367 = vmatprep.subr.mxu0 0.0
      %6368 = vmatpush1.msra.mxu0 0.0
      %6369 = vmatprep.subr.mxu0 0.0
      %6370 = vmatpush1.msra.mxu0 0.0
      %6371 = vmatprep.subr.mxu0 0.0
      %6372 = vmatpush1.msra.mxu0 0.0
      %6373 = vmatprep.subr.mxu0 0.0
      %6374 = vmatpush1.msra.mxu0 0.0
      %6375 = vmatprep.subr.mxu0 0.0
      %6376 = vmatpush1.msra.mxu0 0.0
      %6377 = vmatprep.subr.mxu0 0.0
      %6378 = vmatpush1.msra.mxu0 0.0
      %6379 = vmatprep.subr.mxu0 0.0
      %6380 = vmatpush1.msra.mxu0 0.0
      %6381 = vmatprep.subr.mxu0 0.0
      %6382 = vmatpush1.msra.mxu0 0.0
      %6383 = vmatprep.subr.mxu0 0.0
      %6384 = vmatpush1.msra.mxu0 0.0
      %6385 = vmatprep.subr.mxu0 0.0
      %6386 = vmatpush1.msra.mxu0 0.0
      %6387 = vmatprep.subr.mxu0 0.0
      %6388 = vmatpush1.msra.mxu0 0.0
      %6389 = vmatprep.subr.mxu0 0.0
      %6390 = vmatpush1.msra.mxu0 0.0
      %6391 = vmatprep.subr.mxu0 0.0
      %6392 = vmatpush1.msra.mxu0 0.0
      %6393 = vmatprep.subr.mxu0 0.0
      %6394 = vmatpush1.msra.mxu0 0.0
      %6395 = vmatprep.subr.mxu0 0.0
      %6396 = vmatpush1.msra.mxu0 0.0
      %6397 = vmatprep.subr.mxu0 0.0
      %6398 = vmatpush1.msra.mxu0 0.0
      %6399 = vmatprep.subr.mxu0 0.0
      %6400 = vmatpush1.msra.mxu0 0.0
      %6401 = vmatprep.subr.mxu0 0.0
      %6402 = vmatpush1.msra.mxu0 0.0
      %6403 = vmatprep.subr.mxu0 0.0
      %6404 = vmatpush1.msra.mxu0 0.0
      %6405 = vmatprep.subr.mxu0 0.0
      %6406 = vmatpush1.msra.mxu0 0.0
      %6407 = vmatprep.subr.mxu0 0.0
      %6408 = vmatpush1.msra.mxu0 0.0
      %6409 = vmatprep.subr.mxu0 0.0
      %6410 = vmatpush1.msra.mxu0 0.0
      %6411 = vmatprep.subr.mxu0 0.0
      %6412 = vmatpush1.msra.mxu0 0.0
      %6413 = vmatprep.subr.mxu0 0.0
      %6414 = vmatpush1.msra.mxu0 0.0
      %6415 = vmatprep.subr.mxu0 0.0
      %6416 = vmatpush1.msra.mxu0 0.0
      %6417 = vmatprep.subr.mxu0 0.0
      %6418 = vmatpush1.msra.mxu0 0.0
      %6419 = vmatprep.subr.mxu0 0.0
      %6420 = vmatpush1.msra.mxu0 0.0
      %6421 = vmatprep.subr.mxu0 0.0
      %6422 = vmatpush1.msra.mxu0 0.0
      %6423 = vmatprep.subr.mxu0 0.0
      %6424 = vmatpush1.msra.mxu0 0.0
      %6425 = vmatprep.subr.mxu0 0.0
      %6426 = vmatpush1.msra.mxu0 0.0
      %6427 = vmatprep.mubr.f32.mxu0 0.0
      %6428 = vmatmul.mubr.f32.gmra.mrb[0].mxu0 %v6361
      %v6429 = vpop.f32.mrb[0].mxu0
      %v6430 = vadd.f32 %v6356, %v6429
      %v6431 = vpop.f32.mrb[0].mxu0
      %v6432 = vadd.f32 %v6358, %v6431
      %6433 = vdwg.mxu0
      %6434 = vrot.lane.b32.xlu0 %v6258, 15
      %v6435 = vpop.permute.xlu0 %6434
      %6437 = vrot.lane.b32.xlu0 %v6261, 15
      %v6438 = vpop.permute.xlu0 %6437
      %v6439 = vsel %vm991, %v6438, %v6435
      %v6442 = vsel %vm991, %v6435, %v6438
      %6443 = vrot.lane.b32.xlu0 %v6261, 127
      %v6444 = vpop.permute.xlu0 %6443
      %6445 = vrot.lane.b32.xlu0 %v6258, 127
      %v6446 = vpop.permute.xlu0 %6445
      %v6447 = vsel %vm1000, %v6444, %v6446
      %v6451 = vsel %vm1000, %v6446, %v6444
      %v6452 = vsel %vm1022, %v6442, %v6447
      %v6453 = vsel %vm1023, %v6439, %v6451
      %s6454 = scalar_lea.vmem %s18, 16
      %v6455 = vld [vmem:[%s6454] sm:$0xff]
      %v6457 = vsel %vm1745, %v6455, 0
      %6459 = vmatprep.subr.mxu0 %v6453
      %6460 = vmatpush1.msra.mxu0 %v6452
      %6461 = vmatprep.subr.mxu0 0.0
      %6462 = vmatpush1.msra.mxu0 0.0
      %6463 = vmatprep.subr.mxu0 0.0
      %6464 = vmatpush1.msra.mxu0 0.0
      %6465 = vmatprep.subr.mxu0 0.0
      %6466 = vmatpush1.msra.mxu0 0.0
      %6467 = vmatprep.subr.mxu0 0.0
      %6468 = vmatpush1.msra.mxu0 0.0
      %6469 = vmatprep.subr.mxu0 0.0
      %6470 = vmatpush1.msra.mxu0 0.0
      %6471 = vmatprep.subr.mxu0 0.0
      %6472 = vmatpush1.msra.mxu0 0.0
      %6473 = vmatprep.subr.mxu0 0.0
      %6474 = vmatpush1.msra.mxu0 0.0
      %6475 = vmatprep.subr.mxu0 0.0
      %6476 = vmatpush1.msra.mxu0 0.0
      %6477 = vmatprep.subr.mxu0 0.0
      %6478 = vmatpush1.msra.mxu0 0.0
      %6479 = vmatprep.subr.mxu0 0.0
      %6480 = vmatpush1.msra.mxu0 0.0
      %6481 = vmatprep.subr.mxu0 0.0
      %6482 = vmatpush1.msra.mxu0 0.0
      %6483 = vmatprep.subr.mxu0 0.0
      %6484 = vmatpush1.msra.mxu0 0.0
      %6485 = vmatprep.subr.mxu0 0.0
      %6486 = vmatpush1.msra.mxu0 0.0
      %6487 = vmatprep.subr.mxu0 0.0
      %6488 = vmatpush1.msra.mxu0 0.0
      %6489 = vmatprep.subr.mxu0 0.0
      %6490 = vmatpush1.msra.mxu0 0.0
      %6491 = vmatprep.subr.mxu0 0.0
      %6492 = vmatpush1.msra.mxu0 0.0
      %6493 = vmatprep.subr.mxu0 0.0
      %6494 = vmatpush1.msra.mxu0 0.0
      %6495 = vmatprep.subr.mxu0 0.0
      %6496 = vmatpush1.msra.mxu0 0.0
      %6497 = vmatprep.subr.mxu0 0.0
      %6498 = vmatpush1.msra.mxu0 0.0
      %6499 = vmatprep.subr.mxu0 0.0
      %6500 = vmatpush1.msra.mxu0 0.0
      %6501 = vmatprep.subr.mxu0 0.0
      %6502 = vmatpush1.msra.mxu0 0.0
      %6503 = vmatprep.subr.mxu0 0.0
      %6504 = vmatpush1.msra.mxu0 0.0
      %6505 = vmatprep.subr.mxu0 0.0
      %6506 = vmatpush1.msra.mxu0 0.0
      %6507 = vmatprep.subr.mxu0 0.0
      %6508 = vmatpush1.msra.mxu0 0.0
      %6509 = vmatprep.subr.mxu0 0.0
      %6510 = vmatpush1.msra.mxu0 0.0
      %6511 = vmatprep.subr.mxu0 0.0
      %6512 = vmatpush1.msra.mxu0 0.0
      %6513 = vmatprep.subr.mxu0 0.0
      %6514 = vmatpush1.msra.mxu0 0.0
      %6515 = vmatprep.subr.mxu0 0.0
      %6516 = vmatpush1.msra.mxu0 0.0
      %6517 = vmatprep.subr.mxu0 0.0
      %6518 = vmatpush1.msra.mxu0 0.0
      %6519 = vmatprep.subr.mxu0 0.0
      %6520 = vmatpush1.msra.mxu0 0.0
      %6521 = vmatprep.subr.mxu0 0.0
      %6522 = vmatpush1.msra.mxu0 0.0
      %6523 = vmatprep.mubr.f32.mxu0 0.0
      %6524 = vmatmul.mubr.f32.gmra.mrb[0].mxu0 %v6457
      %v6525 = vpop.f32.mrb[0].mxu0
      %v6526 = vadd.f32 0.0, %v6525
      %v6527 = vpop.f32.mrb[0].mxu0
      %v6528 = vadd.f32 0.0, %v6527
      %6529 = vdwg.mxu0
      %v6530 = vadd.f32 %v6430, %v6526
      %v6531 = vadd.f32 %v6432, %v6528
      %6532 = vrot.lane.b32.xlu0 %v6249, 113
      %v6533 = vpop.permute.xlu0 %6532
      %6534 = vrot.lane.b32.xlu0 %v6250, 113
      %v6535 = vpop.permute.xlu0 %6534
      %v6536 = vsel %vm786, %v6533, %v6535
      %v6540 = vsel %vm786, %v6535, %v6533
      %6541 = vrot.lane.b32.xlu0 %v6250, 1
      %v6542 = vpop.permute.xlu0 %6541
      %6544 = vrot.lane.b32.xlu0 %v6249, 1
      %v6545 = vpop.permute.xlu0 %6544
      %v6546 = vsel %vm797, %v6545, %v6542
      %v6549 = vsel %vm797, %v6542, %v6545
      %v6550 = vsel %vm819, %v6536, %v6549
      %v6551 = vsel %vm820, %v6540, %v6546
      %s6552 = scalar_lea.vmem %s18, 24
      %v6553 = vld [vmem:[%s6552] sm:$0xff]
      %v6555 = vsel %vm1745, %v6553, 0
      %6557 = vmatprep.subr.mxu0 %v6551
      %6558 = vmatpush1.msra.mxu0 %v6550
      %6559 = vmatprep.subr.mxu0 0.0
      %6560 = vmatpush1.msra.mxu0 0.0
      %6561 = vmatprep.subr.mxu0 0.0
      %6562 = vmatpush1.msra.mxu0 0.0
      %6563 = vmatprep.subr.mxu0 0.0
      %6564 = vmatpush1.msra.mxu0 0.0
      %6565 = vmatprep.subr.mxu0 0.0
      %6566 = vmatpush1.msra.mxu0 0.0
      %6567 = vmatprep.subr.mxu0 0.0
      %6568 = vmatpush1.msra.mxu0 0.0
      %6569 = vmatprep.subr.mxu0 0.0
      %6570 = vmatpush1.msra.mxu0 0.0
      %6571 = vmatprep.subr.mxu0 0.0
      %6572 = vmatpush1.msra.mxu0 0.0
      %6573 = vmatprep.subr.mxu0 0.0
      %6574 = vmatpush1.msra.mxu0 0.0
      %6575 = vmatprep.subr.mxu0 0.0
      %6576 = vmatpush1.msra.mxu0 0.0
      %6577 = vmatprep.subr.mxu0 0.0
      %6578 = vmatpush1.msra.mxu0 0.0
      %6579 = vmatprep.subr.mxu0 0.0
      %6580 = vmatpush1.msra.mxu0 0.0
      %6581 = vmatprep.subr.mxu0 0.0
      %6582 = vmatpush1.msra.mxu0 0.0
      %6583 = vmatprep.subr.mxu0 0.0
      %6584 = vmatpush1.msra.mxu0 0.0
      %6585 = vmatprep.subr.mxu0 0.0
      %6586 = vmatpush1.msra.mxu0 0.0
      %6587 = vmatprep.subr.mxu0 0.0
      %6588 = vmatpush1.msra.mxu0 0.0
      %6589 = vmatprep.subr.mxu0 0.0
      %6590 = vmatpush1.msra.mxu0 0.0
      %6591 = vmatprep.subr.mxu0 0.0
      %6592 = vmatpush1.msra.mxu0 0.0
      %6593 = vmatprep.subr.mxu0 0.0
      %6594 = vmatpush1.msra.mxu0 0.0
      %6595 = vmatprep.subr.mxu0 0.0
      %6596 = vmatpush1.msra.mxu0 0.0
      %6597 = vmatprep.subr.mxu0 0.0
      %6598 = vmatpush1.msra.mxu0 0.0
      %6599 = vmatprep.subr.mxu0 0.0
      %6600 = vmatpush1.msra.mxu0 0.0
      %6601 = vmatprep.subr.mxu0 0.0
      %6602 = vmatpush1.msra.mxu0 0.0
      %6603 = vmatprep.subr.mxu0 0.0
      %6604 = vmatpush1.msra.mxu0 0.0
      %6605 = vmatprep.subr.mxu0 0.0
      %6606 = vmatpush1.msra.mxu0 0.0
      %6607 = vmatprep.subr.mxu0 0.0
      %6608 = vmatpush1.msra.mxu0 0.0
      %6609 = vmatprep.subr.mxu0 0.0
      %6610 = vmatpush1.msra.mxu0 0.0
      %6611 = vmatprep.subr.mxu0 0.0
      %6612 = vmatpush1.msra.mxu0 0.0
      %6613 = vmatprep.subr.mxu0 0.0
      %6614 = vmatpush1.msra.mxu0 0.0
      %6615 = vmatprep.subr.mxu0 0.0
      %6616 = vmatpush1.msra.mxu0 0.0
      %6617 = vmatprep.subr.mxu0 0.0
      %6618 = vmatpush1.msra.mxu0 0.0
      %6619 = vmatprep.subr.mxu0 0.0
      %6620 = vmatpush1.msra.mxu0 0.0
      %6621 = vmatprep.mubr.f32.mxu0 0.0
      %6622 = vmatmul.mubr.f32.gmra.mrb[0].mxu0 %v6555
      %v6623 = vpop.f32.mrb[0].mxu0
      %v6624 = vadd.f32 0.0, %v6623
      %v6625 = vpop.f32.mrb[0].mxu0
      %v6626 = vadd.f32 0.0, %v6625
      %6627 = vdwg.mxu0
      %v6628 = vadd.f32 %v6530, %v6624
      %v6629 = vadd.f32 %v6531, %v6626
      %s6630 = scalar_lea.vmem %s18, 32
      %v6631 = vld [vmem:[%s6630] sm:$0xff]
      %v6633 = vsel %vm1745, %v6631, 0
      %6635 = vmatprep.subr.mxu0 %v6250
      %6636 = vmatpush1.msra.mxu0 %v6249
      %6637 = vmatprep.subr.mxu0 0.0
      %6638 = vmatpush1.msra.mxu0 0.0
      %6639 = vmatprep.subr.mxu0 0.0
      %6640 = vmatpush1.msra.mxu0 0.0
      %6641 = vmatprep.subr.mxu0 0.0
      %6642 = vmatpush1.msra.mxu0 0.0
      %6643 = vmatprep.subr.mxu0 0.0
      %6644 = vmatpush1.msra.mxu0 0.0
      %6645 = vmatprep.subr.mxu0 0.0
      %6646 = vmatpush1.msra.mxu0 0.0
      %6647 = vmatprep.subr.mxu0 0.0
      %6648 = vmatpush1.msra.mxu0 0.0
      %6649 = vmatprep.subr.mxu0 0.0
      %6650 = vmatpush1.msra.mxu0 0.0
      %6651 = vmatprep.subr.mxu0 0.0
      %6652 = vmatpush1.msra.mxu0 0.0
      %6653 = vmatprep.subr.mxu0 0.0
      %6654 = vmatpush1.msra.mxu0 0.0
      %6655 = vmatprep.subr.mxu0 0.0
      %6656 = vmatpush1.msra.mxu0 0.0
      %6657 = vmatprep.subr.mxu0 0.0
      %6658 = vmatpush1.msra.mxu0 0.0
      %6659 = vmatprep.subr.mxu0 0.0
      %6660 = vmatpush1.msra.mxu0 0.0
      %6661 = vmatprep.subr.mxu0 0.0
      %6662 = vmatpush1.msra.mxu0 0.0
      %6663 = vmatprep.subr.mxu0 0.0
      %6664 = vmatpush1.msra.mxu0 0.0
      %6665 = vmatprep.subr.mxu0 0.0
      %6666 = vmatpush1.msra.mxu0 0.0
      %6667 = vmatprep.subr.mxu0 0.0
      %6668 = vmatpush1.msra.mxu0 0.0
      %6669 = vmatprep.subr.mxu0 0.0
      %6670 = vmatpush1.msra.mxu0 0.0
      %6671 = vmatprep.subr.mxu0 0.0
      %6672 = vmatpush1.msra.mxu0 0.0
      %6673 = vmatprep.subr.mxu0 0.0
      %6674 = vmatpush1.msra.mxu0 0.0
      %6675 = vmatprep.subr.mxu0 0.0
      %6676 = vmatpush1.msra.mxu0 0.0
      %6677 = vmatprep.subr.mxu0 0.0
      %6678 = vmatpush1.msra.mxu0 0.0
      %6679 = vmatprep.subr.mxu0 0.0
      %6680 = vmatpush1.msra.mxu0 0.0
      %6681 = vmatprep.subr.mxu0 0.0
      %6682 = vmatpush1.msra.mxu0 0.0
      %6683 = vmatprep.subr.mxu0 0.0
      %6684 = vmatpush1.msra.mxu0 0.0
      %6685 = vmatprep.subr.mxu0 0.0
      %6686 = vmatpush1.msra.mxu0 0.0
      %6687 = vmatprep.subr.mxu0 0.0
      %6688 = vmatpush1.msra.mxu0 0.0
      %6689 = vmatprep.subr.mxu0 0.0
      %6690 = vmatpush1.msra.mxu0 0.0
      %6691 = vmatprep.subr.mxu0 0.0
      %6692 = vmatpush1.msra.mxu0 0.0
      %6693 = vmatprep.subr.mxu0 0.0
      %6694 = vmatpush1.msra.mxu0 0.0
      %6695 = vmatprep.subr.mxu0 0.0
      %6696 = vmatpush1.msra.mxu0 0.0
      %6697 = vmatprep.subr.mxu0 0.0
      %6698 = vmatpush1.msra.mxu0 0.0
      %6699 = vmatprep.mubr.f32.mxu0 0.0
      %6700 = vmatmul.mubr.f32.gmra.mrb[0].mxu0 %v6633
      %v6701 = vpop.f32.mrb[0].mxu0
      %v6702 = vadd.f32 0.0, %v6701
      %v6703 = vpop.f32.mrb[0].mxu0
      %v6704 = vadd.f32 0.0, %v6703
      %6705 = vdwg.mxu0
      %v6706 = vadd.f32 %v6628, %v6702
      %v6707 = vadd.f32 %v6629, %v6704
      %6708 = vrot.lane.b32.xlu0 %v6250, 15
      %v6709 = vpop.permute.xlu0 %6708
      %6711 = vrot.lane.b32.xlu0 %v6249, 15
      %v6712 = vpop.permute.xlu0 %6711
      %v6713 = vsel %vm991, %v6712, %v6709
      %v6716 = vsel %vm991, %v6709, %v6712
      %6717 = vrot.lane.b32.xlu0 %v6249, 127
      %v6718 = vpop.permute.xlu0 %6717
      %6719 = vrot.lane.b32.xlu0 %v6250, 127
      %v6720 = vpop.permute.xlu0 %6719
      %v6721 = vsel %vm1000, %v6718, %v6720
      %v6725 = vsel %vm1000, %v6720, %v6718
      %v6726 = vsel %vm1022, %v6716, %v6721
      %v6727 = vsel %vm1023, %v6713, %v6725
      %s6728 = scalar_lea.vmem %s18, 40
      %v6729 = vld [vmem:[%s6728] sm:$0xff]
      %v6731 = vsel %vm1745, %v6729, 0
      %6733 = vmatprep.subr.mxu0 %v6727
      %6734 = vmatpush1.msra.mxu0 %v6726
      %6735 = vmatprep.subr.mxu0 0.0
      %6736 = vmatpush1.msra.mxu0 0.0
      %6737 = vmatprep.subr.mxu0 0.0
      %6738 = vmatpush1.msra.mxu0 0.0
      %6739 = vmatprep.subr.mxu0 0.0
      %6740 = vmatpush1.msra.mxu0 0.0
      %6741 = vmatprep.subr.mxu0 0.0
      %6742 = vmatpush1.msra.mxu0 0.0
      %6743 = vmatprep.subr.mxu0 0.0
      %6744 = vmatpush1.msra.mxu0 0.0
      %6745 = vmatprep.subr.mxu0 0.0
      %6746 = vmatpush1.msra.mxu0 0.0
      %6747 = vmatprep.subr.mxu0 0.0
      %6748 = vmatpush1.msra.mxu0 0.0
      %6749 = vmatprep.subr.mxu0 0.0
      %6750 = vmatpush1.msra.mxu0 0.0
      %6751 = vmatprep.subr.mxu0 0.0
      %6752 = vmatpush1.msra.mxu0 0.0
      %6753 = vmatprep.subr.mxu0 0.0
      %6754 = vmatpush1.msra.mxu0 0.0
      %6755 = vmatprep.subr.mxu0 0.0
      %6756 = vmatpush1.msra.mxu0 0.0
      %6757 = vmatprep.subr.mxu0 0.0
      %6758 = vmatpush1.msra.mxu0 0.0
      %6759 = vmatprep.subr.mxu0 0.0
      %6760 = vmatpush1.msra.mxu0 0.0
      %6761 = vmatprep.subr.mxu0 0.0
      %6762 = vmatpush1.msra.mxu0 0.0
      %6763 = vmatprep.subr.mxu0 0.0
      %6764 = vmatpush1.msra.mxu0 0.0
      %6765 = vmatprep.subr.mxu0 0.0
      %6766 = vmatpush1.msra.mxu0 0.0
      %6767 = vmatprep.subr.mxu0 0.0
      %6768 = vmatpush1.msra.mxu0 0.0
      %6769 = vmatprep.subr.mxu0 0.0
      %6770 = vmatpush1.msra.mxu0 0.0
      %6771 = vmatprep.subr.mxu0 0.0
      %6772 = vmatpush1.msra.mxu0 0.0
      %6773 = vmatprep.subr.mxu0 0.0
      %6774 = vmatpush1.msra.mxu0 0.0
      %6775 = vmatprep.subr.mxu0 0.0
      %6776 = vmatpush1.msra.mxu0 0.0
      %6777 = vmatprep.subr.mxu0 0.0
      %6778 = vmatpush1.msra.mxu0 0.0
      %6779 = vmatprep.subr.mxu0 0.0
      %6780 = vmatpush1.msra.mxu0 0.0
      %6781 = vmatprep.subr.mxu0 0.0
      %6782 = vmatpush1.msra.mxu0 0.0
      %6783 = vmatprep.subr.mxu0 0.0
      %6784 = vmatpush1.msra.mxu0 0.0
      %6785 = vmatprep.subr.mxu0 0.0
      %6786 = vmatpush1.msra.mxu0 0.0
      %6787 = vmatprep.subr.mxu0 0.0
      %6788 = vmatpush1.msra.mxu0 0.0
      %6789 = vmatprep.subr.mxu0 0.0
      %6790 = vmatpush1.msra.mxu0 0.0
      %6791 = vmatprep.subr.mxu0 0.0
      %6792 = vmatpush1.msra.mxu0 0.0
      %6793 = vmatprep.subr.mxu0 0.0
      %6794 = vmatpush1.msra.mxu0 0.0
      %6795 = vmatprep.subr.mxu0 0.0
      %6796 = vmatpush1.msra.mxu0 0.0
      %6797 = vmatprep.mubr.f32.mxu0 0.0
      %6798 = vmatmul.mubr.f32.gmra.mrb[0].mxu0 %v6731
      %v6799 = vpop.f32.mrb[0].mxu0
      %v6800 = vadd.f32 0.0, %v6799
      %v6801 = vpop.f32.mrb[0].mxu0
      %v6802 = vadd.f32 0.0, %v6801
      %6803 = vdwg.mxu0
      %v6804 = vadd.f32 %v6706, %v6800
      %v6805 = vadd.f32 %v6707, %v6802
      %6806 = vrot.lane.b32.xlu0 %v6249, 112
      %v6807 = vpop.permute.xlu0 %6806
      %6808 = vrot.lane.b32.xlu0 %v6250, 112
      %v6809 = vpop.permute.xlu0 %6808
      %v6810 = vsel %vm1404, %v6807, %v6809
      %v6814 = vsel %vm1404, %v6809, %v6807
      %6816 = vrot.lane.b32.xlu0 %v6810, 113
      %v6817 = vpop.permute.xlu0 %6816
      %6818 = vrot.lane.b32.xlu0 %v6814, 113
      %v6819 = vpop.permute.xlu0 %6818
      %v6820 = vsel %vm786, %v6817, %v6819
      %v6824 = vsel %vm786, %v6819, %v6817
      %6825 = vrot.lane.b32.xlu0 %v6814, 1
      %v6826 = vpop.permute.xlu0 %6825
      %6828 = vrot.lane.b32.xlu0 %v6810, 1
      %v6829 = vpop.permute.xlu0 %6828
      %v6830 = vsel %vm797, %v6829, %v6826
      %v6833 = vsel %vm797, %v6826, %v6829
      %v6834 = vsel %vm819, %v6820, %v6833
      %v6835 = vsel %vm820, %v6824, %v6830
      %s6836 = scalar_lea.vmem %s18, 48
      %v6837 = vld [vmem:[%s6836] sm:$0xff]
      %v6839 = vsel %vm1745, %v6837, 0
      %6841 = vmatprep.subr.mxu0 %v6835
      %6842 = vmatpush1.msra.mxu0 %v6834
      %6843 = vmatprep.subr.mxu0 0.0
      %6844 = vmatpush1.msra.mxu0 0.0
      %6845 = vmatprep.subr.mxu0 0.0
      %6846 = vmatpush1.msra.mxu0 0.0
      %6847 = vmatprep.subr.mxu0 0.0
      %6848 = vmatpush1.msra.mxu0 0.0
      %6849 = vmatprep.subr.mxu0 0.0
      %6850 = vmatpush1.msra.mxu0 0.0
      %6851 = vmatprep.subr.mxu0 0.0
      %6852 = vmatpush1.msra.mxu0 0.0
      %6853 = vmatprep.subr.mxu0 0.0
      %6854 = vmatpush1.msra.mxu0 0.0
      %6855 = vmatprep.subr.mxu0 0.0
      %6856 = vmatpush1.msra.mxu0 0.0
      %6857 = vmatprep.subr.mxu0 0.0
      %6858 = vmatpush1.msra.mxu0 0.0
      %6859 = vmatprep.subr.mxu0 0.0
      %6860 = vmatpush1.msra.mxu0 0.0
      %6861 = vmatprep.subr.mxu0 0.0
      %6862 = vmatpush1.msra.mxu0 0.0
      %6863 = vmatprep.subr.mxu0 0.0
      %6864 = vmatpush1.msra.mxu0 0.0
      %6865 = vmatprep.subr.mxu0 0.0
      %6866 = vmatpush1.msra.mxu0 0.0
      %6867 = vmatprep.subr.mxu0 0.0
      %6868 = vmatpush1.msra.mxu0 0.0
      %6869 = vmatprep.subr.mxu0 0.0
      %6870 = vmatpush1.msra.mxu0 0.0
      %6871 = vmatprep.subr.mxu0 0.0
      %6872 = vmatpush1.msra.mxu0 0.0
      %6873 = vmatprep.subr.mxu0 0.0
      %6874 = vmatpush1.msra.mxu0 0.0
      %6875 = vmatprep.subr.mxu0 0.0
      %6876 = vmatpush1.msra.mxu0 0.0
      %6877 = vmatprep.subr.mxu0 0.0
      %6878 = vmatpush1.msra.mxu0 0.0
      %6879 = vmatprep.subr.mxu0 0.0
      %6880 = vmatpush1.msra.mxu0 0.0
      %6881 = vmatprep.subr.mxu0 0.0
      %6882 = vmatpush1.msra.mxu0 0.0
      %6883 = vmatprep.subr.mxu0 0.0
      %6884 = vmatpush1.msra.mxu0 0.0
      %6885 = vmatprep.subr.mxu0 0.0
      %6886 = vmatpush1.msra.mxu0 0.0
      %6887 = vmatprep.subr.mxu0 0.0
      %6888 = vmatpush1.msra.mxu0 0.0
      %6889 = vmatprep.subr.mxu0 0.0
      %6890 = vmatpush1.msra.mxu0 0.0
      %6891 = vmatprep.subr.mxu0 0.0
      %6892 = vmatpush1.msra.mxu0 0.0
      %6893 = vmatprep.subr.mxu0 0.0
      %6894 = vmatpush1.msra.mxu0 0.0
      %6895 = vmatprep.subr.mxu0 0.0
      %6896 = vmatpush1.msra.mxu0 0.0
      %6897 = vmatprep.subr.mxu0 0.0
      %6898 = vmatpush1.msra.mxu0 0.0
      %6899 = vmatprep.subr.mxu0 0.0
      %6900 = vmatpush1.msra.mxu0 0.0
      %6901 = vmatprep.subr.mxu0 0.0
      %6902 = vmatpush1.msra.mxu0 0.0
      %6903 = vmatprep.subr.mxu0 0.0
      %6904 = vmatpush1.msra.mxu0 0.0
      %6905 = vmatprep.mubr.f32.mxu0 0.0
      %6906 = vmatmul.mubr.f32.gmra.mrb[0].mxu0 %v6839
      %v6907 = vpop.f32.mrb[0].mxu0
      %v6908 = vadd.f32 0.0, %v6907
      %v6909 = vpop.f32.mrb[0].mxu0
      %v6910 = vadd.f32 0.0, %v6909
      %6911 = vdwg.mxu0
      %v6912 = vadd.f32 %v6804, %v6908
      %v6913 = vadd.f32 %v6805, %v6910
      %s6914 = scalar_lea.vmem %s18, 56
      %v6915 = vld [vmem:[%s6914] sm:$0xff]
      %v6917 = vsel %vm1745, %v6915, 0
      %6919 = vmatprep.subr.mxu0 %v6814
      %6920 = vmatpush1.msra.mxu0 %v6810
      %6921 = vmatprep.subr.mxu0 0.0
      %6922 = vmatpush1.msra.mxu0 0.0
      %6923 = vmatprep.subr.mxu0 0.0
      %6924 = vmatpush1.msra.mxu0 0.0
      %6925 = vmatprep.subr.mxu0 0.0
      %6926 = vmatpush1.msra.mxu0 0.0
      %6927 = vmatprep.subr.mxu0 0.0
      %6928 = vmatpush1.msra.mxu0 0.0
      %6929 = vmatprep.subr.mxu0 0.0
      %6930 = vmatpush1.msra.mxu0 0.0
      %6931 = vmatprep.subr.mxu0 0.0
      %6932 = vmatpush1.msra.mxu0 0.0
      %6933 = vmatprep.subr.mxu0 0.0
      %6934 = vmatpush1.msra.mxu0 0.0
      %6935 = vmatprep.subr.mxu0 0.0
      %6936 = vmatpush1.msra.mxu0 0.0
      %6937 = vmatprep.subr.mxu0 0.0
      %6938 = vmatpush1.msra.mxu0 0.0
      %6939 = vmatprep.subr.mxu0 0.0
      %6940 = vmatpush1.msra.mxu0 0.0
      %6941 = vmatprep.subr.mxu0 0.0
      %6942 = vmatpush1.msra.mxu0 0.0
      %6943 = vmatprep.subr.mxu0 0.0
      %6944 = vmatpush1.msra.mxu0 0.0
      %6945 = vmatprep.subr.mxu0 0.0
      %6946 = vmatpush1.msra.mxu0 0.0
      %6947 = vmatprep.subr.mxu0 0.0
      %6948 = vmatpush1.msra.mxu0 0.0
      %6949 = vmatprep.subr.mxu0 0.0
      %6950 = vmatpush1.msra.mxu0 0.0
      %6951 = vmatprep.subr.mxu0 0.0
      %6952 = vmatpush1.msra.mxu0 0.0
      %6953 = vmatprep.subr.mxu0 0.0
      %6954 = vmatpush1.msra.mxu0 0.0
      %6955 = vmatprep.subr.mxu0 0.0
      %6956 = vmatpush1.msra.mxu0 0.0
      %6957 = vmatprep.subr.mxu0 0.0
      %6958 = vmatpush1.msra.mxu0 0.0
      %6959 = vmatprep.subr.mxu0 0.0
      %6960 = vmatpush1.msra.mxu0 0.0
      %6961 = vmatprep.subr.mxu0 0.0
      %6962 = vmatpush1.msra.mxu0 0.0
      %6963 = vmatprep.subr.mxu0 0.0
      %6964 = vmatpush1.msra.mxu0 0.0
      %6965 = vmatprep.subr.mxu0 0.0
      %6966 = vmatpush1.msra.mxu0 0.0
      %6967 = vmatprep.subr.mxu0 0.0
      %6968 = vmatpush1.msra.mxu0 0.0
      %6969 = vmatprep.subr.mxu0 0.0
      %6970 = vmatpush1.msra.mxu0 0.0
      %6971 = vmatprep.subr.mxu0 0.0
      %6972 = vmatpush1.msra.mxu0 0.0
      %6973 = vmatprep.subr.mxu0 0.0
      %6974 = vmatpush1.msra.mxu0 0.0
      %6975 = vmatprep.subr.mxu0 0.0
      %6976 = vmatpush1.msra.mxu0 0.0
      %6977 = vmatprep.subr.mxu0 0.0
      %6978 = vmatpush1.msra.mxu0 0.0
      %6979 = vmatprep.subr.mxu0 0.0
      %6980 = vmatpush1.msra.mxu0 0.0
      %6981 = vmatprep.subr.mxu0 0.0
      %6982 = vmatpush1.msra.mxu0 0.0
      %6983 = vmatprep.mubr.f32.mxu0 0.0
      %6984 = vmatmul.mubr.f32.gmra.mrb[0].mxu0 %v6917
      %v6985 = vpop.f32.mrb[0].mxu0
      %v6986 = vadd.f32 0.0, %v6985
      %v6987 = vpop.f32.mrb[0].mxu0
      %v6988 = vadd.f32 0.0, %v6987
      %6989 = vdwg.mxu0
      %v6990 = vadd.f32 %v6912, %v6986
      %v6991 = vadd.f32 %v6913, %v6988
      %6992 = vrot.lane.b32.xlu0 %v6814, 15
      %v6993 = vpop.permute.xlu0 %6992
      %6995 = vrot.lane.b32.xlu0 %v6810, 15
      %v6996 = vpop.permute.xlu0 %6995
      %v6997 = vsel %vm991, %v6996, %v6993
      %v7000 = vsel %vm991, %v6993, %v6996
      %7001 = vrot.lane.b32.xlu0 %v6810, 127
      %v7002 = vpop.permute.xlu0 %7001
      %7003 = vrot.lane.b32.xlu0 %v6814, 127
      %v7004 = vpop.permute.xlu0 %7003
      %v7005 = vsel %vm1000, %v7002, %v7004
      %v7009 = vsel %vm1000, %v7004, %v7002
      %v7010 = vsel %vm1022, %v7000, %v7005
      %v7011 = vsel %vm1023, %v6997, %v7009
      %s7012 = scalar_lea.vmem %s18, 64
      %v7013 = vld [vmem:[%s7012] sm:$0xff]
      %v7015 = vsel %vm1745, %v7013, 0
      %7017 = vmatprep.subr.mxu0 %v7011
      %7018 = vmatpush1.msra.mxu0 %v7010
      %7019 = vmatprep.subr.mxu0 0.0
      %7020 = vmatpush1.msra.mxu0 0.0
      %7021 = vmatprep.subr.mxu0 0.0
      %7022 = vmatpush1.msra.mxu0 0.0
      %7023 = vmatprep.subr.mxu0 0.0
      %7024 = vmatpush1.msra.mxu0 0.0
      %7025 = vmatprep.subr.mxu0 0.0
      %7026 = vmatpush1.msra.mxu0 0.0
      %7027 = vmatprep.subr.mxu0 0.0
      %7028 = vmatpush1.msra.mxu0 0.0
      %7029 = vmatprep.subr.mxu0 0.0
      %7030 = vmatpush1.msra.mxu0 0.0
      %7031 = vmatprep.subr.mxu0 0.0
      %7032 = vmatpush1.msra.mxu0 0.0
      %7033 = vmatprep.subr.mxu0 0.0
      %7034 = vmatpush1.msra.mxu0 0.0
      %7035 = vmatprep.subr.mxu0 0.0
      %7036 = vmatpush1.msra.mxu0 0.0
      %7037 = vmatprep.subr.mxu0 0.0
      %7038 = vmatpush1.msra.mxu0 0.0
      %7039 = vmatprep.subr.mxu0 0.0
      %7040 = vmatpush1.msra.mxu0 0.0
      %7041 = vmatprep.subr.mxu0 0.0
      %7042 = vmatpush1.msra.mxu0 0.0
      %7043 = vmatprep.subr.mxu0 0.0
      %7044 = vmatpush1.msra.mxu0 0.0
      %7045 = vmatprep.subr.mxu0 0.0
      %7046 = vmatpush1.msra.mxu0 0.0
      %7047 = vmatprep.subr.mxu0 0.0
      %7048 = vmatpush1.msra.mxu0 0.0
      %7049 = vmatprep.subr.mxu0 0.0
      %7050 = vmatpush1.msra.mxu0 0.0
      %7051 = vmatprep.subr.mxu0 0.0
      %7052 = vmatpush1.msra.mxu0 0.0
      %7053 = vmatprep.subr.mxu0 0.0
      %7054 = vmatpush1.msra.mxu0 0.0
      %7055 = vmatprep.subr.mxu0 0.0
      %7056 = vmatpush1.msra.mxu0 0.0
      %7057 = vmatprep.subr.mxu0 0.0
      %7058 = vmatpush1.msra.mxu0 0.0
      %7059 = vmatprep.subr.mxu0 0.0
      %7060 = vmatpush1.msra.mxu0 0.0
      %7061 = vmatprep.subr.mxu0 0.0
      %7062 = vmatpush1.msra.mxu0 0.0
      %7063 = vmatprep.subr.mxu0 0.0
      %7064 = vmatpush1.msra.mxu0 0.0
      %7065 = vmatprep.subr.mxu0 0.0
      %7066 = vmatpush1.msra.mxu0 0.0
      %7067 = vmatprep.subr.mxu0 0.0
      %7068 = vmatpush1.msra.mxu0 0.0
      %7069 = vmatprep.subr.mxu0 0.0
      %7070 = vmatpush1.msra.mxu0 0.0
      %7071 = vmatprep.subr.mxu0 0.0
      %7072 = vmatpush1.msra.mxu0 0.0
      %7073 = vmatprep.subr.mxu0 0.0
      %7074 = vmatpush1.msra.mxu0 0.0
      %7075 = vmatprep.subr.mxu0 0.0
      %7076 = vmatpush1.msra.mxu0 0.0
      %7077 = vmatprep.subr.mxu0 0.0
      %7078 = vmatpush1.msra.mxu0 0.0
      %7079 = vmatprep.subr.mxu0 0.0
      %7080 = vmatpush1.msra.mxu0 0.0
      %7081 = vmatprep.mubr.f32.mxu0 0.0
      %7082 = vmatmul.mubr.f32.gmra.mrb[0].mxu0 %v7015
      %v7083 = vpop.f32.mrb[0].mxu0
      %v7084 = vadd.f32 0.0, %v7083
      %v7085 = vpop.f32.mrb[0].mxu0
      %v7086 = vadd.f32 0.0, %v7085
      %7087 = vdwg.mxu0
      %v7088 = vadd.f32 %v6990, %v7084
      %v7089 = vadd.f32 %v6991, %v7086
      %v7090 = vld [vmem:[%s19] sm:$0xff]
      %7092 = vset.pattern.permute.xlu0 0
      %7093 = vperm.xlu0 %7092, %v7090
      %v7094 = vpop.permute.xlu0 %7093
      %v7096 = vadd.f32 %v7088, %v7094
      %v7097 = vadd.f32 %v7089, %v7094
      %v7098 = vmax.f32 %v7096, 0.0
      %v7099 = vmax.f32 %v7097, 0.0
      %v7100 = vld [vmem:[%s20] sm:$0xf]
      %v7101 = vld [vmem:[%s21] sm:$0xf]
      %7103 = vset.pattern.permute.xlu0 0
      %7104 = vperm.xlu0 %7103, %v7101
      %v7105 = vpop.permute.xlu0 %7104
      %v7108 = vsel %vm1745, %v7100, 0
      %7110 = vmatprep.subr.mxu0 %v7099
      %7111 = vmatpush1.msra.mxu0 %v7098
      %7112 = vmatprep.subr.mxu0 0.0
      %7113 = vmatpush1.msra.mxu0 0.0
      %7114 = vmatprep.subr.mxu0 0.0
      %7115 = vmatpush1.msra.mxu0 0.0
      %7116 = vmatprep.subr.mxu0 0.0
      %7117 = vmatpush1.msra.mxu0 0.0
      %7118 = vmatprep.subr.mxu0 0.0
      %7119 = vmatpush1.msra.mxu0 0.0
      %7120 = vmatprep.subr.mxu0 0.0
      %7121 = vmatpush1.msra.mxu0 0.0
      %7122 = vmatprep.subr.mxu0 0.0
      %7123 = vmatpush1.msra.mxu0 0.0
      %7124 = vmatprep.subr.mxu0 0.0
      %7125 = vmatpush1.msra.mxu0 0.0
      %7126 = vmatprep.subr.mxu0 0.0
      %7127 = vmatpush1.msra.mxu0 0.0
      %7128 = vmatprep.subr.mxu0 0.0
      %7129 = vmatpush1.msra.mxu0 0.0
      %7130 = vmatprep.subr.mxu0 0.0
      %7131 = vmatpush1.msra.mxu0 0.0
      %7132 = vmatprep.subr.mxu0 0.0
      %7133 = vmatpush1.msra.mxu0 0.0
      %7134 = vmatprep.subr.mxu0 0.0
      %7135 = vmatpush1.msra.mxu0 0.0
      %7136 = vmatprep.subr.mxu0 0.0
      %7137 = vmatpush1.msra.mxu0 0.0
      %7138 = vmatprep.subr.mxu0 0.0
      %7139 = vmatpush1.msra.mxu0 0.0
      %7140 = vmatprep.subr.mxu0 0.0
      %7141 = vmatpush1.msra.mxu0 0.0
      %7142 = vmatprep.subr.mxu0 0.0
      %7143 = vmatpush1.msra.mxu0 0.0
      %7144 = vmatprep.subr.mxu0 0.0
      %7145 = vmatpush1.msra.mxu0 0.0
      %7146 = vmatprep.subr.mxu0 0.0
      %7147 = vmatpush1.msra.mxu0 0.0
      %7148 = vmatprep.subr.mxu0 0.0
      %7149 = vmatpush1.msra.mxu0 0.0
      %7150 = vmatprep.subr.mxu0 0.0
      %7151 = vmatpush1.msra.mxu0 0.0
      %7152 = vmatprep.subr.mxu0 0.0
      %7153 = vmatpush1.msra.mxu0 0.0
      %7154 = vmatprep.subr.mxu0 0.0
      %7155 = vmatpush1.msra.mxu0 0.0
      %7156 = vmatprep.subr.mxu0 0.0
      %7157 = vmatpush1.msra.mxu0 0.0
      %7158 = vmatprep.subr.mxu0 0.0
      %7159 = vmatpush1.msra.mxu0 0.0
      %7160 = vmatprep.subr.mxu0 0.0
      %7161 = vmatpush1.msra.mxu0 0.0
      %7162 = vmatprep.subr.mxu0 0.0
      %7163 = vmatpush1.msra.mxu0 0.0
      %7164 = vmatprep.subr.mxu0 0.0
      %7165 = vmatpush1.msra.mxu0 0.0
      %7166 = vmatprep.subr.mxu0 0.0
      %7167 = vmatpush1.msra.mxu0 0.0
      %7168 = vmatprep.subr.mxu0 0.0
      %7169 = vmatpush1.msra.mxu0 0.0
      %7170 = vmatprep.subr.mxu0 0.0
      %7171 = vmatpush1.msra.mxu0 0.0
      %7172 = vmatprep.subr.mxu0 0.0
      %7173 = vmatpush1.msra.mxu0 0.0
      %7174 = vmatprep.mubr.f32.mxu0 0.0
      %7175 = vmatmul.mubr.f32.gmra.mrb[0].mxu0 %v7108
      %v7176 = vpop.f32.mrb[0].mxu0
      %v7177 = vadd.f32 %v7105, %v7176
      %v7178 = vpop.f32.mrb[0].mxu0
      %v7179 = vadd.f32 %v7105, %v7178
      %7180 = vdwg.mxu0
      %v7181 = vadd.f32 %v7177, %v764
      %v7182 = vadd.f32 %v7179, %v766
      %v7185 = vcombine.low %v7181, %v7182
      %7187 = vst [vmem:[%s683] sm:$0xff] %v7185
      %p7188 = scmp.lt.s32.totalorder %s33, 1
      %s7189 = scalar_select %p7188, %s33, 1
      %s7190 = smul.addr %s7189, 2
      %s7191 = smul.addr %s7190, 4
      %s7192 = scalar_lea.vmem %s22, %s7191
      // Predicated region
      $region109: #{op_correction.1} parent=107 // pred_check
        %p7193 = pneg %p518
      $region110: #{op_correction.1} parent=107 // pred_check_branch
        %7195 = sbr.rel (%p7193) target = $region112
      $region111: #{op_correction.1} parent=107 // pred_region
        _
      $region112: #{op_correction.1} parent=107 // pred_fallthru
        _
    $region108: #{op_correction.1} parent=5 // pred_fallthru
      _
    %p7196 = scmp.le.s32.totalorder 2, %s28
    // Predicated region
    $region113: #{op_correction.1} parent=5 // pred_check
      %p7197 = pneg %p7196
    $region114: #{op_correction.1} parent=5 // pred_check_branch
      %7199 = sbr.rel (%p7197) target = $region116
    $region115: #{op_correction.1} parent=5 // pred_region
      %s7200 = ssub.s32 %s28, 2
      // Predicated region
      $region117: #{op_correction.1} parent=115 // pred_check
        %p7201 = pneg %p524
      $region118: #{op_correction.1} parent=115 // pred_check_branch
        %7203 = sbr.rel (%p7201) target = $region120
      $region119: #{op_correction.1} parent=115 // pred_region
        %p7204 = scmp.lt.s32.totalorder %s34, 1
        %s7205 = scalar_select %p7204, %s34, 1
        %s7206 = smul.addr %s7205, 2
        %s7207 = smul.addr %s7206, 4
        %s7208 = scalar_lea.vmem %s22, %s7207
      $region120: #{op_correction.1} parent=115 // pred_fallthru
        _
    $region116: #{op_correction.1} parent=5 // pred_fallthru
      _
  $region6: #{op_correction.1} parent=0 // loop_footer
    %s32 = sadd.s32 1, %s28
  $region7: #{op_correction.1} parent=0 // loop_footer_branch
    %27 = sbr.rel target = $region3
  $region8: #{op_correction.1} parent=0 // loop_exit
    _

</llo_original>
